<compile_context>
chip_gen: v7x
topology: tpu7x:2x2x1
jax: 0.10.0
libtpu: 0.0.40
codegen_flags: <defaults>
</compile_context>

<pallas_src>
import math

import jax
import jax.numpy as jnp
from jax.experimental import pallas as pl
from jax.experimental.pallas import tpu as pltpu

# ---------------------------------------------------------------------------
# Model configuration (consistent with the module's __init__)
# ---------------------------------------------------------------------------
CATEGORICAL_DIMS = [10, 8, 6]          # vocab sizes
EMBEDDING_DIMS   = [8, 8, 8]           # per-feature embedding widths
NUMERICAL_DIM    = 8
HIDDEN_UNITS     = [256, 128, 64]
NUM_CAT          = len(CATEGORICAL_DIMS)
TOTAL_EMB_DIM    = sum(EMBEDDING_DIMS)                 # 24
TOTAL_VOCAB      = sum(CATEGORICAL_DIMS)               # 24
INPUT_DIM        = TOTAL_EMB_DIM + NUMERICAL_DIM       # 32

_offs, _acc = [], 0
for _v in CATEGORICAL_DIMS:
    _offs.append(_acc)
    _acc += _v
VOCAB_OFFSETS = tuple(_offs)                           # (0, 10, 18)

LN_EPS = 1e-5
BN_EPS = 1e-5
# BatchNorm1d in eval mode with freshly-initialized running stats
# (mean=0, var=1, weight=1, bias=0) reduces to a scalar scale; it is folded
# into the NEXT layer's weights at param-prep time.
BN_SCALE = 1.0 / math.sqrt(1.0 + BN_EPS)
# TODO(synk): if trained BatchNorm running stats / affine params are ever loaded,
# fold the per-channel (gamma, beta, mean, var) into the weights instead of BN_SCALE.

GELU_APPROX = True            # tanh-GELU -> EUP; set False for exact erf-GELU numerics
TILE_B_DEFAULT = 1024         # multiple of 128; ~<4 MB activations at 2048, VMEM is a non-issue


# ---------------------------------------------------------------------------
# Pallas kernel: embedding (as 3-hot matmul) + full dense chain, one batch tile
# ---------------------------------------------------------------------------
def _tour_mlp_kernel(cat_ref, num_ref,
                     wa_ref, ba_ref, ln_g_ref, ln_b_ref,
                     w1_ref, b1_ref,
                     w2_ref, b2_ref,
                     w3_ref, b3_ref,
                     wh_row_ref, bh_ref,
                     out_ref):
    tile_b = cat_ref.shape[0]
    dot_dtype = wa_ref.dtype

    cat = cat_ref[...]                                               # [T, 3] int32 (offsets pre-added)
    num = num_ref[...]                                               # [T, 8] f32

    # ---- in-kernel "gather": 3-hot encoding over the concatenated vocab ----
    lane = jax.lax.broadcasted_iota(jnp.int32, (tile_b, TOTAL_VOCAB), 1)
    hot = lane == cat[:, 0:1]
    for c in range(1, NUM_CAT):
        hot = jnp.logical_or(hot, lane == cat[:, c:c + 1])
    onehot = hot.astype(jnp.float32)                                 # [T, 24]

    # ---- feature_attention: single fused Linear over [onehot | numericals] ----
    x = jnp.concatenate([onehot, num], axis=-1).astype(dot_dtype)    # [T, 32]
    h = jnp.dot(x, wa_ref[...], preferred_element_type=jnp.float32) + ba_ref[...]

    # LayerNorm -> GELU (dropout = identity in eval)
    mean = jnp.mean(h, axis=-1, keepdims=True)
    var = jnp.mean(jnp.square(h - mean), axis=-1, keepdims=True)
    h = (h - mean) * jax.lax.rsqrt(var + LN_EPS)
    h = h * ln_g_ref[...] + ln_b_ref[...]
    h = jax.nn.gelu(h, approximate=GELU_APPROX)

    # ---- hidden blocks: Linear -> GELU (BN eval scale pre-folded into w2/w3/wh) ----
    for w_ref, b_ref in ((w1_ref, b1_ref), (w2_ref, b2_ref), (w3_ref, b3_ref)):
        h = jnp.dot(h.astype(dot_dtype), w_ref[...],
                    preferred_element_type=jnp.float32) + b_ref[...]
        h = jax.nn.gelu(h, approximate=GELU_APPROX)

    # ---- prediction head: contract over h's last axis (no materialized h.T) ----
    z = jax.lax.dot_general(wh_row_ref[...], h.astype(dot_dtype),
                            dimension_numbers=(((1,), (1,)), ((), ())),
                            preferred_element_type=jnp.float32) + bh_ref[...]
    out_ref[...] = jax.nn.sigmoid(z)                                 # lane-dense [1, T] store


# ---------------------------------------------------------------------------
# Wrapper
# ---------------------------------------------------------------------------
def _round_up(x, m):
    return ((x + m - 1) // m) * m


def _select_tile_b(batch, cap):
    cap = max(128, _round_up(cap, 128))
    b_ceil = _round_up(max(batch, 1), 256)
    # Keep >= 2 grid steps when the batch allows it so dimension_semantics=("parallel",)
    # can shard the batch across v7x's two TensorCores, while still using large tiles
    # (fewer grid steps -> less fixed per-step / MXU weight-push overhead).
    tile = min(cap, max(256, b_ceil // 2))
    return _round_up(tile, 128)


def _const_spec(arr):
    # Full-array VMEM-resident block with a constant index_map: DMA'd once, reused.
    return pl.BlockSpec(arr.shape, lambda i: (0, 0))


def tour_model_forward(categorical_inputs, numerical_inputs, kparams, *, tile_b=TILE_B_DEFAULT):
    """Forward pass. kparams come from prepare_kernel_params()."""
    B = categorical_inputs.shape[0]
    tile_b = _select_tile_b(B, tile_b)
    b_pad = _round_up(B, tile_b)
    num_tiles = b_pad // tile_b

    offs = jnp.asarray(VOCAB_OFFSETS, dtype=jnp.int32)
    cat = categorical_inputs.astype(jnp.int32) + offs[None, :]       # fold vocab offsets on host
    num = numerical_inputs.astype(jnp.float32)
    if b_pad != B:
        cat = jnp.pad(cat, ((0, b_pad - B), (0, 0)))                 # pad rows hit vocab slot 0 (valid)
        num = jnp.pad(num, ((0, b_pad - B), (0, 0)))

    weights = (kparams["wa"], kparams["ba"], kparams["ln_g"], kparams["ln_b"],
               kparams["w1"], kparams["b1"],
               kparams["w2"], kparams["b2"],
               kparams["w3"], kparams["b3"],
               kparams["wh_row"], kparams["bh"])

    in_specs = [
        pl.BlockSpec((tile_b, NUM_CAT), lambda i: (i, 0)),           # categorical indices
        pl.BlockSpec((tile_b, NUMERICAL_DIM), lambda i: (i, 0)),     # numerical features
    ] + [_const_spec(w) for w in weights]                            # VMEM-resident weights

    out_specs = pl.BlockSpec((1, tile_b), lambda i: (0, i))          # lane-dense output slab

    flops_per_row = 2 * (INPUT_DIM * INPUT_DIM
                         + INPUT_DIM * HIDDEN_UNITS[0]
                         + HIDDEN_UNITS[0] * HIDDEN_UNITS[1]
                         + HIDDEN_UNITS[1] * HIDDEN_UNITS[2]
                         + HIDDEN_UNITS[2] * 1)
    trans_per_row = INPUT_DIM + sum(HIDDEN_UNITS) + 1
    weight_bytes = int(sum(int(w.size) * w.dtype.itemsize for w in weights))
    cost = pl.CostEstimate(
        flops=flops_per_row * b_pad,
        transcendentals=trans_per_row * b_pad,
        bytes_accessed=b_pad * (NUM_CAT * 4 + NUMERICAL_DIM * 4 + 4) + weight_bytes,
    )

    out = pl.pallas_call(
        _tour_mlp_kernel,
        out_shape=jax.ShapeDtypeStruct((1, b_pad), jnp.float32),
        grid=(num_tiles,),
        in_specs=in_specs,
        out_specs=out_specs,
        compiler_params=pltpu.CompilerParams(dimension_semantics=("parallel",)),
        cost_estimate=cost,
    )(cat, num, *weights)

    preds = out[0, :B].reshape(B, 1)
    return preds, None


# ---------------------------------------------------------------------------
# Deterministic parameter initialization (mirrors _init_weights)
# ---------------------------------------------------------------------------
def init_params(key):
    keys = iter(jax.random.split(key, 16))

    def kaiming_linear(k, fan_in, fan_out):
        std = math.sqrt(2.0 / fan_in)                  # kaiming_normal_, fan_in, relu
        w = jax.random.normal(k, (fan_in, fan_out), dtype=jnp.float32) * std
        b = jnp.zeros((1, fan_out), dtype=jnp.float32)
        return w, b

    params = {}
    params["emb_tables"] = [
        jax.random.normal(next(keys), (vocab, edim), dtype=jnp.float32) * 0.01
        for vocab, edim in zip(CATEGORICAL_DIMS, EMBEDDING_DIMS)
    ]
    params["wa"], params["ba"] = kaiming_linear(next(keys), INPUT_DIM, INPUT_DIM)
    params["ln_g"] = jnp.ones((1, INPUT_DIM), dtype=jnp.float32)
    params["ln_b"] = jnp.zeros((1, INPUT_DIM), dtype=jnp.float32)
    params["w1"], params["b1"] = kaiming_linear(next(keys), INPUT_DIM, HIDDEN_UNITS[0])
    params["w2"], params["b2"] = kaiming_linear(next(keys), HIDDEN_UNITS[0], HIDDEN_UNITS[1])
    params["w3"], params["b3"] = kaiming_linear(next(keys), HIDDEN_UNITS[1], HIDDEN_UNITS[2])
    params["wh"], params["bh"] = kaiming_linear(next(keys), HIDDEN_UNITS[2], 1)
    return params


def prepare_kernel_params(params, *, dot_dtype=jnp.bfloat16):
    """One-time host-side folding of embeddings + BN eval scale into the Linear weights.

    dot_dtype=bfloat16 stores the matmul operands in bf16 (kernel accumulates in f32 and
    keeps all elementwise math in f32); pass jnp.float32 for exact-mode numerics.
    """
    # Block-diagonal embedding matrix: rows = concatenated vocabularies,
    # cols = concatenated embedding features (matches torch.cat(embeddings, dim=1)).
    blocks = []
    for i, tab in enumerate(params["emb_tables"]):
        left = sum(EMBEDDING_DIMS[:i])
        right = TOTAL_EMB_DIM - left - EMBEDDING_DIMS[i]
        blocks.append(jnp.pad(tab, ((0, 0), (left, right))))
    e_block = jnp.concatenate(blocks, axis=0)                        # [24, 24]

    wa = params["wa"]
    wa_full = jnp.concatenate([e_block @ wa[:TOTAL_EMB_DIM, :],      # gather folded
                               wa[TOTAL_EMB_DIM:, :]], axis=0)       # [32, 32]
    return {
        "wa": wa_full.astype(dot_dtype),
        "ba": params["ba"], "ln_g": params["ln_g"], "ln_b": params["ln_b"],
        "w1": params["w1"].astype(dot_dtype), "b1": params["b1"],
        "w2": (params["w2"] * BN_SCALE).astype(dot_dtype), "b2": params["b2"],  # BN of block 1 folded
        "w3": (params["w3"] * BN_SCALE).astype(dot_dtype), "b3": params["b3"],  # BN of block 2 folded
        "wh_row": (params["wh"] * BN_SCALE).T.astype(dot_dtype),                # [1, 64], BN of block 3 folded
        "bh": params["bh"].reshape(1, 1),
    }


# ---------------------------------------------------------------------------
# Pure-JAX references
# ---------------------------------------------------------------------------
def reference_forward(categorical_inputs, numerical_inputs, params):
    """Exact PyTorch-semantics reference (f32, erf-GELU), uses the RAW params."""
    embs = [tab[categorical_inputs[:, i]] for i, tab in enumerate(params["emb_tables"])]
    x = jnp.concatenate(embs + [numerical_inputs], axis=1).astype(jnp.float32)

    h = x @ params["wa"] + params["ba"]
    mean = jnp.mean(h, axis=-1, keepdims=True)
    var = jnp.mean(jnp.square(h - mean), axis=-1, keepdims=True)
    h = (h - mean) / jnp.sqrt(var + LN_EPS) * params["ln_g"] + params["ln_b"]
    h = jax.nn.gelu(h, approximate=False)
    for w, b in ((params["w1"], params["b1"]),
                 (params["w2"], params["b2"]),
                 (params["w3"], params["b3"])):
        h = jax.nn.gelu(h @ w + b, approximate=False) * BN_SCALE
    z = h @ params["wh"] + params["bh"]
    return jax.nn.sigmoid(z)


def matched_reference_forward(categorical_inputs, numerical_inputs, kparams):
    """Mirrors the kernel's numerics (bf16 dot operands, f32 accum, tanh-GELU)."""
    offs = jnp.asarray(VOCAB_OFFSETS, dtype=jnp.int32)
    idx = categorical_inputs.astype(jnp.int32) + offs[None, :]
    onehot = jax.nn.one_hot(idx, TOTAL_VOCAB, dtype=jnp.float32).sum(axis=1)   # [B, 24]
    x = jnp.concatenate([onehot, numerical_inputs.astype(jnp.float32)], axis=-1)
    dt = kparams["wa"].dtype

    h = jnp.dot(x.astype(dt), kparams["wa"], preferred_element_type=jnp.float32) + kparams["ba"]
    mean = jnp.mean(h, axis=-1, keepdims=True)
    var = jnp.mean(jnp.square(h - mean), axis=-1, keepdims=True)
    h = (h - mean) * jax.lax.rsqrt(var + LN_EPS)
    h = h * kparams["ln_g"] + kparams["ln_b"]
    h = jax.nn.gelu(h, approximate=GELU_APPROX)
    for wk, bk in (("w1", "b1"), ("w2", "b2"), ("w3", "b3")):
        h = jnp.dot(h.astype(dt), kparams[wk], preferred_element_type=jnp.float32) + kparams[bk]
        h = jax.nn.gelu(h, approximate=GELU_APPROX)
    z = jnp.dot(h.astype(dt), kparams["wh_row"].T, preferred_element_type=jnp.float32) + kparams["bh"]
    return jax.nn.sigmoid(z)


# ---------------------------------------------------------------------------
if __name__ == "__main__":
    key = jax.random.PRNGKey(0)
    k_param, k_cat, k_num = jax.random.split(key, 3)

    params = init_params(k_param)
    kparams = prepare_kernel_params(params)          # bf16 matmul operands

    BATCH = 1000   # not a tile multiple: exercises padding + a 2-step grid (2 TCs on v7x)
    cat_keys = jax.random.split(k_cat, NUM_CAT)
    cat_cols = [jax.random.randint(kk, (BATCH, 1), 0, vocab, dtype=jnp.int32)
                for kk, vocab in zip(cat_keys, CATEGORICAL_DIMS)]
    categorical_inputs = jnp.concatenate(cat_cols, axis=1)           # [B, 3] int32
    numerical_inputs = jax.random.normal(k_num, (BATCH, NUMERICAL_DIM),
                                         dtype=jnp.float32)          # [B, 8] f32

    preds, aux = tour_model_forward(categorical_inputs, numerical_inputs, kparams)
    preds = jax.block_until_ready(preds)

    assert preds.shape == (BATCH, 1)
    assert aux is None
    assert bool(jnp.all(jnp.isfinite(preds)))

    ref_matched = matched_reference_forward(categorical_inputs, numerical_inputs, kparams)
    err_matched = float(jnp.max(jnp.abs(preds - ref_matched)))
    assert err_matched < 5e-3, f"kernel vs matched-numerics reference max abs err {err_matched}"

    ref_exact = reference_forward(categorical_inputs, numerical_inputs, params)
    err_exact = float(jnp.max(jnp.abs(preds - ref_exact)))
    # bf16 dot operands + tanh-GELU deviate slightly from PyTorch's default f32 / erf-GELU.
    assert err_exact < 5e-2, f"kernel vs exact reference max abs err {err_exact}"

    print("KERNEL_OK")
</pallas_src>

<mosaic_0001>
module attributes {stable_mosaic.version = 11 : i64} {
  func.func @_tour_mlp_kernel(%arg0: i32, %arg1: memref<512x3xi32, #tpu.memory_space<vmem>>, %arg2: memref<512x8xf32, #tpu.memory_space<vmem>>, %arg3: memref<32x32xbf16, #tpu.memory_space<vmem>>, %arg4: memref<1x32xf32, #tpu.memory_space<vmem>>, %arg5: memref<1x32xf32, #tpu.memory_space<vmem>>, %arg6: memref<1x32xf32, #tpu.memory_space<vmem>>, %arg7: memref<32x256xbf16, #tpu.memory_space<vmem>>, %arg8: memref<1x256xf32, #tpu.memory_space<vmem>>, %arg9: memref<256x128xbf16, #tpu.memory_space<vmem>>, %arg10: memref<1x128xf32, #tpu.memory_space<vmem>>, %arg11: memref<128x64xbf16, #tpu.memory_space<vmem>>, %arg12: memref<1x64xf32, #tpu.memory_space<vmem>>, %arg13: memref<1x64xbf16, #tpu.memory_space<vmem>>, %arg14: memref<1x1xf32, #tpu.memory_space<vmem>>, %arg15: memref<1x512xf32, #tpu.memory_space<vmem>>) attributes {dimension_semantics = [#tpu.dimension_semantics<parallel>], iteration_bounds = array<i64: 2>, scalar_prefetch = 0 : i64, scratch_operands = 0 : i64, tpu.core_type = #tpu.core_type<tc>, window_params = [{transform_indices = @transform_0, window_bounds = array<i64: 512, 3>}, {transform_indices = @transform_1, window_bounds = array<i64: 512, 8>}, {pipeline_mode = #tpu.pipeline_mode<synchronous>, transform_indices = @transform_2, window_bounds = array<i64: 32, 32>}, {pipeline_mode = #tpu.pipeline_mode<synchronous>, transform_indices = @transform_3, window_bounds = array<i64: 1, 32>}, {pipeline_mode = #tpu.pipeline_mode<synchronous>, transform_indices = @transform_4, window_bounds = array<i64: 1, 32>}, {pipeline_mode = #tpu.pipeline_mode<synchronous>, transform_indices = @transform_5, window_bounds = array<i64: 1, 32>}, {pipeline_mode = #tpu.pipeline_mode<synchronous>, transform_indices = @transform_6, window_bounds = array<i64: 32, 256>}, {pipeline_mode = #tpu.pipeline_mode<synchronous>, transform_indices = @transform_7, window_bounds = array<i64: 1, 256>}, {pipeline_mode = #tpu.pipeline_mode<synchronous>, transform_indices = @transform_8, window_bounds = array<i64: 256, 128>}, {pipeline_mode = #tpu.pipeline_mode<synchronous>, transform_indices = @transform_9, window_bounds = array<i64: 1, 128>}, {pipeline_mode = #tpu.pipeline_mode<synchronous>, transform_indices = @transform_10, window_bounds = array<i64: 128, 64>}, {pipeline_mode = #tpu.pipeline_mode<synchronous>, transform_indices = @transform_11, window_bounds = array<i64: 1, 64>}, {pipeline_mode = #tpu.pipeline_mode<synchronous>, transform_indices = @transform_12, window_bounds = array<i64: 1, 64>}, {pipeline_mode = #tpu.pipeline_mode<synchronous>, transform_indices = @transform_13, window_bounds = array<i64: 1, 1>}, {transform_indices = @transform_14, window_bounds = array<i64: 1, 512>}]} {
    %c0 = arith.constant 0 : index
    %c0_0 = arith.constant 0 : index
    %0 = vector.load %arg1[%c0, %c0_0] : memref<512x3xi32, #tpu.memory_space<vmem>>, vector<512x3xi32>
    %c0_1 = arith.constant 0 : index
    %c0_2 = arith.constant 0 : index
    %1 = vector.load %arg2[%c0_1, %c0_2] : memref<512x8xf32, #tpu.memory_space<vmem>>, vector<512x8xf32>
    %2 = tpu.iota {dimensions = array<i32: 1>} : vector<512x24xi32>
    %3 = vector.extract_strided_slice %0 {offsets = [0, 0], sizes = [512, 1], strides = [1, 1]} : vector<512x3xi32> to vector<512x1xi32>
    %4 = vector.broadcast %3 : vector<512x1xi32> to vector<512x24xi32>
    %5 = arith.cmpi eq, %2, %4 : vector<512x24xi32>
    %6 = vector.extract_strided_slice %0 {offsets = [0, 1], sizes = [512, 1], strides = [1, 1]} : vector<512x3xi32> to vector<512x1xi32>
    %7 = vector.broadcast %6 : vector<512x1xi32> to vector<512x24xi32>
    %8 = arith.cmpi eq, %2, %7 : vector<512x24xi32>
    %9 = arith.ori %5, %8 : vector<512x24xi1>
    %10 = vector.extract_strided_slice %0 {offsets = [0, 2], sizes = [512, 1], strides = [1, 1]} : vector<512x3xi32> to vector<512x1xi32>
    %11 = vector.broadcast %10 : vector<512x1xi32> to vector<512x24xi32>
    %12 = arith.cmpi eq, %2, %11 : vector<512x24xi32>
    %13 = arith.ori %9, %12 : vector<512x24xi1>
    %14 = arith.extui %13 : vector<512x24xi1> to vector<512x24xi32>
    %15 = arith.sitofp %14 : vector<512x24xi32> to vector<512x24xf32>
    %16 = tpu.concatenate %15, %1 in 1 : vector<512x24xf32>, vector<512x8xf32> -> vector<512x32xf32>
    %17 = arith.truncf %16 : vector<512x32xf32> to vector<512x32xbf16>
    %c0_3 = arith.constant 0 : index
    %c0_4 = arith.constant 0 : index
    %18 = vector.load %arg3[%c0_3, %c0_4] : memref<32x32xbf16, #tpu.memory_space<vmem>>, vector<32x32xbf16>
    %cst = arith.constant dense<0.000000e+00> : vector<512x32xf32>
    %19 = tpu.matmul %17, %18, %cst {dimension_numbers = #tpu.dot_dimension_numbers<[1], [0], [0], [1], [0, 0, 1, 1], [], []>} : vector<512x32xbf16>, vector<32x32xbf16>, vector<512x32xf32> -> vector<512x32xf32>
    %c0_5 = arith.constant 0 : index
    %c0_6 = arith.constant 0 : index
    %20 = vector.load %arg4[%c0_5, %c0_6] : memref<1x32xf32, #tpu.memory_space<vmem>>, vector<1x32xf32>
    %21 = vector.broadcast %20 : vector<1x32xf32> to vector<512x32xf32>
    %22 = arith.addf %19, %21 : vector<512x32xf32>
    %cst_7 = arith.constant dense<0.000000e+00> : vector<512xf32>
    %23 = vector.multi_reduction <add>, %22, %cst_7 [1] : vector<512x32xf32> to vector<512xf32>
    %24 = vector.shape_cast %23 : vector<512xf32> to vector<512x1xf32>
    %cst_8 = arith.constant 3.200000e+01 : f32
    %25 = vector.broadcast %cst_8 : f32 to vector<512x1xf32>
    %26 = arith.divf %24, %25 : vector<512x1xf32>
    %27 = vector.broadcast %26 : vector<512x1xf32> to vector<512x32xf32>
    %28 = arith.subf %22, %27 : vector<512x32xf32>
    %29 = arith.mulf %28, %28 : vector<512x32xf32>
    %cst_9 = arith.constant dense<0.000000e+00> : vector<512xf32>
    %30 = vector.multi_reduction <add>, %29, %cst_9 [1] : vector<512x32xf32> to vector<512xf32>
    %31 = vector.shape_cast %30 : vector<512xf32> to vector<512x1xf32>
    %cst_10 = arith.constant 3.200000e+01 : f32
    %32 = vector.broadcast %cst_10 : f32 to vector<512x1xf32>
    %33 = arith.divf %31, %32 : vector<512x1xf32>
    %34 = vector.broadcast %26 : vector<512x1xf32> to vector<512x32xf32>
    %35 = arith.subf %22, %34 : vector<512x32xf32>
    %cst_11 = arith.constant 9.99999974E-6 : f32
    %36 = vector.broadcast %cst_11 : f32 to vector<512x1xf32>
    %37 = arith.addf %33, %36 : vector<512x1xf32>
    %38 = math.rsqrt %37 : vector<512x1xf32>
    %39 = vector.broadcast %38 : vector<512x1xf32> to vector<512x32xf32>
    %40 = arith.mulf %35, %39 : vector<512x32xf32>
    %c0_12 = arith.constant 0 : index
    %c0_13 = arith.constant 0 : index
    %41 = vector.load %arg5[%c0_12, %c0_13] : memref<1x32xf32, #tpu.memory_space<vmem>>, vector<1x32xf32>
    %42 = vector.broadcast %41 : vector<1x32xf32> to vector<512x32xf32>
    %43 = arith.mulf %40, %42 : vector<512x32xf32>
    %c0_14 = arith.constant 0 : index
    %c0_15 = arith.constant 0 : index
    %44 = vector.load %arg6[%c0_14, %c0_15] : memref<1x32xf32, #tpu.memory_space<vmem>>, vector<1x32xf32>
    %45 = vector.broadcast %44 : vector<1x32xf32> to vector<512x32xf32>
    %46 = arith.addf %43, %45 : vector<512x32xf32>
    %47 = arith.mulf %46, %46 : vector<512x32xf32>
    %48 = arith.mulf %46, %47 : vector<512x32xf32>
    %cst_16 = arith.constant 4.471500e-02 : f32
    %49 = vector.broadcast %cst_16 : f32 to vector<512x32xf32>
    %50 = arith.mulf %49, %48 : vector<512x32xf32>
    %51 = arith.addf %46, %50 : vector<512x32xf32>
    %cst_17 = arith.constant 0.797884583 : f32
    %52 = vector.broadcast %cst_17 : f32 to vector<512x32xf32>
    %53 = arith.mulf %52, %51 : vector<512x32xf32>
    %54 = math.tanh %53 : vector<512x32xf32>
    %cst_18 = arith.constant 1.000000e+00 : f32
    %55 = vector.broadcast %cst_18 : f32 to vector<512x32xf32>
    %56 = arith.addf %55, %54 : vector<512x32xf32>
    %cst_19 = arith.constant 5.000000e-01 : f32
    %57 = vector.broadcast %cst_19 : f32 to vector<512x32xf32>
    %58 = arith.mulf %57, %56 : vector<512x32xf32>
    %59 = arith.mulf %46, %58 : vector<512x32xf32>
    %60 = arith.truncf %59 : vector<512x32xf32> to vector<512x32xbf16>
    %c0_20 = arith.constant 0 : index
    %c0_21 = arith.constant 0 : index
    %61 = vector.load %arg7[%c0_20, %c0_21] : memref<32x256xbf16, #tpu.memory_space<vmem>>, vector<32x256xbf16>
    %cst_22 = arith.constant dense<0.000000e+00> : vector<512x256xf32>
    %62 = tpu.matmul %60, %61, %cst_22 {dimension_numbers = #tpu.dot_dimension_numbers<[1], [0], [0], [1], [0, 0, 1, 1], [], []>} : vector<512x32xbf16>, vector<32x256xbf16>, vector<512x256xf32> -> vector<512x256xf32>
    %c0_23 = arith.constant 0 : index
    %c0_24 = arith.constant 0 : index
    %63 = vector.load %arg8[%c0_23, %c0_24] : memref<1x256xf32, #tpu.memory_space<vmem>>, vector<1x256xf32>
    %64 = vector.broadcast %63 : vector<1x256xf32> to vector<512x256xf32>
    %65 = arith.addf %62, %64 : vector<512x256xf32>
    %66 = arith.mulf %65, %65 : vector<512x256xf32>
    %67 = arith.mulf %65, %66 : vector<512x256xf32>
    %cst_25 = arith.constant 4.471500e-02 : f32
    %68 = vector.broadcast %cst_25 : f32 to vector<512x256xf32>
    %69 = arith.mulf %68, %67 : vector<512x256xf32>
    %70 = arith.addf %65, %69 : vector<512x256xf32>
    %cst_26 = arith.constant 0.797884583 : f32
    %71 = vector.broadcast %cst_26 : f32 to vector<512x256xf32>
    %72 = arith.mulf %71, %70 : vector<512x256xf32>
    %73 = math.tanh %72 : vector<512x256xf32>
    %cst_27 = arith.constant 1.000000e+00 : f32
    %74 = vector.broadcast %cst_27 : f32 to vector<512x256xf32>
    %75 = arith.addf %74, %73 : vector<512x256xf32>
    %cst_28 = arith.constant 5.000000e-01 : f32
    %76 = vector.broadcast %cst_28 : f32 to vector<512x256xf32>
    %77 = arith.mulf %76, %75 : vector<512x256xf32>
    %78 = arith.mulf %65, %77 : vector<512x256xf32>
    %79 = arith.truncf %78 : vector<512x256xf32> to vector<512x256xbf16>
    %c0_29 = arith.constant 0 : index
    %c0_30 = arith.constant 0 : index
    %80 = vector.load %arg9[%c0_29, %c0_30] : memref<256x128xbf16, #tpu.memory_space<vmem>>, vector<256x128xbf16>
    %cst_31 = arith.constant dense<0.000000e+00> : vector<512x128xf32>
    %81 = tpu.matmul %79, %80, %cst_31 {dimension_numbers = #tpu.dot_dimension_numbers<[1], [0], [0], [1], [0, 0, 1, 1], [], []>} : vector<512x256xbf16>, vector<256x128xbf16>, vector<512x128xf32> -> vector<512x128xf32>
    %c0_32 = arith.constant 0 : index
    %c0_33 = arith.constant 0 : index
    %82 = vector.load %arg10[%c0_32, %c0_33] : memref<1x128xf32, #tpu.memory_space<vmem>>, vector<1x128xf32>
    %83 = vector.broadcast %82 : vector<1x128xf32> to vector<512x128xf32>
    %84 = arith.addf %81, %83 : vector<512x128xf32>
    %85 = arith.mulf %84, %84 : vector<512x128xf32>
    %86 = arith.mulf %84, %85 : vector<512x128xf32>
    %cst_34 = arith.constant 4.471500e-02 : f32
    %87 = vector.broadcast %cst_34 : f32 to vector<512x128xf32>
    %88 = arith.mulf %87, %86 : vector<512x128xf32>
    %89 = arith.addf %84, %88 : vector<512x128xf32>
    %cst_35 = arith.constant 0.797884583 : f32
    %90 = vector.broadcast %cst_35 : f32 to vector<512x128xf32>
    %91 = arith.mulf %90, %89 : vector<512x128xf32>
    %92 = math.tanh %91 : vector<512x128xf32>
    %cst_36 = arith.constant 1.000000e+00 : f32
    %93 = vector.broadcast %cst_36 : f32 to vector<512x128xf32>
    %94 = arith.addf %93, %92 : vector<512x128xf32>
    %cst_37 = arith.constant 5.000000e-01 : f32
    %95 = vector.broadcast %cst_37 : f32 to vector<512x128xf32>
    %96 = arith.mulf %95, %94 : vector<512x128xf32>
    %97 = arith.mulf %84, %96 : vector<512x128xf32>
    %98 = arith.truncf %97 : vector<512x128xf32> to vector<512x128xbf16>
    %c0_38 = arith.constant 0 : index
    %c0_39 = arith.constant 0 : index
    %99 = vector.load %arg11[%c0_38, %c0_39] : memref<128x64xbf16, #tpu.memory_space<vmem>>, vector<128x64xbf16>
    %cst_40 = arith.constant dense<0.000000e+00> : vector<512x64xf32>
    %100 = tpu.matmul %98, %99, %cst_40 {dimension_numbers = #tpu.dot_dimension_numbers<[1], [0], [0], [1], [0, 0, 1, 1], [], []>} : vector<512x128xbf16>, vector<128x64xbf16>, vector<512x64xf32> -> vector<512x64xf32>
    %c0_41 = arith.constant 0 : index
    %c0_42 = arith.constant 0 : index
    %101 = vector.load %arg12[%c0_41, %c0_42] : memref<1x64xf32, #tpu.memory_space<vmem>>, vector<1x64xf32>
    %102 = vector.broadcast %101 : vector<1x64xf32> to vector<512x64xf32>
    %103 = arith.addf %100, %102 : vector<512x64xf32>
    %104 = arith.mulf %103, %103 : vector<512x64xf32>
    %105 = arith.mulf %103, %104 : vector<512x64xf32>
    %cst_43 = arith.constant 4.471500e-02 : f32
    %106 = vector.broadcast %cst_43 : f32 to vector<512x64xf32>
    %107 = arith.mulf %106, %105 : vector<512x64xf32>
    %108 = arith.addf %103, %107 : vector<512x64xf32>
    %cst_44 = arith.constant 0.797884583 : f32
    %109 = vector.broadcast %cst_44 : f32 to vector<512x64xf32>
    %110 = arith.mulf %109, %108 : vector<512x64xf32>
    %111 = math.tanh %110 : vector<512x64xf32>
    %cst_45 = arith.constant 1.000000e+00 : f32
    %112 = vector.broadcast %cst_45 : f32 to vector<512x64xf32>
    %113 = arith.addf %112, %111 : vector<512x64xf32>
    %cst_46 = arith.constant 5.000000e-01 : f32
    %114 = vector.broadcast %cst_46 : f32 to vector<512x64xf32>
    %115 = arith.mulf %114, %113 : vector<512x64xf32>
    %116 = arith.mulf %103, %115 : vector<512x64xf32>
    %c0_47 = arith.constant 0 : index
    %c0_48 = arith.constant 0 : index
    %117 = vector.load %arg13[%c0_47, %c0_48] : memref<1x64xbf16, #tpu.memory_space<vmem>>, vector<1x64xbf16>
    %118 = arith.truncf %116 : vector<512x64xf32> to vector<512x64xbf16>
    %cst_49 = arith.constant dense<0.000000e+00> : vector<1x512xf32>
    %119 = tpu.matmul %117, %118, %cst_49 {dimension_numbers = #tpu.dot_dimension_numbers<[1], [1], [0], [0], [0, 0, 1, 0], [], []>} : vector<1x64xbf16>, vector<512x64xbf16>, vector<1x512xf32> -> vector<1x512xf32>
    %c0_50 = arith.constant 0 : index
    %c0_51 = arith.constant 0 : index
    %120 = vector.load %arg14[%c0_50, %c0_51] : memref<1x1xf32, #tpu.memory_space<vmem>>, vector<1x1xf32>
    %121 = vector.broadcast %120 : vector<1x1xf32> to vector<1x512xf32>
    %122 = arith.addf %119, %121 : vector<1x512xf32>
    %123 = arith.negf %122 : vector<1x512xf32>
    %124 = math.exp %123 : vector<1x512xf32>
    %cst_52 = arith.constant 1.000000e+00 : f32
    %125 = vector.broadcast %cst_52 : f32 to vector<1x512xf32>
    %126 = arith.addf %125, %124 : vector<1x512xf32>
    %127 = arith.divf %125, %126 : vector<1x512xf32>
    %c0_53 = arith.constant 0 : index
    %c0_54 = arith.constant 0 : index
    %128 = vector.load %arg15[%c0_53, %c0_54] : memref<1x512xf32, #tpu.memory_space<vmem>>, vector<1x512xf32>
    tpu.vector_store %arg15[%c0_53, %c0_54], %127 {strides = array<i32>} : memref<1x512xf32, #tpu.memory_space<vmem>>, vector<1x512xf32>,
    return
  }
  func.func @transform_0(%arg0: i32) -> (i32, i32) {
    %c0_i32 = arith.constant 0 : i32
    %c0_i32_0 = arith.constant 0 : i32
    return %arg0, %c0_i32 : i32, i32
  }
  func.func @transform_1(%arg0: i32) -> (i32, i32) {
    %c0_i32 = arith.constant 0 : i32
    %c0_i32_0 = arith.constant 0 : i32
    return %arg0, %c0_i32 : i32, i32
  }
  func.func @transform_2(%arg0: i32) -> (i32, i32) {
    %c0_i32 = arith.constant 0 : i32
    %c0_i32_0 = arith.constant 0 : i32
    %c0_i32_1 = arith.constant 0 : i32
    return %c0_i32, %c0_i32_0 : i32, i32
  }
  func.func @transform_3(%arg0: i32) -> (i32, i32) {
    %c0_i32 = arith.constant 0 : i32
    %c0_i32_0 = arith.constant 0 : i32
    %c0_i32_1 = arith.constant 0 : i32
    return %c0_i32, %c0_i32_0 : i32, i32
  }
  func.func @transform_4(%arg0: i32) -> (i32, i32) {
    %c0_i32 = arith.constant 0 : i32
    %c0_i32_0 = arith.constant 0 : i32
    %c0_i32_1 = arith.constant 0 : i32
    return %c0_i32, %c0_i32_0 : i32, i32
  }
  func.func @transform_5(%arg0: i32) -> (i32, i32) {
    %c0_i32 = arith.constant 0 : i32
    %c0_i32_0 = arith.constant 0 : i32
    %c0_i32_1 = arith.constant 0 : i32
    return %c0_i32, %c0_i32_0 : i32, i32
  }
  func.func @transform_6(%arg0: i32) -> (i32, i32) {
    %c0_i32 = arith.constant 0 : i32
    %c0_i32_0 = arith.constant 0 : i32
    %c0_i32_1 = arith.constant 0 : i32
    return %c0_i32, %c0_i32_0 : i32, i32
  }
  func.func @transform_7(%arg0: i32) -> (i32, i32) {
    %c0_i32 = arith.constant 0 : i32
    %c0_i32_0 = arith.constant 0 : i32
    %c0_i32_1 = arith.constant 0 : i32
    return %c0_i32, %c0_i32_0 : i32, i32
  }
  func.func @transform_8(%arg0: i32) -> (i32, i32) {
    %c0_i32 = arith.constant 0 : i32
    %c0_i32_0 = arith.constant 0 : i32
    %c0_i32_1 = arith.constant 0 : i32
    return %c0_i32, %c0_i32_0 : i32, i32
  }
  func.func @transform_9(%arg0: i32) -> (i32, i32) {
    %c0_i32 = arith.constant 0 : i32
    %c0_i32_0 = arith.constant 0 : i32
    %c0_i32_1 = arith.constant 0 : i32
    return %c0_i32, %c0_i32_0 : i32, i32
  }
  func.func @transform_10(%arg0: i32) -> (i32, i32) {
    %c0_i32 = arith.constant 0 : i32
    %c0_i32_0 = arith.constant 0 : i32
    %c0_i32_1 = arith.constant 0 : i32
    return %c0_i32, %c0_i32_0 : i32, i32
  }
  func.func @transform_11(%arg0: i32) -> (i32, i32) {
    %c0_i32 = arith.constant 0 : i32
    %c0_i32_0 = arith.constant 0 : i32
    %c0_i32_1 = arith.constant 0 : i32
    return %c0_i32, %c0_i32_0 : i32, i32
  }
  func.func @transform_12(%arg0: i32) -> (i32, i32) {
    %c0_i32 = arith.constant 0 : i32
    %c0_i32_0 = arith.constant 0 : i32
    %c0_i32_1 = arith.constant 0 : i32
    return %c0_i32, %c0_i32_0 : i32, i32
  }
  func.func @transform_13(%arg0: i32) -> (i32, i32) {
    %c0_i32 = arith.constant 0 : i32
    %c0_i32_0 = arith.constant 0 : i32
    %c0_i32_1 = arith.constant 0 : i32
    return %c0_i32, %c0_i32_0 : i32, i32
  }
  func.func @transform_14(%arg0: i32) -> (i32, i32) {
    %c0_i32 = arith.constant 0 : i32
    %c0_i32_0 = arith.constant 0 : i32
    return %c0_i32, %arg0 : i32, i32
  }
}

</mosaic_0001>

<llo_original>
// kernel: tpu_custom_call.1
$region0: #{tpu_custom_call.1}
  #allocation0 [shape = 'u32[]', space=smem, size = 0x4, offset = 0x4, fixed_abs, tag = 'smem constant byte address 0x4 - core index']
  #allocation1 [shape = 'u32[144,128]{1,0:T(1,128)}', space=vmem, size = 0x12000, scoped, tag = 'internal scratch']
  #allocation2 [shape = 'f32[1,1]{1,0:T(1,128)S(1)}', space=vmem, size = 0x200, scoped, tag = 'scoped memory for tpu_custom_call.1']
  %s0 = inlined_call_operand.vmem [shape: s32[1024,3], index: 0, kind: input, shape index: {}]
  %s1 = inlined_call_operand.vmem [shape: f32[1024,8], index: 1, kind: input, shape index: {}]
  %s2 = inlined_call_operand.vmem [shape: bf16[32,32], index: 2, kind: input, shape index: {}]
  %s3 = inlined_call_operand.vmem [shape: f32[1,32], index: 3, kind: input, shape index: {}]
  %s4 = inlined_call_operand.vmem [shape: f32[1,32], index: 4, kind: input, shape index: {}]
  %s5 = inlined_call_operand.vmem [shape: f32[1,32], index: 5, kind: input, shape index: {}]
  %s6 = inlined_call_operand.vmem [shape: bf16[32,256], index: 6, kind: input, shape index: {}]
  %s7 = inlined_call_operand.vmem [shape: f32[1,256], index: 7, kind: input, shape index: {}]
  %s8 = inlined_call_operand.vmem [shape: bf16[256,128], index: 8, kind: input, shape index: {}]
  %s9 = inlined_call_operand.vmem [shape: f32[1,128], index: 9, kind: input, shape index: {}]
  %s10 = inlined_call_operand.vmem [shape: bf16[128,64], index: 10, kind: input, shape index: {}]
  %s11 = inlined_call_operand.vmem [shape: f32[1,64], index: 11, kind: input, shape index: {}]
  %s12 = inlined_call_operand.vmem [shape: bf16[1,64], index: 12, kind: input, shape index: {}]
  %s13 = inlined_call_operand.<no memory space> [shape: f32[1,1], index: 13, kind: input, shape index: {}]
  %s14 = inlined_call_operand.hbm [shape: f32[1,1024], index: 14, kind: output, shape index: {}]
  %s15 = sld [smem:[#allocation0]]
  $region89: #{tpu_custom_call.1} parent=0
    _
  %s17 = ssub.s32 1, %s15
  %s18 = scalar_select 0, %s17, %s15
  %v19 = vstv %s13
  %20 = vst [vmem:[#allocation2] sm:$0x1] %v19
  $region1: #{tpu_custom_call.1} parent=0
    #allocation3 [shape = 'u8[4096]{0}', space=vmem, size = 0x1000, scoped, tag = 'output window, operand 0']
    #allocation4 [shape = 's32[2]{0}', space=sflag, size = 0x8, scoped, tag = 'scoped memory for tpu_custom_call.1']
    %21 = vsyncpa [#allocation4], 0
    %s22 = scalar_lea.sflag [#allocation4], 1
    %23 = vsyncpa %s22, 0
    loop: start=0, step=1, limit=4
    $region2: #{tpu_custom_call.1} parent=1 // loop_pre_header
      _
    $region3: #{tpu_custom_call.1} parent=1 // loop_header
      %s25 = sphi 0, %s29
      %p26 = scmp.ge.s32.totalorder %s25, 4
      %s35 = sphi 0, %s37
      %s38 = sphi 0, %s35
      %s39 = sphi 0, %s38
      %s55 = sphi 0, %s39
      %s61 = sphi 0, %s63
      %s64 = sphi 0, %s61
      %s65 = sphi 0, %s64
      %s81 = sphi 0, %s65
      %s85 = sphi 0, %s85
      %s87 = sphi 0, %s85
      %s88 = sphi 0, %s87
      %s102 = sphi 0, %s88
      %s106 = sphi 0, %s106
      %s108 = sphi 0, %s106
      %s109 = sphi 0, %s108
      %s123 = sphi 0, %s109
      %s127 = sphi 0, %s127
      %s129 = sphi 0, %s127
      %s130 = sphi 0, %s129
      %s144 = sphi 0, %s130
      %s148 = sphi 0, %s148
      %s150 = sphi 0, %s148
      %s151 = sphi 0, %s150
      %s165 = sphi 0, %s151
      %s169 = sphi 0, %s169
      %s171 = sphi 0, %s169
      %s172 = sphi 0, %s171
      %s186 = sphi 0, %s172
      %s190 = sphi 0, %s190
      %s192 = sphi 0, %s190
      %s193 = sphi 0, %s192
      %s207 = sphi 0, %s193
      %s211 = sphi 0, %s211
      %s213 = sphi 0, %s211
      %s214 = sphi 0, %s213
      %s228 = sphi 0, %s214
      %s232 = sphi 0, %s232
      %s234 = sphi 0, %s232
      %s235 = sphi 0, %s234
      %s249 = sphi 0, %s235
      %s253 = sphi 0, %s253
      %s255 = sphi 0, %s253
      %s256 = sphi 0, %s255
      %s270 = sphi 0, %s256
      %s274 = sphi 0, %s274
      %s276 = sphi 0, %s274
      %s277 = sphi 0, %s276
      %s291 = sphi 0, %s277
      %s295 = sphi 0, %s295
      %s297 = sphi 0, %s295
      %s298 = sphi 0, %s297
      %s312 = sphi 0, %s298
      %s316 = sphi 0, %s316
      %s318 = sphi 0, %s316
      %s319 = sphi 0, %s318
      %s333 = sphi 0, %s319
      %s339 = sphi 0, %s341
      %s342 = sphi 0, %s339
      %s343 = sphi 0, %s342
      %s359 = sphi 0, %s343
    $region4: #{tpu_custom_call.1} parent=1 // loop_header_branch
      %28 = sbr.rel (%p26) target = $region8
    $region5: #{tpu_custom_call.1} parent=1 // loop_body
      %s30 = ssub.s32 %s25, 1
      %s31 = ssub.s32 %s25, 2
      %s32 = sadd.s32 %s25, 1
      %s33 = ssub.s32 %s25, %s32
      %p34 = scmp.eq.s32.totalorder %s33, 0
      %s36 = sadd.s32 %s35, 1
      %s37 = scalar_select %p34, %s35, %s36
      %p40 = pneg %p34
      %p41 = scmp.eq.s32.totalorder %s25, 1
      %p42 = por %p40, %p41
      %p43 = scmp.ne.s32.totalorder %s35, %s38
      %p44 = scmp.eq.s32.totalorder %s25, 0
      %p45 = por %p43, %p44
      %p46 = scmp.ne.s32.totalorder %s35, %s38
      %p47 = scmp.eq.s32.totalorder %s30, 1
      %p48 = por %p46, %p47
      %p49 = scmp.ne.s32.totalorder %s38, %s39
      %p50 = scmp.eq.s32.totalorder %s30, 0
      %p51 = por %p49, %p50
      %p52 = scmp.ne.s32.totalorder %s38, %s39
      %p53 = scmp.eq.s32.totalorder %s31, 1
      %p54 = por %p52, %p53
      %p56 = scmp.ne.s32.totalorder %s39, %s55
      %p57 = scmp.eq.s32.totalorder %s31, 0
      %p58 = por %p56, %p57
      %s59 = ssub.s32 %s25, %s32
      %p60 = scmp.eq.s32.totalorder %s59, 0
      %s62 = sadd.s32 %s61, 1
      %s63 = scalar_select %p60, %s61, %s62
      %p66 = pneg %p60
      %p67 = scmp.eq.s32.totalorder %s25, 1
      %p68 = por %p66, %p67
      %p69 = scmp.ne.s32.totalorder %s61, %s64
      %p70 = scmp.eq.s32.totalorder %s25, 0
      %p71 = por %p69, %p70
      %p72 = scmp.ne.s32.totalorder %s61, %s64
      %p73 = scmp.eq.s32.totalorder %s30, 1
      %p74 = por %p72, %p73
      %p75 = scmp.ne.s32.totalorder %s64, %s65
      %p76 = scmp.eq.s32.totalorder %s30, 0
      %p77 = por %p75, %p76
      %p78 = scmp.ne.s32.totalorder %s64, %s65
      %p79 = scmp.eq.s32.totalorder %s31, 1
      %p80 = por %p78, %p79
      %p82 = scmp.ne.s32.totalorder %s65, %s81
      %p83 = scmp.eq.s32.totalorder %s31, 0
      %p84 = por %p82, %p83
      %s86 = sadd.s32 %s85, 1
      %p89 = scmp.eq.s32.totalorder %s25, 1
      %p90 = scmp.ne.s32.totalorder %s85, %s87
      %p91 = scmp.eq.s32.totalorder %s25, 0
      %p92 = por %p90, %p91
      %p93 = scmp.ne.s32.totalorder %s85, %s87
      %p94 = scmp.eq.s32.totalorder %s30, 1
      %p95 = por %p93, %p94
      %p96 = scmp.ne.s32.totalorder %s87, %s88
      %p97 = scmp.eq.s32.totalorder %s30, 0
      %p98 = por %p96, %p97
      %p99 = scmp.ne.s32.totalorder %s87, %s88
      %p100 = scmp.eq.s32.totalorder %s31, 1
      %p101 = por %p99, %p100
      %p103 = scmp.ne.s32.totalorder %s88, %s102
      %p104 = scmp.eq.s32.totalorder %s31, 0
      %p105 = por %p103, %p104
      %s107 = sadd.s32 %s106, 1
      %p110 = scmp.eq.s32.totalorder %s25, 1
      %p111 = scmp.ne.s32.totalorder %s106, %s108
      %p112 = scmp.eq.s32.totalorder %s25, 0
      %p113 = por %p111, %p112
      %p114 = scmp.ne.s32.totalorder %s106, %s108
      %p115 = scmp.eq.s32.totalorder %s30, 1
      %p116 = por %p114, %p115
      %p117 = scmp.ne.s32.totalorder %s108, %s109
      %p118 = scmp.eq.s32.totalorder %s30, 0
      %p119 = por %p117, %p118
      %p120 = scmp.ne.s32.totalorder %s108, %s109
      %p121 = scmp.eq.s32.totalorder %s31, 1
      %p122 = por %p120, %p121
      %p124 = scmp.ne.s32.totalorder %s109, %s123
      %p125 = scmp.eq.s32.totalorder %s31, 0
      %p126 = por %p124, %p125
      %s128 = sadd.s32 %s127, 1
      %p131 = scmp.eq.s32.totalorder %s25, 1
      %p132 = scmp.ne.s32.totalorder %s127, %s129
      %p133 = scmp.eq.s32.totalorder %s25, 0
      %p134 = por %p132, %p133
      %p135 = scmp.ne.s32.totalorder %s127, %s129
      %p136 = scmp.eq.s32.totalorder %s30, 1
      %p137 = por %p135, %p136
      %p138 = scmp.ne.s32.totalorder %s129, %s130
      %p139 = scmp.eq.s32.totalorder %s30, 0
      %p140 = por %p138, %p139
      %p141 = scmp.ne.s32.totalorder %s129, %s130
      %p142 = scmp.eq.s32.totalorder %s31, 1
      %p143 = por %p141, %p142
      %p145 = scmp.ne.s32.totalorder %s130, %s144
      %p146 = scmp.eq.s32.totalorder %s31, 0
      %p147 = por %p145, %p146
      %s149 = sadd.s32 %s148, 1
      %p152 = scmp.eq.s32.totalorder %s25, 1
      %p153 = scmp.ne.s32.totalorder %s148, %s150
      %p154 = scmp.eq.s32.totalorder %s25, 0
      %p155 = por %p153, %p154
      %p156 = scmp.ne.s32.totalorder %s148, %s150
      %p157 = scmp.eq.s32.totalorder %s30, 1
      %p158 = por %p156, %p157
      %p159 = scmp.ne.s32.totalorder %s150, %s151
      %p160 = scmp.eq.s32.totalorder %s30, 0
      %p161 = por %p159, %p160
      %p162 = scmp.ne.s32.totalorder %s150, %s151
      %p163 = scmp.eq.s32.totalorder %s31, 1
      %p164 = por %p162, %p163
      %p166 = scmp.ne.s32.totalorder %s151, %s165
      %p167 = scmp.eq.s32.totalorder %s31, 0
      %p168 = por %p166, %p167
      %s170 = sadd.s32 %s169, 1
      %p173 = scmp.eq.s32.totalorder %s25, 1
      %p174 = scmp.ne.s32.totalorder %s169, %s171
      %p175 = scmp.eq.s32.totalorder %s25, 0
      %p176 = por %p174, %p175
      %p177 = scmp.ne.s32.totalorder %s169, %s171
      %p178 = scmp.eq.s32.totalorder %s30, 1
      %p179 = por %p177, %p178
      %p180 = scmp.ne.s32.totalorder %s171, %s172
      %p181 = scmp.eq.s32.totalorder %s30, 0
      %p182 = por %p180, %p181
      %p183 = scmp.ne.s32.totalorder %s171, %s172
      %p184 = scmp.eq.s32.totalorder %s31, 1
      %p185 = por %p183, %p184
      %p187 = scmp.ne.s32.totalorder %s172, %s186
      %p188 = scmp.eq.s32.totalorder %s31, 0
      %p189 = por %p187, %p188
      %s191 = sadd.s32 %s190, 1
      %p194 = scmp.eq.s32.totalorder %s25, 1
      %p195 = scmp.ne.s32.totalorder %s190, %s192
      %p196 = scmp.eq.s32.totalorder %s25, 0
      %p197 = por %p195, %p196
      %p198 = scmp.ne.s32.totalorder %s190, %s192
      %p199 = scmp.eq.s32.totalorder %s30, 1
      %p200 = por %p198, %p199
      %p201 = scmp.ne.s32.totalorder %s192, %s193
      %p202 = scmp.eq.s32.totalorder %s30, 0
      %p203 = por %p201, %p202
      %p204 = scmp.ne.s32.totalorder %s192, %s193
      %p205 = scmp.eq.s32.totalorder %s31, 1
      %p206 = por %p204, %p205
      %p208 = scmp.ne.s32.totalorder %s193, %s207
      %p209 = scmp.eq.s32.totalorder %s31, 0
      %p210 = por %p208, %p209
      %s212 = sadd.s32 %s211, 1
      %p215 = scmp.eq.s32.totalorder %s25, 1
      %p216 = scmp.ne.s32.totalorder %s211, %s213
      %p217 = scmp.eq.s32.totalorder %s25, 0
      %p218 = por %p216, %p217
      %p219 = scmp.ne.s32.totalorder %s211, %s213
      %p220 = scmp.eq.s32.totalorder %s30, 1
      %p221 = por %p219, %p220
      %p222 = scmp.ne.s32.totalorder %s213, %s214
      %p223 = scmp.eq.s32.totalorder %s30, 0
      %p224 = por %p222, %p223
      %p225 = scmp.ne.s32.totalorder %s213, %s214
      %p226 = scmp.eq.s32.totalorder %s31, 1
      %p227 = por %p225, %p226
      %p229 = scmp.ne.s32.totalorder %s214, %s228
      %p230 = scmp.eq.s32.totalorder %s31, 0
      %p231 = por %p229, %p230
      %s233 = sadd.s32 %s232, 1
      %p236 = scmp.eq.s32.totalorder %s25, 1
      %p237 = scmp.ne.s32.totalorder %s232, %s234
      %p238 = scmp.eq.s32.totalorder %s25, 0
      %p239 = por %p237, %p238
      %p240 = scmp.ne.s32.totalorder %s232, %s234
      %p241 = scmp.eq.s32.totalorder %s30, 1
      %p242 = por %p240, %p241
      %p243 = scmp.ne.s32.totalorder %s234, %s235
      %p244 = scmp.eq.s32.totalorder %s30, 0
      %p245 = por %p243, %p244
      %p246 = scmp.ne.s32.totalorder %s234, %s235
      %p247 = scmp.eq.s32.totalorder %s31, 1
      %p248 = por %p246, %p247
      %p250 = scmp.ne.s32.totalorder %s235, %s249
      %p251 = scmp.eq.s32.totalorder %s31, 0
      %p252 = por %p250, %p251
      %s254 = sadd.s32 %s253, 1
      %p257 = scmp.eq.s32.totalorder %s25, 1
      %p258 = scmp.ne.s32.totalorder %s253, %s255
      %p259 = scmp.eq.s32.totalorder %s25, 0
      %p260 = por %p258, %p259
      %p261 = scmp.ne.s32.totalorder %s253, %s255
      %p262 = scmp.eq.s32.totalorder %s30, 1
      %p263 = por %p261, %p262
      %p264 = scmp.ne.s32.totalorder %s255, %s256
      %p265 = scmp.eq.s32.totalorder %s30, 0
      %p266 = por %p264, %p265
      %p267 = scmp.ne.s32.totalorder %s255, %s256
      %p268 = scmp.eq.s32.totalorder %s31, 1
      %p269 = por %p267, %p268
      %p271 = scmp.ne.s32.totalorder %s256, %s270
      %p272 = scmp.eq.s32.totalorder %s31, 0
      %p273 = por %p271, %p272
      %s275 = sadd.s32 %s274, 1
      %p278 = scmp.eq.s32.totalorder %s25, 1
      %p279 = scmp.ne.s32.totalorder %s274, %s276
      %p280 = scmp.eq.s32.totalorder %s25, 0
      %p281 = por %p279, %p280
      %p282 = scmp.ne.s32.totalorder %s274, %s276
      %p283 = scmp.eq.s32.totalorder %s30, 1
      %p284 = por %p282, %p283
      %p285 = scmp.ne.s32.totalorder %s276, %s277
      %p286 = scmp.eq.s32.totalorder %s30, 0
      %p287 = por %p285, %p286
      %p288 = scmp.ne.s32.totalorder %s276, %s277
      %p289 = scmp.eq.s32.totalorder %s31, 1
      %p290 = por %p288, %p289
      %p292 = scmp.ne.s32.totalorder %s277, %s291
      %p293 = scmp.eq.s32.totalorder %s31, 0
      %p294 = por %p292, %p293
      %s296 = sadd.s32 %s295, 1
      %p299 = scmp.eq.s32.totalorder %s25, 1
      %p300 = scmp.ne.s32.totalorder %s295, %s297
      %p301 = scmp.eq.s32.totalorder %s25, 0
      %p302 = por %p300, %p301
      %p303 = scmp.ne.s32.totalorder %s295, %s297
      %p304 = scmp.eq.s32.totalorder %s30, 1
      %p305 = por %p303, %p304
      %p306 = scmp.ne.s32.totalorder %s297, %s298
      %p307 = scmp.eq.s32.totalorder %s30, 0
      %p308 = por %p306, %p307
      %p309 = scmp.ne.s32.totalorder %s297, %s298
      %p310 = scmp.eq.s32.totalorder %s31, 1
      %p311 = por %p309, %p310
      %p313 = scmp.ne.s32.totalorder %s298, %s312
      %p314 = scmp.eq.s32.totalorder %s31, 0
      %p315 = por %p313, %p314
      %s317 = sadd.s32 %s316, 1
      %p320 = scmp.eq.s32.totalorder %s25, 1
      %p321 = scmp.ne.s32.totalorder %s316, %s318
      %p322 = scmp.eq.s32.totalorder %s25, 0
      %p323 = por %p321, %p322
      %p324 = scmp.ne.s32.totalorder %s316, %s318
      %p325 = scmp.eq.s32.totalorder %s30, 1
      %p326 = por %p324, %p325
      %p327 = scmp.ne.s32.totalorder %s318, %s319
      %p328 = scmp.eq.s32.totalorder %s30, 0
      %p329 = por %p327, %p328
      %p330 = scmp.ne.s32.totalorder %s318, %s319
      %p331 = scmp.eq.s32.totalorder %s31, 1
      %p332 = por %p330, %p331
      %p334 = scmp.ne.s32.totalorder %s319, %s333
      %p335 = scmp.eq.s32.totalorder %s31, 0
      %p336 = por %p334, %p335
      %s337 = ssub.s32 %s25, %s32
      %p338 = scmp.eq.s32.totalorder %s337, 0
      %s340 = sadd.s32 %s339, 1
      %s341 = scalar_select %p338, %s339, %s340
      %p344 = pneg %p338
      %p345 = scmp.eq.s32.totalorder %s25, 1
      %p346 = por %p344, %p345
      %p347 = scmp.ne.s32.totalorder %s339, %s342
      %p348 = scmp.eq.s32.totalorder %s25, 0
      %p349 = por %p347, %p348
      %p350 = scmp.ne.s32.totalorder %s339, %s342
      %p351 = scmp.eq.s32.totalorder %s30, 1
      %p352 = por %p350, %p351
      %p353 = scmp.ne.s32.totalorder %s342, %s343
      %p354 = scmp.eq.s32.totalorder %s30, 0
      %p355 = por %p353, %p354
      %p356 = scmp.ne.s32.totalorder %s342, %s343
      %p357 = scmp.eq.s32.totalorder %s31, 1
      %p358 = por %p356, %p357
      %p360 = scmp.ne.s32.totalorder %s343, %s359
      %p361 = scmp.eq.s32.totalorder %s31, 0
      %p362 = por %p360, %p361
      %p363 = scmp.le.s32.totalorder 1, %s25
      %p364 = scmp.lt.s32.totalorder %s25, 3
      %p365 = pnand %p363, %p364
      %p366 = pneg %p365
      // Predicated region
      $region9: #{tpu_custom_call.1} parent=5 // pred_check
        _
      $region10: #{tpu_custom_call.1} parent=5 // pred_check_branch
        %368 = sbr.rel (%p365) target = $region12
      $region11: #{tpu_custom_call.1} parent=5 // pred_region
        %s369 = ssub.s32 %s25, 1
        // Predicated region
        $region13: #{tpu_custom_call.1} parent=11 // pred_check
          %p370 = pneg %p98
        $region14: #{tpu_custom_call.1} parent=11 // pred_check_branch
          %372 = sbr.rel (%p370) target = $region16
        $region15: #{tpu_custom_call.1} parent=11 // pred_region
          _
        $region16: #{tpu_custom_call.1} parent=11 // pred_fallthru
          _
        // Predicated region
        $region17: #{tpu_custom_call.1} parent=11 // pred_check
          %p373 = pneg %p119
        $region18: #{tpu_custom_call.1} parent=11 // pred_check_branch
          %375 = sbr.rel (%p373) target = $region20
        $region19: #{tpu_custom_call.1} parent=11 // pred_region
          _
        $region20: #{tpu_custom_call.1} parent=11 // pred_fallthru
          _
        // Predicated region
        $region21: #{tpu_custom_call.1} parent=11 // pred_check
          %p376 = pneg %p140
        $region22: #{tpu_custom_call.1} parent=11 // pred_check_branch
          %378 = sbr.rel (%p376) target = $region24
        $region23: #{tpu_custom_call.1} parent=11 // pred_region
          _
        $region24: #{tpu_custom_call.1} parent=11 // pred_fallthru
          _
        // Predicated region
        $region25: #{tpu_custom_call.1} parent=11 // pred_check
          %p379 = pneg %p161
        $region26: #{tpu_custom_call.1} parent=11 // pred_check_branch
          %381 = sbr.rel (%p379) target = $region28
        $region27: #{tpu_custom_call.1} parent=11 // pred_region
          _
        $region28: #{tpu_custom_call.1} parent=11 // pred_fallthru
          _
        // Predicated region
        $region29: #{tpu_custom_call.1} parent=11 // pred_check
          %p382 = pneg %p182
        $region30: #{tpu_custom_call.1} parent=11 // pred_check_branch
          %384 = sbr.rel (%p382) target = $region32
        $region31: #{tpu_custom_call.1} parent=11 // pred_region
          _
        $region32: #{tpu_custom_call.1} parent=11 // pred_fallthru
          _
        // Predicated region
        $region33: #{tpu_custom_call.1} parent=11 // pred_check
          %p385 = pneg %p203
        $region34: #{tpu_custom_call.1} parent=11 // pred_check_branch
          %387 = sbr.rel (%p385) target = $region36
        $region35: #{tpu_custom_call.1} parent=11 // pred_region
          _
        $region36: #{tpu_custom_call.1} parent=11 // pred_fallthru
          _
        // Predicated region
        $region37: #{tpu_custom_call.1} parent=11 // pred_check
          %p388 = pneg %p224
        $region38: #{tpu_custom_call.1} parent=11 // pred_check_branch
          %390 = sbr.rel (%p388) target = $region40
        $region39: #{tpu_custom_call.1} parent=11 // pred_region
          _
        $region40: #{tpu_custom_call.1} parent=11 // pred_fallthru
          _
        // Predicated region
        $region41: #{tpu_custom_call.1} parent=11 // pred_check
          %p391 = pneg %p245
        $region42: #{tpu_custom_call.1} parent=11 // pred_check_branch
          %393 = sbr.rel (%p391) target = $region44
        $region43: #{tpu_custom_call.1} parent=11 // pred_region
          _
        $region44: #{tpu_custom_call.1} parent=11 // pred_fallthru
          _
        // Predicated region
        $region45: #{tpu_custom_call.1} parent=11 // pred_check
          %p394 = pneg %p266
        $region46: #{tpu_custom_call.1} parent=11 // pred_check_branch
          %396 = sbr.rel (%p394) target = $region48
        $region47: #{tpu_custom_call.1} parent=11 // pred_region
          _
        $region48: #{tpu_custom_call.1} parent=11 // pred_fallthru
          _
        // Predicated region
        $region49: #{tpu_custom_call.1} parent=11 // pred_check
          %p397 = pneg %p287
        $region50: #{tpu_custom_call.1} parent=11 // pred_check_branch
          %399 = sbr.rel (%p397) target = $region52
        $region51: #{tpu_custom_call.1} parent=11 // pred_region
          _
        $region52: #{tpu_custom_call.1} parent=11 // pred_fallthru
          _
        // Predicated region
        $region53: #{tpu_custom_call.1} parent=11 // pred_check
          %p400 = pneg %p308
        $region54: #{tpu_custom_call.1} parent=11 // pred_check_branch
          %402 = sbr.rel (%p400) target = $region56
        $region55: #{tpu_custom_call.1} parent=11 // pred_region
          _
        $region56: #{tpu_custom_call.1} parent=11 // pred_fallthru
          _
        // Predicated region
        $region57: #{tpu_custom_call.1} parent=11 // pred_check
          %p403 = pneg %p329
        $region58: #{tpu_custom_call.1} parent=11 // pred_check_branch
          %405 = sbr.rel (%p403) target = $region60
        $region59: #{tpu_custom_call.1} parent=11 // pred_region
          _
        $region60: #{tpu_custom_call.1} parent=11 // pred_fallthru
          _
      $region12: #{tpu_custom_call.1} parent=5 // pred_fallthru
        _
      %p406 = scmp.lt.s32.totalorder %s25, 2
      // Predicated region
      $region61: #{tpu_custom_call.1} parent=5 // pred_check
        %p407 = pneg %p406
      $region62: #{tpu_custom_call.1} parent=5 // pred_check_branch
        %409 = sbr.rel (%p407) target = $region64
      $region63: #{tpu_custom_call.1} parent=5 // pred_region
        // Predicated region
        $region65: #{tpu_custom_call.1} parent=63 // pred_check
          %p410 = pneg %p45
        $region66: #{tpu_custom_call.1} parent=63 // pred_check_branch
          %412 = sbr.rel (%p410) target = $region68
        $region67: #{tpu_custom_call.1} parent=63 // pred_region
          %s413 = smul.u32 64, %s25
          %p414 = scmp.lt.s32.totalorder %s413, 127
          %s415 = scalar_select %p414, %s413, 127
          %s416 = smul.addr %s415, 8
          %s417 = scalar_lea.vmem %s0, %s416
          %s418 = smul.u32 64, %s25
        $region68: #{tpu_custom_call.1} parent=63 // pred_fallthru
          _
        // Predicated region
        $region69: #{tpu_custom_call.1} parent=63 // pred_check
          %p419 = pneg %p71
        $region70: #{tpu_custom_call.1} parent=63 // pred_check_branch
          %421 = sbr.rel (%p419) target = $region72
        $region71: #{tpu_custom_call.1} parent=63 // pred_region
          %s422 = smul.u32 64, %s25
          %p423 = scmp.lt.s32.totalorder %s422, 127
          %s424 = scalar_select %p423, %s422, 127
          %s425 = smul.addr %s424, 8
          %s426 = scalar_lea.vmem %s1, %s425
          %s427 = smul.u32 64, %s25
        $region72: #{tpu_custom_call.1} parent=63 // pred_fallthru
          _
      $region64: #{tpu_custom_call.1} parent=5 // pred_fallthru
        _
      %p428 = scmp.le.s32.totalorder 1, %s25
      %p429 = scmp.lt.s32.totalorder %s25, 3
      %p430 = pnand %p428, %p429
      %p431 = pneg %p430
      // Predicated region
      $region73: #{tpu_custom_call.1} parent=5 // pred_check
        _
      $region74: #{tpu_custom_call.1} parent=5 // pred_check_branch
        %433 = sbr.rel (%p430) target = $region76
      $region75: #{tpu_custom_call.1} parent=5 // pred_region
        %s434 = ssub.s32 %s25, 1
        %s435 = smul.u32 64, %s30
        %p436 = scmp.lt.s32.totalorder %s435, 127
        %s437 = scalar_select %p436, %s435, 127
        %s438 = smul.addr %s437, 8
        %s439 = scalar_lea.vmem %s0, %s438
        %p440 = pneg %p51
        %p441 = pneg %p48
        %s442 = smul.u32 64, %s30
        %p443 = scmp.lt.s32.totalorder %s442, 127
        %s444 = scalar_select %p443, %s442, 127
        %s445 = smul.addr %s444, 8
        %s446 = scalar_lea.vmem %s1, %s445
        %p447 = pneg %p77
        %p448 = pneg %p74
        %p449 = pneg %p98
        %p450 = pneg %p95
        %p451 = pneg %p119
        %p452 = pneg %p116
        %p453 = pneg %p140
        %p454 = pneg %p137
        %p455 = pneg %p161
        %p456 = pneg %p158
        %p457 = pneg %p182
        %p458 = pneg %p179
        %p459 = pneg %p203
        %p460 = pneg %p200
        %p461 = pneg %p224
        %p462 = pneg %p221
        %p463 = pneg %p245
        %p464 = pneg %p242
        %p465 = pneg %p266
        %p466 = pneg %p263
        %p467 = pneg %p287
        %p468 = pneg %p284
        %p469 = pneg %p308
        %p470 = pneg %p305
        %p471 = pneg %p329
        %p472 = pneg %p326
        %p473 = pneg %p355
        %p474 = pneg %p352
        %s475 = sand.u32 %s342, 1
        %s476 = scalar_lea.sflag [#allocation4], %s475
        %s477 = sand.u32 %s342, 1
        %s478 = smul.addr %s477, 4
        %s479 = scalar_lea.vmem [#allocation3], %s478
        %s480 = smul.u32 64, %s30
        %p481 = scmp.lt.s32.totalorder %s480, 127
        %s482 = scalar_select %p481, %s480, 127
        %s483 = smul.addr %s482, 8
        %s484 = scalar_lea.vmem %s0, %s483
        %s485 = smul.u32 64, %s30
        %s486 = smul.u32 64, %s30
        %p487 = scmp.lt.s32.totalorder %s486, 127
        %s488 = scalar_select %p487, %s486, 127
        %s489 = smul.addr %s488, 8
        %s490 = scalar_lea.vmem %s1, %s489
        %s491 = smul.u32 64, %s30
        %s492 = smul.u32 4, %s30
        %v494 = vld [vmem:[%s484] sm:$0xff]
        %v495 = vld [vmem:[%s484 + $0x8] sm:$0xff]
        %v496 = vld [vmem:[%s484 + $0x10] sm:$0xff]
        %v497 = vld [vmem:[%s484 + $0x18] sm:$0xff]
        %v498 = vld [vmem:[%s484 + $0x20] sm:$0xff]
        %v499 = vld [vmem:[%s484 + $0x28] sm:$0xff]
        %v500 = vld [vmem:[%s484 + $0x30] sm:$0xff]
        %v501 = vld [vmem:[%s484 + $0x38] sm:$0xff]
        %v502 = vld [vmem:[%s484 + $0x40] sm:$0xff]
        %v503 = vld [vmem:[%s484 + $0x48] sm:$0xff]
        %v504 = vld [vmem:[%s484 + $0x50] sm:$0xff]
        %v505 = vld [vmem:[%s484 + $0x58] sm:$0xff]
        %v506 = vld [vmem:[%s484 + $0x60] sm:$0xff]
        %v507 = vld [vmem:[%s484 + $0x68] sm:$0xff]
        %v508 = vld [vmem:[%s484 + $0x70] sm:$0xff]
        %v509 = vld [vmem:[%s484 + $0x78] sm:$0xff]
        %v510 = vld [vmem:[%s484 + $0x80] sm:$0xff]
        %v511 = vld [vmem:[%s484 + $0x88] sm:$0xff]
        %v512 = vld [vmem:[%s484 + $0x90] sm:$0xff]
        %v513 = vld [vmem:[%s484 + $0x98] sm:$0xff]
        %v514 = vld [vmem:[%s484 + $0xa0] sm:$0xff]
        %v515 = vld [vmem:[%s484 + $0xa8] sm:$0xff]
        %v516 = vld [vmem:[%s484 + $0xb0] sm:$0xff]
        %v517 = vld [vmem:[%s484 + $0xb8] sm:$0xff]
        %v518 = vld [vmem:[%s484 + $0xc0] sm:$0xff]
        %v519 = vld [vmem:[%s484 + $0xc8] sm:$0xff]
        %v520 = vld [vmem:[%s484 + $0xd0] sm:$0xff]
        %v521 = vld [vmem:[%s484 + $0xd8] sm:$0xff]
        %v522 = vld [vmem:[%s484 + $0xe0] sm:$0xff]
        %v523 = vld [vmem:[%s484 + $0xe8] sm:$0xff]
        %v524 = vld [vmem:[%s484 + $0xf0] sm:$0xff]
        %v525 = vld [vmem:[%s484 + $0xf8] sm:$0xff]
        %v526 = vld [vmem:[%s484 + $0x100] sm:$0xff]
        %v527 = vld [vmem:[%s484 + $0x108] sm:$0xff]
        %v528 = vld [vmem:[%s484 + $0x110] sm:$0xff]
        %v529 = vld [vmem:[%s484 + $0x118] sm:$0xff]
        %v530 = vld [vmem:[%s484 + $0x120] sm:$0xff]
        %v531 = vld [vmem:[%s484 + $0x128] sm:$0xff]
        %v532 = vld [vmem:[%s484 + $0x130] sm:$0xff]
        %v533 = vld [vmem:[%s484 + $0x138] sm:$0xff]
        %v534 = vld [vmem:[%s484 + $0x140] sm:$0xff]
        %v535 = vld [vmem:[%s484 + $0x148] sm:$0xff]
        %v536 = vld [vmem:[%s484 + $0x150] sm:$0xff]
        %v537 = vld [vmem:[%s484 + $0x158] sm:$0xff]
        %v538 = vld [vmem:[%s484 + $0x160] sm:$0xff]
        %v539 = vld [vmem:[%s484 + $0x168] sm:$0xff]
        %v540 = vld [vmem:[%s484 + $0x170] sm:$0xff]
        %v541 = vld [vmem:[%s484 + $0x178] sm:$0xff]
        %v542 = vld [vmem:[%s484 + $0x180] sm:$0xff]
        %v543 = vld [vmem:[%s484 + $0x188] sm:$0xff]
        %v544 = vld [vmem:[%s484 + $0x190] sm:$0xff]
        %v545 = vld [vmem:[%s484 + $0x198] sm:$0xff]
        %v546 = vld [vmem:[%s484 + $0x1a0] sm:$0xff]
        %v547 = vld [vmem:[%s484 + $0x1a8] sm:$0xff]
        %v548 = vld [vmem:[%s484 + $0x1b0] sm:$0xff]
        %v549 = vld [vmem:[%s484 + $0x1b8] sm:$0xff]
        %v550 = vld [vmem:[%s484 + $0x1c0] sm:$0xff]
        %v551 = vld [vmem:[%s484 + $0x1c8] sm:$0xff]
        %v552 = vld [vmem:[%s484 + $0x1d0] sm:$0xff]
        %v553 = vld [vmem:[%s484 + $0x1d8] sm:$0xff]
        %v554 = vld [vmem:[%s484 + $0x1e0] sm:$0xff]
        %v555 = vld [vmem:[%s484 + $0x1e8] sm:$0xff]
        %v556 = vld [vmem:[%s484 + $0x1f0] sm:$0xff]
        %v557 = vld [vmem:[%s484 + $0x1f8] sm:$0xff]
        %v558 = vld [vmem:[%s490] sm:$0xff]
        %v559 = vld [vmem:[%s490 + $0x8] sm:$0xff]
        %v560 = vld [vmem:[%s490 + $0x10] sm:$0xff]
        %v561 = vld [vmem:[%s490 + $0x18] sm:$0xff]
        %v562 = vld [vmem:[%s490 + $0x20] sm:$0xff]
        %v563 = vld [vmem:[%s490 + $0x28] sm:$0xff]
        %v564 = vld [vmem:[%s490 + $0x30] sm:$0xff]
        %v565 = vld [vmem:[%s490 + $0x38] sm:$0xff]
        %v566 = vld [vmem:[%s490 + $0x40] sm:$0xff]
        %v567 = vld [vmem:[%s490 + $0x48] sm:$0xff]
        %v568 = vld [vmem:[%s490 + $0x50] sm:$0xff]
        %v569 = vld [vmem:[%s490 + $0x58] sm:$0xff]
        %v570 = vld [vmem:[%s490 + $0x60] sm:$0xff]
        %v571 = vld [vmem:[%s490 + $0x68] sm:$0xff]
        %v572 = vld [vmem:[%s490 + $0x70] sm:$0xff]
        %v573 = vld [vmem:[%s490 + $0x78] sm:$0xff]
        %v574 = vld [vmem:[%s490 + $0x80] sm:$0xff]
        %v575 = vld [vmem:[%s490 + $0x88] sm:$0xff]
        %v576 = vld [vmem:[%s490 + $0x90] sm:$0xff]
        %v577 = vld [vmem:[%s490 + $0x98] sm:$0xff]
        %v578 = vld [vmem:[%s490 + $0xa0] sm:$0xff]
        %v579 = vld [vmem:[%s490 + $0xa8] sm:$0xff]
        %v580 = vld [vmem:[%s490 + $0xb0] sm:$0xff]
        %v581 = vld [vmem:[%s490 + $0xb8] sm:$0xff]
        %v582 = vld [vmem:[%s490 + $0xc0] sm:$0xff]
        %v583 = vld [vmem:[%s490 + $0xc8] sm:$0xff]
        %v584 = vld [vmem:[%s490 + $0xd0] sm:$0xff]
        %v585 = vld [vmem:[%s490 + $0xd8] sm:$0xff]
        %v586 = vld [vmem:[%s490 + $0xe0] sm:$0xff]
        %v587 = vld [vmem:[%s490 + $0xe8] sm:$0xff]
        %v588 = vld [vmem:[%s490 + $0xf0] sm:$0xff]
        %v589 = vld [vmem:[%s490 + $0xf8] sm:$0xff]
        %v590 = vld [vmem:[%s490 + $0x100] sm:$0xff]
        %v591 = vld [vmem:[%s490 + $0x108] sm:$0xff]
        %v592 = vld [vmem:[%s490 + $0x110] sm:$0xff]
        %v593 = vld [vmem:[%s490 + $0x118] sm:$0xff]
        %v594 = vld [vmem:[%s490 + $0x120] sm:$0xff]
        %v595 = vld [vmem:[%s490 + $0x128] sm:$0xff]
        %v596 = vld [vmem:[%s490 + $0x130] sm:$0xff]
        %v597 = vld [vmem:[%s490 + $0x138] sm:$0xff]
        %v598 = vld [vmem:[%s490 + $0x140] sm:$0xff]
        %v599 = vld [vmem:[%s490 + $0x148] sm:$0xff]
        %v600 = vld [vmem:[%s490 + $0x150] sm:$0xff]
        %v601 = vld [vmem:[%s490 + $0x158] sm:$0xff]
        %v602 = vld [vmem:[%s490 + $0x160] sm:$0xff]
        %v603 = vld [vmem:[%s490 + $0x168] sm:$0xff]
        %v604 = vld [vmem:[%s490 + $0x170] sm:$0xff]
        %v605 = vld [vmem:[%s490 + $0x178] sm:$0xff]
        %v606 = vld [vmem:[%s490 + $0x180] sm:$0xff]
        %v607 = vld [vmem:[%s490 + $0x188] sm:$0xff]
        %v608 = vld [vmem:[%s490 + $0x190] sm:$0xff]
        %v609 = vld [vmem:[%s490 + $0x198] sm:$0xff]
        %v610 = vld [vmem:[%s490 + $0x1a0] sm:$0xff]
        %v611 = vld [vmem:[%s490 + $0x1a8] sm:$0xff]
        %v612 = vld [vmem:[%s490 + $0x1b0] sm:$0xff]
        %v613 = vld [vmem:[%s490 + $0x1b8] sm:$0xff]
        %v614 = vld [vmem:[%s490 + $0x1c0] sm:$0xff]
        %v615 = vld [vmem:[%s490 + $0x1c8] sm:$0xff]
        %v616 = vld [vmem:[%s490 + $0x1d0] sm:$0xff]
        %v617 = vld [vmem:[%s490 + $0x1d8] sm:$0xff]
        %v618 = vld [vmem:[%s490 + $0x1e0] sm:$0xff]
        %v619 = vld [vmem:[%s490 + $0x1e8] sm:$0xff]
        %v620 = vld [vmem:[%s490 + $0x1f0] sm:$0xff]
        %v621 = vld [vmem:[%s490 + $0x1f8] sm:$0xff]
        %v622 = vlaneseq
        %v623 = vand.u32 %v622, 127
        %624 = vset.pattern.permute.xlu0 0
        %625 = vperm.xlu0 %624, %v494
        %v626 = vpop.permute.xlu0 %625
        %627 = vset.pattern.permute.xlu0 0
        %628 = vperm.xlu0 %627, %v495
        %v629 = vpop.permute.xlu0 %628
        %630 = vset.pattern.permute.xlu0 0
        %631 = vperm.xlu0 %630, %v496
        %v632 = vpop.permute.xlu0 %631
        %633 = vset.pattern.permute.xlu0 0
        %634 = vperm.xlu0 %633, %v497
        %v635 = vpop.permute.xlu0 %634
        %636 = vset.pattern.permute.xlu0 0
        %637 = vperm.xlu0 %636, %v498
        %v638 = vpop.permute.xlu0 %637
        %639 = vset.pattern.permute.xlu0 0
        %640 = vperm.xlu0 %639, %v499
        %v641 = vpop.permute.xlu0 %640
        %642 = vset.pattern.permute.xlu0 0
        %643 = vperm.xlu0 %642, %v500
        %v644 = vpop.permute.xlu0 %643
        %645 = vset.pattern.permute.xlu0 0
        %646 = vperm.xlu0 %645, %v501
        %v647 = vpop.permute.xlu0 %646
        %648 = vset.pattern.permute.xlu0 0
        %649 = vperm.xlu0 %648, %v502
        %v650 = vpop.permute.xlu0 %649
        %651 = vset.pattern.permute.xlu0 0
        %652 = vperm.xlu0 %651, %v503
        %v653 = vpop.permute.xlu0 %652
        %654 = vset.pattern.permute.xlu0 0
        %655 = vperm.xlu0 %654, %v504
        %v656 = vpop.permute.xlu0 %655
        %657 = vset.pattern.permute.xlu0 0
        %658 = vperm.xlu0 %657, %v505
        %v659 = vpop.permute.xlu0 %658
        %660 = vset.pattern.permute.xlu0 0
        %661 = vperm.xlu0 %660, %v506
        %v662 = vpop.permute.xlu0 %661
        %663 = vset.pattern.permute.xlu0 0
        %664 = vperm.xlu0 %663, %v507
        %v665 = vpop.permute.xlu0 %664
        %666 = vset.pattern.permute.xlu0 0
        %667 = vperm.xlu0 %666, %v508
        %v668 = vpop.permute.xlu0 %667
        %669 = vset.pattern.permute.xlu0 0
        %670 = vperm.xlu0 %669, %v509
        %v671 = vpop.permute.xlu0 %670
        %672 = vset.pattern.permute.xlu0 0
        %673 = vperm.xlu0 %672, %v510
        %v674 = vpop.permute.xlu0 %673
        %675 = vset.pattern.permute.xlu0 0
        %676 = vperm.xlu0 %675, %v511
        %v677 = vpop.permute.xlu0 %676
        %678 = vset.pattern.permute.xlu0 0
        %679 = vperm.xlu0 %678, %v512
        %v680 = vpop.permute.xlu0 %679
        %681 = vset.pattern.permute.xlu0 0
        %682 = vperm.xlu0 %681, %v513
        %v683 = vpop.permute.xlu0 %682
        %684 = vset.pattern.permute.xlu0 0
        %685 = vperm.xlu0 %684, %v514
        %v686 = vpop.permute.xlu0 %685
        %687 = vset.pattern.permute.xlu0 0
        %688 = vperm.xlu0 %687, %v515
        %v689 = vpop.permute.xlu0 %688
        %690 = vset.pattern.permute.xlu0 0
        %691 = vperm.xlu0 %690, %v516
        %v692 = vpop.permute.xlu0 %691
        %693 = vset.pattern.permute.xlu0 0
        %694 = vperm.xlu0 %693, %v517
        %v695 = vpop.permute.xlu0 %694
        %696 = vset.pattern.permute.xlu0 0
        %697 = vperm.xlu0 %696, %v518
        %v698 = vpop.permute.xlu0 %697
        %699 = vset.pattern.permute.xlu0 0
        %700 = vperm.xlu0 %699, %v519
        %v701 = vpop.permute.xlu0 %700
        %702 = vset.pattern.permute.xlu0 0
        %703 = vperm.xlu0 %702, %v520
        %v704 = vpop.permute.xlu0 %703
        %705 = vset.pattern.permute.xlu0 0
        %706 = vperm.xlu0 %705, %v521
        %v707 = vpop.permute.xlu0 %706
        %708 = vset.pattern.permute.xlu0 0
        %709 = vperm.xlu0 %708, %v522
        %v710 = vpop.permute.xlu0 %709
        %711 = vset.pattern.permute.xlu0 0
        %712 = vperm.xlu0 %711, %v523
        %v713 = vpop.permute.xlu0 %712
        %714 = vset.pattern.permute.xlu0 0
        %715 = vperm.xlu0 %714, %v524
        %v716 = vpop.permute.xlu0 %715
        %717 = vset.pattern.permute.xlu0 0
        %718 = vperm.xlu0 %717, %v525
        %v719 = vpop.permute.xlu0 %718
        %720 = vset.pattern.permute.xlu0 0
        %721 = vperm.xlu0 %720, %v526
        %v722 = vpop.permute.xlu0 %721
        %723 = vset.pattern.permute.xlu0 0
        %724 = vperm.xlu0 %723, %v527
        %v725 = vpop.permute.xlu0 %724
        %726 = vset.pattern.permute.xlu0 0
        %727 = vperm.xlu0 %726, %v528
        %v728 = vpop.permute.xlu0 %727
        %729 = vset.pattern.permute.xlu0 0
        %730 = vperm.xlu0 %729, %v529
        %v731 = vpop.permute.xlu0 %730
        %732 = vset.pattern.permute.xlu0 0
        %733 = vperm.xlu0 %732, %v530
        %v734 = vpop.permute.xlu0 %733
        %735 = vset.pattern.permute.xlu0 0
        %736 = vperm.xlu0 %735, %v531
        %v737 = vpop.permute.xlu0 %736
        %738 = vset.pattern.permute.xlu0 0
        %739 = vperm.xlu0 %738, %v532
        %v740 = vpop.permute.xlu0 %739
        %741 = vset.pattern.permute.xlu0 0
        %742 = vperm.xlu0 %741, %v533
        %v743 = vpop.permute.xlu0 %742
        %744 = vset.pattern.permute.xlu0 0
        %745 = vperm.xlu0 %744, %v534
        %v746 = vpop.permute.xlu0 %745
        %747 = vset.pattern.permute.xlu0 0
        %748 = vperm.xlu0 %747, %v535
        %v749 = vpop.permute.xlu0 %748
        %750 = vset.pattern.permute.xlu0 0
        %751 = vperm.xlu0 %750, %v536
        %v752 = vpop.permute.xlu0 %751
        %753 = vset.pattern.permute.xlu0 0
        %754 = vperm.xlu0 %753, %v537
        %v755 = vpop.permute.xlu0 %754
        %756 = vset.pattern.permute.xlu0 0
        %757 = vperm.xlu0 %756, %v538
        %v758 = vpop.permute.xlu0 %757
        %759 = vset.pattern.permute.xlu0 0
        %760 = vperm.xlu0 %759, %v539
        %v761 = vpop.permute.xlu0 %760
        %762 = vset.pattern.permute.xlu0 0
        %763 = vperm.xlu0 %762, %v540
        %v764 = vpop.permute.xlu0 %763
        %765 = vset.pattern.permute.xlu0 0
        %766 = vperm.xlu0 %765, %v541
        %v767 = vpop.permute.xlu0 %766
        %768 = vset.pattern.permute.xlu0 0
        %769 = vperm.xlu0 %768, %v542
        %v770 = vpop.permute.xlu0 %769
        %771 = vset.pattern.permute.xlu0 0
        %772 = vperm.xlu0 %771, %v543
        %v773 = vpop.permute.xlu0 %772
        %774 = vset.pattern.permute.xlu0 0
        %775 = vperm.xlu0 %774, %v544
        %v776 = vpop.permute.xlu0 %775
        %777 = vset.pattern.permute.xlu0 0
        %778 = vperm.xlu0 %777, %v545
        %v779 = vpop.permute.xlu0 %778
        %780 = vset.pattern.permute.xlu0 0
        %781 = vperm.xlu0 %780, %v546
        %v782 = vpop.permute.xlu0 %781
        %783 = vset.pattern.permute.xlu0 0
        %784 = vperm.xlu0 %783, %v547
        %v785 = vpop.permute.xlu0 %784
        %786 = vset.pattern.permute.xlu0 0
        %787 = vperm.xlu0 %786, %v548
        %v788 = vpop.permute.xlu0 %787
        %789 = vset.pattern.permute.xlu0 0
        %790 = vperm.xlu0 %789, %v549
        %v791 = vpop.permute.xlu0 %790
        %792 = vset.pattern.permute.xlu0 0
        %793 = vperm.xlu0 %792, %v550
        %v794 = vpop.permute.xlu0 %793
        %795 = vset.pattern.permute.xlu0 0
        %796 = vperm.xlu0 %795, %v551
        %v797 = vpop.permute.xlu0 %796
        %798 = vset.pattern.permute.xlu0 0
        %799 = vperm.xlu0 %798, %v552
        %v800 = vpop.permute.xlu0 %799
        %801 = vset.pattern.permute.xlu0 0
        %802 = vperm.xlu0 %801, %v553
        %v803 = vpop.permute.xlu0 %802
        %804 = vset.pattern.permute.xlu0 0
        %805 = vperm.xlu0 %804, %v554
        %v806 = vpop.permute.xlu0 %805
        %807 = vset.pattern.permute.xlu0 0
        %808 = vperm.xlu0 %807, %v555
        %v809 = vpop.permute.xlu0 %808
        %810 = vset.pattern.permute.xlu0 0
        %811 = vperm.xlu0 %810, %v556
        %v812 = vpop.permute.xlu0 %811
        %813 = vset.pattern.permute.xlu0 0
        %814 = vperm.xlu0 %813, %v557
        %v815 = vpop.permute.xlu0 %814
        %vm816 = vcmp.eq.s32.totalorder %v623, %v626
        %vm817 = vcmp.eq.s32.totalorder %v623, %v629
        %vm818 = vcmp.eq.s32.totalorder %v623, %v632
        %vm819 = vcmp.eq.s32.totalorder %v623, %v635
        %vm820 = vcmp.eq.s32.totalorder %v623, %v638
        %vm821 = vcmp.eq.s32.totalorder %v623, %v641
        %vm822 = vcmp.eq.s32.totalorder %v623, %v644
        %vm823 = vcmp.eq.s32.totalorder %v623, %v647
        %vm824 = vcmp.eq.s32.totalorder %v623, %v650
        %vm825 = vcmp.eq.s32.totalorder %v623, %v653
        %vm826 = vcmp.eq.s32.totalorder %v623, %v656
        %vm827 = vcmp.eq.s32.totalorder %v623, %v659
        %vm828 = vcmp.eq.s32.totalorder %v623, %v662
        %vm829 = vcmp.eq.s32.totalorder %v623, %v665
        %vm830 = vcmp.eq.s32.totalorder %v623, %v668
        %vm831 = vcmp.eq.s32.totalorder %v623, %v671
        %vm832 = vcmp.eq.s32.totalorder %v623, %v674
        %vm833 = vcmp.eq.s32.totalorder %v623, %v677
        %vm834 = vcmp.eq.s32.totalorder %v623, %v680
        %vm835 = vcmp.eq.s32.totalorder %v623, %v683
        %vm836 = vcmp.eq.s32.totalorder %v623, %v686
        %vm837 = vcmp.eq.s32.totalorder %v623, %v689
        %vm838 = vcmp.eq.s32.totalorder %v623, %v692
        %vm839 = vcmp.eq.s32.totalorder %v623, %v695
        %vm840 = vcmp.eq.s32.totalorder %v623, %v698
        %vm841 = vcmp.eq.s32.totalorder %v623, %v701
        %vm842 = vcmp.eq.s32.totalorder %v623, %v704
        %vm843 = vcmp.eq.s32.totalorder %v623, %v707
        %vm844 = vcmp.eq.s32.totalorder %v623, %v710
        %vm845 = vcmp.eq.s32.totalorder %v623, %v713
        %vm846 = vcmp.eq.s32.totalorder %v623, %v716
        %vm847 = vcmp.eq.s32.totalorder %v623, %v719
        %vm848 = vcmp.eq.s32.totalorder %v623, %v722
        %vm849 = vcmp.eq.s32.totalorder %v623, %v725
        %vm850 = vcmp.eq.s32.totalorder %v623, %v728
        %vm851 = vcmp.eq.s32.totalorder %v623, %v731
        %vm852 = vcmp.eq.s32.totalorder %v623, %v734
        %vm853 = vcmp.eq.s32.totalorder %v623, %v737
        %vm854 = vcmp.eq.s32.totalorder %v623, %v740
        %vm855 = vcmp.eq.s32.totalorder %v623, %v743
        %vm856 = vcmp.eq.s32.totalorder %v623, %v746
        %vm857 = vcmp.eq.s32.totalorder %v623, %v749
        %vm858 = vcmp.eq.s32.totalorder %v623, %v752
        %vm859 = vcmp.eq.s32.totalorder %v623, %v755
        %vm860 = vcmp.eq.s32.totalorder %v623, %v758
        %vm861 = vcmp.eq.s32.totalorder %v623, %v761
        %vm862 = vcmp.eq.s32.totalorder %v623, %v764
        %vm863 = vcmp.eq.s32.totalorder %v623, %v767
        %vm864 = vcmp.eq.s32.totalorder %v623, %v770
        %vm865 = vcmp.eq.s32.totalorder %v623, %v773
        %vm866 = vcmp.eq.s32.totalorder %v623, %v776
        %vm867 = vcmp.eq.s32.totalorder %v623, %v779
        %vm868 = vcmp.eq.s32.totalorder %v623, %v782
        %vm869 = vcmp.eq.s32.totalorder %v623, %v785
        %vm870 = vcmp.eq.s32.totalorder %v623, %v788
        %vm871 = vcmp.eq.s32.totalorder %v623, %v791
        %vm872 = vcmp.eq.s32.totalorder %v623, %v794
        %vm873 = vcmp.eq.s32.totalorder %v623, %v797
        %vm874 = vcmp.eq.s32.totalorder %v623, %v800
        %vm875 = vcmp.eq.s32.totalorder %v623, %v803
        %vm876 = vcmp.eq.s32.totalorder %v623, %v806
        %vm877 = vcmp.eq.s32.totalorder %v623, %v809
        %vm878 = vcmp.eq.s32.totalorder %v623, %v812
        %vm879 = vcmp.eq.s32.totalorder %v623, %v815
        %880 = vset.pattern.permute.xlu0 1
        %881 = vperm.xlu0 %880, %v494
        %v882 = vpop.permute.xlu0 %881
        %883 = vset.pattern.permute.xlu0 1
        %884 = vperm.xlu0 %883, %v495
        %v885 = vpop.permute.xlu0 %884
        %886 = vset.pattern.permute.xlu0 1
        %887 = vperm.xlu0 %886, %v496
        %v888 = vpop.permute.xlu0 %887
        %889 = vset.pattern.permute.xlu0 1
        %890 = vperm.xlu0 %889, %v497
        %v891 = vpop.permute.xlu0 %890
        %892 = vset.pattern.permute.xlu0 1
        %893 = vperm.xlu0 %892, %v498
        %v894 = vpop.permute.xlu0 %893
        %895 = vset.pattern.permute.xlu0 1
        %896 = vperm.xlu0 %895, %v499
        %v897 = vpop.permute.xlu0 %896
        %898 = vset.pattern.permute.xlu0 1
        %899 = vperm.xlu0 %898, %v500
        %v900 = vpop.permute.xlu0 %899
        %901 = vset.pattern.permute.xlu0 1
        %902 = vperm.xlu0 %901, %v501
        %v903 = vpop.permute.xlu0 %902
        %904 = vset.pattern.permute.xlu0 1
        %905 = vperm.xlu0 %904, %v502
        %v906 = vpop.permute.xlu0 %905
        %907 = vset.pattern.permute.xlu0 1
        %908 = vperm.xlu0 %907, %v503
        %v909 = vpop.permute.xlu0 %908
        %910 = vset.pattern.permute.xlu0 1
        %911 = vperm.xlu0 %910, %v504
        %v912 = vpop.permute.xlu0 %911
        %913 = vset.pattern.permute.xlu0 1
        %914 = vperm.xlu0 %913, %v505
        %v915 = vpop.permute.xlu0 %914
        %916 = vset.pattern.permute.xlu0 1
        %917 = vperm.xlu0 %916, %v506
        %v918 = vpop.permute.xlu0 %917
        %919 = vset.pattern.permute.xlu0 1
        %920 = vperm.xlu0 %919, %v507
        %v921 = vpop.permute.xlu0 %920
        %922 = vset.pattern.permute.xlu0 1
        %923 = vperm.xlu0 %922, %v508
        %v924 = vpop.permute.xlu0 %923
        %925 = vset.pattern.permute.xlu0 1
        %926 = vperm.xlu0 %925, %v509
        %v927 = vpop.permute.xlu0 %926
        %928 = vset.pattern.permute.xlu0 1
        %929 = vperm.xlu0 %928, %v510
        %v930 = vpop.permute.xlu0 %929
        %931 = vset.pattern.permute.xlu0 1
        %932 = vperm.xlu0 %931, %v511
        %v933 = vpop.permute.xlu0 %932
        %934 = vset.pattern.permute.xlu0 1
        %935 = vperm.xlu0 %934, %v512
        %v936 = vpop.permute.xlu0 %935
        %937 = vset.pattern.permute.xlu0 1
        %938 = vperm.xlu0 %937, %v513
        %v939 = vpop.permute.xlu0 %938
        %940 = vset.pattern.permute.xlu0 1
        %941 = vperm.xlu0 %940, %v514
        %v942 = vpop.permute.xlu0 %941
        %943 = vset.pattern.permute.xlu0 1
        %944 = vperm.xlu0 %943, %v515
        %v945 = vpop.permute.xlu0 %944
        %946 = vset.pattern.permute.xlu0 1
        %947 = vperm.xlu0 %946, %v516
        %v948 = vpop.permute.xlu0 %947
        %949 = vset.pattern.permute.xlu0 1
        %950 = vperm.xlu0 %949, %v517
        %v951 = vpop.permute.xlu0 %950
        %952 = vset.pattern.permute.xlu0 1
        %953 = vperm.xlu0 %952, %v518
        %v954 = vpop.permute.xlu0 %953
        %955 = vset.pattern.permute.xlu0 1
        %956 = vperm.xlu0 %955, %v519
        %v957 = vpop.permute.xlu0 %956
        %958 = vset.pattern.permute.xlu0 1
        %959 = vperm.xlu0 %958, %v520
        %v960 = vpop.permute.xlu0 %959
        %961 = vset.pattern.permute.xlu0 1
        %962 = vperm.xlu0 %961, %v521
        %v963 = vpop.permute.xlu0 %962
        %964 = vset.pattern.permute.xlu0 1
        %965 = vperm.xlu0 %964, %v522
        %v966 = vpop.permute.xlu0 %965
        %967 = vset.pattern.permute.xlu0 1
        %968 = vperm.xlu0 %967, %v523
        %v969 = vpop.permute.xlu0 %968
        %970 = vset.pattern.permute.xlu0 1
        %971 = vperm.xlu0 %970, %v524
        %v972 = vpop.permute.xlu0 %971
        %973 = vset.pattern.permute.xlu0 1
        %974 = vperm.xlu0 %973, %v525
        %v975 = vpop.permute.xlu0 %974
        %976 = vset.pattern.permute.xlu0 1
        %977 = vperm.xlu0 %976, %v526
        %v978 = vpop.permute.xlu0 %977
        %979 = vset.pattern.permute.xlu0 1
        %980 = vperm.xlu0 %979, %v527
        %v981 = vpop.permute.xlu0 %980
        %982 = vset.pattern.permute.xlu0 1
        %983 = vperm.xlu0 %982, %v528
        %v984 = vpop.permute.xlu0 %983
        %985 = vset.pattern.permute.xlu0 1
        %986 = vperm.xlu0 %985, %v529
        %v987 = vpop.permute.xlu0 %986
        %988 = vset.pattern.permute.xlu0 1
        %989 = vperm.xlu0 %988, %v530
        %v990 = vpop.permute.xlu0 %989
        %991 = vset.pattern.permute.xlu0 1
        %992 = vperm.xlu0 %991, %v531
        %v993 = vpop.permute.xlu0 %992
        %994 = vset.pattern.permute.xlu0 1
        %995 = vperm.xlu0 %994, %v532
        %v996 = vpop.permute.xlu0 %995
        %997 = vset.pattern.permute.xlu0 1
        %998 = vperm.xlu0 %997, %v533
        %v999 = vpop.permute.xlu0 %998
        %1000 = vset.pattern.permute.xlu0 1
        %1001 = vperm.xlu0 %1000, %v534
        %v1002 = vpop.permute.xlu0 %1001
        %1003 = vset.pattern.permute.xlu0 1
        %1004 = vperm.xlu0 %1003, %v535
        %v1005 = vpop.permute.xlu0 %1004
        %1006 = vset.pattern.permute.xlu0 1
        %1007 = vperm.xlu0 %1006, %v536
        %v1008 = vpop.permute.xlu0 %1007
        %1009 = vset.pattern.permute.xlu0 1
        %1010 = vperm.xlu0 %1009, %v537
        %v1011 = vpop.permute.xlu0 %1010
        %1012 = vset.pattern.permute.xlu0 1
        %1013 = vperm.xlu0 %1012, %v538
        %v1014 = vpop.permute.xlu0 %1013
        %1015 = vset.pattern.permute.xlu0 1
        %1016 = vperm.xlu0 %1015, %v539
        %v1017 = vpop.permute.xlu0 %1016
        %1018 = vset.pattern.permute.xlu0 1
        %1019 = vperm.xlu0 %1018, %v540
        %v1020 = vpop.permute.xlu0 %1019
        %1021 = vset.pattern.permute.xlu0 1
        %1022 = vperm.xlu0 %1021, %v541
        %v1023 = vpop.permute.xlu0 %1022
        %1024 = vset.pattern.permute.xlu0 1
        %1025 = vperm.xlu0 %1024, %v542
        %v1026 = vpop.permute.xlu0 %1025
        %1027 = vset.pattern.permute.xlu0 1
        %1028 = vperm.xlu0 %1027, %v543
        %v1029 = vpop.permute.xlu0 %1028
        %1030 = vset.pattern.permute.xlu0 1
        %1031 = vperm.xlu0 %1030, %v544
        %v1032 = vpop.permute.xlu0 %1031
        %1033 = vset.pattern.permute.xlu0 1
        %1034 = vperm.xlu0 %1033, %v545
        %v1035 = vpop.permute.xlu0 %1034
        %1036 = vset.pattern.permute.xlu0 1
        %1037 = vperm.xlu0 %1036, %v546
        %v1038 = vpop.permute.xlu0 %1037
        %1039 = vset.pattern.permute.xlu0 1
        %1040 = vperm.xlu0 %1039, %v547
        %v1041 = vpop.permute.xlu0 %1040
        %1042 = vset.pattern.permute.xlu0 1
        %1043 = vperm.xlu0 %1042, %v548
        %v1044 = vpop.permute.xlu0 %1043
        %1045 = vset.pattern.permute.xlu0 1
        %1046 = vperm.xlu0 %1045, %v549
        %v1047 = vpop.permute.xlu0 %1046
        %1048 = vset.pattern.permute.xlu0 1
        %1049 = vperm.xlu0 %1048, %v550
        %v1050 = vpop.permute.xlu0 %1049
        %1051 = vset.pattern.permute.xlu0 1
        %1052 = vperm.xlu0 %1051, %v551
        %v1053 = vpop.permute.xlu0 %1052
        %1054 = vset.pattern.permute.xlu0 1
        %1055 = vperm.xlu0 %1054, %v552
        %v1056 = vpop.permute.xlu0 %1055
        %1057 = vset.pattern.permute.xlu0 1
        %1058 = vperm.xlu0 %1057, %v553
        %v1059 = vpop.permute.xlu0 %1058
        %1060 = vset.pattern.permute.xlu0 1
        %1061 = vperm.xlu0 %1060, %v554
        %v1062 = vpop.permute.xlu0 %1061
        %1063 = vset.pattern.permute.xlu0 1
        %1064 = vperm.xlu0 %1063, %v555
        %v1065 = vpop.permute.xlu0 %1064
        %1066 = vset.pattern.permute.xlu0 1
        %1067 = vperm.xlu0 %1066, %v556
        %v1068 = vpop.permute.xlu0 %1067
        %1069 = vset.pattern.permute.xlu0 1
        %1070 = vperm.xlu0 %1069, %v557
        %v1071 = vpop.permute.xlu0 %1070
        %vm1072 = vcmp.eq.s32.totalorder %v623, %v882
        %vm1073 = vcmp.eq.s32.totalorder %v623, %v885
        %vm1074 = vcmp.eq.s32.totalorder %v623, %v888
        %vm1075 = vcmp.eq.s32.totalorder %v623, %v891
        %vm1076 = vcmp.eq.s32.totalorder %v623, %v894
        %vm1077 = vcmp.eq.s32.totalorder %v623, %v897
        %vm1078 = vcmp.eq.s32.totalorder %v623, %v900
        %vm1079 = vcmp.eq.s32.totalorder %v623, %v903
        %vm1080 = vcmp.eq.s32.totalorder %v623, %v906
        %vm1081 = vcmp.eq.s32.totalorder %v623, %v909
        %vm1082 = vcmp.eq.s32.totalorder %v623, %v912
        %vm1083 = vcmp.eq.s32.totalorder %v623, %v915
        %vm1084 = vcmp.eq.s32.totalorder %v623, %v918
        %vm1085 = vcmp.eq.s32.totalorder %v623, %v921
        %vm1086 = vcmp.eq.s32.totalorder %v623, %v924
        %vm1087 = vcmp.eq.s32.totalorder %v623, %v927
        %vm1088 = vcmp.eq.s32.totalorder %v623, %v930
        %vm1089 = vcmp.eq.s32.totalorder %v623, %v933
        %vm1090 = vcmp.eq.s32.totalorder %v623, %v936
        %vm1091 = vcmp.eq.s32.totalorder %v623, %v939
        %vm1092 = vcmp.eq.s32.totalorder %v623, %v942
        %vm1093 = vcmp.eq.s32.totalorder %v623, %v945
        %vm1094 = vcmp.eq.s32.totalorder %v623, %v948
        %vm1095 = vcmp.eq.s32.totalorder %v623, %v951
        %vm1096 = vcmp.eq.s32.totalorder %v623, %v954
        %vm1097 = vcmp.eq.s32.totalorder %v623, %v957
        %vm1098 = vcmp.eq.s32.totalorder %v623, %v960
        %vm1099 = vcmp.eq.s32.totalorder %v623, %v963
        %vm1100 = vcmp.eq.s32.totalorder %v623, %v966
        %vm1101 = vcmp.eq.s32.totalorder %v623, %v969
        %vm1102 = vcmp.eq.s32.totalorder %v623, %v972
        %vm1103 = vcmp.eq.s32.totalorder %v623, %v975
        %vm1104 = vcmp.eq.s32.totalorder %v623, %v978
        %vm1105 = vcmp.eq.s32.totalorder %v623, %v981
        %vm1106 = vcmp.eq.s32.totalorder %v623, %v984
        %vm1107 = vcmp.eq.s32.totalorder %v623, %v987
        %vm1108 = vcmp.eq.s32.totalorder %v623, %v990
        %vm1109 = vcmp.eq.s32.totalorder %v623, %v993
        %vm1110 = vcmp.eq.s32.totalorder %v623, %v996
        %vm1111 = vcmp.eq.s32.totalorder %v623, %v999
        %vm1112 = vcmp.eq.s32.totalorder %v623, %v1002
        %vm1113 = vcmp.eq.s32.totalorder %v623, %v1005
        %vm1114 = vcmp.eq.s32.totalorder %v623, %v1008
        %vm1115 = vcmp.eq.s32.totalorder %v623, %v1011
        %vm1116 = vcmp.eq.s32.totalorder %v623, %v1014
        %vm1117 = vcmp.eq.s32.totalorder %v623, %v1017
        %vm1118 = vcmp.eq.s32.totalorder %v623, %v1020
        %vm1119 = vcmp.eq.s32.totalorder %v623, %v1023
        %vm1120 = vcmp.eq.s32.totalorder %v623, %v1026
        %vm1121 = vcmp.eq.s32.totalorder %v623, %v1029
        %vm1122 = vcmp.eq.s32.totalorder %v623, %v1032
        %vm1123 = vcmp.eq.s32.totalorder %v623, %v1035
        %vm1124 = vcmp.eq.s32.totalorder %v623, %v1038
        %vm1125 = vcmp.eq.s32.totalorder %v623, %v1041
        %vm1126 = vcmp.eq.s32.totalorder %v623, %v1044
        %vm1127 = vcmp.eq.s32.totalorder %v623, %v1047
        %vm1128 = vcmp.eq.s32.totalorder %v623, %v1050
        %vm1129 = vcmp.eq.s32.totalorder %v623, %v1053
        %vm1130 = vcmp.eq.s32.totalorder %v623, %v1056
        %vm1131 = vcmp.eq.s32.totalorder %v623, %v1059
        %vm1132 = vcmp.eq.s32.totalorder %v623, %v1062
        %vm1133 = vcmp.eq.s32.totalorder %v623, %v1065
        %vm1134 = vcmp.eq.s32.totalorder %v623, %v1068
        %vm1135 = vcmp.eq.s32.totalorder %v623, %v1071
        %vm1136 = vmor %vm816, %vm1072
        %vm1137 = vmor %vm817, %vm1073
        %vm1138 = vmor %vm818, %vm1074
        %vm1139 = vmor %vm819, %vm1075
        %vm1140 = vmor %vm820, %vm1076
        %vm1141 = vmor %vm821, %vm1077
        %vm1142 = vmor %vm822, %vm1078
        %vm1143 = vmor %vm823, %vm1079
        %vm1144 = vmor %vm824, %vm1080
        %vm1145 = vmor %vm825, %vm1081
        %vm1146 = vmor %vm826, %vm1082
        %vm1147 = vmor %vm827, %vm1083
        %vm1148 = vmor %vm828, %vm1084
        %vm1149 = vmor %vm829, %vm1085
        %vm1150 = vmor %vm830, %vm1086
        %vm1151 = vmor %vm831, %vm1087
        %vm1152 = vmor %vm832, %vm1088
        %vm1153 = vmor %vm833, %vm1089
        %vm1154 = vmor %vm834, %vm1090
        %vm1155 = vmor %vm835, %vm1091
        %vm1156 = vmor %vm836, %vm1092
        %vm1157 = vmor %vm837, %vm1093
        %vm1158 = vmor %vm838, %vm1094
        %vm1159 = vmor %vm839, %vm1095
        %vm1160 = vmor %vm840, %vm1096
        %vm1161 = vmor %vm841, %vm1097
        %vm1162 = vmor %vm842, %vm1098
        %vm1163 = vmor %vm843, %vm1099
        %vm1164 = vmor %vm844, %vm1100
        %vm1165 = vmor %vm845, %vm1101
        %vm1166 = vmor %vm846, %vm1102
        %vm1167 = vmor %vm847, %vm1103
        %vm1168 = vmor %vm848, %vm1104
        %vm1169 = vmor %vm849, %vm1105
        %vm1170 = vmor %vm850, %vm1106
        %vm1171 = vmor %vm851, %vm1107
        %vm1172 = vmor %vm852, %vm1108
        %vm1173 = vmor %vm853, %vm1109
        %vm1174 = vmor %vm854, %vm1110
        %vm1175 = vmor %vm855, %vm1111
        %vm1176 = vmor %vm856, %vm1112
        %vm1177 = vmor %vm857, %vm1113
        %vm1178 = vmor %vm858, %vm1114
        %vm1179 = vmor %vm859, %vm1115
        %vm1180 = vmor %vm860, %vm1116
        %vm1181 = vmor %vm861, %vm1117
        %vm1182 = vmor %vm862, %vm1118
        %vm1183 = vmor %vm863, %vm1119
        %vm1184 = vmor %vm864, %vm1120
        %vm1185 = vmor %vm865, %vm1121
        %vm1186 = vmor %vm866, %vm1122
        %vm1187 = vmor %vm867, %vm1123
        %vm1188 = vmor %vm868, %vm1124
        %vm1189 = vmor %vm869, %vm1125
        %vm1190 = vmor %vm870, %vm1126
        %vm1191 = vmor %vm871, %vm1127
        %vm1192 = vmor %vm872, %vm1128
        %vm1193 = vmor %vm873, %vm1129
        %vm1194 = vmor %vm874, %vm1130
        %vm1195 = vmor %vm875, %vm1131
        %vm1196 = vmor %vm876, %vm1132
        %vm1197 = vmor %vm877, %vm1133
        %vm1198 = vmor %vm878, %vm1134
        %vm1199 = vmor %vm879, %vm1135
        %1200 = vset.pattern.permute.xlu0 2
        %1201 = vperm.xlu0 %1200, %v494
        %v1202 = vpop.permute.xlu0 %1201
        %1203 = vset.pattern.permute.xlu0 2
        %1204 = vperm.xlu0 %1203, %v495
        %v1205 = vpop.permute.xlu0 %1204
        %1206 = vset.pattern.permute.xlu0 2
        %1207 = vperm.xlu0 %1206, %v496
        %v1208 = vpop.permute.xlu0 %1207
        %1209 = vset.pattern.permute.xlu0 2
        %1210 = vperm.xlu0 %1209, %v497
        %v1211 = vpop.permute.xlu0 %1210
        %1212 = vset.pattern.permute.xlu0 2
        %1213 = vperm.xlu0 %1212, %v498
        %v1214 = vpop.permute.xlu0 %1213
        %1215 = vset.pattern.permute.xlu0 2
        %1216 = vperm.xlu0 %1215, %v499
        %v1217 = vpop.permute.xlu0 %1216
        %1218 = vset.pattern.permute.xlu0 2
        %1219 = vperm.xlu0 %1218, %v500
        %v1220 = vpop.permute.xlu0 %1219
        %1221 = vset.pattern.permute.xlu0 2
        %1222 = vperm.xlu0 %1221, %v501
        %v1223 = vpop.permute.xlu0 %1222
        %1224 = vset.pattern.permute.xlu0 2
        %1225 = vperm.xlu0 %1224, %v502
        %v1226 = vpop.permute.xlu0 %1225
        %1227 = vset.pattern.permute.xlu0 2
        %1228 = vperm.xlu0 %1227, %v503
        %v1229 = vpop.permute.xlu0 %1228
        %1230 = vset.pattern.permute.xlu0 2
        %1231 = vperm.xlu0 %1230, %v504
        %v1232 = vpop.permute.xlu0 %1231
        %1233 = vset.pattern.permute.xlu0 2
        %1234 = vperm.xlu0 %1233, %v505
        %v1235 = vpop.permute.xlu0 %1234
        %1236 = vset.pattern.permute.xlu0 2
        %1237 = vperm.xlu0 %1236, %v506
        %v1238 = vpop.permute.xlu0 %1237
        %1239 = vset.pattern.permute.xlu0 2
        %1240 = vperm.xlu0 %1239, %v507
        %v1241 = vpop.permute.xlu0 %1240
        %1242 = vset.pattern.permute.xlu0 2
        %1243 = vperm.xlu0 %1242, %v508
        %v1244 = vpop.permute.xlu0 %1243
        %1245 = vset.pattern.permute.xlu0 2
        %1246 = vperm.xlu0 %1245, %v509
        %v1247 = vpop.permute.xlu0 %1246
        %1248 = vset.pattern.permute.xlu0 2
        %1249 = vperm.xlu0 %1248, %v510
        %v1250 = vpop.permute.xlu0 %1249
        %1251 = vset.pattern.permute.xlu0 2
        %1252 = vperm.xlu0 %1251, %v511
        %v1253 = vpop.permute.xlu0 %1252
        %1254 = vset.pattern.permute.xlu0 2
        %1255 = vperm.xlu0 %1254, %v512
        %v1256 = vpop.permute.xlu0 %1255
        %1257 = vset.pattern.permute.xlu0 2
        %1258 = vperm.xlu0 %1257, %v513
        %v1259 = vpop.permute.xlu0 %1258
        %1260 = vset.pattern.permute.xlu0 2
        %1261 = vperm.xlu0 %1260, %v514
        %v1262 = vpop.permute.xlu0 %1261
        %1263 = vset.pattern.permute.xlu0 2
        %1264 = vperm.xlu0 %1263, %v515
        %v1265 = vpop.permute.xlu0 %1264
        %1266 = vset.pattern.permute.xlu0 2
        %1267 = vperm.xlu0 %1266, %v516
        %v1268 = vpop.permute.xlu0 %1267
        %1269 = vset.pattern.permute.xlu0 2
        %1270 = vperm.xlu0 %1269, %v517
        %v1271 = vpop.permute.xlu0 %1270
        %1272 = vset.pattern.permute.xlu0 2
        %1273 = vperm.xlu0 %1272, %v518
        %v1274 = vpop.permute.xlu0 %1273
        %1275 = vset.pattern.permute.xlu0 2
        %1276 = vperm.xlu0 %1275, %v519
        %v1277 = vpop.permute.xlu0 %1276
        %1278 = vset.pattern.permute.xlu0 2
        %1279 = vperm.xlu0 %1278, %v520
        %v1280 = vpop.permute.xlu0 %1279
        %1281 = vset.pattern.permute.xlu0 2
        %1282 = vperm.xlu0 %1281, %v521
        %v1283 = vpop.permute.xlu0 %1282
        %1284 = vset.pattern.permute.xlu0 2
        %1285 = vperm.xlu0 %1284, %v522
        %v1286 = vpop.permute.xlu0 %1285
        %1287 = vset.pattern.permute.xlu0 2
        %1288 = vperm.xlu0 %1287, %v523
        %v1289 = vpop.permute.xlu0 %1288
        %1290 = vset.pattern.permute.xlu0 2
        %1291 = vperm.xlu0 %1290, %v524
        %v1292 = vpop.permute.xlu0 %1291
        %1293 = vset.pattern.permute.xlu0 2
        %1294 = vperm.xlu0 %1293, %v525
        %v1295 = vpop.permute.xlu0 %1294
        %1296 = vset.pattern.permute.xlu0 2
        %1297 = vperm.xlu0 %1296, %v526
        %v1298 = vpop.permute.xlu0 %1297
        %1299 = vset.pattern.permute.xlu0 2
        %1300 = vperm.xlu0 %1299, %v527
        %v1301 = vpop.permute.xlu0 %1300
        %1302 = vset.pattern.permute.xlu0 2
        %1303 = vperm.xlu0 %1302, %v528
        %v1304 = vpop.permute.xlu0 %1303
        %1305 = vset.pattern.permute.xlu0 2
        %1306 = vperm.xlu0 %1305, %v529
        %v1307 = vpop.permute.xlu0 %1306
        %1308 = vset.pattern.permute.xlu0 2
        %1309 = vperm.xlu0 %1308, %v530
        %v1310 = vpop.permute.xlu0 %1309
        %1311 = vset.pattern.permute.xlu0 2
        %1312 = vperm.xlu0 %1311, %v531
        %v1313 = vpop.permute.xlu0 %1312
        %1314 = vset.pattern.permute.xlu0 2
        %1315 = vperm.xlu0 %1314, %v532
        %v1316 = vpop.permute.xlu0 %1315
        %1317 = vset.pattern.permute.xlu0 2
        %1318 = vperm.xlu0 %1317, %v533
        %v1319 = vpop.permute.xlu0 %1318
        %1320 = vset.pattern.permute.xlu0 2
        %1321 = vperm.xlu0 %1320, %v534
        %v1322 = vpop.permute.xlu0 %1321
        %1323 = vset.pattern.permute.xlu0 2
        %1324 = vperm.xlu0 %1323, %v535
        %v1325 = vpop.permute.xlu0 %1324
        %1326 = vset.pattern.permute.xlu0 2
        %1327 = vperm.xlu0 %1326, %v536
        %v1328 = vpop.permute.xlu0 %1327
        %1329 = vset.pattern.permute.xlu0 2
        %1330 = vperm.xlu0 %1329, %v537
        %v1331 = vpop.permute.xlu0 %1330
        %1332 = vset.pattern.permute.xlu0 2
        %1333 = vperm.xlu0 %1332, %v538
        %v1334 = vpop.permute.xlu0 %1333
        %1335 = vset.pattern.permute.xlu0 2
        %1336 = vperm.xlu0 %1335, %v539
        %v1337 = vpop.permute.xlu0 %1336
        %1338 = vset.pattern.permute.xlu0 2
        %1339 = vperm.xlu0 %1338, %v540
        %v1340 = vpop.permute.xlu0 %1339
        %1341 = vset.pattern.permute.xlu0 2
        %1342 = vperm.xlu0 %1341, %v541
        %v1343 = vpop.permute.xlu0 %1342
        %1344 = vset.pattern.permute.xlu0 2
        %1345 = vperm.xlu0 %1344, %v542
        %v1346 = vpop.permute.xlu0 %1345
        %1347 = vset.pattern.permute.xlu0 2
        %1348 = vperm.xlu0 %1347, %v543
        %v1349 = vpop.permute.xlu0 %1348
        %1350 = vset.pattern.permute.xlu0 2
        %1351 = vperm.xlu0 %1350, %v544
        %v1352 = vpop.permute.xlu0 %1351
        %1353 = vset.pattern.permute.xlu0 2
        %1354 = vperm.xlu0 %1353, %v545
        %v1355 = vpop.permute.xlu0 %1354
        %1356 = vset.pattern.permute.xlu0 2
        %1357 = vperm.xlu0 %1356, %v546
        %v1358 = vpop.permute.xlu0 %1357
        %1359 = vset.pattern.permute.xlu0 2
        %1360 = vperm.xlu0 %1359, %v547
        %v1361 = vpop.permute.xlu0 %1360
        %1362 = vset.pattern.permute.xlu0 2
        %1363 = vperm.xlu0 %1362, %v548
        %v1364 = vpop.permute.xlu0 %1363
        %1365 = vset.pattern.permute.xlu0 2
        %1366 = vperm.xlu0 %1365, %v549
        %v1367 = vpop.permute.xlu0 %1366
        %1368 = vset.pattern.permute.xlu0 2
        %1369 = vperm.xlu0 %1368, %v550
        %v1370 = vpop.permute.xlu0 %1369
        %1371 = vset.pattern.permute.xlu0 2
        %1372 = vperm.xlu0 %1371, %v551
        %v1373 = vpop.permute.xlu0 %1372
        %1374 = vset.pattern.permute.xlu0 2
        %1375 = vperm.xlu0 %1374, %v552
        %v1376 = vpop.permute.xlu0 %1375
        %1377 = vset.pattern.permute.xlu0 2
        %1378 = vperm.xlu0 %1377, %v553
        %v1379 = vpop.permute.xlu0 %1378
        %1380 = vset.pattern.permute.xlu0 2
        %1381 = vperm.xlu0 %1380, %v554
        %v1382 = vpop.permute.xlu0 %1381
        %1383 = vset.pattern.permute.xlu0 2
        %1384 = vperm.xlu0 %1383, %v555
        %v1385 = vpop.permute.xlu0 %1384
        %1386 = vset.pattern.permute.xlu0 2
        %1387 = vperm.xlu0 %1386, %v556
        %v1388 = vpop.permute.xlu0 %1387
        %1389 = vset.pattern.permute.xlu0 2
        %1390 = vperm.xlu0 %1389, %v557
        %v1391 = vpop.permute.xlu0 %1390
        %vm1392 = vcmp.eq.s32.totalorder %v623, %v1202
        %vm1393 = vcmp.eq.s32.totalorder %v623, %v1205
        %vm1394 = vcmp.eq.s32.totalorder %v623, %v1208
        %vm1395 = vcmp.eq.s32.totalorder %v623, %v1211
        %vm1396 = vcmp.eq.s32.totalorder %v623, %v1214
        %vm1397 = vcmp.eq.s32.totalorder %v623, %v1217
        %vm1398 = vcmp.eq.s32.totalorder %v623, %v1220
        %vm1399 = vcmp.eq.s32.totalorder %v623, %v1223
        %vm1400 = vcmp.eq.s32.totalorder %v623, %v1226
        %vm1401 = vcmp.eq.s32.totalorder %v623, %v1229
        %vm1402 = vcmp.eq.s32.totalorder %v623, %v1232
        %vm1403 = vcmp.eq.s32.totalorder %v623, %v1235
        %vm1404 = vcmp.eq.s32.totalorder %v623, %v1238
        %vm1405 = vcmp.eq.s32.totalorder %v623, %v1241
        %vm1406 = vcmp.eq.s32.totalorder %v623, %v1244
        %vm1407 = vcmp.eq.s32.totalorder %v623, %v1247
        %vm1408 = vcmp.eq.s32.totalorder %v623, %v1250
        %vm1409 = vcmp.eq.s32.totalorder %v623, %v1253
        %vm1410 = vcmp.eq.s32.totalorder %v623, %v1256
        %vm1411 = vcmp.eq.s32.totalorder %v623, %v1259
        %vm1412 = vcmp.eq.s32.totalorder %v623, %v1262
        %vm1413 = vcmp.eq.s32.totalorder %v623, %v1265
        %vm1414 = vcmp.eq.s32.totalorder %v623, %v1268
        %vm1415 = vcmp.eq.s32.totalorder %v623, %v1271
        %vm1416 = vcmp.eq.s32.totalorder %v623, %v1274
        %vm1417 = vcmp.eq.s32.totalorder %v623, %v1277
        %vm1418 = vcmp.eq.s32.totalorder %v623, %v1280
        %vm1419 = vcmp.eq.s32.totalorder %v623, %v1283
        %vm1420 = vcmp.eq.s32.totalorder %v623, %v1286
        %vm1421 = vcmp.eq.s32.totalorder %v623, %v1289
        %vm1422 = vcmp.eq.s32.totalorder %v623, %v1292
        %vm1423 = vcmp.eq.s32.totalorder %v623, %v1295
        %vm1424 = vcmp.eq.s32.totalorder %v623, %v1298
        %vm1425 = vcmp.eq.s32.totalorder %v623, %v1301
        %vm1426 = vcmp.eq.s32.totalorder %v623, %v1304
        %vm1427 = vcmp.eq.s32.totalorder %v623, %v1307
        %vm1428 = vcmp.eq.s32.totalorder %v623, %v1310
        %vm1429 = vcmp.eq.s32.totalorder %v623, %v1313
        %vm1430 = vcmp.eq.s32.totalorder %v623, %v1316
        %vm1431 = vcmp.eq.s32.totalorder %v623, %v1319
        %vm1432 = vcmp.eq.s32.totalorder %v623, %v1322
        %vm1433 = vcmp.eq.s32.totalorder %v623, %v1325
        %vm1434 = vcmp.eq.s32.totalorder %v623, %v1328
        %vm1435 = vcmp.eq.s32.totalorder %v623, %v1331
        %vm1436 = vcmp.eq.s32.totalorder %v623, %v1334
        %vm1437 = vcmp.eq.s32.totalorder %v623, %v1337
        %vm1438 = vcmp.eq.s32.totalorder %v623, %v1340
        %vm1439 = vcmp.eq.s32.totalorder %v623, %v1343
        %vm1440 = vcmp.eq.s32.totalorder %v623, %v1346
        %vm1441 = vcmp.eq.s32.totalorder %v623, %v1349
        %vm1442 = vcmp.eq.s32.totalorder %v623, %v1352
        %vm1443 = vcmp.eq.s32.totalorder %v623, %v1355
        %vm1444 = vcmp.eq.s32.totalorder %v623, %v1358
        %vm1445 = vcmp.eq.s32.totalorder %v623, %v1361
        %vm1446 = vcmp.eq.s32.totalorder %v623, %v1364
        %vm1447 = vcmp.eq.s32.totalorder %v623, %v1367
        %vm1448 = vcmp.eq.s32.totalorder %v623, %v1370
        %vm1449 = vcmp.eq.s32.totalorder %v623, %v1373
        %vm1450 = vcmp.eq.s32.totalorder %v623, %v1376
        %vm1451 = vcmp.eq.s32.totalorder %v623, %v1379
        %vm1452 = vcmp.eq.s32.totalorder %v623, %v1382
        %vm1453 = vcmp.eq.s32.totalorder %v623, %v1385
        %vm1454 = vcmp.eq.s32.totalorder %v623, %v1388
        %vm1455 = vcmp.eq.s32.totalorder %v623, %v1391
        %vm1456 = vmor %vm1136, %vm1392
        %vm1457 = vmor %vm1137, %vm1393
        %vm1458 = vmor %vm1138, %vm1394
        %vm1459 = vmor %vm1139, %vm1395
        %vm1460 = vmor %vm1140, %vm1396
        %vm1461 = vmor %vm1141, %vm1397
        %vm1462 = vmor %vm1142, %vm1398
        %vm1463 = vmor %vm1143, %vm1399
        %vm1464 = vmor %vm1144, %vm1400
        %vm1465 = vmor %vm1145, %vm1401
        %vm1466 = vmor %vm1146, %vm1402
        %vm1467 = vmor %vm1147, %vm1403
        %vm1468 = vmor %vm1148, %vm1404
        %vm1469 = vmor %vm1149, %vm1405
        %vm1470 = vmor %vm1150, %vm1406
        %vm1471 = vmor %vm1151, %vm1407
        %vm1472 = vmor %vm1152, %vm1408
        %vm1473 = vmor %vm1153, %vm1409
        %vm1474 = vmor %vm1154, %vm1410
        %vm1475 = vmor %vm1155, %vm1411
        %vm1476 = vmor %vm1156, %vm1412
        %vm1477 = vmor %vm1157, %vm1413
        %vm1478 = vmor %vm1158, %vm1414
        %vm1479 = vmor %vm1159, %vm1415
        %vm1480 = vmor %vm1160, %vm1416
        %vm1481 = vmor %vm1161, %vm1417
        %vm1482 = vmor %vm1162, %vm1418
        %vm1483 = vmor %vm1163, %vm1419
        %vm1484 = vmor %vm1164, %vm1420
        %vm1485 = vmor %vm1165, %vm1421
        %vm1486 = vmor %vm1166, %vm1422
        %vm1487 = vmor %vm1167, %vm1423
        %vm1488 = vmor %vm1168, %vm1424
        %vm1489 = vmor %vm1169, %vm1425
        %vm1490 = vmor %vm1170, %vm1426
        %vm1491 = vmor %vm1171, %vm1427
        %vm1492 = vmor %vm1172, %vm1428
        %vm1493 = vmor %vm1173, %vm1429
        %vm1494 = vmor %vm1174, %vm1430
        %vm1495 = vmor %vm1175, %vm1431
        %vm1496 = vmor %vm1176, %vm1432
        %vm1497 = vmor %vm1177, %vm1433
        %vm1498 = vmor %vm1178, %vm1434
        %vm1499 = vmor %vm1179, %vm1435
        %vm1500 = vmor %vm1180, %vm1436
        %vm1501 = vmor %vm1181, %vm1437
        %vm1502 = vmor %vm1182, %vm1438
        %vm1503 = vmor %vm1183, %vm1439
        %vm1504 = vmor %vm1184, %vm1440
        %vm1505 = vmor %vm1185, %vm1441
        %vm1506 = vmor %vm1186, %vm1442
        %vm1507 = vmor %vm1187, %vm1443
        %vm1508 = vmor %vm1188, %vm1444
        %vm1509 = vmor %vm1189, %vm1445
        %vm1510 = vmor %vm1190, %vm1446
        %vm1511 = vmor %vm1191, %vm1447
        %vm1512 = vmor %vm1192, %vm1448
        %vm1513 = vmor %vm1193, %vm1449
        %vm1514 = vmor %vm1194, %vm1450
        %vm1515 = vmor %vm1195, %vm1451
        %vm1516 = vmor %vm1196, %vm1452
        %vm1517 = vmor %vm1197, %vm1453
        %vm1518 = vmor %vm1198, %vm1454
        %vm1519 = vmor %vm1199, %vm1455
        %v1520 = vsel %vm1456, 1, 0
        %v1521 = vsel %vm1457, 1, 0
        %v1522 = vsel %vm1458, 1, 0
        %v1523 = vsel %vm1459, 1, 0
        %v1524 = vsel %vm1460, 1, 0
        %v1525 = vsel %vm1461, 1, 0
        %v1526 = vsel %vm1462, 1, 0
        %v1527 = vsel %vm1463, 1, 0
        %v1528 = vsel %vm1464, 1, 0
        %v1529 = vsel %vm1465, 1, 0
        %v1530 = vsel %vm1466, 1, 0
        %v1531 = vsel %vm1467, 1, 0
        %v1532 = vsel %vm1468, 1, 0
        %v1533 = vsel %vm1469, 1, 0
        %v1534 = vsel %vm1470, 1, 0
        %v1535 = vsel %vm1471, 1, 0
        %v1536 = vsel %vm1472, 1, 0
        %v1537 = vsel %vm1473, 1, 0
        %v1538 = vsel %vm1474, 1, 0
        %v1539 = vsel %vm1475, 1, 0
        %v1540 = vsel %vm1476, 1, 0
        %v1541 = vsel %vm1477, 1, 0
        %v1542 = vsel %vm1478, 1, 0
        %v1543 = vsel %vm1479, 1, 0
        %v1544 = vsel %vm1480, 1, 0
        %v1545 = vsel %vm1481, 1, 0
        %v1546 = vsel %vm1482, 1, 0
        %v1547 = vsel %vm1483, 1, 0
        %v1548 = vsel %vm1484, 1, 0
        %v1549 = vsel %vm1485, 1, 0
        %v1550 = vsel %vm1486, 1, 0
        %v1551 = vsel %vm1487, 1, 0
        %v1552 = vsel %vm1488, 1, 0
        %v1553 = vsel %vm1489, 1, 0
        %v1554 = vsel %vm1490, 1, 0
        %v1555 = vsel %vm1491, 1, 0
        %v1556 = vsel %vm1492, 1, 0
        %v1557 = vsel %vm1493, 1, 0
        %v1558 = vsel %vm1494, 1, 0
        %v1559 = vsel %vm1495, 1, 0
        %v1560 = vsel %vm1496, 1, 0
        %v1561 = vsel %vm1497, 1, 0
        %v1562 = vsel %vm1498, 1, 0
        %v1563 = vsel %vm1499, 1, 0
        %v1564 = vsel %vm1500, 1, 0
        %v1565 = vsel %vm1501, 1, 0
        %v1566 = vsel %vm1502, 1, 0
        %v1567 = vsel %vm1503, 1, 0
        %v1568 = vsel %vm1504, 1, 0
        %v1569 = vsel %vm1505, 1, 0
        %v1570 = vsel %vm1506, 1, 0
        %v1571 = vsel %vm1507, 1, 0
        %v1572 = vsel %vm1508, 1, 0
        %v1573 = vsel %vm1509, 1, 0
        %v1574 = vsel %vm1510, 1, 0
        %v1575 = vsel %vm1511, 1, 0
        %v1576 = vsel %vm1512, 1, 0
        %v1577 = vsel %vm1513, 1, 0
        %v1578 = vsel %vm1514, 1, 0
        %v1579 = vsel %vm1515, 1, 0
        %v1580 = vsel %vm1516, 1, 0
        %v1581 = vsel %vm1517, 1, 0
        %v1582 = vsel %vm1518, 1, 0
        %v1583 = vsel %vm1519, 1, 0
        %v1584 = vcvt.s32.f32 %v1520
        %v1585 = vcvt.s32.f32 %v1521
        %v1586 = vcvt.s32.f32 %v1522
        %v1587 = vcvt.s32.f32 %v1523
        %v1588 = vcvt.s32.f32 %v1524
        %v1589 = vcvt.s32.f32 %v1525
        %v1590 = vcvt.s32.f32 %v1526
        %v1591 = vcvt.s32.f32 %v1527
        %v1592 = vcvt.s32.f32 %v1528
        %v1593 = vcvt.s32.f32 %v1529
        %v1594 = vcvt.s32.f32 %v1530
        %v1595 = vcvt.s32.f32 %v1531
        %v1596 = vcvt.s32.f32 %v1532
        %v1597 = vcvt.s32.f32 %v1533
        %v1598 = vcvt.s32.f32 %v1534
        %v1599 = vcvt.s32.f32 %v1535
        %v1600 = vcvt.s32.f32 %v1536
        %v1601 = vcvt.s32.f32 %v1537
        %v1602 = vcvt.s32.f32 %v1538
        %v1603 = vcvt.s32.f32 %v1539
        %v1604 = vcvt.s32.f32 %v1540
        %v1605 = vcvt.s32.f32 %v1541
        %v1606 = vcvt.s32.f32 %v1542
        %v1607 = vcvt.s32.f32 %v1543
        %v1608 = vcvt.s32.f32 %v1544
        %v1609 = vcvt.s32.f32 %v1545
        %v1610 = vcvt.s32.f32 %v1546
        %v1611 = vcvt.s32.f32 %v1547
        %v1612 = vcvt.s32.f32 %v1548
        %v1613 = vcvt.s32.f32 %v1549
        %v1614 = vcvt.s32.f32 %v1550
        %v1615 = vcvt.s32.f32 %v1551
        %v1616 = vcvt.s32.f32 %v1552
        %v1617 = vcvt.s32.f32 %v1553
        %v1618 = vcvt.s32.f32 %v1554
        %v1619 = vcvt.s32.f32 %v1555
        %v1620 = vcvt.s32.f32 %v1556
        %v1621 = vcvt.s32.f32 %v1557
        %v1622 = vcvt.s32.f32 %v1558
        %v1623 = vcvt.s32.f32 %v1559
        %v1624 = vcvt.s32.f32 %v1560
        %v1625 = vcvt.s32.f32 %v1561
        %v1626 = vcvt.s32.f32 %v1562
        %v1627 = vcvt.s32.f32 %v1563
        %v1628 = vcvt.s32.f32 %v1564
        %v1629 = vcvt.s32.f32 %v1565
        %v1630 = vcvt.s32.f32 %v1566
        %v1631 = vcvt.s32.f32 %v1567
        %v1632 = vcvt.s32.f32 %v1568
        %v1633 = vcvt.s32.f32 %v1569
        %v1634 = vcvt.s32.f32 %v1570
        %v1635 = vcvt.s32.f32 %v1571
        %v1636 = vcvt.s32.f32 %v1572
        %v1637 = vcvt.s32.f32 %v1573
        %v1638 = vcvt.s32.f32 %v1574
        %v1639 = vcvt.s32.f32 %v1575
        %v1640 = vcvt.s32.f32 %v1576
        %v1641 = vcvt.s32.f32 %v1577
        %v1642 = vcvt.s32.f32 %v1578
        %v1643 = vcvt.s32.f32 %v1579
        %v1644 = vcvt.s32.f32 %v1580
        %v1645 = vcvt.s32.f32 %v1581
        %v1646 = vcvt.s32.f32 %v1582
        %v1647 = vcvt.s32.f32 %v1583
        %1712 = vrot.lane.b32.xlu0 %v558, 24
        %v1713 = vpop.permute.xlu0 %1712
        %1714 = vrot.lane.b32.xlu0 %v559, 24
        %v1715 = vpop.permute.xlu0 %1714
        %1716 = vrot.lane.b32.xlu0 %v560, 24
        %v1717 = vpop.permute.xlu0 %1716
        %1718 = vrot.lane.b32.xlu0 %v561, 24
        %v1719 = vpop.permute.xlu0 %1718
        %1720 = vrot.lane.b32.xlu0 %v562, 24
        %v1721 = vpop.permute.xlu0 %1720
        %1722 = vrot.lane.b32.xlu0 %v563, 24
        %v1723 = vpop.permute.xlu0 %1722
        %1724 = vrot.lane.b32.xlu0 %v564, 24
        %v1725 = vpop.permute.xlu0 %1724
        %1726 = vrot.lane.b32.xlu0 %v565, 24
        %v1727 = vpop.permute.xlu0 %1726
        %1728 = vrot.lane.b32.xlu0 %v566, 24
        %v1729 = vpop.permute.xlu0 %1728
        %1730 = vrot.lane.b32.xlu0 %v567, 24
        %v1731 = vpop.permute.xlu0 %1730
        %1732 = vrot.lane.b32.xlu0 %v568, 24
        %v1733 = vpop.permute.xlu0 %1732
        %1734 = vrot.lane.b32.xlu0 %v569, 24
        %v1735 = vpop.permute.xlu0 %1734
        %1736 = vrot.lane.b32.xlu0 %v570, 24
        %v1737 = vpop.permute.xlu0 %1736
        %1738 = vrot.lane.b32.xlu0 %v571, 24
        %v1739 = vpop.permute.xlu0 %1738
        %1740 = vrot.lane.b32.xlu0 %v572, 24
        %v1741 = vpop.permute.xlu0 %1740
        %1742 = vrot.lane.b32.xlu0 %v573, 24
        %v1743 = vpop.permute.xlu0 %1742
        %1744 = vrot.lane.b32.xlu0 %v574, 24
        %v1745 = vpop.permute.xlu0 %1744
        %1746 = vrot.lane.b32.xlu0 %v575, 24
        %v1747 = vpop.permute.xlu0 %1746
        %1748 = vrot.lane.b32.xlu0 %v576, 24
        %v1749 = vpop.permute.xlu0 %1748
        %1750 = vrot.lane.b32.xlu0 %v577, 24
        %v1751 = vpop.permute.xlu0 %1750
        %1752 = vrot.lane.b32.xlu0 %v578, 24
        %v1753 = vpop.permute.xlu0 %1752
        %1754 = vrot.lane.b32.xlu0 %v579, 24
        %v1755 = vpop.permute.xlu0 %1754
        %1756 = vrot.lane.b32.xlu0 %v580, 24
        %v1757 = vpop.permute.xlu0 %1756
        %1758 = vrot.lane.b32.xlu0 %v581, 24
        %v1759 = vpop.permute.xlu0 %1758
        %1760 = vrot.lane.b32.xlu0 %v582, 24
        %v1761 = vpop.permute.xlu0 %1760
        %1762 = vrot.lane.b32.xlu0 %v583, 24
        %v1763 = vpop.permute.xlu0 %1762
        %1764 = vrot.lane.b32.xlu0 %v584, 24
        %v1765 = vpop.permute.xlu0 %1764
        %1766 = vrot.lane.b32.xlu0 %v585, 24
        %v1767 = vpop.permute.xlu0 %1766
        %1768 = vrot.lane.b32.xlu0 %v586, 24
        %v1769 = vpop.permute.xlu0 %1768
        %1770 = vrot.lane.b32.xlu0 %v587, 24
        %v1771 = vpop.permute.xlu0 %1770
        %1772 = vrot.lane.b32.xlu0 %v588, 24
        %v1773 = vpop.permute.xlu0 %1772
        %1774 = vrot.lane.b32.xlu0 %v589, 24
        %v1775 = vpop.permute.xlu0 %1774
        %1776 = vrot.lane.b32.xlu0 %v590, 24
        %v1777 = vpop.permute.xlu0 %1776
        %1778 = vrot.lane.b32.xlu0 %v591, 24
        %v1779 = vpop.permute.xlu0 %1778
        %1780 = vrot.lane.b32.xlu0 %v592, 24
        %v1781 = vpop.permute.xlu0 %1780
        %1782 = vrot.lane.b32.xlu0 %v593, 24
        %v1783 = vpop.permute.xlu0 %1782
        %1784 = vrot.lane.b32.xlu0 %v594, 24
        %v1785 = vpop.permute.xlu0 %1784
        %1786 = vrot.lane.b32.xlu0 %v595, 24
        %v1787 = vpop.permute.xlu0 %1786
        %1788 = vrot.lane.b32.xlu0 %v596, 24
        %v1789 = vpop.permute.xlu0 %1788
        %1790 = vrot.lane.b32.xlu0 %v597, 24
        %v1791 = vpop.permute.xlu0 %1790
        %1792 = vrot.lane.b32.xlu0 %v598, 24
        %v1793 = vpop.permute.xlu0 %1792
        %1794 = vrot.lane.b32.xlu0 %v599, 24
        %v1795 = vpop.permute.xlu0 %1794
        %1796 = vrot.lane.b32.xlu0 %v600, 24
        %v1797 = vpop.permute.xlu0 %1796
        %1798 = vrot.lane.b32.xlu0 %v601, 24
        %v1799 = vpop.permute.xlu0 %1798
        %1800 = vrot.lane.b32.xlu0 %v602, 24
        %v1801 = vpop.permute.xlu0 %1800
        %1802 = vrot.lane.b32.xlu0 %v603, 24
        %v1803 = vpop.permute.xlu0 %1802
        %1804 = vrot.lane.b32.xlu0 %v604, 24
        %v1805 = vpop.permute.xlu0 %1804
        %1806 = vrot.lane.b32.xlu0 %v605, 24
        %v1807 = vpop.permute.xlu0 %1806
        %1808 = vrot.lane.b32.xlu0 %v606, 24
        %v1809 = vpop.permute.xlu0 %1808
        %1810 = vrot.lane.b32.xlu0 %v607, 24
        %v1811 = vpop.permute.xlu0 %1810
        %1812 = vrot.lane.b32.xlu0 %v608, 24
        %v1813 = vpop.permute.xlu0 %1812
        %1814 = vrot.lane.b32.xlu0 %v609, 24
        %v1815 = vpop.permute.xlu0 %1814
        %1816 = vrot.lane.b32.xlu0 %v610, 24
        %v1817 = vpop.permute.xlu0 %1816
        %1818 = vrot.lane.b32.xlu0 %v611, 24
        %v1819 = vpop.permute.xlu0 %1818
        %1820 = vrot.lane.b32.xlu0 %v612, 24
        %v1821 = vpop.permute.xlu0 %1820
        %1822 = vrot.lane.b32.xlu0 %v613, 24
        %v1823 = vpop.permute.xlu0 %1822
        %1824 = vrot.lane.b32.xlu0 %v614, 24
        %v1825 = vpop.permute.xlu0 %1824
        %1826 = vrot.lane.b32.xlu0 %v615, 24
        %v1827 = vpop.permute.xlu0 %1826
        %1828 = vrot.lane.b32.xlu0 %v616, 24
        %v1829 = vpop.permute.xlu0 %1828
        %1830 = vrot.lane.b32.xlu0 %v617, 24
        %v1831 = vpop.permute.xlu0 %1830
        %1832 = vrot.lane.b32.xlu0 %v618, 24
        %v1833 = vpop.permute.xlu0 %1832
        %1834 = vrot.lane.b32.xlu0 %v619, 24
        %v1835 = vpop.permute.xlu0 %1834
        %1836 = vrot.lane.b32.xlu0 %v620, 24
        %v1837 = vpop.permute.xlu0 %1836
        %1838 = vrot.lane.b32.xlu0 %v621, 24
        %v1839 = vpop.permute.xlu0 %1838
        %vm1904 = vcmask 195584
        %v1905 = vsel %vm1904, %v1584, %v1713
        %v1906 = vsel %vm1904, %v1585, %v1715
        %v1907 = vsel %vm1904, %v1586, %v1717
        %v1908 = vsel %vm1904, %v1587, %v1719
        %v1909 = vsel %vm1904, %v1588, %v1721
        %v1910 = vsel %vm1904, %v1589, %v1723
        %v1911 = vsel %vm1904, %v1590, %v1725
        %v1912 = vsel %vm1904, %v1591, %v1727
        %v1913 = vsel %vm1904, %v1592, %v1729
        %v1914 = vsel %vm1904, %v1593, %v1731
        %v1915 = vsel %vm1904, %v1594, %v1733
        %v1916 = vsel %vm1904, %v1595, %v1735
        %v1917 = vsel %vm1904, %v1596, %v1737
        %v1918 = vsel %vm1904, %v1597, %v1739
        %v1919 = vsel %vm1904, %v1598, %v1741
        %v1920 = vsel %vm1904, %v1599, %v1743
        %v1921 = vsel %vm1904, %v1600, %v1745
        %v1922 = vsel %vm1904, %v1601, %v1747
        %v1923 = vsel %vm1904, %v1602, %v1749
        %v1924 = vsel %vm1904, %v1603, %v1751
        %v1925 = vsel %vm1904, %v1604, %v1753
        %v1926 = vsel %vm1904, %v1605, %v1755
        %v1927 = vsel %vm1904, %v1606, %v1757
        %v1928 = vsel %vm1904, %v1607, %v1759
        %v1929 = vsel %vm1904, %v1608, %v1761
        %v1930 = vsel %vm1904, %v1609, %v1763
        %v1931 = vsel %vm1904, %v1610, %v1765
        %v1932 = vsel %vm1904, %v1611, %v1767
        %v1933 = vsel %vm1904, %v1612, %v1769
        %v1934 = vsel %vm1904, %v1613, %v1771
        %v1935 = vsel %vm1904, %v1614, %v1773
        %v1936 = vsel %vm1904, %v1615, %v1775
        %v1937 = vsel %vm1904, %v1616, %v1777
        %v1938 = vsel %vm1904, %v1617, %v1779
        %v1939 = vsel %vm1904, %v1618, %v1781
        %v1940 = vsel %vm1904, %v1619, %v1783
        %v1941 = vsel %vm1904, %v1620, %v1785
        %v1942 = vsel %vm1904, %v1621, %v1787
        %v1943 = vsel %vm1904, %v1622, %v1789
        %v1944 = vsel %vm1904, %v1623, %v1791
        %v1945 = vsel %vm1904, %v1624, %v1793
        %v1946 = vsel %vm1904, %v1625, %v1795
        %v1947 = vsel %vm1904, %v1626, %v1797
        %v1948 = vsel %vm1904, %v1627, %v1799
        %v1949 = vsel %vm1904, %v1628, %v1801
        %v1950 = vsel %vm1904, %v1629, %v1803
        %v1951 = vsel %vm1904, %v1630, %v1805
        %v1952 = vsel %vm1904, %v1631, %v1807
        %v1953 = vsel %vm1904, %v1632, %v1809
        %v1954 = vsel %vm1904, %v1633, %v1811
        %v1955 = vsel %vm1904, %v1634, %v1813
        %v1956 = vsel %vm1904, %v1635, %v1815
        %v1957 = vsel %vm1904, %v1636, %v1817
        %v1958 = vsel %vm1904, %v1637, %v1819
        %v1959 = vsel %vm1904, %v1638, %v1821
        %v1960 = vsel %vm1904, %v1639, %v1823
        %v1961 = vsel %vm1904, %v1640, %v1825
        %v1962 = vsel %vm1904, %v1641, %v1827
        %v1963 = vsel %vm1904, %v1642, %v1829
        %v1964 = vsel %vm1904, %v1643, %v1831
        %v1965 = vsel %vm1904, %v1644, %v1833
        %v1966 = vsel %vm1904, %v1645, %v1835
        %v1967 = vsel %vm1904, %v1646, %v1837
        %v1968 = vsel %vm1904, %v1647, %v1839
        %v1969 = vpack.c.bf16 %v1906, %v1905
        %v1970 = vpack.c.bf16 %v1908, %v1907
        %v1971 = vpack.c.bf16 %v1910, %v1909
        %v1972 = vpack.c.bf16 %v1912, %v1911
        %v1973 = vpack.c.bf16 %v1914, %v1913
        %v1974 = vpack.c.bf16 %v1916, %v1915
        %v1975 = vpack.c.bf16 %v1918, %v1917
        %v1976 = vpack.c.bf16 %v1920, %v1919
        %v1977 = vpack.c.bf16 %v1922, %v1921
        %v1978 = vpack.c.bf16 %v1924, %v1923
        %v1979 = vpack.c.bf16 %v1926, %v1925
        %v1980 = vpack.c.bf16 %v1928, %v1927
        %v1981 = vpack.c.bf16 %v1930, %v1929
        %v1982 = vpack.c.bf16 %v1932, %v1931
        %v1983 = vpack.c.bf16 %v1934, %v1933
        %v1984 = vpack.c.bf16 %v1936, %v1935
        %v1985 = vpack.c.bf16 %v1938, %v1937
        %v1986 = vpack.c.bf16 %v1940, %v1939
        %v1987 = vpack.c.bf16 %v1942, %v1941
        %v1988 = vpack.c.bf16 %v1944, %v1943
        %v1989 = vpack.c.bf16 %v1946, %v1945
        %v1990 = vpack.c.bf16 %v1948, %v1947
        %v1991 = vpack.c.bf16 %v1950, %v1949
        %v1992 = vpack.c.bf16 %v1952, %v1951
        %v1993 = vpack.c.bf16 %v1954, %v1953
        %v1994 = vpack.c.bf16 %v1956, %v1955
        %v1995 = vpack.c.bf16 %v1958, %v1957
        %v1996 = vpack.c.bf16 %v1960, %v1959
        %v1997 = vpack.c.bf16 %v1962, %v1961
        %v1998 = vpack.c.bf16 %v1964, %v1963
        %v1999 = vpack.c.bf16 %v1966, %v1965
        %v2000 = vpack.c.bf16 %v1968, %v1967
        %v2001 = vld [vmem:[%s2] sm:$0xf]
        %v2002 = vld [vmem:[%s2 + $0x4] sm:$0xf]
        %v2003 = vld [vmem:[%s2 + $0x8] sm:$0xf]
        %v2004 = vld [vmem:[%s2 + $0xc] sm:$0xf]
        %v2005 = vld [vmem:[%s3] sm:$0x1]
        %v2007 = vlaneseq
        %v2008 = vshrl.u32 %v2007, 7
        %v2009 = vsub.s32 0, %v2008
        %v2010 = vrot.slane %v2005, %v2009
        %v2016 = vunpack.c.l.b16 %v2001
        %v2017 = vunpack.c.l.b16 %v2002
        %v2018 = vunpack.c.l.b16 %v2003
        %v2019 = vunpack.c.l.b16 %v2004
        %v2020 = vpack.c.b16 %v2017, %v2016
        %v2021 = vpack.c.b16 %v2019, %v2018
        %vm2024 = vcmask 261120
        %v2026 = vsel %vm2024, %v1969, 0
        %v2029 = vsel %vm2024, %v1970, 0
        %v2032 = vsel %vm2024, %v1971, 0
        %v2035 = vsel %vm2024, %v1972, 0
        %v2038 = vsel %vm2024, %v1973, 0
        %v2041 = vsel %vm2024, %v1974, 0
        %v2044 = vsel %vm2024, %v1975, 0
        %v2047 = vsel %vm2024, %v1976, 0
        %v2050 = vsel %vm2024, %v1977, 0
        %v2053 = vsel %vm2024, %v1978, 0
        %v2056 = vsel %vm2024, %v1979, 0
        %v2059 = vsel %vm2024, %v1980, 0
        %v2062 = vsel %vm2024, %v1981, 0
        %v2065 = vsel %vm2024, %v1982, 0
        %v2068 = vsel %vm2024, %v1983, 0
        %v2071 = vsel %vm2024, %v1984, 0
        %v2074 = vsel %vm2024, %v1985, 0
        %v2077 = vsel %vm2024, %v1986, 0
        %v2080 = vsel %vm2024, %v1987, 0
        %v2083 = vsel %vm2024, %v1988, 0
        %v2086 = vsel %vm2024, %v1989, 0
        %v2089 = vsel %vm2024, %v1990, 0
        %v2092 = vsel %vm2024, %v1991, 0
        %v2095 = vsel %vm2024, %v1992, 0
        %v2098 = vsel %vm2024, %v1993, 0
        %v2101 = vsel %vm2024, %v1994, 0
        %v2104 = vsel %vm2024, %v1995, 0
        %v2107 = vsel %vm2024, %v1996, 0
        %v2110 = vsel %vm2024, %v1997, 0
        %v2113 = vsel %vm2024, %v1998, 0
        %v2116 = vsel %vm2024, %v1999, 0
        %v2119 = vsel %vm2024, %v2000, 0
        %2121 = vmatprep.subr.bf16.mxu0 0
        %2122 = vmatpush1.bf16.msra.mxu0 %v2020
        %2123 = vmatprep.subr.bf16.mxu0 0
        %2124 = vmatpush1.bf16.msra.mxu0 %v2021
        %2125 = vmatprep.subr.bf16.mxu0 0
        %2126 = vmatpush1.bf16.msra.mxu0 0
        %2127 = vmatprep.subr.bf16.mxu0 0
        %2128 = vmatpush1.bf16.msra.mxu0 0
        %2129 = vmatprep.subr.bf16.mxu0 0
        %2130 = vmatpush1.bf16.msra.mxu0 0
        %2131 = vmatprep.subr.bf16.mxu0 0
        %2132 = vmatpush1.bf16.msra.mxu0 0
        %2133 = vmatprep.subr.bf16.mxu0 0
        %2134 = vmatpush1.bf16.msra.mxu0 0
        %2135 = vmatprep.subr.bf16.mxu0 0
        %2136 = vmatpush1.bf16.msra.mxu0 0
        %2137 = vmatprep.subr.bf16.mxu0 0
        %2138 = vmatpush1.bf16.msra.mxu0 0
        %2139 = vmatprep.subr.bf16.mxu0 0
        %2140 = vmatpush1.bf16.msra.mxu0 0
        %2141 = vmatprep.subr.bf16.mxu0 0
        %2142 = vmatpush1.bf16.msra.mxu0 0
        %2143 = vmatprep.subr.bf16.mxu0 0
        %2144 = vmatpush1.bf16.msra.mxu0 0
        %2145 = vmatprep.subr.bf16.mxu0 0
        %2146 = vmatpush1.bf16.msra.mxu0 0
        %2147 = vmatprep.subr.bf16.mxu0 0
        %2148 = vmatpush1.bf16.msra.mxu0 0
        %2149 = vmatprep.subr.bf16.mxu0 0
        %2150 = vmatpush1.bf16.msra.mxu0 0
        %2151 = vmatprep.subr.bf16.mxu0 0
        %2152 = vmatpush1.bf16.msra.mxu0 0
        %2153 = vmatprep.mubr.bf16.mxu0 0
        %2154 = vmatmul.mubr.bf16.gmra.mrb[0].mxu0 %v2026
        %v2155 = vpop.f32.mrb[0].mxu0
        %v2156 = vadd.f32 %v2010, %v2155
        %v2157 = vpop.f32.mrb[0].mxu0
        %v2158 = vpop.f32.mrb[0].mxu0
        %v2159 = vadd.f32 %v2010, %v2158
        %v2160 = vpop.f32.mrb[0].mxu0
        %2161 = vmatprep.mubr.bf16.mxu0 0
        %2162 = vmatmul.mubr.bf16.gmra.mrb[0].mxu0 %v2029
        %v2163 = vpop.f32.mrb[0].mxu0
        %v2164 = vadd.f32 %v2010, %v2163
        %v2165 = vpop.f32.mrb[0].mxu0
        %v2166 = vpop.f32.mrb[0].mxu0
        %v2167 = vadd.f32 %v2010, %v2166
        %v2168 = vpop.f32.mrb[0].mxu0
        %2169 = vmatprep.mubr.bf16.mxu0 0
        %2170 = vmatmul.mubr.bf16.gmra.mrb[0].mxu0 %v2032
        %v2171 = vpop.f32.mrb[0].mxu0
        %v2172 = vadd.f32 %v2010, %v2171
        %v2173 = vpop.f32.mrb[0].mxu0
        %v2174 = vpop.f32.mrb[0].mxu0
        %v2175 = vadd.f32 %v2010, %v2174
        %v2176 = vpop.f32.mrb[0].mxu0
        %2177 = vmatprep.mubr.bf16.mxu0 0
        %2178 = vmatmul.mubr.bf16.gmra.mrb[0].mxu0 %v2035
        %v2179 = vpop.f32.mrb[0].mxu0
        %v2180 = vadd.f32 %v2010, %v2179
        %v2181 = vpop.f32.mrb[0].mxu0
        %v2182 = vpop.f32.mrb[0].mxu0
        %v2183 = vadd.f32 %v2010, %v2182
        %v2184 = vpop.f32.mrb[0].mxu0
        %2185 = vmatprep.mubr.bf16.mxu0 0
        %2186 = vmatmul.mubr.bf16.gmra.mrb[0].mxu0 %v2038
        %v2187 = vpop.f32.mrb[0].mxu0
        %v2188 = vadd.f32 %v2010, %v2187
        %v2189 = vpop.f32.mrb[0].mxu0
        %v2190 = vpop.f32.mrb[0].mxu0
        %v2191 = vadd.f32 %v2010, %v2190
        %v2192 = vpop.f32.mrb[0].mxu0
        %2193 = vmatprep.mubr.bf16.mxu0 0
        %2194 = vmatmul.mubr.bf16.gmra.mrb[0].mxu0 %v2041
        %v2195 = vpop.f32.mrb[0].mxu0
        %v2196 = vadd.f32 %v2010, %v2195
        %v2197 = vpop.f32.mrb[0].mxu0
        %v2198 = vpop.f32.mrb[0].mxu0
        %v2199 = vadd.f32 %v2010, %v2198
        %v2200 = vpop.f32.mrb[0].mxu0
        %2201 = vmatprep.mubr.bf16.mxu0 0
        %2202 = vmatmul.mubr.bf16.gmra.mrb[0].mxu0 %v2044
        %v2203 = vpop.f32.mrb[0].mxu0
        %v2204 = vadd.f32 %v2010, %v2203
        %v2205 = vpop.f32.mrb[0].mxu0
        %v2206 = vpop.f32.mrb[0].mxu0
        %v2207 = vadd.f32 %v2010, %v2206
        %v2208 = vpop.f32.mrb[0].mxu0
        %2209 = vmatprep.mubr.bf16.mxu0 0
        %2210 = vmatmul.mubr.bf16.gmra.mrb[0].mxu0 %v2047
        %v2211 = vpop.f32.mrb[0].mxu0
        %v2212 = vadd.f32 %v2010, %v2211
        %v2213 = vpop.f32.mrb[0].mxu0
        %v2214 = vpop.f32.mrb[0].mxu0
        %v2215 = vadd.f32 %v2010, %v2214
        %v2216 = vpop.f32.mrb[0].mxu0
        %2217 = vmatprep.mubr.bf16.mxu0 0
        %2218 = vmatmul.mubr.bf16.gmra.mrb[0].mxu0 %v2050
        %v2219 = vpop.f32.mrb[0].mxu0
        %v2220 = vadd.f32 %v2010, %v2219
        %v2221 = vpop.f32.mrb[0].mxu0
        %v2222 = vpop.f32.mrb[0].mxu0
        %v2223 = vadd.f32 %v2010, %v2222
        %v2224 = vpop.f32.mrb[0].mxu0
        %2225 = vmatprep.mubr.bf16.mxu0 0
        %2226 = vmatmul.mubr.bf16.gmra.mrb[0].mxu0 %v2053
        %v2227 = vpop.f32.mrb[0].mxu0
        %v2228 = vadd.f32 %v2010, %v2227
        %v2229 = vpop.f32.mrb[0].mxu0
        %v2230 = vpop.f32.mrb[0].mxu0
        %v2231 = vadd.f32 %v2010, %v2230
        %v2232 = vpop.f32.mrb[0].mxu0
        %2233 = vmatprep.mubr.bf16.mxu0 0
        %2234 = vmatmul.mubr.bf16.gmra.mrb[0].mxu0 %v2056
        %v2235 = vpop.f32.mrb[0].mxu0
        %v2236 = vadd.f32 %v2010, %v2235
        %v2237 = vpop.f32.mrb[0].mxu0
        %v2238 = vpop.f32.mrb[0].mxu0
        %v2239 = vadd.f32 %v2010, %v2238
        %v2240 = vpop.f32.mrb[0].mxu0
        %2241 = vmatprep.mubr.bf16.mxu0 0
        %2242 = vmatmul.mubr.bf16.gmra.mrb[0].mxu0 %v2059
        %v2243 = vpop.f32.mrb[0].mxu0
        %v2244 = vadd.f32 %v2010, %v2243
        %v2245 = vpop.f32.mrb[0].mxu0
        %v2246 = vpop.f32.mrb[0].mxu0
        %v2247 = vadd.f32 %v2010, %v2246
        %v2248 = vpop.f32.mrb[0].mxu0
        %2249 = vmatprep.mubr.bf16.mxu0 0
        %2250 = vmatmul.mubr.bf16.gmra.mrb[0].mxu0 %v2062
        %v2251 = vpop.f32.mrb[0].mxu0
        %v2252 = vadd.f32 %v2010, %v2251
        %v2253 = vpop.f32.mrb[0].mxu0
        %v2254 = vpop.f32.mrb[0].mxu0
        %v2255 = vadd.f32 %v2010, %v2254
        %v2256 = vpop.f32.mrb[0].mxu0
        %2257 = vmatprep.mubr.bf16.mxu0 0
        %2258 = vmatmul.mubr.bf16.gmra.mrb[0].mxu0 %v2065
        %v2259 = vpop.f32.mrb[0].mxu0
        %v2260 = vadd.f32 %v2010, %v2259
        %v2261 = vpop.f32.mrb[0].mxu0
        %v2262 = vpop.f32.mrb[0].mxu0
        %v2263 = vadd.f32 %v2010, %v2262
        %v2264 = vpop.f32.mrb[0].mxu0
        %2265 = vmatprep.mubr.bf16.mxu0 0
        %2266 = vmatmul.mubr.bf16.gmra.mrb[0].mxu0 %v2068
        %v2267 = vpop.f32.mrb[0].mxu0
        %v2268 = vadd.f32 %v2010, %v2267
        %v2269 = vpop.f32.mrb[0].mxu0
        %v2270 = vpop.f32.mrb[0].mxu0
        %v2271 = vadd.f32 %v2010, %v2270
        %v2272 = vpop.f32.mrb[0].mxu0
        %2273 = vmatprep.mubr.bf16.mxu0 0
        %2274 = vmatmul.mubr.bf16.gmra.mrb[0].mxu0 %v2071
        %v2275 = vpop.f32.mrb[0].mxu0
        %v2276 = vadd.f32 %v2010, %v2275
        %v2277 = vpop.f32.mrb[0].mxu0
        %v2278 = vpop.f32.mrb[0].mxu0
        %v2279 = vadd.f32 %v2010, %v2278
        %v2280 = vpop.f32.mrb[0].mxu0
        %2281 = vmatprep.mubr.bf16.mxu0 0
        %2282 = vmatmul.mubr.bf16.gmra.mrb[0].mxu0 %v2074
        %v2283 = vpop.f32.mrb[0].mxu0
        %v2284 = vadd.f32 %v2010, %v2283
        %v2285 = vpop.f32.mrb[0].mxu0
        %v2286 = vpop.f32.mrb[0].mxu0
        %v2287 = vadd.f32 %v2010, %v2286
        %v2288 = vpop.f32.mrb[0].mxu0
        %2289 = vmatprep.mubr.bf16.mxu0 0
        %2290 = vmatmul.mubr.bf16.gmra.mrb[0].mxu0 %v2077
        %v2291 = vpop.f32.mrb[0].mxu0
        %v2292 = vadd.f32 %v2010, %v2291
        %v2293 = vpop.f32.mrb[0].mxu0
        %v2294 = vpop.f32.mrb[0].mxu0
        %v2295 = vadd.f32 %v2010, %v2294
        %v2296 = vpop.f32.mrb[0].mxu0
        %2297 = vmatprep.mubr.bf16.mxu0 0
        %2298 = vmatmul.mubr.bf16.gmra.mrb[0].mxu0 %v2080
        %v2299 = vpop.f32.mrb[0].mxu0
        %v2300 = vadd.f32 %v2010, %v2299
        %v2301 = vpop.f32.mrb[0].mxu0
        %v2302 = vpop.f32.mrb[0].mxu0
        %v2303 = vadd.f32 %v2010, %v2302
        %v2304 = vpop.f32.mrb[0].mxu0
        %2305 = vmatprep.mubr.bf16.mxu0 0
        %2306 = vmatmul.mubr.bf16.gmra.mrb[0].mxu0 %v2083
        %v2307 = vpop.f32.mrb[0].mxu0
        %v2308 = vadd.f32 %v2010, %v2307
        %v2309 = vpop.f32.mrb[0].mxu0
        %v2310 = vpop.f32.mrb[0].mxu0
        %v2311 = vadd.f32 %v2010, %v2310
        %v2312 = vpop.f32.mrb[0].mxu0
        %2313 = vmatprep.mubr.bf16.mxu0 0
        %2314 = vmatmul.mubr.bf16.gmra.mrb[0].mxu0 %v2086
        %v2315 = vpop.f32.mrb[0].mxu0
        %v2316 = vadd.f32 %v2010, %v2315
        %v2317 = vpop.f32.mrb[0].mxu0
        %v2318 = vpop.f32.mrb[0].mxu0
        %v2319 = vadd.f32 %v2010, %v2318
        %v2320 = vpop.f32.mrb[0].mxu0
        %2321 = vmatprep.mubr.bf16.mxu0 0
        %2322 = vmatmul.mubr.bf16.gmra.mrb[0].mxu0 %v2089
        %v2323 = vpop.f32.mrb[0].mxu0
        %v2324 = vadd.f32 %v2010, %v2323
        %v2325 = vpop.f32.mrb[0].mxu0
        %v2326 = vpop.f32.mrb[0].mxu0
        %v2327 = vadd.f32 %v2010, %v2326
        %v2328 = vpop.f32.mrb[0].mxu0
        %2329 = vmatprep.mubr.bf16.mxu0 0
        %2330 = vmatmul.mubr.bf16.gmra.mrb[0].mxu0 %v2092
        %v2331 = vpop.f32.mrb[0].mxu0
        %v2332 = vadd.f32 %v2010, %v2331
        %v2333 = vpop.f32.mrb[0].mxu0
        %v2334 = vpop.f32.mrb[0].mxu0
        %v2335 = vadd.f32 %v2010, %v2334
        %v2336 = vpop.f32.mrb[0].mxu0
        %2337 = vmatprep.mubr.bf16.mxu0 0
        %2338 = vmatmul.mubr.bf16.gmra.mrb[0].mxu0 %v2095
        %v2339 = vpop.f32.mrb[0].mxu0
        %v2340 = vadd.f32 %v2010, %v2339
        %v2341 = vpop.f32.mrb[0].mxu0
        %v2342 = vpop.f32.mrb[0].mxu0
        %v2343 = vadd.f32 %v2010, %v2342
        %v2344 = vpop.f32.mrb[0].mxu0
        %2345 = vmatprep.mubr.bf16.mxu0 0
        %2346 = vmatmul.mubr.bf16.gmra.mrb[0].mxu0 %v2098
        %v2347 = vpop.f32.mrb[0].mxu0
        %v2348 = vadd.f32 %v2010, %v2347
        %v2349 = vpop.f32.mrb[0].mxu0
        %v2350 = vpop.f32.mrb[0].mxu0
        %v2351 = vadd.f32 %v2010, %v2350
        %v2352 = vpop.f32.mrb[0].mxu0
        %2353 = vmatprep.mubr.bf16.mxu0 0
        %2354 = vmatmul.mubr.bf16.gmra.mrb[0].mxu0 %v2101
        %v2355 = vpop.f32.mrb[0].mxu0
        %v2356 = vadd.f32 %v2010, %v2355
        %v2357 = vpop.f32.mrb[0].mxu0
        %v2358 = vpop.f32.mrb[0].mxu0
        %v2359 = vadd.f32 %v2010, %v2358
        %v2360 = vpop.f32.mrb[0].mxu0
        %2361 = vmatprep.mubr.bf16.mxu0 0
        %2362 = vmatmul.mubr.bf16.gmra.mrb[0].mxu0 %v2104
        %v2363 = vpop.f32.mrb[0].mxu0
        %v2364 = vadd.f32 %v2010, %v2363
        %v2365 = vpop.f32.mrb[0].mxu0
        %v2366 = vpop.f32.mrb[0].mxu0
        %v2367 = vadd.f32 %v2010, %v2366
        %v2368 = vpop.f32.mrb[0].mxu0
        %2369 = vmatprep.mubr.bf16.mxu0 0
        %2370 = vmatmul.mubr.bf16.gmra.mrb[0].mxu0 %v2107
        %v2371 = vpop.f32.mrb[0].mxu0
        %v2372 = vadd.f32 %v2010, %v2371
        %v2373 = vpop.f32.mrb[0].mxu0
        %v2374 = vpop.f32.mrb[0].mxu0
        %v2375 = vadd.f32 %v2010, %v2374
        %v2376 = vpop.f32.mrb[0].mxu0
        %2377 = vmatprep.mubr.bf16.mxu0 0
        %2378 = vmatmul.mubr.bf16.gmra.mrb[0].mxu0 %v2110
        %v2379 = vpop.f32.mrb[0].mxu0
        %v2380 = vadd.f32 %v2010, %v2379
        %v2381 = vpop.f32.mrb[0].mxu0
        %v2382 = vpop.f32.mrb[0].mxu0
        %v2383 = vadd.f32 %v2010, %v2382
        %v2384 = vpop.f32.mrb[0].mxu0
        %2385 = vmatprep.mubr.bf16.mxu0 0
        %2386 = vmatmul.mubr.bf16.gmra.mrb[0].mxu0 %v2113
        %v2387 = vpop.f32.mrb[0].mxu0
        %v2388 = vadd.f32 %v2010, %v2387
        %v2389 = vpop.f32.mrb[0].mxu0
        %v2390 = vpop.f32.mrb[0].mxu0
        %v2391 = vadd.f32 %v2010, %v2390
        %v2392 = vpop.f32.mrb[0].mxu0
        %2393 = vmatprep.mubr.bf16.mxu0 0
        %2394 = vmatmul.mubr.bf16.gmra.mrb[0].mxu0 %v2116
        %v2395 = vpop.f32.mrb[0].mxu0
        %v2396 = vadd.f32 %v2010, %v2395
        %v2397 = vpop.f32.mrb[0].mxu0
        %v2398 = vpop.f32.mrb[0].mxu0
        %v2399 = vadd.f32 %v2010, %v2398
        %v2400 = vpop.f32.mrb[0].mxu0
        %2401 = vmatprep.mubr.bf16.mxu0 0
        %2402 = vmatmul.mubr.bf16.gmra.mrb[0].mxu0 %v2119
        %v2403 = vpop.f32.mrb[0].mxu0
        %v2404 = vadd.f32 %v2010, %v2403
        %v2405 = vpop.f32.mrb[0].mxu0
        %v2406 = vpop.f32.mrb[0].mxu0
        %v2407 = vadd.f32 %v2010, %v2406
        %v2408 = vpop.f32.mrb[0].mxu0
        %2409 = vdwg.mxu0
        %v2410 = vsel %vm2024, %v2156, 0.0
        %2411 = vadd.xlane.f32.xlu0 %v2410
        %v2412 = vpop.xlane.xlu0 %2411
        %v2413 = vsel %vm2024, %v2159, 0.0
        %2414 = vadd.xlane.f32.xlu0 %v2413
        %v2415 = vpop.xlane.xlu0 %2414
        %v2416 = vsel %vm2024, %v2164, 0.0
        %2417 = vadd.xlane.f32.xlu0 %v2416
        %v2418 = vpop.xlane.xlu0 %2417
        %v2419 = vsel %vm2024, %v2167, 0.0
        %2420 = vadd.xlane.f32.xlu0 %v2419
        %v2421 = vpop.xlane.xlu0 %2420
        %v2422 = vsel %vm2024, %v2172, 0.0
        %2423 = vadd.xlane.f32.xlu0 %v2422
        %v2424 = vpop.xlane.xlu0 %2423
        %v2425 = vsel %vm2024, %v2175, 0.0
        %2426 = vadd.xlane.f32.xlu0 %v2425
        %v2427 = vpop.xlane.xlu0 %2426
        %v2428 = vsel %vm2024, %v2180, 0.0
        %2429 = vadd.xlane.f32.xlu0 %v2428
        %v2430 = vpop.xlane.xlu0 %2429
        %v2431 = vsel %vm2024, %v2183, 0.0
        %2432 = vadd.xlane.f32.xlu0 %v2431
        %v2433 = vpop.xlane.xlu0 %2432
        %v2434 = vsel %vm2024, %v2188, 0.0
        %2435 = vadd.xlane.f32.xlu0 %v2434
        %v2436 = vpop.xlane.xlu0 %2435
        %v2437 = vsel %vm2024, %v2191, 0.0
        %2438 = vadd.xlane.f32.xlu0 %v2437
        %v2439 = vpop.xlane.xlu0 %2438
        %v2440 = vsel %vm2024, %v2196, 0.0
        %2441 = vadd.xlane.f32.xlu0 %v2440
        %v2442 = vpop.xlane.xlu0 %2441
        %v2443 = vsel %vm2024, %v2199, 0.0
        %2444 = vadd.xlane.f32.xlu0 %v2443
        %v2445 = vpop.xlane.xlu0 %2444
        %v2446 = vsel %vm2024, %v2204, 0.0
        %2447 = vadd.xlane.f32.xlu0 %v2446
        %v2448 = vpop.xlane.xlu0 %2447
        %v2449 = vsel %vm2024, %v2207, 0.0
        %2450 = vadd.xlane.f32.xlu0 %v2449
        %v2451 = vpop.xlane.xlu0 %2450
        %v2452 = vsel %vm2024, %v2212, 0.0
        %2453 = vadd.xlane.f32.xlu0 %v2452
        %v2454 = vpop.xlane.xlu0 %2453
        %v2455 = vsel %vm2024, %v2215, 0.0
        %2456 = vadd.xlane.f32.xlu0 %v2455
        %v2457 = vpop.xlane.xlu0 %2456
        %v2458 = vsel %vm2024, %v2220, 0.0
        %2459 = vadd.xlane.f32.xlu0 %v2458
        %v2460 = vpop.xlane.xlu0 %2459
        %v2461 = vsel %vm2024, %v2223, 0.0
        %2462 = vadd.xlane.f32.xlu0 %v2461
        %v2463 = vpop.xlane.xlu0 %2462
        %v2464 = vsel %vm2024, %v2228, 0.0
        %2465 = vadd.xlane.f32.xlu0 %v2464
        %v2466 = vpop.xlane.xlu0 %2465
        %v2467 = vsel %vm2024, %v2231, 0.0
        %2468 = vadd.xlane.f32.xlu0 %v2467
        %v2469 = vpop.xlane.xlu0 %2468
        %v2470 = vsel %vm2024, %v2236, 0.0
        %2471 = vadd.xlane.f32.xlu0 %v2470
        %v2472 = vpop.xlane.xlu0 %2471
        %v2473 = vsel %vm2024, %v2239, 0.0
        %2474 = vadd.xlane.f32.xlu0 %v2473
        %v2475 = vpop.xlane.xlu0 %2474
        %v2476 = vsel %vm2024, %v2244, 0.0
        %2477 = vadd.xlane.f32.xlu0 %v2476
        %v2478 = vpop.xlane.xlu0 %2477
        %v2479 = vsel %vm2024, %v2247, 0.0
        %2480 = vadd.xlane.f32.xlu0 %v2479
        %v2481 = vpop.xlane.xlu0 %2480
        %v2482 = vsel %vm2024, %v2252, 0.0
        %2483 = vadd.xlane.f32.xlu0 %v2482
        %v2484 = vpop.xlane.xlu0 %2483
        %v2485 = vsel %vm2024, %v2255, 0.0
        %2486 = vadd.xlane.f32.xlu0 %v2485
        %v2487 = vpop.xlane.xlu0 %2486
        %v2488 = vsel %vm2024, %v2260, 0.0
        %2489 = vadd.xlane.f32.xlu0 %v2488
        %v2490 = vpop.xlane.xlu0 %2489
        %v2491 = vsel %vm2024, %v2263, 0.0
        %2492 = vadd.xlane.f32.xlu0 %v2491
        %v2493 = vpop.xlane.xlu0 %2492
        %v2494 = vsel %vm2024, %v2268, 0.0
        %2495 = vadd.xlane.f32.xlu0 %v2494
        %v2496 = vpop.xlane.xlu0 %2495
        %v2497 = vsel %vm2024, %v2271, 0.0
        %2498 = vadd.xlane.f32.xlu0 %v2497
        %v2499 = vpop.xlane.xlu0 %2498
        %v2500 = vsel %vm2024, %v2276, 0.0
        %2501 = vadd.xlane.f32.xlu0 %v2500
        %v2502 = vpop.xlane.xlu0 %2501
        %v2503 = vsel %vm2024, %v2279, 0.0
        %2504 = vadd.xlane.f32.xlu0 %v2503
        %v2505 = vpop.xlane.xlu0 %2504
        %v2506 = vsel %vm2024, %v2284, 0.0
        %2507 = vadd.xlane.f32.xlu0 %v2506
        %v2508 = vpop.xlane.xlu0 %2507
        %v2509 = vsel %vm2024, %v2287, 0.0
        %2510 = vadd.xlane.f32.xlu0 %v2509
        %v2511 = vpop.xlane.xlu0 %2510
        %v2512 = vsel %vm2024, %v2292, 0.0
        %2513 = vadd.xlane.f32.xlu0 %v2512
        %v2514 = vpop.xlane.xlu0 %2513
        %v2515 = vsel %vm2024, %v2295, 0.0
        %2516 = vadd.xlane.f32.xlu0 %v2515
        %v2517 = vpop.xlane.xlu0 %2516
        %v2518 = vsel %vm2024, %v2300, 0.0
        %2519 = vadd.xlane.f32.xlu0 %v2518
        %v2520 = vpop.xlane.xlu0 %2519
        %v2521 = vsel %vm2024, %v2303, 0.0
        %2522 = vadd.xlane.f32.xlu0 %v2521
        %v2523 = vpop.xlane.xlu0 %2522
        %v2524 = vsel %vm2024, %v2308, 0.0
        %2525 = vadd.xlane.f32.xlu0 %v2524
        %v2526 = vpop.xlane.xlu0 %2525
        %v2527 = vsel %vm2024, %v2311, 0.0
        %2528 = vadd.xlane.f32.xlu0 %v2527
        %v2529 = vpop.xlane.xlu0 %2528
        %v2530 = vsel %vm2024, %v2316, 0.0
        %2531 = vadd.xlane.f32.xlu0 %v2530
        %v2532 = vpop.xlane.xlu0 %2531
        %v2533 = vsel %vm2024, %v2319, 0.0
        %2534 = vadd.xlane.f32.xlu0 %v2533
        %v2535 = vpop.xlane.xlu0 %2534
        %v2536 = vsel %vm2024, %v2324, 0.0
        %2537 = vadd.xlane.f32.xlu0 %v2536
        %v2538 = vpop.xlane.xlu0 %2537
        %v2539 = vsel %vm2024, %v2327, 0.0
        %2540 = vadd.xlane.f32.xlu0 %v2539
        %v2541 = vpop.xlane.xlu0 %2540
        %v2542 = vsel %vm2024, %v2332, 0.0
        %2543 = vadd.xlane.f32.xlu0 %v2542
        %v2544 = vpop.xlane.xlu0 %2543
        %v2545 = vsel %vm2024, %v2335, 0.0
        %2546 = vadd.xlane.f32.xlu0 %v2545
        %v2547 = vpop.xlane.xlu0 %2546
        %v2548 = vsel %vm2024, %v2340, 0.0
        %2549 = vadd.xlane.f32.xlu0 %v2548
        %v2550 = vpop.xlane.xlu0 %2549
        %v2551 = vsel %vm2024, %v2343, 0.0
        %2552 = vadd.xlane.f32.xlu0 %v2551
        %v2553 = vpop.xlane.xlu0 %2552
        %v2554 = vsel %vm2024, %v2348, 0.0
        %2555 = vadd.xlane.f32.xlu0 %v2554
        %v2556 = vpop.xlane.xlu0 %2555
        %v2557 = vsel %vm2024, %v2351, 0.0
        %2558 = vadd.xlane.f32.xlu0 %v2557
        %v2559 = vpop.xlane.xlu0 %2558
        %v2560 = vsel %vm2024, %v2356, 0.0
        %2561 = vadd.xlane.f32.xlu0 %v2560
        %v2562 = vpop.xlane.xlu0 %2561
        %v2563 = vsel %vm2024, %v2359, 0.0
        %2564 = vadd.xlane.f32.xlu0 %v2563
        %v2565 = vpop.xlane.xlu0 %2564
        %v2566 = vsel %vm2024, %v2364, 0.0
        %2567 = vadd.xlane.f32.xlu0 %v2566
        %v2568 = vpop.xlane.xlu0 %2567
        %v2569 = vsel %vm2024, %v2367, 0.0
        %2570 = vadd.xlane.f32.xlu0 %v2569
        %v2571 = vpop.xlane.xlu0 %2570
        %v2572 = vsel %vm2024, %v2372, 0.0
        %2573 = vadd.xlane.f32.xlu0 %v2572
        %v2574 = vpop.xlane.xlu0 %2573
        %v2575 = vsel %vm2024, %v2375, 0.0
        %2576 = vadd.xlane.f32.xlu0 %v2575
        %v2577 = vpop.xlane.xlu0 %2576
        %v2578 = vsel %vm2024, %v2380, 0.0
        %2579 = vadd.xlane.f32.xlu0 %v2578
        %v2580 = vpop.xlane.xlu0 %2579
        %v2581 = vsel %vm2024, %v2383, 0.0
        %2582 = vadd.xlane.f32.xlu0 %v2581
        %v2583 = vpop.xlane.xlu0 %2582
        %v2584 = vsel %vm2024, %v2388, 0.0
        %2585 = vadd.xlane.f32.xlu0 %v2584
        %v2586 = vpop.xlane.xlu0 %2585
        %v2587 = vsel %vm2024, %v2391, 0.0
        %2588 = vadd.xlane.f32.xlu0 %v2587
        %v2589 = vpop.xlane.xlu0 %2588
        %v2590 = vsel %vm2024, %v2396, 0.0
        %2591 = vadd.xlane.f32.xlu0 %v2590
        %v2592 = vpop.xlane.xlu0 %2591
        %v2593 = vsel %vm2024, %v2399, 0.0
        %2594 = vadd.xlane.f32.xlu0 %v2593
        %v2595 = vpop.xlane.xlu0 %2594
        %v2596 = vsel %vm2024, %v2404, 0.0
        %2597 = vadd.xlane.f32.xlu0 %v2596
        %v2598 = vpop.xlane.xlu0 %2597
        %v2599 = vsel %vm2024, %v2407, 0.0
        %2600 = vadd.xlane.f32.xlu0 %v2599
        %v2601 = vpop.xlane.xlu0 %2600
        %v2602 = vrcp.pop 32.0
        %v2603 = vmul.f32 %v2412, %v2602
        %v2604 = vmul.f32 %v2415, %v2602
        %v2605 = vmul.f32 %v2418, %v2602
        %v2606 = vmul.f32 %v2421, %v2602
        %v2607 = vmul.f32 %v2424, %v2602
        %v2608 = vmul.f32 %v2427, %v2602
        %v2609 = vmul.f32 %v2430, %v2602
        %v2610 = vmul.f32 %v2433, %v2602
        %v2611 = vmul.f32 %v2436, %v2602
        %v2612 = vmul.f32 %v2439, %v2602
        %v2613 = vmul.f32 %v2442, %v2602
        %v2614 = vmul.f32 %v2445, %v2602
        %v2615 = vmul.f32 %v2448, %v2602
        %v2616 = vmul.f32 %v2451, %v2602
        %v2617 = vmul.f32 %v2454, %v2602
        %v2618 = vmul.f32 %v2457, %v2602
        %v2619 = vmul.f32 %v2460, %v2602
        %v2620 = vmul.f32 %v2463, %v2602
        %v2621 = vmul.f32 %v2466, %v2602
        %v2622 = vmul.f32 %v2469, %v2602
        %v2623 = vmul.f32 %v2472, %v2602
        %v2624 = vmul.f32 %v2475, %v2602
        %v2625 = vmul.f32 %v2478, %v2602
        %v2626 = vmul.f32 %v2481, %v2602
        %v2627 = vmul.f32 %v2484, %v2602
        %v2628 = vmul.f32 %v2487, %v2602
        %v2629 = vmul.f32 %v2490, %v2602
        %v2630 = vmul.f32 %v2493, %v2602
        %v2631 = vmul.f32 %v2496, %v2602
        %v2632 = vmul.f32 %v2499, %v2602
        %v2633 = vmul.f32 %v2502, %v2602
        %v2634 = vmul.f32 %v2505, %v2602
        %v2635 = vmul.f32 %v2508, %v2602
        %v2636 = vmul.f32 %v2511, %v2602
        %v2637 = vmul.f32 %v2514, %v2602
        %v2638 = vmul.f32 %v2517, %v2602
        %v2639 = vmul.f32 %v2520, %v2602
        %v2640 = vmul.f32 %v2523, %v2602
        %v2641 = vmul.f32 %v2526, %v2602
        %v2642 = vmul.f32 %v2529, %v2602
        %v2643 = vmul.f32 %v2532, %v2602
        %v2644 = vmul.f32 %v2535, %v2602
        %v2645 = vmul.f32 %v2538, %v2602
        %v2646 = vmul.f32 %v2541, %v2602
        %v2647 = vmul.f32 %v2544, %v2602
        %v2648 = vmul.f32 %v2547, %v2602
        %v2649 = vmul.f32 %v2550, %v2602
        %v2650 = vmul.f32 %v2553, %v2602
        %v2651 = vmul.f32 %v2556, %v2602
        %v2652 = vmul.f32 %v2559, %v2602
        %v2653 = vmul.f32 %v2562, %v2602
        %v2654 = vmul.f32 %v2565, %v2602
        %v2655 = vmul.f32 %v2568, %v2602
        %v2656 = vmul.f32 %v2571, %v2602
        %v2657 = vmul.f32 %v2574, %v2602
        %v2658 = vmul.f32 %v2577, %v2602
        %v2659 = vmul.f32 %v2580, %v2602
        %v2660 = vmul.f32 %v2583, %v2602
        %v2661 = vmul.f32 %v2586, %v2602
        %v2662 = vmul.f32 %v2589, %v2602
        %v2663 = vmul.f32 %v2592, %v2602
        %v2664 = vmul.f32 %v2595, %v2602
        %v2665 = vmul.f32 %v2598, %v2602
        %v2666 = vmul.f32 %v2601, %v2602
        %v2667 = vsub.f32 %v2156, %v2603
        %v2668 = vsub.f32 %v2159, %v2604
        %v2669 = vsub.f32 %v2164, %v2605
        %v2670 = vsub.f32 %v2167, %v2606
        %v2671 = vsub.f32 %v2172, %v2607
        %v2672 = vsub.f32 %v2175, %v2608
        %v2673 = vsub.f32 %v2180, %v2609
        %v2674 = vsub.f32 %v2183, %v2610
        %v2675 = vsub.f32 %v2188, %v2611
        %v2676 = vsub.f32 %v2191, %v2612
        %v2677 = vsub.f32 %v2196, %v2613
        %v2678 = vsub.f32 %v2199, %v2614
        %v2679 = vsub.f32 %v2204, %v2615
        %v2680 = vsub.f32 %v2207, %v2616
        %v2681 = vsub.f32 %v2212, %v2617
        %v2682 = vsub.f32 %v2215, %v2618
        %v2683 = vsub.f32 %v2220, %v2619
        %v2684 = vsub.f32 %v2223, %v2620
        %v2685 = vsub.f32 %v2228, %v2621
        %v2686 = vsub.f32 %v2231, %v2622
        %v2687 = vsub.f32 %v2236, %v2623
        %v2688 = vsub.f32 %v2239, %v2624
        %v2689 = vsub.f32 %v2244, %v2625
        %v2690 = vsub.f32 %v2247, %v2626
        %v2691 = vsub.f32 %v2252, %v2627
        %v2692 = vsub.f32 %v2255, %v2628
        %v2693 = vsub.f32 %v2260, %v2629
        %v2694 = vsub.f32 %v2263, %v2630
        %v2695 = vsub.f32 %v2268, %v2631
        %v2696 = vsub.f32 %v2271, %v2632
        %v2697 = vsub.f32 %v2276, %v2633
        %v2698 = vsub.f32 %v2279, %v2634
        %v2699 = vsub.f32 %v2284, %v2635
        %v2700 = vsub.f32 %v2287, %v2636
        %v2701 = vsub.f32 %v2292, %v2637
        %v2702 = vsub.f32 %v2295, %v2638
        %v2703 = vsub.f32 %v2300, %v2639
        %v2704 = vsub.f32 %v2303, %v2640
        %v2705 = vsub.f32 %v2308, %v2641
        %v2706 = vsub.f32 %v2311, %v2642
        %v2707 = vsub.f32 %v2316, %v2643
        %v2708 = vsub.f32 %v2319, %v2644
        %v2709 = vsub.f32 %v2324, %v2645
        %v2710 = vsub.f32 %v2327, %v2646
        %v2711 = vsub.f32 %v2332, %v2647
        %v2712 = vsub.f32 %v2335, %v2648
        %v2713 = vsub.f32 %v2340, %v2649
        %v2714 = vsub.f32 %v2343, %v2650
        %v2715 = vsub.f32 %v2348, %v2651
        %v2716 = vsub.f32 %v2351, %v2652
        %v2717 = vsub.f32 %v2356, %v2653
        %v2718 = vsub.f32 %v2359, %v2654
        %v2719 = vsub.f32 %v2364, %v2655
        %v2720 = vsub.f32 %v2367, %v2656
        %v2721 = vsub.f32 %v2372, %v2657
        %v2722 = vsub.f32 %v2375, %v2658
        %v2723 = vsub.f32 %v2380, %v2659
        %v2724 = vsub.f32 %v2383, %v2660
        %v2725 = vsub.f32 %v2388, %v2661
        %v2726 = vsub.f32 %v2391, %v2662
        %v2727 = vsub.f32 %v2396, %v2663
        %v2728 = vsub.f32 %v2399, %v2664
        %v2729 = vsub.f32 %v2404, %v2665
        %v2730 = vsub.f32 %v2407, %v2666
        %v2731 = vmul.f32 %v2667, %v2667
        %v2732 = vmul.f32 %v2668, %v2668
        %v2733 = vmul.f32 %v2669, %v2669
        %v2734 = vmul.f32 %v2670, %v2670
        %v2735 = vmul.f32 %v2671, %v2671
        %v2736 = vmul.f32 %v2672, %v2672
        %v2737 = vmul.f32 %v2673, %v2673
        %v2738 = vmul.f32 %v2674, %v2674
        %v2739 = vmul.f32 %v2675, %v2675
        %v2740 = vmul.f32 %v2676, %v2676
        %v2741 = vmul.f32 %v2677, %v2677
        %v2742 = vmul.f32 %v2678, %v2678
        %v2743 = vmul.f32 %v2679, %v2679
        %v2744 = vmul.f32 %v2680, %v2680
        %v2745 = vmul.f32 %v2681, %v2681
        %v2746 = vmul.f32 %v2682, %v2682
        %v2747 = vmul.f32 %v2683, %v2683
        %v2748 = vmul.f32 %v2684, %v2684
        %v2749 = vmul.f32 %v2685, %v2685
        %v2750 = vmul.f32 %v2686, %v2686
        %v2751 = vmul.f32 %v2687, %v2687
        %v2752 = vmul.f32 %v2688, %v2688
        %v2753 = vmul.f32 %v2689, %v2689
        %v2754 = vmul.f32 %v2690, %v2690
        %v2755 = vmul.f32 %v2691, %v2691
        %v2756 = vmul.f32 %v2692, %v2692
        %v2757 = vmul.f32 %v2693, %v2693
        %v2758 = vmul.f32 %v2694, %v2694
        %v2759 = vmul.f32 %v2695, %v2695
        %v2760 = vmul.f32 %v2696, %v2696
        %v2761 = vmul.f32 %v2697, %v2697
        %v2762 = vmul.f32 %v2698, %v2698
        %v2763 = vmul.f32 %v2699, %v2699
        %v2764 = vmul.f32 %v2700, %v2700
        %v2765 = vmul.f32 %v2701, %v2701
        %v2766 = vmul.f32 %v2702, %v2702
        %v2767 = vmul.f32 %v2703, %v2703
        %v2768 = vmul.f32 %v2704, %v2704
        %v2769 = vmul.f32 %v2705, %v2705
        %v2770 = vmul.f32 %v2706, %v2706
        %v2771 = vmul.f32 %v2707, %v2707
        %v2772 = vmul.f32 %v2708, %v2708
        %v2773 = vmul.f32 %v2709, %v2709
        %v2774 = vmul.f32 %v2710, %v2710
        %v2775 = vmul.f32 %v2711, %v2711
        %v2776 = vmul.f32 %v2712, %v2712
        %v2777 = vmul.f32 %v2713, %v2713
        %v2778 = vmul.f32 %v2714, %v2714
        %v2779 = vmul.f32 %v2715, %v2715
        %v2780 = vmul.f32 %v2716, %v2716
        %v2781 = vmul.f32 %v2717, %v2717
        %v2782 = vmul.f32 %v2718, %v2718
        %v2783 = vmul.f32 %v2719, %v2719
        %v2784 = vmul.f32 %v2720, %v2720
        %v2785 = vmul.f32 %v2721, %v2721
        %v2786 = vmul.f32 %v2722, %v2722
        %v2787 = vmul.f32 %v2723, %v2723
        %v2788 = vmul.f32 %v2724, %v2724
        %v2789 = vmul.f32 %v2725, %v2725
        %v2790 = vmul.f32 %v2726, %v2726
        %v2791 = vmul.f32 %v2727, %v2727
        %v2792 = vmul.f32 %v2728, %v2728
        %v2793 = vmul.f32 %v2729, %v2729
        %v2794 = vmul.f32 %v2730, %v2730
        %v2795 = vsel %vm2024, %v2731, 0.0
        %2796 = vadd.xlane.f32.xlu0 %v2795
        %v2797 = vpop.xlane.xlu0 %2796
        %v2798 = vsel %vm2024, %v2732, 0.0
        %2799 = vadd.xlane.f32.xlu0 %v2798
        %v2800 = vpop.xlane.xlu0 %2799
        %v2801 = vsel %vm2024, %v2733, 0.0
        %2802 = vadd.xlane.f32.xlu0 %v2801
        %v2803 = vpop.xlane.xlu0 %2802
        %v2804 = vsel %vm2024, %v2734, 0.0
        %2805 = vadd.xlane.f32.xlu0 %v2804
        %v2806 = vpop.xlane.xlu0 %2805
        %v2807 = vsel %vm2024, %v2735, 0.0
        %2808 = vadd.xlane.f32.xlu0 %v2807
        %v2809 = vpop.xlane.xlu0 %2808
        %v2810 = vsel %vm2024, %v2736, 0.0
        %2811 = vadd.xlane.f32.xlu0 %v2810
        %v2812 = vpop.xlane.xlu0 %2811
        %v2813 = vsel %vm2024, %v2737, 0.0
        %2814 = vadd.xlane.f32.xlu0 %v2813
        %v2815 = vpop.xlane.xlu0 %2814
        %v2816 = vsel %vm2024, %v2738, 0.0
        %2817 = vadd.xlane.f32.xlu0 %v2816
        %v2818 = vpop.xlane.xlu0 %2817
        %v2819 = vsel %vm2024, %v2739, 0.0
        %2820 = vadd.xlane.f32.xlu0 %v2819
        %v2821 = vpop.xlane.xlu0 %2820
        %v2822 = vsel %vm2024, %v2740, 0.0
        %2823 = vadd.xlane.f32.xlu0 %v2822
        %v2824 = vpop.xlane.xlu0 %2823
        %v2825 = vsel %vm2024, %v2741, 0.0
        %2826 = vadd.xlane.f32.xlu0 %v2825
        %v2827 = vpop.xlane.xlu0 %2826
        %v2828 = vsel %vm2024, %v2742, 0.0
        %2829 = vadd.xlane.f32.xlu0 %v2828
        %v2830 = vpop.xlane.xlu0 %2829
        %v2831 = vsel %vm2024, %v2743, 0.0
        %2832 = vadd.xlane.f32.xlu0 %v2831
        %v2833 = vpop.xlane.xlu0 %2832
        %v2834 = vsel %vm2024, %v2744, 0.0
        %2835 = vadd.xlane.f32.xlu0 %v2834
        %v2836 = vpop.xlane.xlu0 %2835
        %v2837 = vsel %vm2024, %v2745, 0.0
        %2838 = vadd.xlane.f32.xlu0 %v2837
        %v2839 = vpop.xlane.xlu0 %2838
        %v2840 = vsel %vm2024, %v2746, 0.0
        %2841 = vadd.xlane.f32.xlu0 %v2840
        %v2842 = vpop.xlane.xlu0 %2841
        %v2843 = vsel %vm2024, %v2747, 0.0
        %2844 = vadd.xlane.f32.xlu0 %v2843
        %v2845 = vpop.xlane.xlu0 %2844
        %v2846 = vsel %vm2024, %v2748, 0.0
        %2847 = vadd.xlane.f32.xlu0 %v2846
        %v2848 = vpop.xlane.xlu0 %2847
        %v2849 = vsel %vm2024, %v2749, 0.0
        %2850 = vadd.xlane.f32.xlu0 %v2849
        %v2851 = vpop.xlane.xlu0 %2850
        %v2852 = vsel %vm2024, %v2750, 0.0
        %2853 = vadd.xlane.f32.xlu0 %v2852
        %v2854 = vpop.xlane.xlu0 %2853
        %v2855 = vsel %vm2024, %v2751, 0.0
        %2856 = vadd.xlane.f32.xlu0 %v2855
        %v2857 = vpop.xlane.xlu0 %2856
        %v2858 = vsel %vm2024, %v2752, 0.0
        %2859 = vadd.xlane.f32.xlu0 %v2858
        %v2860 = vpop.xlane.xlu0 %2859
        %v2861 = vsel %vm2024, %v2753, 0.0
        %2862 = vadd.xlane.f32.xlu0 %v2861
        %v2863 = vpop.xlane.xlu0 %2862
        %v2864 = vsel %vm2024, %v2754, 0.0
        %2865 = vadd.xlane.f32.xlu0 %v2864
        %v2866 = vpop.xlane.xlu0 %2865
        %v2867 = vsel %vm2024, %v2755, 0.0
        %2868 = vadd.xlane.f32.xlu0 %v2867
        %v2869 = vpop.xlane.xlu0 %2868
        %v2870 = vsel %vm2024, %v2756, 0.0
        %2871 = vadd.xlane.f32.xlu0 %v2870
        %v2872 = vpop.xlane.xlu0 %2871
        %v2873 = vsel %vm2024, %v2757, 0.0
        %2874 = vadd.xlane.f32.xlu0 %v2873
        %v2875 = vpop.xlane.xlu0 %2874
        %v2876 = vsel %vm2024, %v2758, 0.0
        %2877 = vadd.xlane.f32.xlu0 %v2876
        %v2878 = vpop.xlane.xlu0 %2877
        %v2879 = vsel %vm2024, %v2759, 0.0
        %2880 = vadd.xlane.f32.xlu0 %v2879
        %v2881 = vpop.xlane.xlu0 %2880
        %v2882 = vsel %vm2024, %v2760, 0.0
        %2883 = vadd.xlane.f32.xlu0 %v2882
        %v2884 = vpop.xlane.xlu0 %2883
        %v2885 = vsel %vm2024, %v2761, 0.0
        %2886 = vadd.xlane.f32.xlu0 %v2885
        %v2887 = vpop.xlane.xlu0 %2886
        %v2888 = vsel %vm2024, %v2762, 0.0
        %2889 = vadd.xlane.f32.xlu0 %v2888
        %v2890 = vpop.xlane.xlu0 %2889
        %v2891 = vsel %vm2024, %v2763, 0.0
        %2892 = vadd.xlane.f32.xlu0 %v2891
        %v2893 = vpop.xlane.xlu0 %2892
        %v2894 = vsel %vm2024, %v2764, 0.0
        %2895 = vadd.xlane.f32.xlu0 %v2894
        %v2896 = vpop.xlane.xlu0 %2895
        %v2897 = vsel %vm2024, %v2765, 0.0
        %2898 = vadd.xlane.f32.xlu0 %v2897
        %v2899 = vpop.xlane.xlu0 %2898
        %v2900 = vsel %vm2024, %v2766, 0.0
        %2901 = vadd.xlane.f32.xlu0 %v2900
        %v2902 = vpop.xlane.xlu0 %2901
        %v2903 = vsel %vm2024, %v2767, 0.0
        %2904 = vadd.xlane.f32.xlu0 %v2903
        %v2905 = vpop.xlane.xlu0 %2904
        %v2906 = vsel %vm2024, %v2768, 0.0
        %2907 = vadd.xlane.f32.xlu0 %v2906
        %v2908 = vpop.xlane.xlu0 %2907
        %v2909 = vsel %vm2024, %v2769, 0.0
        %2910 = vadd.xlane.f32.xlu0 %v2909
        %v2911 = vpop.xlane.xlu0 %2910
        %v2912 = vsel %vm2024, %v2770, 0.0
        %2913 = vadd.xlane.f32.xlu0 %v2912
        %v2914 = vpop.xlane.xlu0 %2913
        %v2915 = vsel %vm2024, %v2771, 0.0
        %2916 = vadd.xlane.f32.xlu0 %v2915
        %v2917 = vpop.xlane.xlu0 %2916
        %v2918 = vsel %vm2024, %v2772, 0.0
        %2919 = vadd.xlane.f32.xlu0 %v2918
        %v2920 = vpop.xlane.xlu0 %2919
        %v2921 = vsel %vm2024, %v2773, 0.0
        %2922 = vadd.xlane.f32.xlu0 %v2921
        %v2923 = vpop.xlane.xlu0 %2922
        %v2924 = vsel %vm2024, %v2774, 0.0
        %2925 = vadd.xlane.f32.xlu0 %v2924
        %v2926 = vpop.xlane.xlu0 %2925
        %v2927 = vsel %vm2024, %v2775, 0.0
        %2928 = vadd.xlane.f32.xlu0 %v2927
        %v2929 = vpop.xlane.xlu0 %2928
        %v2930 = vsel %vm2024, %v2776, 0.0
        %2931 = vadd.xlane.f32.xlu0 %v2930
        %v2932 = vpop.xlane.xlu0 %2931
        %v2933 = vsel %vm2024, %v2777, 0.0
        %2934 = vadd.xlane.f32.xlu0 %v2933
        %v2935 = vpop.xlane.xlu0 %2934
        %v2936 = vsel %vm2024, %v2778, 0.0
        %2937 = vadd.xlane.f32.xlu0 %v2936
        %v2938 = vpop.xlane.xlu0 %2937
        %v2939 = vsel %vm2024, %v2779, 0.0
        %2940 = vadd.xlane.f32.xlu0 %v2939
        %v2941 = vpop.xlane.xlu0 %2940
        %v2942 = vsel %vm2024, %v2780, 0.0
        %2943 = vadd.xlane.f32.xlu0 %v2942
        %v2944 = vpop.xlane.xlu0 %2943
        %v2945 = vsel %vm2024, %v2781, 0.0
        %2946 = vadd.xlane.f32.xlu0 %v2945
        %v2947 = vpop.xlane.xlu0 %2946
        %v2948 = vsel %vm2024, %v2782, 0.0
        %2949 = vadd.xlane.f32.xlu0 %v2948
        %v2950 = vpop.xlane.xlu0 %2949
        %v2951 = vsel %vm2024, %v2783, 0.0
        %2952 = vadd.xlane.f32.xlu0 %v2951
        %v2953 = vpop.xlane.xlu0 %2952
        %v2954 = vsel %vm2024, %v2784, 0.0
        %2955 = vadd.xlane.f32.xlu0 %v2954
        %v2956 = vpop.xlane.xlu0 %2955
        %v2957 = vsel %vm2024, %v2785, 0.0
        %2958 = vadd.xlane.f32.xlu0 %v2957
        %v2959 = vpop.xlane.xlu0 %2958
        %v2960 = vsel %vm2024, %v2786, 0.0
        %2961 = vadd.xlane.f32.xlu0 %v2960
        %v2962 = vpop.xlane.xlu0 %2961
        %v2963 = vsel %vm2024, %v2787, 0.0
        %2964 = vadd.xlane.f32.xlu0 %v2963
        %v2965 = vpop.xlane.xlu0 %2964
        %v2966 = vsel %vm2024, %v2788, 0.0
        %2967 = vadd.xlane.f32.xlu0 %v2966
        %v2968 = vpop.xlane.xlu0 %2967
        %v2969 = vsel %vm2024, %v2789, 0.0
        %2970 = vadd.xlane.f32.xlu0 %v2969
        %v2971 = vpop.xlane.xlu0 %2970
        %v2972 = vsel %vm2024, %v2790, 0.0
        %2973 = vadd.xlane.f32.xlu0 %v2972
        %v2974 = vpop.xlane.xlu0 %2973
        %v2975 = vsel %vm2024, %v2791, 0.0
        %2976 = vadd.xlane.f32.xlu0 %v2975
        %v2977 = vpop.xlane.xlu0 %2976
        %v2978 = vsel %vm2024, %v2792, 0.0
        %2979 = vadd.xlane.f32.xlu0 %v2978
        %v2980 = vpop.xlane.xlu0 %2979
        %v2981 = vsel %vm2024, %v2793, 0.0
        %2982 = vadd.xlane.f32.xlu0 %v2981
        %v2983 = vpop.xlane.xlu0 %2982
        %v2984 = vsel %vm2024, %v2794, 0.0
        %2985 = vadd.xlane.f32.xlu0 %v2984
        %v2986 = vpop.xlane.xlu0 %2985
        %v2987 = vmul.f32 %v2797, %v2602
        %v2988 = vmul.f32 %v2800, %v2602
        %v2989 = vmul.f32 %v2803, %v2602
        %v2990 = vmul.f32 %v2806, %v2602
        %v2991 = vmul.f32 %v2809, %v2602
        %v2992 = vmul.f32 %v2812, %v2602
        %v2993 = vmul.f32 %v2815, %v2602
        %v2994 = vmul.f32 %v2818, %v2602
        %v2995 = vmul.f32 %v2821, %v2602
        %v2996 = vmul.f32 %v2824, %v2602
        %v2997 = vmul.f32 %v2827, %v2602
        %v2998 = vmul.f32 %v2830, %v2602
        %v2999 = vmul.f32 %v2833, %v2602
        %v3000 = vmul.f32 %v2836, %v2602
        %v3001 = vmul.f32 %v2839, %v2602
        %v3002 = vmul.f32 %v2842, %v2602
        %v3003 = vmul.f32 %v2845, %v2602
        %v3004 = vmul.f32 %v2848, %v2602
        %v3005 = vmul.f32 %v2851, %v2602
        %v3006 = vmul.f32 %v2854, %v2602
        %v3007 = vmul.f32 %v2857, %v2602
        %v3008 = vmul.f32 %v2860, %v2602
        %v3009 = vmul.f32 %v2863, %v2602
        %v3010 = vmul.f32 %v2866, %v2602
        %v3011 = vmul.f32 %v2869, %v2602
        %v3012 = vmul.f32 %v2872, %v2602
        %v3013 = vmul.f32 %v2875, %v2602
        %v3014 = vmul.f32 %v2878, %v2602
        %v3015 = vmul.f32 %v2881, %v2602
        %v3016 = vmul.f32 %v2884, %v2602
        %v3017 = vmul.f32 %v2887, %v2602
        %v3018 = vmul.f32 %v2890, %v2602
        %v3019 = vmul.f32 %v2893, %v2602
        %v3020 = vmul.f32 %v2896, %v2602
        %v3021 = vmul.f32 %v2899, %v2602
        %v3022 = vmul.f32 %v2902, %v2602
        %v3023 = vmul.f32 %v2905, %v2602
        %v3024 = vmul.f32 %v2908, %v2602
        %v3025 = vmul.f32 %v2911, %v2602
        %v3026 = vmul.f32 %v2914, %v2602
        %v3027 = vmul.f32 %v2917, %v2602
        %v3028 = vmul.f32 %v2920, %v2602
        %v3029 = vmul.f32 %v2923, %v2602
        %v3030 = vmul.f32 %v2926, %v2602
        %v3031 = vmul.f32 %v2929, %v2602
        %v3032 = vmul.f32 %v2932, %v2602
        %v3033 = vmul.f32 %v2935, %v2602
        %v3034 = vmul.f32 %v2938, %v2602
        %v3035 = vmul.f32 %v2941, %v2602
        %v3036 = vmul.f32 %v2944, %v2602
        %v3037 = vmul.f32 %v2947, %v2602
        %v3038 = vmul.f32 %v2950, %v2602
        %v3039 = vmul.f32 %v2953, %v2602
        %v3040 = vmul.f32 %v2956, %v2602
        %v3041 = vmul.f32 %v2959, %v2602
        %v3042 = vmul.f32 %v2962, %v2602
        %v3043 = vmul.f32 %v2965, %v2602
        %v3044 = vmul.f32 %v2968, %v2602
        %v3045 = vmul.f32 %v2971, %v2602
        %v3046 = vmul.f32 %v2974, %v2602
        %v3047 = vmul.f32 %v2977, %v2602
        %v3048 = vmul.f32 %v2980, %v2602
        %v3049 = vmul.f32 %v2983, %v2602
        %v3050 = vmul.f32 %v2986, %v2602
        %v3051 = vadd.f32 %v2987, 1e-05
        %v3052 = vadd.f32 %v2988, 1e-05
        %v3053 = vadd.f32 %v2989, 1e-05
        %v3054 = vadd.f32 %v2990, 1e-05
        %v3055 = vadd.f32 %v2991, 1e-05
        %v3056 = vadd.f32 %v2992, 1e-05
        %v3057 = vadd.f32 %v2993, 1e-05
        %v3058 = vadd.f32 %v2994, 1e-05
        %v3059 = vadd.f32 %v2995, 1e-05
        %v3060 = vadd.f32 %v2996, 1e-05
        %v3061 = vadd.f32 %v2997, 1e-05
        %v3062 = vadd.f32 %v2998, 1e-05
        %v3063 = vadd.f32 %v2999, 1e-05
        %v3064 = vadd.f32 %v3000, 1e-05
        %v3065 = vadd.f32 %v3001, 1e-05
        %v3066 = vadd.f32 %v3002, 1e-05
        %v3067 = vadd.f32 %v3003, 1e-05
        %v3068 = vadd.f32 %v3004, 1e-05
        %v3069 = vadd.f32 %v3005, 1e-05
        %v3070 = vadd.f32 %v3006, 1e-05
        %v3071 = vadd.f32 %v3007, 1e-05
        %v3072 = vadd.f32 %v3008, 1e-05
        %v3073 = vadd.f32 %v3009, 1e-05
        %v3074 = vadd.f32 %v3010, 1e-05
        %v3075 = vadd.f32 %v3011, 1e-05
        %v3076 = vadd.f32 %v3012, 1e-05
        %v3077 = vadd.f32 %v3013, 1e-05
        %v3078 = vadd.f32 %v3014, 1e-05
        %v3079 = vadd.f32 %v3015, 1e-05
        %v3080 = vadd.f32 %v3016, 1e-05
        %v3081 = vadd.f32 %v3017, 1e-05
        %v3082 = vadd.f32 %v3018, 1e-05
        %v3083 = vadd.f32 %v3019, 1e-05
        %v3084 = vadd.f32 %v3020, 1e-05
        %v3085 = vadd.f32 %v3021, 1e-05
        %v3086 = vadd.f32 %v3022, 1e-05
        %v3087 = vadd.f32 %v3023, 1e-05
        %v3088 = vadd.f32 %v3024, 1e-05
        %v3089 = vadd.f32 %v3025, 1e-05
        %v3090 = vadd.f32 %v3026, 1e-05
        %v3091 = vadd.f32 %v3027, 1e-05
        %v3092 = vadd.f32 %v3028, 1e-05
        %v3093 = vadd.f32 %v3029, 1e-05
        %v3094 = vadd.f32 %v3030, 1e-05
        %v3095 = vadd.f32 %v3031, 1e-05
        %v3096 = vadd.f32 %v3032, 1e-05
        %v3097 = vadd.f32 %v3033, 1e-05
        %v3098 = vadd.f32 %v3034, 1e-05
        %v3099 = vadd.f32 %v3035, 1e-05
        %v3100 = vadd.f32 %v3036, 1e-05
        %v3101 = vadd.f32 %v3037, 1e-05
        %v3102 = vadd.f32 %v3038, 1e-05
        %v3103 = vadd.f32 %v3039, 1e-05
        %v3104 = vadd.f32 %v3040, 1e-05
        %v3105 = vadd.f32 %v3041, 1e-05
        %v3106 = vadd.f32 %v3042, 1e-05
        %v3107 = vadd.f32 %v3043, 1e-05
        %v3108 = vadd.f32 %v3044, 1e-05
        %v3109 = vadd.f32 %v3045, 1e-05
        %v3110 = vadd.f32 %v3046, 1e-05
        %v3111 = vadd.f32 %v3047, 1e-05
        %v3112 = vadd.f32 %v3048, 1e-05
        %v3113 = vadd.f32 %v3049, 1e-05
        %v3114 = vadd.f32 %v3050, 1e-05
        %v3115 = vrsqrt.pop %v3051
        %v3116 = vrsqrt.pop %v3052
        %v3117 = vrsqrt.pop %v3053
        %v3118 = vrsqrt.pop %v3054
        %v3119 = vrsqrt.pop %v3055
        %v3120 = vrsqrt.pop %v3056
        %v3121 = vrsqrt.pop %v3057
        %v3122 = vrsqrt.pop %v3058
        %v3123 = vrsqrt.pop %v3059
        %v3124 = vrsqrt.pop %v3060
        %v3125 = vrsqrt.pop %v3061
        %v3126 = vrsqrt.pop %v3062
        %v3127 = vrsqrt.pop %v3063
        %v3128 = vrsqrt.pop %v3064
        %v3129 = vrsqrt.pop %v3065
        %v3130 = vrsqrt.pop %v3066
        %v3131 = vrsqrt.pop %v3067
        %v3132 = vrsqrt.pop %v3068
        %v3133 = vrsqrt.pop %v3069
        %v3134 = vrsqrt.pop %v3070
        %v3135 = vrsqrt.pop %v3071
        %v3136 = vrsqrt.pop %v3072
        %v3137 = vrsqrt.pop %v3073
        %v3138 = vrsqrt.pop %v3074
        %v3139 = vrsqrt.pop %v3075
        %v3140 = vrsqrt.pop %v3076
        %v3141 = vrsqrt.pop %v3077
        %v3142 = vrsqrt.pop %v3078
        %v3143 = vrsqrt.pop %v3079
        %v3144 = vrsqrt.pop %v3080
        %v3145 = vrsqrt.pop %v3081
        %v3146 = vrsqrt.pop %v3082
        %v3147 = vrsqrt.pop %v3083
        %v3148 = vrsqrt.pop %v3084
        %v3149 = vrsqrt.pop %v3085
        %v3150 = vrsqrt.pop %v3086
        %v3151 = vrsqrt.pop %v3087
        %v3152 = vrsqrt.pop %v3088
        %v3153 = vrsqrt.pop %v3089
        %v3154 = vrsqrt.pop %v3090
        %v3155 = vrsqrt.pop %v3091
        %v3156 = vrsqrt.pop %v3092
        %v3157 = vrsqrt.pop %v3093
        %v3158 = vrsqrt.pop %v3094
        %v3159 = vrsqrt.pop %v3095
        %v3160 = vrsqrt.pop %v3096
        %v3161 = vrsqrt.pop %v3097
        %v3162 = vrsqrt.pop %v3098
        %v3163 = vrsqrt.pop %v3099
        %v3164 = vrsqrt.pop %v3100
        %v3165 = vrsqrt.pop %v3101
        %v3166 = vrsqrt.pop %v3102
        %v3167 = vrsqrt.pop %v3103
        %v3168 = vrsqrt.pop %v3104
        %v3169 = vrsqrt.pop %v3105
        %v3170 = vrsqrt.pop %v3106
        %v3171 = vrsqrt.pop %v3107
        %v3172 = vrsqrt.pop %v3108
        %v3173 = vrsqrt.pop %v3109
        %v3174 = vrsqrt.pop %v3110
        %v3175 = vrsqrt.pop %v3111
        %v3176 = vrsqrt.pop %v3112
        %v3177 = vrsqrt.pop %v3113
        %v3178 = vrsqrt.pop %v3114
        %v3179 = vmul.f32 %v2667, %v3115
        %v3180 = vmul.f32 %v2668, %v3116
        %v3181 = vmul.f32 %v2669, %v3117
        %v3182 = vmul.f32 %v2670, %v3118
        %v3183 = vmul.f32 %v2671, %v3119
        %v3184 = vmul.f32 %v2672, %v3120
        %v3185 = vmul.f32 %v2673, %v3121
        %v3186 = vmul.f32 %v2674, %v3122
        %v3187 = vmul.f32 %v2675, %v3123
        %v3188 = vmul.f32 %v2676, %v3124
        %v3189 = vmul.f32 %v2677, %v3125
        %v3190 = vmul.f32 %v2678, %v3126
        %v3191 = vmul.f32 %v2679, %v3127
        %v3192 = vmul.f32 %v2680, %v3128
        %v3193 = vmul.f32 %v2681, %v3129
        %v3194 = vmul.f32 %v2682, %v3130
        %v3195 = vmul.f32 %v2683, %v3131
        %v3196 = vmul.f32 %v2684, %v3132
        %v3197 = vmul.f32 %v2685, %v3133
        %v3198 = vmul.f32 %v2686, %v3134
        %v3199 = vmul.f32 %v2687, %v3135
        %v3200 = vmul.f32 %v2688, %v3136
        %v3201 = vmul.f32 %v2689, %v3137
        %v3202 = vmul.f32 %v2690, %v3138
        %v3203 = vmul.f32 %v2691, %v3139
        %v3204 = vmul.f32 %v2692, %v3140
        %v3205 = vmul.f32 %v2693, %v3141
        %v3206 = vmul.f32 %v2694, %v3142
        %v3207 = vmul.f32 %v2695, %v3143
        %v3208 = vmul.f32 %v2696, %v3144
        %v3209 = vmul.f32 %v2697, %v3145
        %v3210 = vmul.f32 %v2698, %v3146
        %v3211 = vmul.f32 %v2699, %v3147
        %v3212 = vmul.f32 %v2700, %v3148
        %v3213 = vmul.f32 %v2701, %v3149
        %v3214 = vmul.f32 %v2702, %v3150
        %v3215 = vmul.f32 %v2703, %v3151
        %v3216 = vmul.f32 %v2704, %v3152
        %v3217 = vmul.f32 %v2705, %v3153
        %v3218 = vmul.f32 %v2706, %v3154
        %v3219 = vmul.f32 %v2707, %v3155
        %v3220 = vmul.f32 %v2708, %v3156
        %v3221 = vmul.f32 %v2709, %v3157
        %v3222 = vmul.f32 %v2710, %v3158
        %v3223 = vmul.f32 %v2711, %v3159
        %v3224 = vmul.f32 %v2712, %v3160
        %v3225 = vmul.f32 %v2713, %v3161
        %v3226 = vmul.f32 %v2714, %v3162
        %v3227 = vmul.f32 %v2715, %v3163
        %v3228 = vmul.f32 %v2716, %v3164
        %v3229 = vmul.f32 %v2717, %v3165
        %v3230 = vmul.f32 %v2718, %v3166
        %v3231 = vmul.f32 %v2719, %v3167
        %v3232 = vmul.f32 %v2720, %v3168
        %v3233 = vmul.f32 %v2721, %v3169
        %v3234 = vmul.f32 %v2722, %v3170
        %v3235 = vmul.f32 %v2723, %v3171
        %v3236 = vmul.f32 %v2724, %v3172
        %v3237 = vmul.f32 %v2725, %v3173
        %v3238 = vmul.f32 %v2726, %v3174
        %v3239 = vmul.f32 %v2727, %v3175
        %v3240 = vmul.f32 %v2728, %v3176
        %v3241 = vmul.f32 %v2729, %v3177
        %v3242 = vmul.f32 %v2730, %v3178
        %v3243 = vld [vmem:[%s4] sm:$0x1]
        %v3245 = vlaneseq
        %v3246 = vshrl.u32 %v3245, 7
        %v3247 = vsub.s32 0, %v3246
        %v3248 = vrot.slane %v3243, %v3247
        %v3250 = vmul.f32 %v3179, %v3248
        %v3251 = vmul.f32 %v3180, %v3248
        %v3252 = vmul.f32 %v3181, %v3248
        %v3253 = vmul.f32 %v3182, %v3248
        %v3254 = vmul.f32 %v3183, %v3248
        %v3255 = vmul.f32 %v3184, %v3248
        %v3256 = vmul.f32 %v3185, %v3248
        %v3257 = vmul.f32 %v3186, %v3248
        %v3258 = vmul.f32 %v3187, %v3248
        %v3259 = vmul.f32 %v3188, %v3248
        %v3260 = vmul.f32 %v3189, %v3248
        %v3261 = vmul.f32 %v3190, %v3248
        %v3262 = vmul.f32 %v3191, %v3248
        %v3263 = vmul.f32 %v3192, %v3248
        %v3264 = vmul.f32 %v3193, %v3248
        %v3265 = vmul.f32 %v3194, %v3248
        %v3266 = vmul.f32 %v3195, %v3248
        %v3267 = vmul.f32 %v3196, %v3248
        %v3268 = vmul.f32 %v3197, %v3248
        %v3269 = vmul.f32 %v3198, %v3248
        %v3270 = vmul.f32 %v3199, %v3248
        %v3271 = vmul.f32 %v3200, %v3248
        %v3272 = vmul.f32 %v3201, %v3248
        %v3273 = vmul.f32 %v3202, %v3248
        %v3274 = vmul.f32 %v3203, %v3248
        %v3275 = vmul.f32 %v3204, %v3248
        %v3276 = vmul.f32 %v3205, %v3248
        %v3277 = vmul.f32 %v3206, %v3248
        %v3278 = vmul.f32 %v3207, %v3248
        %v3279 = vmul.f32 %v3208, %v3248
        %v3280 = vmul.f32 %v3209, %v3248
        %v3281 = vmul.f32 %v3210, %v3248
        %v3282 = vmul.f32 %v3211, %v3248
        %v3283 = vmul.f32 %v3212, %v3248
        %v3284 = vmul.f32 %v3213, %v3248
        %v3285 = vmul.f32 %v3214, %v3248
        %v3286 = vmul.f32 %v3215, %v3248
        %v3287 = vmul.f32 %v3216, %v3248
        %v3288 = vmul.f32 %v3217, %v3248
        %v3289 = vmul.f32 %v3218, %v3248
        %v3290 = vmul.f32 %v3219, %v3248
        %v3291 = vmul.f32 %v3220, %v3248
        %v3292 = vmul.f32 %v3221, %v3248
        %v3293 = vmul.f32 %v3222, %v3248
        %v3294 = vmul.f32 %v3223, %v3248
        %v3295 = vmul.f32 %v3224, %v3248
        %v3296 = vmul.f32 %v3225, %v3248
        %v3297 = vmul.f32 %v3226, %v3248
        %v3298 = vmul.f32 %v3227, %v3248
        %v3299 = vmul.f32 %v3228, %v3248
        %v3300 = vmul.f32 %v3229, %v3248
        %v3301 = vmul.f32 %v3230, %v3248
        %v3302 = vmul.f32 %v3231, %v3248
        %v3303 = vmul.f32 %v3232, %v3248
        %v3304 = vmul.f32 %v3233, %v3248
        %v3305 = vmul.f32 %v3234, %v3248
        %v3306 = vmul.f32 %v3235, %v3248
        %v3307 = vmul.f32 %v3236, %v3248
        %v3308 = vmul.f32 %v3237, %v3248
        %v3309 = vmul.f32 %v3238, %v3248
        %v3310 = vmul.f32 %v3239, %v3248
        %v3311 = vmul.f32 %v3240, %v3248
        %v3312 = vmul.f32 %v3241, %v3248
        %v3313 = vmul.f32 %v3242, %v3248
        %v3314 = vld [vmem:[%s5] sm:$0x1]
        %v3316 = vlaneseq
        %v3317 = vshrl.u32 %v3316, 7
        %v3318 = vsub.s32 0, %v3317
        %v3319 = vrot.slane %v3314, %v3318
        %v3321 = vadd.f32 %v3250, %v3319
        %v3322 = vadd.f32 %v3251, %v3319
        %v3323 = vadd.f32 %v3252, %v3319
        %v3324 = vadd.f32 %v3253, %v3319
        %v3325 = vadd.f32 %v3254, %v3319
        %v3326 = vadd.f32 %v3255, %v3319
        %v3327 = vadd.f32 %v3256, %v3319
        %v3328 = vadd.f32 %v3257, %v3319
        %v3329 = vadd.f32 %v3258, %v3319
        %v3330 = vadd.f32 %v3259, %v3319
        %v3331 = vadd.f32 %v3260, %v3319
        %v3332 = vadd.f32 %v3261, %v3319
        %v3333 = vadd.f32 %v3262, %v3319
        %v3334 = vadd.f32 %v3263, %v3319
        %v3335 = vadd.f32 %v3264, %v3319
        %v3336 = vadd.f32 %v3265, %v3319
        %v3337 = vadd.f32 %v3266, %v3319
        %v3338 = vadd.f32 %v3267, %v3319
        %v3339 = vadd.f32 %v3268, %v3319
        %v3340 = vadd.f32 %v3269, %v3319
        %v3341 = vadd.f32 %v3270, %v3319
        %v3342 = vadd.f32 %v3271, %v3319
        %v3343 = vadd.f32 %v3272, %v3319
        %v3344 = vadd.f32 %v3273, %v3319
        %v3345 = vadd.f32 %v3274, %v3319
        %v3346 = vadd.f32 %v3275, %v3319
        %v3347 = vadd.f32 %v3276, %v3319
        %v3348 = vadd.f32 %v3277, %v3319
        %v3349 = vadd.f32 %v3278, %v3319
        %v3350 = vadd.f32 %v3279, %v3319
        %v3351 = vadd.f32 %v3280, %v3319
        %v3352 = vadd.f32 %v3281, %v3319
        %v3353 = vadd.f32 %v3282, %v3319
        %v3354 = vadd.f32 %v3283, %v3319
        %v3355 = vadd.f32 %v3284, %v3319
        %v3356 = vadd.f32 %v3285, %v3319
        %v3357 = vadd.f32 %v3286, %v3319
        %v3358 = vadd.f32 %v3287, %v3319
        %v3359 = vadd.f32 %v3288, %v3319
        %v3360 = vadd.f32 %v3289, %v3319
        %v3361 = vadd.f32 %v3290, %v3319
        %v3362 = vadd.f32 %v3291, %v3319
        %v3363 = vadd.f32 %v3292, %v3319
        %v3364 = vadd.f32 %v3293, %v3319
        %v3365 = vadd.f32 %v3294, %v3319
        %v3366 = vadd.f32 %v3295, %v3319
        %v3367 = vadd.f32 %v3296, %v3319
        %v3368 = vadd.f32 %v3297, %v3319
        %v3369 = vadd.f32 %v3298, %v3319
        %v3370 = vadd.f32 %v3299, %v3319
        %v3371 = vadd.f32 %v3300, %v3319
        %v3372 = vadd.f32 %v3301, %v3319
        %v3373 = vadd.f32 %v3302, %v3319
        %v3374 = vadd.f32 %v3303, %v3319
        %v3375 = vadd.f32 %v3304, %v3319
        %v3376 = vadd.f32 %v3305, %v3319
        %v3377 = vadd.f32 %v3306, %v3319
        %v3378 = vadd.f32 %v3307, %v3319
        %v3379 = vadd.f32 %v3308, %v3319
        %v3380 = vadd.f32 %v3309, %v3319
        %v3381 = vadd.f32 %v3310, %v3319
        %v3382 = vadd.f32 %v3311, %v3319
        %v3383 = vadd.f32 %v3312, %v3319
        %v3384 = vadd.f32 %v3313, %v3319
        %v3385 = vmul.f32 %v3321, %v3321
        %v3386 = vmul.f32 %v3322, %v3322
        %v3387 = vmul.f32 %v3323, %v3323
        %v3388 = vmul.f32 %v3324, %v3324
        %v3389 = vmul.f32 %v3325, %v3325
        %v3390 = vmul.f32 %v3326, %v3326
        %v3391 = vmul.f32 %v3327, %v3327
        %v3392 = vmul.f32 %v3328, %v3328
        %v3393 = vmul.f32 %v3329, %v3329
        %v3394 = vmul.f32 %v3330, %v3330
        %v3395 = vmul.f32 %v3331, %v3331
        %v3396 = vmul.f32 %v3332, %v3332
        %v3397 = vmul.f32 %v3333, %v3333
        %v3398 = vmul.f32 %v3334, %v3334
        %v3399 = vmul.f32 %v3335, %v3335
        %v3400 = vmul.f32 %v3336, %v3336
        %v3401 = vmul.f32 %v3337, %v3337
        %v3402 = vmul.f32 %v3338, %v3338
        %v3403 = vmul.f32 %v3339, %v3339
        %v3404 = vmul.f32 %v3340, %v3340
        %v3405 = vmul.f32 %v3341, %v3341
        %v3406 = vmul.f32 %v3342, %v3342
        %v3407 = vmul.f32 %v3343, %v3343
        %v3408 = vmul.f32 %v3344, %v3344
        %v3409 = vmul.f32 %v3345, %v3345
        %v3410 = vmul.f32 %v3346, %v3346
        %v3411 = vmul.f32 %v3347, %v3347
        %v3412 = vmul.f32 %v3348, %v3348
        %v3413 = vmul.f32 %v3349, %v3349
        %v3414 = vmul.f32 %v3350, %v3350
        %v3415 = vmul.f32 %v3351, %v3351
        %v3416 = vmul.f32 %v3352, %v3352
        %v3417 = vmul.f32 %v3353, %v3353
        %v3418 = vmul.f32 %v3354, %v3354
        %v3419 = vmul.f32 %v3355, %v3355
        %v3420 = vmul.f32 %v3356, %v3356
        %v3421 = vmul.f32 %v3357, %v3357
        %v3422 = vmul.f32 %v3358, %v3358
        %v3423 = vmul.f32 %v3359, %v3359
        %v3424 = vmul.f32 %v3360, %v3360
        %v3425 = vmul.f32 %v3361, %v3361
        %v3426 = vmul.f32 %v3362, %v3362
        %v3427 = vmul.f32 %v3363, %v3363
        %v3428 = vmul.f32 %v3364, %v3364
        %v3429 = vmul.f32 %v3365, %v3365
        %v3430 = vmul.f32 %v3366, %v3366
        %v3431 = vmul.f32 %v3367, %v3367
        %v3432 = vmul.f32 %v3368, %v3368
        %v3433 = vmul.f32 %v3369, %v3369
        %v3434 = vmul.f32 %v3370, %v3370
        %v3435 = vmul.f32 %v3371, %v3371
        %v3436 = vmul.f32 %v3372, %v3372
        %v3437 = vmul.f32 %v3373, %v3373
        %v3438 = vmul.f32 %v3374, %v3374
        %v3439 = vmul.f32 %v3375, %v3375
        %v3440 = vmul.f32 %v3376, %v3376
        %v3441 = vmul.f32 %v3377, %v3377
        %v3442 = vmul.f32 %v3378, %v3378
        %v3443 = vmul.f32 %v3379, %v3379
        %v3444 = vmul.f32 %v3380, %v3380
        %v3445 = vmul.f32 %v3381, %v3381
        %v3446 = vmul.f32 %v3382, %v3382
        %v3447 = vmul.f32 %v3383, %v3383
        %v3448 = vmul.f32 %v3384, %v3384
        %v3449 = vmul.f32 %v3321, %v3385
        %v3450 = vmul.f32 %v3322, %v3386
        %v3451 = vmul.f32 %v3323, %v3387
        %v3452 = vmul.f32 %v3324, %v3388
        %v3453 = vmul.f32 %v3325, %v3389
        %v3454 = vmul.f32 %v3326, %v3390
        %v3455 = vmul.f32 %v3327, %v3391
        %v3456 = vmul.f32 %v3328, %v3392
        %v3457 = vmul.f32 %v3329, %v3393
        %v3458 = vmul.f32 %v3330, %v3394
        %v3459 = vmul.f32 %v3331, %v3395
        %v3460 = vmul.f32 %v3332, %v3396
        %v3461 = vmul.f32 %v3333, %v3397
        %v3462 = vmul.f32 %v3334, %v3398
        %v3463 = vmul.f32 %v3335, %v3399
        %v3464 = vmul.f32 %v3336, %v3400
        %v3465 = vmul.f32 %v3337, %v3401
        %v3466 = vmul.f32 %v3338, %v3402
        %v3467 = vmul.f32 %v3339, %v3403
        %v3468 = vmul.f32 %v3340, %v3404
        %v3469 = vmul.f32 %v3341, %v3405
        %v3470 = vmul.f32 %v3342, %v3406
        %v3471 = vmul.f32 %v3343, %v3407
        %v3472 = vmul.f32 %v3344, %v3408
        %v3473 = vmul.f32 %v3345, %v3409
        %v3474 = vmul.f32 %v3346, %v3410
        %v3475 = vmul.f32 %v3347, %v3411
        %v3476 = vmul.f32 %v3348, %v3412
        %v3477 = vmul.f32 %v3349, %v3413
        %v3478 = vmul.f32 %v3350, %v3414
        %v3479 = vmul.f32 %v3351, %v3415
        %v3480 = vmul.f32 %v3352, %v3416
        %v3481 = vmul.f32 %v3353, %v3417
        %v3482 = vmul.f32 %v3354, %v3418
        %v3483 = vmul.f32 %v3355, %v3419
        %v3484 = vmul.f32 %v3356, %v3420
        %v3485 = vmul.f32 %v3357, %v3421
        %v3486 = vmul.f32 %v3358, %v3422
        %v3487 = vmul.f32 %v3359, %v3423
        %v3488 = vmul.f32 %v3360, %v3424
        %v3489 = vmul.f32 %v3361, %v3425
        %v3490 = vmul.f32 %v3362, %v3426
        %v3491 = vmul.f32 %v3363, %v3427
        %v3492 = vmul.f32 %v3364, %v3428
        %v3493 = vmul.f32 %v3365, %v3429
        %v3494 = vmul.f32 %v3366, %v3430
        %v3495 = vmul.f32 %v3367, %v3431
        %v3496 = vmul.f32 %v3368, %v3432
        %v3497 = vmul.f32 %v3369, %v3433
        %v3498 = vmul.f32 %v3370, %v3434
        %v3499 = vmul.f32 %v3371, %v3435
        %v3500 = vmul.f32 %v3372, %v3436
        %v3501 = vmul.f32 %v3373, %v3437
        %v3502 = vmul.f32 %v3374, %v3438
        %v3503 = vmul.f32 %v3375, %v3439
        %v3504 = vmul.f32 %v3376, %v3440
        %v3505 = vmul.f32 %v3377, %v3441
        %v3506 = vmul.f32 %v3378, %v3442
        %v3507 = vmul.f32 %v3379, %v3443
        %v3508 = vmul.f32 %v3380, %v3444
        %v3509 = vmul.f32 %v3381, %v3445
        %v3510 = vmul.f32 %v3382, %v3446
        %v3511 = vmul.f32 %v3383, %v3447
        %v3512 = vmul.f32 %v3384, %v3448
        %v3513 = vmul.f32 %v3449, 0.044715
        %v3514 = vmul.f32 %v3450, 0.044715
        %v3515 = vmul.f32 %v3451, 0.044715
        %v3516 = vmul.f32 %v3452, 0.044715
        %v3517 = vmul.f32 %v3453, 0.044715
        %v3518 = vmul.f32 %v3454, 0.044715
        %v3519 = vmul.f32 %v3455, 0.044715
        %v3520 = vmul.f32 %v3456, 0.044715
        %v3521 = vmul.f32 %v3457, 0.044715
        %v3522 = vmul.f32 %v3458, 0.044715
        %v3523 = vmul.f32 %v3459, 0.044715
        %v3524 = vmul.f32 %v3460, 0.044715
        %v3525 = vmul.f32 %v3461, 0.044715
        %v3526 = vmul.f32 %v3462, 0.044715
        %v3527 = vmul.f32 %v3463, 0.044715
        %v3528 = vmul.f32 %v3464, 0.044715
        %v3529 = vmul.f32 %v3465, 0.044715
        %v3530 = vmul.f32 %v3466, 0.044715
        %v3531 = vmul.f32 %v3467, 0.044715
        %v3532 = vmul.f32 %v3468, 0.044715
        %v3533 = vmul.f32 %v3469, 0.044715
        %v3534 = vmul.f32 %v3470, 0.044715
        %v3535 = vmul.f32 %v3471, 0.044715
        %v3536 = vmul.f32 %v3472, 0.044715
        %v3537 = vmul.f32 %v3473, 0.044715
        %v3538 = vmul.f32 %v3474, 0.044715
        %v3539 = vmul.f32 %v3475, 0.044715
        %v3540 = vmul.f32 %v3476, 0.044715
        %v3541 = vmul.f32 %v3477, 0.044715
        %v3542 = vmul.f32 %v3478, 0.044715
        %v3543 = vmul.f32 %v3479, 0.044715
        %v3544 = vmul.f32 %v3480, 0.044715
        %v3545 = vmul.f32 %v3481, 0.044715
        %v3546 = vmul.f32 %v3482, 0.044715
        %v3547 = vmul.f32 %v3483, 0.044715
        %v3548 = vmul.f32 %v3484, 0.044715
        %v3549 = vmul.f32 %v3485, 0.044715
        %v3550 = vmul.f32 %v3486, 0.044715
        %v3551 = vmul.f32 %v3487, 0.044715
        %v3552 = vmul.f32 %v3488, 0.044715
        %v3553 = vmul.f32 %v3489, 0.044715
        %v3554 = vmul.f32 %v3490, 0.044715
        %v3555 = vmul.f32 %v3491, 0.044715
        %v3556 = vmul.f32 %v3492, 0.044715
        %v3557 = vmul.f32 %v3493, 0.044715
        %v3558 = vmul.f32 %v3494, 0.044715
        %v3559 = vmul.f32 %v3495, 0.044715
        %v3560 = vmul.f32 %v3496, 0.044715
        %v3561 = vmul.f32 %v3497, 0.044715
        %v3562 = vmul.f32 %v3498, 0.044715
        %v3563 = vmul.f32 %v3499, 0.044715
        %v3564 = vmul.f32 %v3500, 0.044715
        %v3565 = vmul.f32 %v3501, 0.044715
        %v3566 = vmul.f32 %v3502, 0.044715
        %v3567 = vmul.f32 %v3503, 0.044715
        %v3568 = vmul.f32 %v3504, 0.044715
        %v3569 = vmul.f32 %v3505, 0.044715
        %v3570 = vmul.f32 %v3506, 0.044715
        %v3571 = vmul.f32 %v3507, 0.044715
        %v3572 = vmul.f32 %v3508, 0.044715
        %v3573 = vmul.f32 %v3509, 0.044715
        %v3574 = vmul.f32 %v3510, 0.044715
        %v3575 = vmul.f32 %v3511, 0.044715
        %v3576 = vmul.f32 %v3512, 0.044715
        %v3577 = vadd.f32 %v3321, %v3513
        %v3578 = vadd.f32 %v3322, %v3514
        %v3579 = vadd.f32 %v3323, %v3515
        %v3580 = vadd.f32 %v3324, %v3516
        %v3581 = vadd.f32 %v3325, %v3517
        %v3582 = vadd.f32 %v3326, %v3518
        %v3583 = vadd.f32 %v3327, %v3519
        %v3584 = vadd.f32 %v3328, %v3520
        %v3585 = vadd.f32 %v3329, %v3521
        %v3586 = vadd.f32 %v3330, %v3522
        %v3587 = vadd.f32 %v3331, %v3523
        %v3588 = vadd.f32 %v3332, %v3524
        %v3589 = vadd.f32 %v3333, %v3525
        %v3590 = vadd.f32 %v3334, %v3526
        %v3591 = vadd.f32 %v3335, %v3527
        %v3592 = vadd.f32 %v3336, %v3528
        %v3593 = vadd.f32 %v3337, %v3529
        %v3594 = vadd.f32 %v3338, %v3530
        %v3595 = vadd.f32 %v3339, %v3531
        %v3596 = vadd.f32 %v3340, %v3532
        %v3597 = vadd.f32 %v3341, %v3533
        %v3598 = vadd.f32 %v3342, %v3534
        %v3599 = vadd.f32 %v3343, %v3535
        %v3600 = vadd.f32 %v3344, %v3536
        %v3601 = vadd.f32 %v3345, %v3537
        %v3602 = vadd.f32 %v3346, %v3538
        %v3603 = vadd.f32 %v3347, %v3539
        %v3604 = vadd.f32 %v3348, %v3540
        %v3605 = vadd.f32 %v3349, %v3541
        %v3606 = vadd.f32 %v3350, %v3542
        %v3607 = vadd.f32 %v3351, %v3543
        %v3608 = vadd.f32 %v3352, %v3544
        %v3609 = vadd.f32 %v3353, %v3545
        %v3610 = vadd.f32 %v3354, %v3546
        %v3611 = vadd.f32 %v3355, %v3547
        %v3612 = vadd.f32 %v3356, %v3548
        %v3613 = vadd.f32 %v3357, %v3549
        %v3614 = vadd.f32 %v3358, %v3550
        %v3615 = vadd.f32 %v3359, %v3551
        %v3616 = vadd.f32 %v3360, %v3552
        %v3617 = vadd.f32 %v3361, %v3553
        %v3618 = vadd.f32 %v3362, %v3554
        %v3619 = vadd.f32 %v3363, %v3555
        %v3620 = vadd.f32 %v3364, %v3556
        %v3621 = vadd.f32 %v3365, %v3557
        %v3622 = vadd.f32 %v3366, %v3558
        %v3623 = vadd.f32 %v3367, %v3559
        %v3624 = vadd.f32 %v3368, %v3560
        %v3625 = vadd.f32 %v3369, %v3561
        %v3626 = vadd.f32 %v3370, %v3562
        %v3627 = vadd.f32 %v3371, %v3563
        %v3628 = vadd.f32 %v3372, %v3564
        %v3629 = vadd.f32 %v3373, %v3565
        %v3630 = vadd.f32 %v3374, %v3566
        %v3631 = vadd.f32 %v3375, %v3567
        %v3632 = vadd.f32 %v3376, %v3568
        %v3633 = vadd.f32 %v3377, %v3569
        %v3634 = vadd.f32 %v3378, %v3570
        %v3635 = vadd.f32 %v3379, %v3571
        %v3636 = vadd.f32 %v3380, %v3572
        %v3637 = vadd.f32 %v3381, %v3573
        %v3638 = vadd.f32 %v3382, %v3574
        %v3639 = vadd.f32 %v3383, %v3575
        %v3640 = vadd.f32 %v3384, %v3576
        %v3641 = vmul.f32 %v3577, 0.7978846
        %v3642 = vmul.f32 %v3578, 0.7978846
        %v3643 = vmul.f32 %v3579, 0.7978846
        %v3644 = vmul.f32 %v3580, 0.7978846
        %v3645 = vmul.f32 %v3581, 0.7978846
        %v3646 = vmul.f32 %v3582, 0.7978846
        %v3647 = vmul.f32 %v3583, 0.7978846
        %v3648 = vmul.f32 %v3584, 0.7978846
        %v3649 = vmul.f32 %v3585, 0.7978846
        %v3650 = vmul.f32 %v3586, 0.7978846
        %v3651 = vmul.f32 %v3587, 0.7978846
        %v3652 = vmul.f32 %v3588, 0.7978846
        %v3653 = vmul.f32 %v3589, 0.7978846
        %v3654 = vmul.f32 %v3590, 0.7978846
        %v3655 = vmul.f32 %v3591, 0.7978846
        %v3656 = vmul.f32 %v3592, 0.7978846
        %v3657 = vmul.f32 %v3593, 0.7978846
        %v3658 = vmul.f32 %v3594, 0.7978846
        %v3659 = vmul.f32 %v3595, 0.7978846
        %v3660 = vmul.f32 %v3596, 0.7978846
        %v3661 = vmul.f32 %v3597, 0.7978846
        %v3662 = vmul.f32 %v3598, 0.7978846
        %v3663 = vmul.f32 %v3599, 0.7978846
        %v3664 = vmul.f32 %v3600, 0.7978846
        %v3665 = vmul.f32 %v3601, 0.7978846
        %v3666 = vmul.f32 %v3602, 0.7978846
        %v3667 = vmul.f32 %v3603, 0.7978846
        %v3668 = vmul.f32 %v3604, 0.7978846
        %v3669 = vmul.f32 %v3605, 0.7978846
        %v3670 = vmul.f32 %v3606, 0.7978846
        %v3671 = vmul.f32 %v3607, 0.7978846
        %v3672 = vmul.f32 %v3608, 0.7978846
        %v3673 = vmul.f32 %v3609, 0.7978846
        %v3674 = vmul.f32 %v3610, 0.7978846
        %v3675 = vmul.f32 %v3611, 0.7978846
        %v3676 = vmul.f32 %v3612, 0.7978846
        %v3677 = vmul.f32 %v3613, 0.7978846
        %v3678 = vmul.f32 %v3614, 0.7978846
        %v3679 = vmul.f32 %v3615, 0.7978846
        %v3680 = vmul.f32 %v3616, 0.7978846
        %v3681 = vmul.f32 %v3617, 0.7978846
        %v3682 = vmul.f32 %v3618, 0.7978846
        %v3683 = vmul.f32 %v3619, 0.7978846
        %v3684 = vmul.f32 %v3620, 0.7978846
        %v3685 = vmul.f32 %v3621, 0.7978846
        %v3686 = vmul.f32 %v3622, 0.7978846
        %v3687 = vmul.f32 %v3623, 0.7978846
        %v3688 = vmul.f32 %v3624, 0.7978846
        %v3689 = vmul.f32 %v3625, 0.7978846
        %v3690 = vmul.f32 %v3626, 0.7978846
        %v3691 = vmul.f32 %v3627, 0.7978846
        %v3692 = vmul.f32 %v3628, 0.7978846
        %v3693 = vmul.f32 %v3629, 0.7978846
        %v3694 = vmul.f32 %v3630, 0.7978846
        %v3695 = vmul.f32 %v3631, 0.7978846
        %v3696 = vmul.f32 %v3632, 0.7978846
        %v3697 = vmul.f32 %v3633, 0.7978846
        %v3698 = vmul.f32 %v3634, 0.7978846
        %v3699 = vmul.f32 %v3635, 0.7978846
        %v3700 = vmul.f32 %v3636, 0.7978846
        %v3701 = vmul.f32 %v3637, 0.7978846
        %v3702 = vmul.f32 %v3638, 0.7978846
        %v3703 = vmul.f32 %v3639, 0.7978846
        %v3704 = vmul.f32 %v3640, 0.7978846
        %v3705 = vtanh.pop %v3641
        %v3706 = vtanh.pop %v3642
        %v3707 = vtanh.pop %v3643
        %v3708 = vtanh.pop %v3644
        %v3709 = vtanh.pop %v3645
        %v3710 = vtanh.pop %v3646
        %v3711 = vtanh.pop %v3647
        %v3712 = vtanh.pop %v3648
        %v3713 = vtanh.pop %v3649
        %v3714 = vtanh.pop %v3650
        %v3715 = vtanh.pop %v3651
        %v3716 = vtanh.pop %v3652
        %v3717 = vtanh.pop %v3653
        %v3718 = vtanh.pop %v3654
        %v3719 = vtanh.pop %v3655
        %v3720 = vtanh.pop %v3656
        %v3721 = vtanh.pop %v3657
        %v3722 = vtanh.pop %v3658
        %v3723 = vtanh.pop %v3659
        %v3724 = vtanh.pop %v3660
        %v3725 = vtanh.pop %v3661
        %v3726 = vtanh.pop %v3662
        %v3727 = vtanh.pop %v3663
        %v3728 = vtanh.pop %v3664
        %v3729 = vtanh.pop %v3665
        %v3730 = vtanh.pop %v3666
        %v3731 = vtanh.pop %v3667
        %v3732 = vtanh.pop %v3668
        %v3733 = vtanh.pop %v3669
        %v3734 = vtanh.pop %v3670
        %v3735 = vtanh.pop %v3671
        %v3736 = vtanh.pop %v3672
        %v3737 = vtanh.pop %v3673
        %v3738 = vtanh.pop %v3674
        %v3739 = vtanh.pop %v3675
        %v3740 = vtanh.pop %v3676
        %v3741 = vtanh.pop %v3677
        %v3742 = vtanh.pop %v3678
        %v3743 = vtanh.pop %v3679
        %v3744 = vtanh.pop %v3680
        %v3745 = vtanh.pop %v3681
        %v3746 = vtanh.pop %v3682
        %v3747 = vtanh.pop %v3683
        %v3748 = vtanh.pop %v3684
        %v3749 = vtanh.pop %v3685
        %v3750 = vtanh.pop %v3686
        %v3751 = vtanh.pop %v3687
        %v3752 = vtanh.pop %v3688
        %v3753 = vtanh.pop %v3689
        %v3754 = vtanh.pop %v3690
        %v3755 = vtanh.pop %v3691
        %v3756 = vtanh.pop %v3692
        %v3757 = vtanh.pop %v3693
        %v3758 = vtanh.pop %v3694
        %v3759 = vtanh.pop %v3695
        %v3760 = vtanh.pop %v3696
        %v3761 = vtanh.pop %v3697
        %v3762 = vtanh.pop %v3698
        %v3763 = vtanh.pop %v3699
        %v3764 = vtanh.pop %v3700
        %v3765 = vtanh.pop %v3701
        %v3766 = vtanh.pop %v3702
        %v3767 = vtanh.pop %v3703
        %v3768 = vtanh.pop %v3704
        %v3769 = vadd.f32 %v3705, 1.0
        %v3770 = vadd.f32 %v3706, 1.0
        %v3771 = vadd.f32 %v3707, 1.0
        %v3772 = vadd.f32 %v3708, 1.0
        %v3773 = vadd.f32 %v3709, 1.0
        %v3774 = vadd.f32 %v3710, 1.0
        %v3775 = vadd.f32 %v3711, 1.0
        %v3776 = vadd.f32 %v3712, 1.0
        %v3777 = vadd.f32 %v3713, 1.0
        %v3778 = vadd.f32 %v3714, 1.0
        %v3779 = vadd.f32 %v3715, 1.0
        %v3780 = vadd.f32 %v3716, 1.0
        %v3781 = vadd.f32 %v3717, 1.0
        %v3782 = vadd.f32 %v3718, 1.0
        %v3783 = vadd.f32 %v3719, 1.0
        %v3784 = vadd.f32 %v3720, 1.0
        %v3785 = vadd.f32 %v3721, 1.0
        %v3786 = vadd.f32 %v3722, 1.0
        %v3787 = vadd.f32 %v3723, 1.0
        %v3788 = vadd.f32 %v3724, 1.0
        %v3789 = vadd.f32 %v3725, 1.0
        %v3790 = vadd.f32 %v3726, 1.0
        %v3791 = vadd.f32 %v3727, 1.0
        %v3792 = vadd.f32 %v3728, 1.0
        %v3793 = vadd.f32 %v3729, 1.0
        %v3794 = vadd.f32 %v3730, 1.0
        %v3795 = vadd.f32 %v3731, 1.0
        %v3796 = vadd.f32 %v3732, 1.0
        %v3797 = vadd.f32 %v3733, 1.0
        %v3798 = vadd.f32 %v3734, 1.0
        %v3799 = vadd.f32 %v3735, 1.0
        %v3800 = vadd.f32 %v3736, 1.0
        %v3801 = vadd.f32 %v3737, 1.0
        %v3802 = vadd.f32 %v3738, 1.0
        %v3803 = vadd.f32 %v3739, 1.0
        %v3804 = vadd.f32 %v3740, 1.0
        %v3805 = vadd.f32 %v3741, 1.0
        %v3806 = vadd.f32 %v3742, 1.0
        %v3807 = vadd.f32 %v3743, 1.0
        %v3808 = vadd.f32 %v3744, 1.0
        %v3809 = vadd.f32 %v3745, 1.0
        %v3810 = vadd.f32 %v3746, 1.0
        %v3811 = vadd.f32 %v3747, 1.0
        %v3812 = vadd.f32 %v3748, 1.0
        %v3813 = vadd.f32 %v3749, 1.0
        %v3814 = vadd.f32 %v3750, 1.0
        %v3815 = vadd.f32 %v3751, 1.0
        %v3816 = vadd.f32 %v3752, 1.0
        %v3817 = vadd.f32 %v3753, 1.0
        %v3818 = vadd.f32 %v3754, 1.0
        %v3819 = vadd.f32 %v3755, 1.0
        %v3820 = vadd.f32 %v3756, 1.0
        %v3821 = vadd.f32 %v3757, 1.0
        %v3822 = vadd.f32 %v3758, 1.0
        %v3823 = vadd.f32 %v3759, 1.0
        %v3824 = vadd.f32 %v3760, 1.0
        %v3825 = vadd.f32 %v3761, 1.0
        %v3826 = vadd.f32 %v3762, 1.0
        %v3827 = vadd.f32 %v3763, 1.0
        %v3828 = vadd.f32 %v3764, 1.0
        %v3829 = vadd.f32 %v3765, 1.0
        %v3830 = vadd.f32 %v3766, 1.0
        %v3831 = vadd.f32 %v3767, 1.0
        %v3832 = vadd.f32 %v3768, 1.0
        %v3833 = vmul.f32 %v3769, 0.5
        %v3834 = vmul.f32 %v3770, 0.5
        %v3835 = vmul.f32 %v3771, 0.5
        %v3836 = vmul.f32 %v3772, 0.5
        %v3837 = vmul.f32 %v3773, 0.5
        %v3838 = vmul.f32 %v3774, 0.5
        %v3839 = vmul.f32 %v3775, 0.5
        %v3840 = vmul.f32 %v3776, 0.5
        %v3841 = vmul.f32 %v3777, 0.5
        %v3842 = vmul.f32 %v3778, 0.5
        %v3843 = vmul.f32 %v3779, 0.5
        %v3844 = vmul.f32 %v3780, 0.5
        %v3845 = vmul.f32 %v3781, 0.5
        %v3846 = vmul.f32 %v3782, 0.5
        %v3847 = vmul.f32 %v3783, 0.5
        %v3848 = vmul.f32 %v3784, 0.5
        %v3849 = vmul.f32 %v3785, 0.5
        %v3850 = vmul.f32 %v3786, 0.5
        %v3851 = vmul.f32 %v3787, 0.5
        %v3852 = vmul.f32 %v3788, 0.5
        %v3853 = vmul.f32 %v3789, 0.5
        %v3854 = vmul.f32 %v3790, 0.5
        %v3855 = vmul.f32 %v3791, 0.5
        %v3856 = vmul.f32 %v3792, 0.5
        %v3857 = vmul.f32 %v3793, 0.5
        %v3858 = vmul.f32 %v3794, 0.5
        %v3859 = vmul.f32 %v3795, 0.5
        %v3860 = vmul.f32 %v3796, 0.5
        %v3861 = vmul.f32 %v3797, 0.5
        %v3862 = vmul.f32 %v3798, 0.5
        %v3863 = vmul.f32 %v3799, 0.5
        %v3864 = vmul.f32 %v3800, 0.5
        %v3865 = vmul.f32 %v3801, 0.5
        %v3866 = vmul.f32 %v3802, 0.5
        %v3867 = vmul.f32 %v3803, 0.5
        %v3868 = vmul.f32 %v3804, 0.5
        %v3869 = vmul.f32 %v3805, 0.5
        %v3870 = vmul.f32 %v3806, 0.5
        %v3871 = vmul.f32 %v3807, 0.5
        %v3872 = vmul.f32 %v3808, 0.5
        %v3873 = vmul.f32 %v3809, 0.5
        %v3874 = vmul.f32 %v3810, 0.5
        %v3875 = vmul.f32 %v3811, 0.5
        %v3876 = vmul.f32 %v3812, 0.5
        %v3877 = vmul.f32 %v3813, 0.5
        %v3878 = vmul.f32 %v3814, 0.5
        %v3879 = vmul.f32 %v3815, 0.5
        %v3880 = vmul.f32 %v3816, 0.5
        %v3881 = vmul.f32 %v3817, 0.5
        %v3882 = vmul.f32 %v3818, 0.5
        %v3883 = vmul.f32 %v3819, 0.5
        %v3884 = vmul.f32 %v3820, 0.5
        %v3885 = vmul.f32 %v3821, 0.5
        %v3886 = vmul.f32 %v3822, 0.5
        %v3887 = vmul.f32 %v3823, 0.5
        %v3888 = vmul.f32 %v3824, 0.5
        %v3889 = vmul.f32 %v3825, 0.5
        %v3890 = vmul.f32 %v3826, 0.5
        %v3891 = vmul.f32 %v3827, 0.5
        %v3892 = vmul.f32 %v3828, 0.5
        %v3893 = vmul.f32 %v3829, 0.5
        %v3894 = vmul.f32 %v3830, 0.5
        %v3895 = vmul.f32 %v3831, 0.5
        %v3896 = vmul.f32 %v3832, 0.5
        %v3897 = vmul.f32 %v3321, %v3833
        %v3898 = vmul.f32 %v3322, %v3834
        %v3899 = vmul.f32 %v3323, %v3835
        %v3900 = vmul.f32 %v3324, %v3836
        %v3901 = vmul.f32 %v3325, %v3837
        %v3902 = vmul.f32 %v3326, %v3838
        %v3903 = vmul.f32 %v3327, %v3839
        %v3904 = vmul.f32 %v3328, %v3840
        %v3905 = vmul.f32 %v3329, %v3841
        %v3906 = vmul.f32 %v3330, %v3842
        %v3907 = vmul.f32 %v3331, %v3843
        %v3908 = vmul.f32 %v3332, %v3844
        %v3909 = vmul.f32 %v3333, %v3845
        %v3910 = vmul.f32 %v3334, %v3846
        %v3911 = vmul.f32 %v3335, %v3847
        %v3912 = vmul.f32 %v3336, %v3848
        %v3913 = vmul.f32 %v3337, %v3849
        %v3914 = vmul.f32 %v3338, %v3850
        %v3915 = vmul.f32 %v3339, %v3851
        %v3916 = vmul.f32 %v3340, %v3852
        %v3917 = vmul.f32 %v3341, %v3853
        %v3918 = vmul.f32 %v3342, %v3854
        %v3919 = vmul.f32 %v3343, %v3855
        %v3920 = vmul.f32 %v3344, %v3856
        %v3921 = vmul.f32 %v3345, %v3857
        %v3922 = vmul.f32 %v3346, %v3858
        %v3923 = vmul.f32 %v3347, %v3859
        %v3924 = vmul.f32 %v3348, %v3860
        %v3925 = vmul.f32 %v3349, %v3861
        %v3926 = vmul.f32 %v3350, %v3862
        %v3927 = vmul.f32 %v3351, %v3863
        %v3928 = vmul.f32 %v3352, %v3864
        %v3929 = vmul.f32 %v3353, %v3865
        %v3930 = vmul.f32 %v3354, %v3866
        %v3931 = vmul.f32 %v3355, %v3867
        %v3932 = vmul.f32 %v3356, %v3868
        %v3933 = vmul.f32 %v3357, %v3869
        %v3934 = vmul.f32 %v3358, %v3870
        %v3935 = vmul.f32 %v3359, %v3871
        %v3936 = vmul.f32 %v3360, %v3872
        %v3937 = vmul.f32 %v3361, %v3873
        %v3938 = vmul.f32 %v3362, %v3874
        %v3939 = vmul.f32 %v3363, %v3875
        %v3940 = vmul.f32 %v3364, %v3876
        %v3941 = vmul.f32 %v3365, %v3877
        %v3942 = vmul.f32 %v3366, %v3878
        %v3943 = vmul.f32 %v3367, %v3879
        %v3944 = vmul.f32 %v3368, %v3880
        %v3945 = vmul.f32 %v3369, %v3881
        %v3946 = vmul.f32 %v3370, %v3882
        %v3947 = vmul.f32 %v3371, %v3883
        %v3948 = vmul.f32 %v3372, %v3884
        %v3949 = vmul.f32 %v3373, %v3885
        %v3950 = vmul.f32 %v3374, %v3886
        %v3951 = vmul.f32 %v3375, %v3887
        %v3952 = vmul.f32 %v3376, %v3888
        %v3953 = vmul.f32 %v3377, %v3889
        %v3954 = vmul.f32 %v3378, %v3890
        %v3955 = vmul.f32 %v3379, %v3891
        %v3956 = vmul.f32 %v3380, %v3892
        %v3957 = vmul.f32 %v3381, %v3893
        %v3958 = vmul.f32 %v3382, %v3894
        %v3959 = vmul.f32 %v3383, %v3895
        %v3960 = vmul.f32 %v3384, %v3896
        %v3961 = vpack.c.bf16 %v3898, %v3897
        %v3962 = vpack.c.bf16 %v3900, %v3899
        %v3963 = vpack.c.bf16 %v3902, %v3901
        %v3964 = vpack.c.bf16 %v3904, %v3903
        %v3965 = vpack.c.bf16 %v3906, %v3905
        %v3966 = vpack.c.bf16 %v3908, %v3907
        %v3967 = vpack.c.bf16 %v3910, %v3909
        %v3968 = vpack.c.bf16 %v3912, %v3911
        %v3969 = vpack.c.bf16 %v3914, %v3913
        %v3970 = vpack.c.bf16 %v3916, %v3915
        %v3971 = vpack.c.bf16 %v3918, %v3917
        %v3972 = vpack.c.bf16 %v3920, %v3919
        %v3973 = vpack.c.bf16 %v3922, %v3921
        %v3974 = vpack.c.bf16 %v3924, %v3923
        %v3975 = vpack.c.bf16 %v3926, %v3925
        %v3976 = vpack.c.bf16 %v3928, %v3927
        %v3977 = vpack.c.bf16 %v3930, %v3929
        %v3978 = vpack.c.bf16 %v3932, %v3931
        %v3979 = vpack.c.bf16 %v3934, %v3933
        %v3980 = vpack.c.bf16 %v3936, %v3935
        %v3981 = vpack.c.bf16 %v3938, %v3937
        %v3982 = vpack.c.bf16 %v3940, %v3939
        %v3983 = vpack.c.bf16 %v3942, %v3941
        %v3984 = vpack.c.bf16 %v3944, %v3943
        %v3985 = vpack.c.bf16 %v3946, %v3945
        %v3986 = vpack.c.bf16 %v3948, %v3947
        %v3987 = vpack.c.bf16 %v3950, %v3949
        %v3988 = vpack.c.bf16 %v3952, %v3951
        %v3989 = vpack.c.bf16 %v3954, %v3953
        %v3990 = vpack.c.bf16 %v3956, %v3955
        %v3991 = vpack.c.bf16 %v3958, %v3957
        %v3992 = vpack.c.bf16 %v3960, %v3959
        %v3993 = vld [vmem:[%s6] sm:$0xff]
        %v3994 = vld [vmem:[%s6 + $0x8] sm:$0xff]
        %v3995 = vld [vmem:[%s6 + $0x10] sm:$0xff]
        %v3996 = vld [vmem:[%s6 + $0x18] sm:$0xff]
        %v3997 = vld [vmem:[%s7] sm:$0x3]
        %v3999 = vlaneseq
        %v4000 = vshrl.u32 %v3999, 7
        %v4001 = vsub.s32 0, %v4000
        %v4002 = vrot.slane %v3997, %v4001
        %v4003 = vlaneseq
        %v4004 = vshrl.u32 %v4003, 7
        %v4005 = vsub.s32 1, %v4004
        %v4006 = vrot.slane %v3997, %v4005
        %v4013 = vunpack.c.l.b16 %v3993
        %v4014 = vunpack.c.h.b16 %v3993
        %v4015 = vunpack.c.l.b16 %v3994
        %v4016 = vunpack.c.h.b16 %v3994
        %v4017 = vunpack.c.l.b16 %v3995
        %v4018 = vunpack.c.h.b16 %v3995
        %v4019 = vunpack.c.l.b16 %v3996
        %v4020 = vunpack.c.h.b16 %v3996
        %v4021 = vpack.c.b16 %v4015, %v4013
        %v4022 = vpack.c.b16 %v4016, %v4014
        %v4023 = vpack.c.b16 %v4019, %v4017
        %v4024 = vpack.c.b16 %v4020, %v4018
        %v4030 = vsel %vm2024, %v3961, 0
        %v4033 = vsel %vm2024, %v3962, 0
        %v4036 = vsel %vm2024, %v3963, 0
        %v4039 = vsel %vm2024, %v3964, 0
        %v4042 = vsel %vm2024, %v3965, 0
        %v4045 = vsel %vm2024, %v3966, 0
        %v4048 = vsel %vm2024, %v3967, 0
        %v4051 = vsel %vm2024, %v3968, 0
        %v4054 = vsel %vm2024, %v3969, 0
        %v4057 = vsel %vm2024, %v3970, 0
        %v4060 = vsel %vm2024, %v3971, 0
        %v4063 = vsel %vm2024, %v3972, 0
        %v4066 = vsel %vm2024, %v3973, 0
        %v4069 = vsel %vm2024, %v3974, 0
        %v4072 = vsel %vm2024, %v3975, 0
        %v4075 = vsel %vm2024, %v3976, 0
        %v4078 = vsel %vm2024, %v3977, 0
        %v4081 = vsel %vm2024, %v3978, 0
        %v4084 = vsel %vm2024, %v3979, 0
        %v4087 = vsel %vm2024, %v3980, 0
        %v4090 = vsel %vm2024, %v3981, 0
        %v4093 = vsel %vm2024, %v3982, 0
        %v4096 = vsel %vm2024, %v3983, 0
        %v4099 = vsel %vm2024, %v3984, 0
        %v4102 = vsel %vm2024, %v3985, 0
        %v4105 = vsel %vm2024, %v3986, 0
        %v4108 = vsel %vm2024, %v3987, 0
        %v4111 = vsel %vm2024, %v3988, 0
        %v4114 = vsel %vm2024, %v3989, 0
        %v4117 = vsel %vm2024, %v3990, 0
        %v4120 = vsel %vm2024, %v3991, 0
        %v4123 = vsel %vm2024, %v3992, 0
        %4125 = vmatprep.subr.bf16.mxu0 %v4022
        %4126 = vmatpush1.bf16.msra.mxu0 %v4021
        %4127 = vmatprep.subr.bf16.mxu0 %v4024
        %4128 = vmatpush1.bf16.msra.mxu0 %v4023
        %4129 = vmatprep.subr.bf16.mxu0 0
        %4130 = vmatpush1.bf16.msra.mxu0 0
        %4131 = vmatprep.subr.bf16.mxu0 0
        %4132 = vmatpush1.bf16.msra.mxu0 0
        %4133 = vmatprep.subr.bf16.mxu0 0
        %4134 = vmatpush1.bf16.msra.mxu0 0
        %4135 = vmatprep.subr.bf16.mxu0 0
        %4136 = vmatpush1.bf16.msra.mxu0 0
        %4137 = vmatprep.subr.bf16.mxu0 0
        %4138 = vmatpush1.bf16.msra.mxu0 0
        %4139 = vmatprep.subr.bf16.mxu0 0
        %4140 = vmatpush1.bf16.msra.mxu0 0
        %4141 = vmatprep.subr.bf16.mxu0 0
        %4142 = vmatpush1.bf16.msra.mxu0 0
        %4143 = vmatprep.subr.bf16.mxu0 0
        %4144 = vmatpush1.bf16.msra.mxu0 0
        %4145 = vmatprep.subr.bf16.mxu0 0
        %4146 = vmatpush1.bf16.msra.mxu0 0
        %4147 = vmatprep.subr.bf16.mxu0 0
        %4148 = vmatpush1.bf16.msra.mxu0 0
        %4149 = vmatprep.subr.bf16.mxu0 0
        %4150 = vmatpush1.bf16.msra.mxu0 0
        %4151 = vmatprep.subr.bf16.mxu0 0
        %4152 = vmatpush1.bf16.msra.mxu0 0
        %4153 = vmatprep.subr.bf16.mxu0 0
        %4154 = vmatpush1.bf16.msra.mxu0 0
        %4155 = vmatprep.subr.bf16.mxu0 0
        %4156 = vmatpush1.bf16.msra.mxu0 0
        %4157 = vmatprep.mubr.bf16.mxu0 0
        %4158 = vmatmul.mubr.bf16.gmra.mrb[0].mxu0 %v4030
        %v4159 = vpop.f32.mrb[0].mxu0
        %v4160 = vadd.f32 %v4002, %v4159
        %v4161 = vpop.f32.mrb[0].mxu0
        %v4162 = vadd.f32 %v4006, %v4161
        %v4163 = vpop.f32.mrb[0].mxu0
        %v4164 = vadd.f32 %v4002, %v4163
        %v4165 = vpop.f32.mrb[0].mxu0
        %v4166 = vadd.f32 %v4006, %v4165
        %4167 = vmatprep.mubr.bf16.mxu0 0
        %4168 = vmatmul.mubr.bf16.gmra.mrb[0].mxu0 %v4033
        %v4169 = vpop.f32.mrb[0].mxu0
        %v4170 = vadd.f32 %v4002, %v4169
        %v4171 = vpop.f32.mrb[0].mxu0
        %v4172 = vadd.f32 %v4006, %v4171
        %v4173 = vpop.f32.mrb[0].mxu0
        %v4174 = vadd.f32 %v4002, %v4173
        %v4175 = vpop.f32.mrb[0].mxu0
        %v4176 = vadd.f32 %v4006, %v4175
        %4177 = vmatprep.mubr.bf16.mxu0 0
        %4178 = vmatmul.mubr.bf16.gmra.mrb[0].mxu0 %v4036
        %v4179 = vpop.f32.mrb[0].mxu0
        %v4180 = vadd.f32 %v4002, %v4179
        %v4181 = vpop.f32.mrb[0].mxu0
        %v4182 = vadd.f32 %v4006, %v4181
        %v4183 = vpop.f32.mrb[0].mxu0
        %v4184 = vadd.f32 %v4002, %v4183
        %v4185 = vpop.f32.mrb[0].mxu0
        %v4186 = vadd.f32 %v4006, %v4185
        %4187 = vmatprep.mubr.bf16.mxu0 0
        %4188 = vmatmul.mubr.bf16.gmra.mrb[0].mxu0 %v4039
        %v4189 = vpop.f32.mrb[0].mxu0
        %v4190 = vadd.f32 %v4002, %v4189
        %v4191 = vpop.f32.mrb[0].mxu0
        %v4192 = vadd.f32 %v4006, %v4191
        %v4193 = vpop.f32.mrb[0].mxu0
        %v4194 = vadd.f32 %v4002, %v4193
        %v4195 = vpop.f32.mrb[0].mxu0
        %v4196 = vadd.f32 %v4006, %v4195
        %4197 = vmatprep.mubr.bf16.mxu0 0
        %4198 = vmatmul.mubr.bf16.gmra.mrb[0].mxu0 %v4042
        %v4199 = vpop.f32.mrb[0].mxu0
        %v4200 = vadd.f32 %v4002, %v4199
        %v4201 = vpop.f32.mrb[0].mxu0
        %v4202 = vadd.f32 %v4006, %v4201
        %v4203 = vpop.f32.mrb[0].mxu0
        %v4204 = vadd.f32 %v4002, %v4203
        %v4205 = vpop.f32.mrb[0].mxu0
        %v4206 = vadd.f32 %v4006, %v4205
        %4207 = vmatprep.mubr.bf16.mxu0 0
        %4208 = vmatmul.mubr.bf16.gmra.mrb[0].mxu0 %v4045
        %v4209 = vpop.f32.mrb[0].mxu0
        %v4210 = vadd.f32 %v4002, %v4209
        %v4211 = vpop.f32.mrb[0].mxu0
        %v4212 = vadd.f32 %v4006, %v4211
        %v4213 = vpop.f32.mrb[0].mxu0
        %v4214 = vadd.f32 %v4002, %v4213
        %v4215 = vpop.f32.mrb[0].mxu0
        %v4216 = vadd.f32 %v4006, %v4215
        %4217 = vmatprep.mubr.bf16.mxu0 0
        %4218 = vmatmul.mubr.bf16.gmra.mrb[0].mxu0 %v4048
        %v4219 = vpop.f32.mrb[0].mxu0
        %v4220 = vadd.f32 %v4002, %v4219
        %v4221 = vpop.f32.mrb[0].mxu0
        %v4222 = vadd.f32 %v4006, %v4221
        %v4223 = vpop.f32.mrb[0].mxu0
        %v4224 = vadd.f32 %v4002, %v4223
        %v4225 = vpop.f32.mrb[0].mxu0
        %v4226 = vadd.f32 %v4006, %v4225
        %4227 = vmatprep.mubr.bf16.mxu0 0
        %4228 = vmatmul.mubr.bf16.gmra.mrb[0].mxu0 %v4051
        %v4229 = vpop.f32.mrb[0].mxu0
        %v4230 = vadd.f32 %v4002, %v4229
        %v4231 = vpop.f32.mrb[0].mxu0
        %v4232 = vadd.f32 %v4006, %v4231
        %v4233 = vpop.f32.mrb[0].mxu0
        %v4234 = vadd.f32 %v4002, %v4233
        %v4235 = vpop.f32.mrb[0].mxu0
        %v4236 = vadd.f32 %v4006, %v4235
        %4237 = vmatprep.mubr.bf16.mxu0 0
        %4238 = vmatmul.mubr.bf16.gmra.mrb[0].mxu0 %v4054
        %v4239 = vpop.f32.mrb[0].mxu0
        %v4240 = vadd.f32 %v4002, %v4239
        %v4241 = vpop.f32.mrb[0].mxu0
        %v4242 = vadd.f32 %v4006, %v4241
        %v4243 = vpop.f32.mrb[0].mxu0
        %v4244 = vadd.f32 %v4002, %v4243
        %v4245 = vpop.f32.mrb[0].mxu0
        %v4246 = vadd.f32 %v4006, %v4245
        %4247 = vmatprep.mubr.bf16.mxu0 0
        %4248 = vmatmul.mubr.bf16.gmra.mrb[0].mxu0 %v4057
        %v4249 = vpop.f32.mrb[0].mxu0
        %v4250 = vadd.f32 %v4002, %v4249
        %v4251 = vpop.f32.mrb[0].mxu0
        %v4252 = vadd.f32 %v4006, %v4251
        %v4253 = vpop.f32.mrb[0].mxu0
        %v4254 = vadd.f32 %v4002, %v4253
        %v4255 = vpop.f32.mrb[0].mxu0
        %v4256 = vadd.f32 %v4006, %v4255
        %4257 = vmatprep.mubr.bf16.mxu0 0
        %4258 = vmatmul.mubr.bf16.gmra.mrb[0].mxu0 %v4060
        %v4259 = vpop.f32.mrb[0].mxu0
        %v4260 = vadd.f32 %v4002, %v4259
        %v4261 = vpop.f32.mrb[0].mxu0
        %v4262 = vadd.f32 %v4006, %v4261
        %v4263 = vpop.f32.mrb[0].mxu0
        %v4264 = vadd.f32 %v4002, %v4263
        %v4265 = vpop.f32.mrb[0].mxu0
        %v4266 = vadd.f32 %v4006, %v4265
        %4267 = vmatprep.mubr.bf16.mxu0 0
        %4268 = vmatmul.mubr.bf16.gmra.mrb[0].mxu0 %v4063
        %v4269 = vpop.f32.mrb[0].mxu0
        %v4270 = vadd.f32 %v4002, %v4269
        %v4271 = vpop.f32.mrb[0].mxu0
        %v4272 = vadd.f32 %v4006, %v4271
        %v4273 = vpop.f32.mrb[0].mxu0
        %v4274 = vadd.f32 %v4002, %v4273
        %v4275 = vpop.f32.mrb[0].mxu0
        %v4276 = vadd.f32 %v4006, %v4275
        %4277 = vmatprep.mubr.bf16.mxu0 0
        %4278 = vmatmul.mubr.bf16.gmra.mrb[0].mxu0 %v4066
        %v4279 = vpop.f32.mrb[0].mxu0
        %v4280 = vadd.f32 %v4002, %v4279
        %v4281 = vpop.f32.mrb[0].mxu0
        %v4282 = vadd.f32 %v4006, %v4281
        %v4283 = vpop.f32.mrb[0].mxu0
        %v4284 = vadd.f32 %v4002, %v4283
        %v4285 = vpop.f32.mrb[0].mxu0
        %v4286 = vadd.f32 %v4006, %v4285
        %4287 = vmatprep.mubr.bf16.mxu0 0
        %4288 = vmatmul.mubr.bf16.gmra.mrb[0].mxu0 %v4069
        %v4289 = vpop.f32.mrb[0].mxu0
        %v4290 = vadd.f32 %v4002, %v4289
        %v4291 = vpop.f32.mrb[0].mxu0
        %v4292 = vadd.f32 %v4006, %v4291
        %v4293 = vpop.f32.mrb[0].mxu0
        %v4294 = vadd.f32 %v4002, %v4293
        %v4295 = vpop.f32.mrb[0].mxu0
        %v4296 = vadd.f32 %v4006, %v4295
        %4297 = vmatprep.mubr.bf16.mxu0 0
        %4298 = vmatmul.mubr.bf16.gmra.mrb[0].mxu0 %v4072
        %v4299 = vpop.f32.mrb[0].mxu0
        %v4300 = vadd.f32 %v4002, %v4299
        %v4301 = vpop.f32.mrb[0].mxu0
        %v4302 = vadd.f32 %v4006, %v4301
        %v4303 = vpop.f32.mrb[0].mxu0
        %v4304 = vadd.f32 %v4002, %v4303
        %v4305 = vpop.f32.mrb[0].mxu0
        %v4306 = vadd.f32 %v4006, %v4305
        %4307 = vmatprep.mubr.bf16.mxu0 0
        %4308 = vmatmul.mubr.bf16.gmra.mrb[0].mxu0 %v4075
        %v4309 = vpop.f32.mrb[0].mxu0
        %v4310 = vadd.f32 %v4002, %v4309
        %v4311 = vpop.f32.mrb[0].mxu0
        %v4312 = vadd.f32 %v4006, %v4311
        %v4313 = vpop.f32.mrb[0].mxu0
        %v4314 = vadd.f32 %v4002, %v4313
        %v4315 = vpop.f32.mrb[0].mxu0
        %v4316 = vadd.f32 %v4006, %v4315
        %4317 = vmatprep.mubr.bf16.mxu0 0
        %4318 = vmatmul.mubr.bf16.gmra.mrb[0].mxu0 %v4078
        %v4319 = vpop.f32.mrb[0].mxu0
        %v4320 = vadd.f32 %v4002, %v4319
        %v4321 = vpop.f32.mrb[0].mxu0
        %v4322 = vadd.f32 %v4006, %v4321
        %v4323 = vpop.f32.mrb[0].mxu0
        %v4324 = vadd.f32 %v4002, %v4323
        %v4325 = vpop.f32.mrb[0].mxu0
        %v4326 = vadd.f32 %v4006, %v4325
        %4327 = vmatprep.mubr.bf16.mxu0 0
        %4328 = vmatmul.mubr.bf16.gmra.mrb[0].mxu0 %v4081
        %v4329 = vpop.f32.mrb[0].mxu0
        %v4330 = vadd.f32 %v4002, %v4329
        %v4331 = vpop.f32.mrb[0].mxu0
        %v4332 = vadd.f32 %v4006, %v4331
        %v4333 = vpop.f32.mrb[0].mxu0
        %v4334 = vadd.f32 %v4002, %v4333
        %v4335 = vpop.f32.mrb[0].mxu0
        %v4336 = vadd.f32 %v4006, %v4335
        %4337 = vmatprep.mubr.bf16.mxu0 0
        %4338 = vmatmul.mubr.bf16.gmra.mrb[0].mxu0 %v4084
        %v4339 = vpop.f32.mrb[0].mxu0
        %v4340 = vadd.f32 %v4002, %v4339
        %v4341 = vpop.f32.mrb[0].mxu0
        %v4342 = vadd.f32 %v4006, %v4341
        %v4343 = vpop.f32.mrb[0].mxu0
        %v4344 = vadd.f32 %v4002, %v4343
        %v4345 = vpop.f32.mrb[0].mxu0
        %v4346 = vadd.f32 %v4006, %v4345
        %4347 = vmatprep.mubr.bf16.mxu0 0
        %4348 = vmatmul.mubr.bf16.gmra.mrb[0].mxu0 %v4087
        %v4349 = vpop.f32.mrb[0].mxu0
        %v4350 = vadd.f32 %v4002, %v4349
        %v4351 = vpop.f32.mrb[0].mxu0
        %v4352 = vadd.f32 %v4006, %v4351
        %v4353 = vpop.f32.mrb[0].mxu0
        %v4354 = vadd.f32 %v4002, %v4353
        %v4355 = vpop.f32.mrb[0].mxu0
        %v4356 = vadd.f32 %v4006, %v4355
        %4357 = vmatprep.mubr.bf16.mxu0 0
        %4358 = vmatmul.mubr.bf16.gmra.mrb[0].mxu0 %v4090
        %v4359 = vpop.f32.mrb[0].mxu0
        %v4360 = vadd.f32 %v4002, %v4359
        %v4361 = vpop.f32.mrb[0].mxu0
        %v4362 = vadd.f32 %v4006, %v4361
        %v4363 = vpop.f32.mrb[0].mxu0
        %v4364 = vadd.f32 %v4002, %v4363
        %v4365 = vpop.f32.mrb[0].mxu0
        %v4366 = vadd.f32 %v4006, %v4365
        %4367 = vmatprep.mubr.bf16.mxu0 0
        %4368 = vmatmul.mubr.bf16.gmra.mrb[0].mxu0 %v4093
        %v4369 = vpop.f32.mrb[0].mxu0
        %v4370 = vadd.f32 %v4002, %v4369
        %v4371 = vpop.f32.mrb[0].mxu0
        %v4372 = vadd.f32 %v4006, %v4371
        %v4373 = vpop.f32.mrb[0].mxu0
        %v4374 = vadd.f32 %v4002, %v4373
        %v4375 = vpop.f32.mrb[0].mxu0
        %v4376 = vadd.f32 %v4006, %v4375
        %4377 = vmatprep.mubr.bf16.mxu0 0
        %4378 = vmatmul.mubr.bf16.gmra.mrb[0].mxu0 %v4096
        %v4379 = vpop.f32.mrb[0].mxu0
        %v4380 = vadd.f32 %v4002, %v4379
        %v4381 = vpop.f32.mrb[0].mxu0
        %v4382 = vadd.f32 %v4006, %v4381
        %v4383 = vpop.f32.mrb[0].mxu0
        %v4384 = vadd.f32 %v4002, %v4383
        %v4385 = vpop.f32.mrb[0].mxu0
        %v4386 = vadd.f32 %v4006, %v4385
        %4387 = vmatprep.mubr.bf16.mxu0 0
        %4388 = vmatmul.mubr.bf16.gmra.mrb[0].mxu0 %v4099
        %v4389 = vpop.f32.mrb[0].mxu0
        %v4390 = vadd.f32 %v4002, %v4389
        %v4391 = vpop.f32.mrb[0].mxu0
        %v4392 = vadd.f32 %v4006, %v4391
        %v4393 = vpop.f32.mrb[0].mxu0
        %v4394 = vadd.f32 %v4002, %v4393
        %v4395 = vpop.f32.mrb[0].mxu0
        %v4396 = vadd.f32 %v4006, %v4395
        %4397 = vmatprep.mubr.bf16.mxu0 0
        %4398 = vmatmul.mubr.bf16.gmra.mrb[0].mxu0 %v4102
        %v4399 = vpop.f32.mrb[0].mxu0
        %v4400 = vadd.f32 %v4002, %v4399
        %v4401 = vpop.f32.mrb[0].mxu0
        %v4402 = vadd.f32 %v4006, %v4401
        %v4403 = vpop.f32.mrb[0].mxu0
        %v4404 = vadd.f32 %v4002, %v4403
        %v4405 = vpop.f32.mrb[0].mxu0
        %v4406 = vadd.f32 %v4006, %v4405
        %4407 = vmatprep.mubr.bf16.mxu0 0
        %4408 = vmatmul.mubr.bf16.gmra.mrb[0].mxu0 %v4105
        %v4409 = vpop.f32.mrb[0].mxu0
        %v4410 = vadd.f32 %v4002, %v4409
        %v4411 = vpop.f32.mrb[0].mxu0
        %v4412 = vadd.f32 %v4006, %v4411
        %v4413 = vpop.f32.mrb[0].mxu0
        %v4414 = vadd.f32 %v4002, %v4413
        %v4415 = vpop.f32.mrb[0].mxu0
        %v4416 = vadd.f32 %v4006, %v4415
        %4417 = vmatprep.mubr.bf16.mxu0 0
        %4418 = vmatmul.mubr.bf16.gmra.mrb[0].mxu0 %v4108
        %v4419 = vpop.f32.mrb[0].mxu0
        %v4420 = vadd.f32 %v4002, %v4419
        %v4421 = vpop.f32.mrb[0].mxu0
        %v4422 = vadd.f32 %v4006, %v4421
        %v4423 = vpop.f32.mrb[0].mxu0
        %v4424 = vadd.f32 %v4002, %v4423
        %v4425 = vpop.f32.mrb[0].mxu0
        %v4426 = vadd.f32 %v4006, %v4425
        %4427 = vmatprep.mubr.bf16.mxu0 0
        %4428 = vmatmul.mubr.bf16.gmra.mrb[0].mxu0 %v4111
        %v4429 = vpop.f32.mrb[0].mxu0
        %v4430 = vadd.f32 %v4002, %v4429
        %v4431 = vpop.f32.mrb[0].mxu0
        %v4432 = vadd.f32 %v4006, %v4431
        %v4433 = vpop.f32.mrb[0].mxu0
        %v4434 = vadd.f32 %v4002, %v4433
        %v4435 = vpop.f32.mrb[0].mxu0
        %v4436 = vadd.f32 %v4006, %v4435
        %4437 = vmatprep.mubr.bf16.mxu0 0
        %4438 = vmatmul.mubr.bf16.gmra.mrb[0].mxu0 %v4114
        %v4439 = vpop.f32.mrb[0].mxu0
        %v4440 = vadd.f32 %v4002, %v4439
        %v4441 = vpop.f32.mrb[0].mxu0
        %v4442 = vadd.f32 %v4006, %v4441
        %v4443 = vpop.f32.mrb[0].mxu0
        %v4444 = vadd.f32 %v4002, %v4443
        %v4445 = vpop.f32.mrb[0].mxu0
        %v4446 = vadd.f32 %v4006, %v4445
        %4447 = vmatprep.mubr.bf16.mxu0 0
        %4448 = vmatmul.mubr.bf16.gmra.mrb[0].mxu0 %v4117
        %v4449 = vpop.f32.mrb[0].mxu0
        %v4450 = vadd.f32 %v4002, %v4449
        %v4451 = vpop.f32.mrb[0].mxu0
        %v4452 = vadd.f32 %v4006, %v4451
        %v4453 = vpop.f32.mrb[0].mxu0
        %v4454 = vadd.f32 %v4002, %v4453
        %v4455 = vpop.f32.mrb[0].mxu0
        %v4456 = vadd.f32 %v4006, %v4455
        %4457 = vmatprep.mubr.bf16.mxu0 0
        %4458 = vmatmul.mubr.bf16.gmra.mrb[0].mxu0 %v4120
        %v4459 = vpop.f32.mrb[0].mxu0
        %v4460 = vadd.f32 %v4002, %v4459
        %v4461 = vpop.f32.mrb[0].mxu0
        %v4462 = vadd.f32 %v4006, %v4461
        %v4463 = vpop.f32.mrb[0].mxu0
        %v4464 = vadd.f32 %v4002, %v4463
        %v4465 = vpop.f32.mrb[0].mxu0
        %v4466 = vadd.f32 %v4006, %v4465
        %4467 = vmatprep.mubr.bf16.mxu0 0
        %4468 = vmatmul.mubr.bf16.gmra.mrb[0].mxu0 %v4123
        %v4469 = vpop.f32.mrb[0].mxu0
        %v4470 = vadd.f32 %v4002, %v4469
        %v4471 = vpop.f32.mrb[0].mxu0
        %v4472 = vadd.f32 %v4006, %v4471
        %v4473 = vpop.f32.mrb[0].mxu0
        %v4474 = vadd.f32 %v4002, %v4473
        %v4475 = vpop.f32.mrb[0].mxu0
        %v4476 = vadd.f32 %v4006, %v4475
        %4477 = vdwg.mxu0
        %v4478 = vmul.f32 %v4160, %v4160
        %v4479 = vmul.f32 %v4162, %v4162
        %v4480 = vmul.f32 %v4164, %v4164
        %v4481 = vmul.f32 %v4166, %v4166
        %v4482 = vmul.f32 %v4170, %v4170
        %v4483 = vmul.f32 %v4172, %v4172
        %v4484 = vmul.f32 %v4174, %v4174
        %v4485 = vmul.f32 %v4176, %v4176
        %v4486 = vmul.f32 %v4180, %v4180
        %v4487 = vmul.f32 %v4182, %v4182
        %v4488 = vmul.f32 %v4184, %v4184
        %v4489 = vmul.f32 %v4186, %v4186
        %v4490 = vmul.f32 %v4190, %v4190
        %v4491 = vmul.f32 %v4192, %v4192
        %v4492 = vmul.f32 %v4194, %v4194
        %v4493 = vmul.f32 %v4196, %v4196
        %v4494 = vmul.f32 %v4200, %v4200
        %v4495 = vmul.f32 %v4202, %v4202
        %v4496 = vmul.f32 %v4204, %v4204
        %v4497 = vmul.f32 %v4206, %v4206
        %v4498 = vmul.f32 %v4210, %v4210
        %v4499 = vmul.f32 %v4212, %v4212
        %v4500 = vmul.f32 %v4214, %v4214
        %v4501 = vmul.f32 %v4216, %v4216
        %v4502 = vmul.f32 %v4220, %v4220
        %v4503 = vmul.f32 %v4222, %v4222
        %v4504 = vmul.f32 %v4224, %v4224
        %v4505 = vmul.f32 %v4226, %v4226
        %v4506 = vmul.f32 %v4230, %v4230
        %v4507 = vmul.f32 %v4232, %v4232
        %v4508 = vmul.f32 %v4234, %v4234
        %v4509 = vmul.f32 %v4236, %v4236
        %v4510 = vmul.f32 %v4240, %v4240
        %v4511 = vmul.f32 %v4242, %v4242
        %v4512 = vmul.f32 %v4244, %v4244
        %v4513 = vmul.f32 %v4246, %v4246
        %v4514 = vmul.f32 %v4250, %v4250
        %v4515 = vmul.f32 %v4252, %v4252
        %v4516 = vmul.f32 %v4254, %v4254
        %v4517 = vmul.f32 %v4256, %v4256
        %v4518 = vmul.f32 %v4260, %v4260
        %v4519 = vmul.f32 %v4262, %v4262
        %v4520 = vmul.f32 %v4264, %v4264
        %v4521 = vmul.f32 %v4266, %v4266
        %v4522 = vmul.f32 %v4270, %v4270
        %v4523 = vmul.f32 %v4272, %v4272
        %v4524 = vmul.f32 %v4274, %v4274
        %v4525 = vmul.f32 %v4276, %v4276
        %v4526 = vmul.f32 %v4280, %v4280
        %v4527 = vmul.f32 %v4282, %v4282
        %v4528 = vmul.f32 %v4284, %v4284
        %v4529 = vmul.f32 %v4286, %v4286
        %v4530 = vmul.f32 %v4290, %v4290
        %v4531 = vmul.f32 %v4292, %v4292
        %v4532 = vmul.f32 %v4294, %v4294
        %v4533 = vmul.f32 %v4296, %v4296
        %v4534 = vmul.f32 %v4300, %v4300
        %v4535 = vmul.f32 %v4302, %v4302
        %v4536 = vmul.f32 %v4304, %v4304
        %v4537 = vmul.f32 %v4306, %v4306
        %v4538 = vmul.f32 %v4310, %v4310
        %v4539 = vmul.f32 %v4312, %v4312
        %v4540 = vmul.f32 %v4314, %v4314
        %v4541 = vmul.f32 %v4316, %v4316
        %v4542 = vmul.f32 %v4320, %v4320
        %v4543 = vmul.f32 %v4322, %v4322
        %v4544 = vmul.f32 %v4324, %v4324
        %v4545 = vmul.f32 %v4326, %v4326
        %v4546 = vmul.f32 %v4330, %v4330
        %v4547 = vmul.f32 %v4332, %v4332
        %v4548 = vmul.f32 %v4334, %v4334
        %v4549 = vmul.f32 %v4336, %v4336
        %v4550 = vmul.f32 %v4340, %v4340
        %v4551 = vmul.f32 %v4342, %v4342
        %v4552 = vmul.f32 %v4344, %v4344
        %v4553 = vmul.f32 %v4346, %v4346
        %v4554 = vmul.f32 %v4350, %v4350
        %v4555 = vmul.f32 %v4352, %v4352
        %v4556 = vmul.f32 %v4354, %v4354
        %v4557 = vmul.f32 %v4356, %v4356
        %v4558 = vmul.f32 %v4360, %v4360
        %v4559 = vmul.f32 %v4362, %v4362
        %v4560 = vmul.f32 %v4364, %v4364
        %v4561 = vmul.f32 %v4366, %v4366
        %v4562 = vmul.f32 %v4370, %v4370
        %v4563 = vmul.f32 %v4372, %v4372
        %v4564 = vmul.f32 %v4374, %v4374
        %v4565 = vmul.f32 %v4376, %v4376
        %v4566 = vmul.f32 %v4380, %v4380
        %v4567 = vmul.f32 %v4382, %v4382
        %v4568 = vmul.f32 %v4384, %v4384
        %v4569 = vmul.f32 %v4386, %v4386
        %v4570 = vmul.f32 %v4390, %v4390
        %v4571 = vmul.f32 %v4392, %v4392
        %v4572 = vmul.f32 %v4394, %v4394
        %v4573 = vmul.f32 %v4396, %v4396
        %v4574 = vmul.f32 %v4400, %v4400
        %v4575 = vmul.f32 %v4402, %v4402
        %v4576 = vmul.f32 %v4404, %v4404
        %v4577 = vmul.f32 %v4406, %v4406
        %v4578 = vmul.f32 %v4410, %v4410
        %v4579 = vmul.f32 %v4412, %v4412
        %v4580 = vmul.f32 %v4414, %v4414
        %v4581 = vmul.f32 %v4416, %v4416
        %v4582 = vmul.f32 %v4420, %v4420
        %v4583 = vmul.f32 %v4422, %v4422
        %v4584 = vmul.f32 %v4424, %v4424
        %v4585 = vmul.f32 %v4426, %v4426
        %v4586 = vmul.f32 %v4430, %v4430
        %v4587 = vmul.f32 %v4432, %v4432
        %v4588 = vmul.f32 %v4434, %v4434
        %v4589 = vmul.f32 %v4436, %v4436
        %v4590 = vmul.f32 %v4440, %v4440
        %v4591 = vmul.f32 %v4442, %v4442
        %v4592 = vmul.f32 %v4444, %v4444
        %v4593 = vmul.f32 %v4446, %v4446
        %v4594 = vmul.f32 %v4450, %v4450
        %v4595 = vmul.f32 %v4452, %v4452
        %v4596 = vmul.f32 %v4454, %v4454
        %v4597 = vmul.f32 %v4456, %v4456
        %v4598 = vmul.f32 %v4460, %v4460
        %v4599 = vmul.f32 %v4462, %v4462
        %v4600 = vmul.f32 %v4464, %v4464
        %v4601 = vmul.f32 %v4466, %v4466
        %v4602 = vmul.f32 %v4470, %v4470
        %v4603 = vmul.f32 %v4472, %v4472
        %v4604 = vmul.f32 %v4474, %v4474
        %v4605 = vmul.f32 %v4476, %v4476
        %v4606 = vmul.f32 %v4160, %v4478
        %v4607 = vmul.f32 %v4162, %v4479
        %v4608 = vmul.f32 %v4164, %v4480
        %v4609 = vmul.f32 %v4166, %v4481
        %v4610 = vmul.f32 %v4170, %v4482
        %v4611 = vmul.f32 %v4172, %v4483
        %v4612 = vmul.f32 %v4174, %v4484
        %v4613 = vmul.f32 %v4176, %v4485
        %v4614 = vmul.f32 %v4180, %v4486
        %v4615 = vmul.f32 %v4182, %v4487
        %v4616 = vmul.f32 %v4184, %v4488
        %v4617 = vmul.f32 %v4186, %v4489
        %v4618 = vmul.f32 %v4190, %v4490
        %v4619 = vmul.f32 %v4192, %v4491
        %v4620 = vmul.f32 %v4194, %v4492
        %v4621 = vmul.f32 %v4196, %v4493
        %v4622 = vmul.f32 %v4200, %v4494
        %v4623 = vmul.f32 %v4202, %v4495
        %v4624 = vmul.f32 %v4204, %v4496
        %v4625 = vmul.f32 %v4206, %v4497
        %v4626 = vmul.f32 %v4210, %v4498
        %v4627 = vmul.f32 %v4212, %v4499
        %v4628 = vmul.f32 %v4214, %v4500
        %v4629 = vmul.f32 %v4216, %v4501
        %v4630 = vmul.f32 %v4220, %v4502
        %v4631 = vmul.f32 %v4222, %v4503
        %v4632 = vmul.f32 %v4224, %v4504
        %v4633 = vmul.f32 %v4226, %v4505
        %v4634 = vmul.f32 %v4230, %v4506
        %v4635 = vmul.f32 %v4232, %v4507
        %v4636 = vmul.f32 %v4234, %v4508
        %v4637 = vmul.f32 %v4236, %v4509
        %v4638 = vmul.f32 %v4240, %v4510
        %v4639 = vmul.f32 %v4242, %v4511
        %v4640 = vmul.f32 %v4244, %v4512
        %v4641 = vmul.f32 %v4246, %v4513
        %v4642 = vmul.f32 %v4250, %v4514
        %v4643 = vmul.f32 %v4252, %v4515
        %v4644 = vmul.f32 %v4254, %v4516
        %v4645 = vmul.f32 %v4256, %v4517
        %v4646 = vmul.f32 %v4260, %v4518
        %v4647 = vmul.f32 %v4262, %v4519
        %v4648 = vmul.f32 %v4264, %v4520
        %v4649 = vmul.f32 %v4266, %v4521
        %v4650 = vmul.f32 %v4270, %v4522
        %v4651 = vmul.f32 %v4272, %v4523
        %v4652 = vmul.f32 %v4274, %v4524
        %v4653 = vmul.f32 %v4276, %v4525
        %v4654 = vmul.f32 %v4280, %v4526
        %v4655 = vmul.f32 %v4282, %v4527
        %v4656 = vmul.f32 %v4284, %v4528
        %v4657 = vmul.f32 %v4286, %v4529
        %v4658 = vmul.f32 %v4290, %v4530
        %v4659 = vmul.f32 %v4292, %v4531
        %v4660 = vmul.f32 %v4294, %v4532
        %v4661 = vmul.f32 %v4296, %v4533
        %v4662 = vmul.f32 %v4300, %v4534
        %v4663 = vmul.f32 %v4302, %v4535
        %v4664 = vmul.f32 %v4304, %v4536
        %v4665 = vmul.f32 %v4306, %v4537
        %v4666 = vmul.f32 %v4310, %v4538
        %v4667 = vmul.f32 %v4312, %v4539
        %v4668 = vmul.f32 %v4314, %v4540
        %v4669 = vmul.f32 %v4316, %v4541
        %v4670 = vmul.f32 %v4320, %v4542
        %v4671 = vmul.f32 %v4322, %v4543
        %v4672 = vmul.f32 %v4324, %v4544
        %v4673 = vmul.f32 %v4326, %v4545
        %v4674 = vmul.f32 %v4330, %v4546
        %v4675 = vmul.f32 %v4332, %v4547
        %v4676 = vmul.f32 %v4334, %v4548
        %v4677 = vmul.f32 %v4336, %v4549
        %v4678 = vmul.f32 %v4340, %v4550
        %v4679 = vmul.f32 %v4342, %v4551
        %v4680 = vmul.f32 %v4344, %v4552
        %v4681 = vmul.f32 %v4346, %v4553
        %v4682 = vmul.f32 %v4350, %v4554
        %v4683 = vmul.f32 %v4352, %v4555
        %v4684 = vmul.f32 %v4354, %v4556
        %v4685 = vmul.f32 %v4356, %v4557
        %v4686 = vmul.f32 %v4360, %v4558
        %v4687 = vmul.f32 %v4362, %v4559
        %v4688 = vmul.f32 %v4364, %v4560
        %v4689 = vmul.f32 %v4366, %v4561
        %v4690 = vmul.f32 %v4370, %v4562
        %v4691 = vmul.f32 %v4372, %v4563
        %v4692 = vmul.f32 %v4374, %v4564
        %v4693 = vmul.f32 %v4376, %v4565
        %v4694 = vmul.f32 %v4380, %v4566
        %v4695 = vmul.f32 %v4382, %v4567
        %v4696 = vmul.f32 %v4384, %v4568
        %v4697 = vmul.f32 %v4386, %v4569
        %v4698 = vmul.f32 %v4390, %v4570
        %v4699 = vmul.f32 %v4392, %v4571
        %v4700 = vmul.f32 %v4394, %v4572
        %v4701 = vmul.f32 %v4396, %v4573
        %v4702 = vmul.f32 %v4400, %v4574
        %v4703 = vmul.f32 %v4402, %v4575
        %v4704 = vmul.f32 %v4404, %v4576
        %v4705 = vmul.f32 %v4406, %v4577
        %v4706 = vmul.f32 %v4410, %v4578
        %v4707 = vmul.f32 %v4412, %v4579
        %v4708 = vmul.f32 %v4414, %v4580
        %v4709 = vmul.f32 %v4416, %v4581
        %v4710 = vmul.f32 %v4420, %v4582
        %v4711 = vmul.f32 %v4422, %v4583
        %v4712 = vmul.f32 %v4424, %v4584
        %v4713 = vmul.f32 %v4426, %v4585
        %v4714 = vmul.f32 %v4430, %v4586
        %v4715 = vmul.f32 %v4432, %v4587
        %v4716 = vmul.f32 %v4434, %v4588
        %v4717 = vmul.f32 %v4436, %v4589
        %v4718 = vmul.f32 %v4440, %v4590
        %v4719 = vmul.f32 %v4442, %v4591
        %v4720 = vmul.f32 %v4444, %v4592
        %v4721 = vmul.f32 %v4446, %v4593
        %v4722 = vmul.f32 %v4450, %v4594
        %v4723 = vmul.f32 %v4452, %v4595
        %v4724 = vmul.f32 %v4454, %v4596
        %v4725 = vmul.f32 %v4456, %v4597
        %v4726 = vmul.f32 %v4460, %v4598
        %v4727 = vmul.f32 %v4462, %v4599
        %v4728 = vmul.f32 %v4464, %v4600
        %v4729 = vmul.f32 %v4466, %v4601
        %v4730 = vmul.f32 %v4470, %v4602
        %v4731 = vmul.f32 %v4472, %v4603
        %v4732 = vmul.f32 %v4474, %v4604
        %v4733 = vmul.f32 %v4476, %v4605
        %v4734 = vmul.f32 %v4606, 0.044715
        %v4735 = vmul.f32 %v4607, 0.044715
        %v4736 = vmul.f32 %v4608, 0.044715
        %v4737 = vmul.f32 %v4609, 0.044715
        %v4738 = vmul.f32 %v4610, 0.044715
        %v4739 = vmul.f32 %v4611, 0.044715
        %v4740 = vmul.f32 %v4612, 0.044715
        %v4741 = vmul.f32 %v4613, 0.044715
        %v4742 = vmul.f32 %v4614, 0.044715
        %v4743 = vmul.f32 %v4615, 0.044715
        %v4744 = vmul.f32 %v4616, 0.044715
        %v4745 = vmul.f32 %v4617, 0.044715
        %v4746 = vmul.f32 %v4618, 0.044715
        %v4747 = vmul.f32 %v4619, 0.044715
        %v4748 = vmul.f32 %v4620, 0.044715
        %v4749 = vmul.f32 %v4621, 0.044715
        %v4750 = vmul.f32 %v4622, 0.044715
        %v4751 = vmul.f32 %v4623, 0.044715
        %v4752 = vmul.f32 %v4624, 0.044715
        %v4753 = vmul.f32 %v4625, 0.044715
        %v4754 = vmul.f32 %v4626, 0.044715
        %v4755 = vmul.f32 %v4627, 0.044715
        %v4756 = vmul.f32 %v4628, 0.044715
        %v4757 = vmul.f32 %v4629, 0.044715
        %v4758 = vmul.f32 %v4630, 0.044715
        %v4759 = vmul.f32 %v4631, 0.044715
        %v4760 = vmul.f32 %v4632, 0.044715
        %v4761 = vmul.f32 %v4633, 0.044715
        %v4762 = vmul.f32 %v4634, 0.044715
        %v4763 = vmul.f32 %v4635, 0.044715
        %v4764 = vmul.f32 %v4636, 0.044715
        %v4765 = vmul.f32 %v4637, 0.044715
        %v4766 = vmul.f32 %v4638, 0.044715
        %v4767 = vmul.f32 %v4639, 0.044715
        %v4768 = vmul.f32 %v4640, 0.044715
        %v4769 = vmul.f32 %v4641, 0.044715
        %v4770 = vmul.f32 %v4642, 0.044715
        %v4771 = vmul.f32 %v4643, 0.044715
        %v4772 = vmul.f32 %v4644, 0.044715
        %v4773 = vmul.f32 %v4645, 0.044715
        %v4774 = vmul.f32 %v4646, 0.044715
        %v4775 = vmul.f32 %v4647, 0.044715
        %v4776 = vmul.f32 %v4648, 0.044715
        %v4777 = vmul.f32 %v4649, 0.044715
        %v4778 = vmul.f32 %v4650, 0.044715
        %v4779 = vmul.f32 %v4651, 0.044715
        %v4780 = vmul.f32 %v4652, 0.044715
        %v4781 = vmul.f32 %v4653, 0.044715
        %v4782 = vmul.f32 %v4654, 0.044715
        %v4783 = vmul.f32 %v4655, 0.044715
        %v4784 = vmul.f32 %v4656, 0.044715
        %v4785 = vmul.f32 %v4657, 0.044715
        %v4786 = vmul.f32 %v4658, 0.044715
        %v4787 = vmul.f32 %v4659, 0.044715
        %v4788 = vmul.f32 %v4660, 0.044715
        %v4789 = vmul.f32 %v4661, 0.044715
        %v4790 = vmul.f32 %v4662, 0.044715
        %v4791 = vmul.f32 %v4663, 0.044715
        %v4792 = vmul.f32 %v4664, 0.044715
        %v4793 = vmul.f32 %v4665, 0.044715
        %v4794 = vmul.f32 %v4666, 0.044715
        %v4795 = vmul.f32 %v4667, 0.044715
        %v4796 = vmul.f32 %v4668, 0.044715
        %v4797 = vmul.f32 %v4669, 0.044715
        %v4798 = vmul.f32 %v4670, 0.044715
        %v4799 = vmul.f32 %v4671, 0.044715
        %v4800 = vmul.f32 %v4672, 0.044715
        %v4801 = vmul.f32 %v4673, 0.044715
        %v4802 = vmul.f32 %v4674, 0.044715
        %v4803 = vmul.f32 %v4675, 0.044715
        %v4804 = vmul.f32 %v4676, 0.044715
        %v4805 = vmul.f32 %v4677, 0.044715
        %v4806 = vmul.f32 %v4678, 0.044715
        %v4807 = vmul.f32 %v4679, 0.044715
        %v4808 = vmul.f32 %v4680, 0.044715
        %v4809 = vmul.f32 %v4681, 0.044715
        %v4810 = vmul.f32 %v4682, 0.044715
        %v4811 = vmul.f32 %v4683, 0.044715
        %v4812 = vmul.f32 %v4684, 0.044715
        %v4813 = vmul.f32 %v4685, 0.044715
        %v4814 = vmul.f32 %v4686, 0.044715
        %v4815 = vmul.f32 %v4687, 0.044715
        %v4816 = vmul.f32 %v4688, 0.044715
        %v4817 = vmul.f32 %v4689, 0.044715
        %v4818 = vmul.f32 %v4690, 0.044715
        %v4819 = vmul.f32 %v4691, 0.044715
        %v4820 = vmul.f32 %v4692, 0.044715
        %v4821 = vmul.f32 %v4693, 0.044715
        %v4822 = vmul.f32 %v4694, 0.044715
        %v4823 = vmul.f32 %v4695, 0.044715
        %v4824 = vmul.f32 %v4696, 0.044715
        %v4825 = vmul.f32 %v4697, 0.044715
        %v4826 = vmul.f32 %v4698, 0.044715
        %v4827 = vmul.f32 %v4699, 0.044715
        %v4828 = vmul.f32 %v4700, 0.044715
        %v4829 = vmul.f32 %v4701, 0.044715
        %v4830 = vmul.f32 %v4702, 0.044715
        %v4831 = vmul.f32 %v4703, 0.044715
        %v4832 = vmul.f32 %v4704, 0.044715
        %v4833 = vmul.f32 %v4705, 0.044715
        %v4834 = vmul.f32 %v4706, 0.044715
        %v4835 = vmul.f32 %v4707, 0.044715
        %v4836 = vmul.f32 %v4708, 0.044715
        %v4837 = vmul.f32 %v4709, 0.044715
        %v4838 = vmul.f32 %v4710, 0.044715
        %v4839 = vmul.f32 %v4711, 0.044715
        %v4840 = vmul.f32 %v4712, 0.044715
        %v4841 = vmul.f32 %v4713, 0.044715
        %v4842 = vmul.f32 %v4714, 0.044715
        %v4843 = vmul.f32 %v4715, 0.044715
        %v4844 = vmul.f32 %v4716, 0.044715
        %v4845 = vmul.f32 %v4717, 0.044715
        %v4846 = vmul.f32 %v4718, 0.044715
        %v4847 = vmul.f32 %v4719, 0.044715
        %v4848 = vmul.f32 %v4720, 0.044715
        %v4849 = vmul.f32 %v4721, 0.044715
        %v4850 = vmul.f32 %v4722, 0.044715
        %v4851 = vmul.f32 %v4723, 0.044715
        %v4852 = vmul.f32 %v4724, 0.044715
        %v4853 = vmul.f32 %v4725, 0.044715
        %v4854 = vmul.f32 %v4726, 0.044715
        %v4855 = vmul.f32 %v4727, 0.044715
        %v4856 = vmul.f32 %v4728, 0.044715
        %v4857 = vmul.f32 %v4729, 0.044715
        %v4858 = vmul.f32 %v4730, 0.044715
        %v4859 = vmul.f32 %v4731, 0.044715
        %v4860 = vmul.f32 %v4732, 0.044715
        %v4861 = vmul.f32 %v4733, 0.044715
        %v4862 = vadd.f32 %v4160, %v4734
        %v4863 = vadd.f32 %v4162, %v4735
        %v4864 = vadd.f32 %v4164, %v4736
        %v4865 = vadd.f32 %v4166, %v4737
        %v4866 = vadd.f32 %v4170, %v4738
        %v4867 = vadd.f32 %v4172, %v4739
        %v4868 = vadd.f32 %v4174, %v4740
        %v4869 = vadd.f32 %v4176, %v4741
        %v4870 = vadd.f32 %v4180, %v4742
        %v4871 = vadd.f32 %v4182, %v4743
        %v4872 = vadd.f32 %v4184, %v4744
        %v4873 = vadd.f32 %v4186, %v4745
        %v4874 = vadd.f32 %v4190, %v4746
        %v4875 = vadd.f32 %v4192, %v4747
        %v4876 = vadd.f32 %v4194, %v4748
        %v4877 = vadd.f32 %v4196, %v4749
        %v4878 = vadd.f32 %v4200, %v4750
        %v4879 = vadd.f32 %v4202, %v4751
        %v4880 = vadd.f32 %v4204, %v4752
        %v4881 = vadd.f32 %v4206, %v4753
        %v4882 = vadd.f32 %v4210, %v4754
        %v4883 = vadd.f32 %v4212, %v4755
        %v4884 = vadd.f32 %v4214, %v4756
        %v4885 = vadd.f32 %v4216, %v4757
        %v4886 = vadd.f32 %v4220, %v4758
        %v4887 = vadd.f32 %v4222, %v4759
        %v4888 = vadd.f32 %v4224, %v4760
        %v4889 = vadd.f32 %v4226, %v4761
        %v4890 = vadd.f32 %v4230, %v4762
        %v4891 = vadd.f32 %v4232, %v4763
        %v4892 = vadd.f32 %v4234, %v4764
        %v4893 = vadd.f32 %v4236, %v4765
        %v4894 = vadd.f32 %v4240, %v4766
        %v4895 = vadd.f32 %v4242, %v4767
        %v4896 = vadd.f32 %v4244, %v4768
        %v4897 = vadd.f32 %v4246, %v4769
        %v4898 = vadd.f32 %v4250, %v4770
        %v4899 = vadd.f32 %v4252, %v4771
        %v4900 = vadd.f32 %v4254, %v4772
        %v4901 = vadd.f32 %v4256, %v4773
        %v4902 = vadd.f32 %v4260, %v4774
        %v4903 = vadd.f32 %v4262, %v4775
        %v4904 = vadd.f32 %v4264, %v4776
        %v4905 = vadd.f32 %v4266, %v4777
        %v4906 = vadd.f32 %v4270, %v4778
        %v4907 = vadd.f32 %v4272, %v4779
        %v4908 = vadd.f32 %v4274, %v4780
        %v4909 = vadd.f32 %v4276, %v4781
        %v4910 = vadd.f32 %v4280, %v4782
        %v4911 = vadd.f32 %v4282, %v4783
        %v4912 = vadd.f32 %v4284, %v4784
        %v4913 = vadd.f32 %v4286, %v4785
        %v4914 = vadd.f32 %v4290, %v4786
        %v4915 = vadd.f32 %v4292, %v4787
        %v4916 = vadd.f32 %v4294, %v4788
        %v4917 = vadd.f32 %v4296, %v4789
        %v4918 = vadd.f32 %v4300, %v4790
        %v4919 = vadd.f32 %v4302, %v4791
        %v4920 = vadd.f32 %v4304, %v4792
        %v4921 = vadd.f32 %v4306, %v4793
        %v4922 = vadd.f32 %v4310, %v4794
        %v4923 = vadd.f32 %v4312, %v4795
        %v4924 = vadd.f32 %v4314, %v4796
        %v4925 = vadd.f32 %v4316, %v4797
        %v4926 = vadd.f32 %v4320, %v4798
        %v4927 = vadd.f32 %v4322, %v4799
        %v4928 = vadd.f32 %v4324, %v4800
        %v4929 = vadd.f32 %v4326, %v4801
        %v4930 = vadd.f32 %v4330, %v4802
        %v4931 = vadd.f32 %v4332, %v4803
        %v4932 = vadd.f32 %v4334, %v4804
        %v4933 = vadd.f32 %v4336, %v4805
        %v4934 = vadd.f32 %v4340, %v4806
        %v4935 = vadd.f32 %v4342, %v4807
        %v4936 = vadd.f32 %v4344, %v4808
        %v4937 = vadd.f32 %v4346, %v4809
        %v4938 = vadd.f32 %v4350, %v4810
        %v4939 = vadd.f32 %v4352, %v4811
        %v4940 = vadd.f32 %v4354, %v4812
        %v4941 = vadd.f32 %v4356, %v4813
        %v4942 = vadd.f32 %v4360, %v4814
        %v4943 = vadd.f32 %v4362, %v4815
        %v4944 = vadd.f32 %v4364, %v4816
        %v4945 = vadd.f32 %v4366, %v4817
        %v4946 = vadd.f32 %v4370, %v4818
        %v4947 = vadd.f32 %v4372, %v4819
        %v4948 = vadd.f32 %v4374, %v4820
        %v4949 = vadd.f32 %v4376, %v4821
        %v4950 = vadd.f32 %v4380, %v4822
        %v4951 = vadd.f32 %v4382, %v4823
        %v4952 = vadd.f32 %v4384, %v4824
        %v4953 = vadd.f32 %v4386, %v4825
        %v4954 = vadd.f32 %v4390, %v4826
        %v4955 = vadd.f32 %v4392, %v4827
        %v4956 = vadd.f32 %v4394, %v4828
        %v4957 = vadd.f32 %v4396, %v4829
        %v4958 = vadd.f32 %v4400, %v4830
        %v4959 = vadd.f32 %v4402, %v4831
        %v4960 = vadd.f32 %v4404, %v4832
        %v4961 = vadd.f32 %v4406, %v4833
        %v4962 = vadd.f32 %v4410, %v4834
        %v4963 = vadd.f32 %v4412, %v4835
        %v4964 = vadd.f32 %v4414, %v4836
        %v4965 = vadd.f32 %v4416, %v4837
        %v4966 = vadd.f32 %v4420, %v4838
        %v4967 = vadd.f32 %v4422, %v4839
        %v4968 = vadd.f32 %v4424, %v4840
        %v4969 = vadd.f32 %v4426, %v4841
        %v4970 = vadd.f32 %v4430, %v4842
        %v4971 = vadd.f32 %v4432, %v4843
        %v4972 = vadd.f32 %v4434, %v4844
        %v4973 = vadd.f32 %v4436, %v4845
        %v4974 = vadd.f32 %v4440, %v4846
        %v4975 = vadd.f32 %v4442, %v4847
        %v4976 = vadd.f32 %v4444, %v4848
        %v4977 = vadd.f32 %v4446, %v4849
        %v4978 = vadd.f32 %v4450, %v4850
        %v4979 = vadd.f32 %v4452, %v4851
        %v4980 = vadd.f32 %v4454, %v4852
        %v4981 = vadd.f32 %v4456, %v4853
        %v4982 = vadd.f32 %v4460, %v4854
        %v4983 = vadd.f32 %v4462, %v4855
        %v4984 = vadd.f32 %v4464, %v4856
        %v4985 = vadd.f32 %v4466, %v4857
        %v4986 = vadd.f32 %v4470, %v4858
        %v4987 = vadd.f32 %v4472, %v4859
        %v4988 = vadd.f32 %v4474, %v4860
        %v4989 = vadd.f32 %v4476, %v4861
        %v4990 = vmul.f32 %v4862, 0.7978846
        %v4991 = vmul.f32 %v4863, 0.7978846
        %v4992 = vmul.f32 %v4864, 0.7978846
        %v4993 = vmul.f32 %v4865, 0.7978846
        %v4994 = vmul.f32 %v4866, 0.7978846
        %v4995 = vmul.f32 %v4867, 0.7978846
        %v4996 = vmul.f32 %v4868, 0.7978846
        %v4997 = vmul.f32 %v4869, 0.7978846
        %v4998 = vmul.f32 %v4870, 0.7978846
        %v4999 = vmul.f32 %v4871, 0.7978846
        %v5000 = vmul.f32 %v4872, 0.7978846
        %v5001 = vmul.f32 %v4873, 0.7978846
        %v5002 = vmul.f32 %v4874, 0.7978846
        %v5003 = vmul.f32 %v4875, 0.7978846
        %v5004 = vmul.f32 %v4876, 0.7978846
        %v5005 = vmul.f32 %v4877, 0.7978846
        %v5006 = vmul.f32 %v4878, 0.7978846
        %v5007 = vmul.f32 %v4879, 0.7978846
        %v5008 = vmul.f32 %v4880, 0.7978846
        %v5009 = vmul.f32 %v4881, 0.7978846
        %v5010 = vmul.f32 %v4882, 0.7978846
        %v5011 = vmul.f32 %v4883, 0.7978846
        %v5012 = vmul.f32 %v4884, 0.7978846
        %v5013 = vmul.f32 %v4885, 0.7978846
        %v5014 = vmul.f32 %v4886, 0.7978846
        %v5015 = vmul.f32 %v4887, 0.7978846
        %v5016 = vmul.f32 %v4888, 0.7978846
        %v5017 = vmul.f32 %v4889, 0.7978846
        %v5018 = vmul.f32 %v4890, 0.7978846
        %v5019 = vmul.f32 %v4891, 0.7978846
        %v5020 = vmul.f32 %v4892, 0.7978846
        %v5021 = vmul.f32 %v4893, 0.7978846
        %v5022 = vmul.f32 %v4894, 0.7978846
        %v5023 = vmul.f32 %v4895, 0.7978846
        %v5024 = vmul.f32 %v4896, 0.7978846
        %v5025 = vmul.f32 %v4897, 0.7978846
        %v5026 = vmul.f32 %v4898, 0.7978846
        %v5027 = vmul.f32 %v4899, 0.7978846
        %v5028 = vmul.f32 %v4900, 0.7978846
        %v5029 = vmul.f32 %v4901, 0.7978846
        %v5030 = vmul.f32 %v4902, 0.7978846
        %v5031 = vmul.f32 %v4903, 0.7978846
        %v5032 = vmul.f32 %v4904, 0.7978846
        %v5033 = vmul.f32 %v4905, 0.7978846
        %v5034 = vmul.f32 %v4906, 0.7978846
        %v5035 = vmul.f32 %v4907, 0.7978846
        %v5036 = vmul.f32 %v4908, 0.7978846
        %v5037 = vmul.f32 %v4909, 0.7978846
        %v5038 = vmul.f32 %v4910, 0.7978846
        %v5039 = vmul.f32 %v4911, 0.7978846
        %v5040 = vmul.f32 %v4912, 0.7978846
        %v5041 = vmul.f32 %v4913, 0.7978846
        %v5042 = vmul.f32 %v4914, 0.7978846
        %v5043 = vmul.f32 %v4915, 0.7978846
        %v5044 = vmul.f32 %v4916, 0.7978846
        %v5045 = vmul.f32 %v4917, 0.7978846
        %v5046 = vmul.f32 %v4918, 0.7978846
        %v5047 = vmul.f32 %v4919, 0.7978846
        %v5048 = vmul.f32 %v4920, 0.7978846
        %v5049 = vmul.f32 %v4921, 0.7978846
        %v5050 = vmul.f32 %v4922, 0.7978846
        %v5051 = vmul.f32 %v4923, 0.7978846
        %v5052 = vmul.f32 %v4924, 0.7978846
        %v5053 = vmul.f32 %v4925, 0.7978846
        %v5054 = vmul.f32 %v4926, 0.7978846
        %v5055 = vmul.f32 %v4927, 0.7978846
        %v5056 = vmul.f32 %v4928, 0.7978846
        %v5057 = vmul.f32 %v4929, 0.7978846
        %v5058 = vmul.f32 %v4930, 0.7978846
        %v5059 = vmul.f32 %v4931, 0.7978846
        %v5060 = vmul.f32 %v4932, 0.7978846
        %v5061 = vmul.f32 %v4933, 0.7978846
        %v5062 = vmul.f32 %v4934, 0.7978846
        %v5063 = vmul.f32 %v4935, 0.7978846
        %v5064 = vmul.f32 %v4936, 0.7978846
        %v5065 = vmul.f32 %v4937, 0.7978846
        %v5066 = vmul.f32 %v4938, 0.7978846
        %v5067 = vmul.f32 %v4939, 0.7978846
        %v5068 = vmul.f32 %v4940, 0.7978846
        %v5069 = vmul.f32 %v4941, 0.7978846
        %v5070 = vmul.f32 %v4942, 0.7978846
        %v5071 = vmul.f32 %v4943, 0.7978846
        %v5072 = vmul.f32 %v4944, 0.7978846
        %v5073 = vmul.f32 %v4945, 0.7978846
        %v5074 = vmul.f32 %v4946, 0.7978846
        %v5075 = vmul.f32 %v4947, 0.7978846
        %v5076 = vmul.f32 %v4948, 0.7978846
        %v5077 = vmul.f32 %v4949, 0.7978846
        %v5078 = vmul.f32 %v4950, 0.7978846
        %v5079 = vmul.f32 %v4951, 0.7978846
        %v5080 = vmul.f32 %v4952, 0.7978846
        %v5081 = vmul.f32 %v4953, 0.7978846
        %v5082 = vmul.f32 %v4954, 0.7978846
        %v5083 = vmul.f32 %v4955, 0.7978846
        %v5084 = vmul.f32 %v4956, 0.7978846
        %v5085 = vmul.f32 %v4957, 0.7978846
        %v5086 = vmul.f32 %v4958, 0.7978846
        %v5087 = vmul.f32 %v4959, 0.7978846
        %v5088 = vmul.f32 %v4960, 0.7978846
        %v5089 = vmul.f32 %v4961, 0.7978846
        %v5090 = vmul.f32 %v4962, 0.7978846
        %v5091 = vmul.f32 %v4963, 0.7978846
        %v5092 = vmul.f32 %v4964, 0.7978846
        %v5093 = vmul.f32 %v4965, 0.7978846
        %v5094 = vmul.f32 %v4966, 0.7978846
        %v5095 = vmul.f32 %v4967, 0.7978846
        %v5096 = vmul.f32 %v4968, 0.7978846
        %v5097 = vmul.f32 %v4969, 0.7978846
        %v5098 = vmul.f32 %v4970, 0.7978846
        %v5099 = vmul.f32 %v4971, 0.7978846
        %v5100 = vmul.f32 %v4972, 0.7978846
        %v5101 = vmul.f32 %v4973, 0.7978846
        %v5102 = vmul.f32 %v4974, 0.7978846
        %v5103 = vmul.f32 %v4975, 0.7978846
        %v5104 = vmul.f32 %v4976, 0.7978846
        %v5105 = vmul.f32 %v4977, 0.7978846
        %v5106 = vmul.f32 %v4978, 0.7978846
        %v5107 = vmul.f32 %v4979, 0.7978846
        %v5108 = vmul.f32 %v4980, 0.7978846
        %v5109 = vmul.f32 %v4981, 0.7978846
        %v5110 = vmul.f32 %v4982, 0.7978846
        %v5111 = vmul.f32 %v4983, 0.7978846
        %v5112 = vmul.f32 %v4984, 0.7978846
        %v5113 = vmul.f32 %v4985, 0.7978846
        %v5114 = vmul.f32 %v4986, 0.7978846
        %v5115 = vmul.f32 %v4987, 0.7978846
        %v5116 = vmul.f32 %v4988, 0.7978846
        %v5117 = vmul.f32 %v4989, 0.7978846
        %v5118 = vtanh.pop %v4990
        %v5119 = vtanh.pop %v4991
        %v5120 = vtanh.pop %v4992
        %v5121 = vtanh.pop %v4993
        %v5122 = vtanh.pop %v4994
        %v5123 = vtanh.pop %v4995
        %v5124 = vtanh.pop %v4996
        %v5125 = vtanh.pop %v4997
        %v5126 = vtanh.pop %v4998
        %v5127 = vtanh.pop %v4999
        %v5128 = vtanh.pop %v5000
        %v5129 = vtanh.pop %v5001
        %v5130 = vtanh.pop %v5002
        %v5131 = vtanh.pop %v5003
        %v5132 = vtanh.pop %v5004
        %v5133 = vtanh.pop %v5005
        %v5134 = vtanh.pop %v5006
        %v5135 = vtanh.pop %v5007
        %v5136 = vtanh.pop %v5008
        %v5137 = vtanh.pop %v5009
        %v5138 = vtanh.pop %v5010
        %v5139 = vtanh.pop %v5011
        %v5140 = vtanh.pop %v5012
        %v5141 = vtanh.pop %v5013
        %v5142 = vtanh.pop %v5014
        %v5143 = vtanh.pop %v5015
        %v5144 = vtanh.pop %v5016
        %v5145 = vtanh.pop %v5017
        %v5146 = vtanh.pop %v5018
        %v5147 = vtanh.pop %v5019
        %v5148 = vtanh.pop %v5020
        %v5149 = vtanh.pop %v5021
        %v5150 = vtanh.pop %v5022
        %v5151 = vtanh.pop %v5023
        %v5152 = vtanh.pop %v5024
        %v5153 = vtanh.pop %v5025
        %v5154 = vtanh.pop %v5026
        %v5155 = vtanh.pop %v5027
        %v5156 = vtanh.pop %v5028
        %v5157 = vtanh.pop %v5029
        %v5158 = vtanh.pop %v5030
        %v5159 = vtanh.pop %v5031
        %v5160 = vtanh.pop %v5032
        %v5161 = vtanh.pop %v5033
        %v5162 = vtanh.pop %v5034
        %v5163 = vtanh.pop %v5035
        %v5164 = vtanh.pop %v5036
        %v5165 = vtanh.pop %v5037
        %v5166 = vtanh.pop %v5038
        %v5167 = vtanh.pop %v5039
        %v5168 = vtanh.pop %v5040
        %v5169 = vtanh.pop %v5041
        %v5170 = vtanh.pop %v5042
        %v5171 = vtanh.pop %v5043
        %v5172 = vtanh.pop %v5044
        %v5173 = vtanh.pop %v5045
        %v5174 = vtanh.pop %v5046
        %v5175 = vtanh.pop %v5047
        %v5176 = vtanh.pop %v5048
        %v5177 = vtanh.pop %v5049
        %v5178 = vtanh.pop %v5050
        %v5179 = vtanh.pop %v5051
        %v5180 = vtanh.pop %v5052
        %v5181 = vtanh.pop %v5053
        %v5182 = vtanh.pop %v5054
        %v5183 = vtanh.pop %v5055
        %v5184 = vtanh.pop %v5056
        %v5185 = vtanh.pop %v5057
        %v5186 = vtanh.pop %v5058
        %v5187 = vtanh.pop %v5059
        %v5188 = vtanh.pop %v5060
        %v5189 = vtanh.pop %v5061
        %v5190 = vtanh.pop %v5062
        %v5191 = vtanh.pop %v5063
        %v5192 = vtanh.pop %v5064
        %v5193 = vtanh.pop %v5065
        %v5194 = vtanh.pop %v5066
        %v5195 = vtanh.pop %v5067
        %v5196 = vtanh.pop %v5068
        %v5197 = vtanh.pop %v5069
        %v5198 = vtanh.pop %v5070
        %v5199 = vtanh.pop %v5071
        %v5200 = vtanh.pop %v5072
        %v5201 = vtanh.pop %v5073
        %v5202 = vtanh.pop %v5074
        %v5203 = vtanh.pop %v5075
        %v5204 = vtanh.pop %v5076
        %v5205 = vtanh.pop %v5077
        %v5206 = vtanh.pop %v5078
        %v5207 = vtanh.pop %v5079
        %v5208 = vtanh.pop %v5080
        %v5209 = vtanh.pop %v5081
        %v5210 = vtanh.pop %v5082
        %v5211 = vtanh.pop %v5083
        %v5212 = vtanh.pop %v5084
        %v5213 = vtanh.pop %v5085
        %v5214 = vtanh.pop %v5086
        %v5215 = vtanh.pop %v5087
        %v5216 = vtanh.pop %v5088
        %v5217 = vtanh.pop %v5089
        %v5218 = vtanh.pop %v5090
        %v5219 = vtanh.pop %v5091
        %v5220 = vtanh.pop %v5092
        %v5221 = vtanh.pop %v5093
        %v5222 = vtanh.pop %v5094
        %v5223 = vtanh.pop %v5095
        %v5224 = vtanh.pop %v5096
        %v5225 = vtanh.pop %v5097
        %v5226 = vtanh.pop %v5098
        %v5227 = vtanh.pop %v5099
        %v5228 = vtanh.pop %v5100
        %v5229 = vtanh.pop %v5101
        %v5230 = vtanh.pop %v5102
        %v5231 = vtanh.pop %v5103
        %v5232 = vtanh.pop %v5104
        %v5233 = vtanh.pop %v5105
        %v5234 = vtanh.pop %v5106
        %v5235 = vtanh.pop %v5107
        %v5236 = vtanh.pop %v5108
        %v5237 = vtanh.pop %v5109
        %v5238 = vtanh.pop %v5110
        %v5239 = vtanh.pop %v5111
        %v5240 = vtanh.pop %v5112
        %v5241 = vtanh.pop %v5113
        %v5242 = vtanh.pop %v5114
        %v5243 = vtanh.pop %v5115
        %v5244 = vtanh.pop %v5116
        %v5245 = vtanh.pop %v5117
        %v5246 = vadd.f32 %v5118, 1.0
        %v5247 = vadd.f32 %v5119, 1.0
        %v5248 = vadd.f32 %v5120, 1.0
        %v5249 = vadd.f32 %v5121, 1.0
        %v5250 = vadd.f32 %v5122, 1.0
        %v5251 = vadd.f32 %v5123, 1.0
        %v5252 = vadd.f32 %v5124, 1.0
        %v5253 = vadd.f32 %v5125, 1.0
        %v5254 = vadd.f32 %v5126, 1.0
        %v5255 = vadd.f32 %v5127, 1.0
        %v5256 = vadd.f32 %v5128, 1.0
        %v5257 = vadd.f32 %v5129, 1.0
        %v5258 = vadd.f32 %v5130, 1.0
        %v5259 = vadd.f32 %v5131, 1.0
        %v5260 = vadd.f32 %v5132, 1.0
        %v5261 = vadd.f32 %v5133, 1.0
        %v5262 = vadd.f32 %v5134, 1.0
        %v5263 = vadd.f32 %v5135, 1.0
        %v5264 = vadd.f32 %v5136, 1.0
        %v5265 = vadd.f32 %v5137, 1.0
        %v5266 = vadd.f32 %v5138, 1.0
        %v5267 = vadd.f32 %v5139, 1.0
        %v5268 = vadd.f32 %v5140, 1.0
        %v5269 = vadd.f32 %v5141, 1.0
        %v5270 = vadd.f32 %v5142, 1.0
        %v5271 = vadd.f32 %v5143, 1.0
        %v5272 = vadd.f32 %v5144, 1.0
        %v5273 = vadd.f32 %v5145, 1.0
        %v5274 = vadd.f32 %v5146, 1.0
        %v5275 = vadd.f32 %v5147, 1.0
        %v5276 = vadd.f32 %v5148, 1.0
        %v5277 = vadd.f32 %v5149, 1.0
        %v5278 = vadd.f32 %v5150, 1.0
        %v5279 = vadd.f32 %v5151, 1.0
        %v5280 = vadd.f32 %v5152, 1.0
        %v5281 = vadd.f32 %v5153, 1.0
        %v5282 = vadd.f32 %v5154, 1.0
        %v5283 = vadd.f32 %v5155, 1.0
        %v5284 = vadd.f32 %v5156, 1.0
        %v5285 = vadd.f32 %v5157, 1.0
        %v5286 = vadd.f32 %v5158, 1.0
        %v5287 = vadd.f32 %v5159, 1.0
        %v5288 = vadd.f32 %v5160, 1.0
        %v5289 = vadd.f32 %v5161, 1.0
        %v5290 = vadd.f32 %v5162, 1.0
        %v5291 = vadd.f32 %v5163, 1.0
        %v5292 = vadd.f32 %v5164, 1.0
        %v5293 = vadd.f32 %v5165, 1.0
        %v5294 = vadd.f32 %v5166, 1.0
        %v5295 = vadd.f32 %v5167, 1.0
        %v5296 = vadd.f32 %v5168, 1.0
        %v5297 = vadd.f32 %v5169, 1.0
        %v5298 = vadd.f32 %v5170, 1.0
        %v5299 = vadd.f32 %v5171, 1.0
        %v5300 = vadd.f32 %v5172, 1.0
        %v5301 = vadd.f32 %v5173, 1.0
        %v5302 = vadd.f32 %v5174, 1.0
        %v5303 = vadd.f32 %v5175, 1.0
        %v5304 = vadd.f32 %v5176, 1.0
        %v5305 = vadd.f32 %v5177, 1.0
        %v5306 = vadd.f32 %v5178, 1.0
        %v5307 = vadd.f32 %v5179, 1.0
        %v5308 = vadd.f32 %v5180, 1.0
        %v5309 = vadd.f32 %v5181, 1.0
        %v5310 = vadd.f32 %v5182, 1.0
        %v5311 = vadd.f32 %v5183, 1.0
        %v5312 = vadd.f32 %v5184, 1.0
        %v5313 = vadd.f32 %v5185, 1.0
        %v5314 = vadd.f32 %v5186, 1.0
        %v5315 = vadd.f32 %v5187, 1.0
        %v5316 = vadd.f32 %v5188, 1.0
        %v5317 = vadd.f32 %v5189, 1.0
        %v5318 = vadd.f32 %v5190, 1.0
        %v5319 = vadd.f32 %v5191, 1.0
        %v5320 = vadd.f32 %v5192, 1.0
        %v5321 = vadd.f32 %v5193, 1.0
        %v5322 = vadd.f32 %v5194, 1.0
        %v5323 = vadd.f32 %v5195, 1.0
        %v5324 = vadd.f32 %v5196, 1.0
        %v5325 = vadd.f32 %v5197, 1.0
        %v5326 = vadd.f32 %v5198, 1.0
        %v5327 = vadd.f32 %v5199, 1.0
        %v5328 = vadd.f32 %v5200, 1.0
        %v5329 = vadd.f32 %v5201, 1.0
        %v5330 = vadd.f32 %v5202, 1.0
        %v5331 = vadd.f32 %v5203, 1.0
        %v5332 = vadd.f32 %v5204, 1.0
        %v5333 = vadd.f32 %v5205, 1.0
        %v5334 = vadd.f32 %v5206, 1.0
        %v5335 = vadd.f32 %v5207, 1.0
        %v5336 = vadd.f32 %v5208, 1.0
        %v5337 = vadd.f32 %v5209, 1.0
        %v5338 = vadd.f32 %v5210, 1.0
        %v5339 = vadd.f32 %v5211, 1.0
        %v5340 = vadd.f32 %v5212, 1.0
        %v5341 = vadd.f32 %v5213, 1.0
        %v5342 = vadd.f32 %v5214, 1.0
        %v5343 = vadd.f32 %v5215, 1.0
        %v5344 = vadd.f32 %v5216, 1.0
        %v5345 = vadd.f32 %v5217, 1.0
        %v5346 = vadd.f32 %v5218, 1.0
        %v5347 = vadd.f32 %v5219, 1.0
        %v5348 = vadd.f32 %v5220, 1.0
        %v5349 = vadd.f32 %v5221, 1.0
        %v5350 = vadd.f32 %v5222, 1.0
        %v5351 = vadd.f32 %v5223, 1.0
        %v5352 = vadd.f32 %v5224, 1.0
        %v5353 = vadd.f32 %v5225, 1.0
        %v5354 = vadd.f32 %v5226, 1.0
        %v5355 = vadd.f32 %v5227, 1.0
        %v5356 = vadd.f32 %v5228, 1.0
        %v5357 = vadd.f32 %v5229, 1.0
        %v5358 = vadd.f32 %v5230, 1.0
        %v5359 = vadd.f32 %v5231, 1.0
        %v5360 = vadd.f32 %v5232, 1.0
        %v5361 = vadd.f32 %v5233, 1.0
        %v5362 = vadd.f32 %v5234, 1.0
        %v5363 = vadd.f32 %v5235, 1.0
        %v5364 = vadd.f32 %v5236, 1.0
        %v5365 = vadd.f32 %v5237, 1.0
        %v5366 = vadd.f32 %v5238, 1.0
        %v5367 = vadd.f32 %v5239, 1.0
        %v5368 = vadd.f32 %v5240, 1.0
        %v5369 = vadd.f32 %v5241, 1.0
        %v5370 = vadd.f32 %v5242, 1.0
        %v5371 = vadd.f32 %v5243, 1.0
        %v5372 = vadd.f32 %v5244, 1.0
        %v5373 = vadd.f32 %v5245, 1.0
        %v5374 = vmul.f32 %v5246, 0.5
        %v5375 = vmul.f32 %v5247, 0.5
        %v5376 = vmul.f32 %v5248, 0.5
        %v5377 = vmul.f32 %v5249, 0.5
        %v5378 = vmul.f32 %v5250, 0.5
        %v5379 = vmul.f32 %v5251, 0.5
        %v5380 = vmul.f32 %v5252, 0.5
        %v5381 = vmul.f32 %v5253, 0.5
        %v5382 = vmul.f32 %v5254, 0.5
        %v5383 = vmul.f32 %v5255, 0.5
        %v5384 = vmul.f32 %v5256, 0.5
        %v5385 = vmul.f32 %v5257, 0.5
        %v5386 = vmul.f32 %v5258, 0.5
        %v5387 = vmul.f32 %v5259, 0.5
        %v5388 = vmul.f32 %v5260, 0.5
        %v5389 = vmul.f32 %v5261, 0.5
        %v5390 = vmul.f32 %v5262, 0.5
        %v5391 = vmul.f32 %v5263, 0.5
        %v5392 = vmul.f32 %v5264, 0.5
        %v5393 = vmul.f32 %v5265, 0.5
        %v5394 = vmul.f32 %v5266, 0.5
        %v5395 = vmul.f32 %v5267, 0.5
        %v5396 = vmul.f32 %v5268, 0.5
        %v5397 = vmul.f32 %v5269, 0.5
        %v5398 = vmul.f32 %v5270, 0.5
        %v5399 = vmul.f32 %v5271, 0.5
        %v5400 = vmul.f32 %v5272, 0.5
        %v5401 = vmul.f32 %v5273, 0.5
        %v5402 = vmul.f32 %v5274, 0.5
        %v5403 = vmul.f32 %v5275, 0.5
        %v5404 = vmul.f32 %v5276, 0.5
        %v5405 = vmul.f32 %v5277, 0.5
        %v5406 = vmul.f32 %v5278, 0.5
        %v5407 = vmul.f32 %v5279, 0.5
        %v5408 = vmul.f32 %v5280, 0.5
        %v5409 = vmul.f32 %v5281, 0.5
        %v5410 = vmul.f32 %v5282, 0.5
        %v5411 = vmul.f32 %v5283, 0.5
        %v5412 = vmul.f32 %v5284, 0.5
        %v5413 = vmul.f32 %v5285, 0.5
        %v5414 = vmul.f32 %v5286, 0.5
        %v5415 = vmul.f32 %v5287, 0.5
        %v5416 = vmul.f32 %v5288, 0.5
        %v5417 = vmul.f32 %v5289, 0.5
        %v5418 = vmul.f32 %v5290, 0.5
        %v5419 = vmul.f32 %v5291, 0.5
        %v5420 = vmul.f32 %v5292, 0.5
        %v5421 = vmul.f32 %v5293, 0.5
        %v5422 = vmul.f32 %v5294, 0.5
        %v5423 = vmul.f32 %v5295, 0.5
        %v5424 = vmul.f32 %v5296, 0.5
        %v5425 = vmul.f32 %v5297, 0.5
        %v5426 = vmul.f32 %v5298, 0.5
        %v5427 = vmul.f32 %v5299, 0.5
        %v5428 = vmul.f32 %v5300, 0.5
        %v5429 = vmul.f32 %v5301, 0.5
        %v5430 = vmul.f32 %v5302, 0.5
        %v5431 = vmul.f32 %v5303, 0.5
        %v5432 = vmul.f32 %v5304, 0.5
        %v5433 = vmul.f32 %v5305, 0.5
        %v5434 = vmul.f32 %v5306, 0.5
        %v5435 = vmul.f32 %v5307, 0.5
        %v5436 = vmul.f32 %v5308, 0.5
        %v5437 = vmul.f32 %v5309, 0.5
        %v5438 = vmul.f32 %v5310, 0.5
        %v5439 = vmul.f32 %v5311, 0.5
        %v5440 = vmul.f32 %v5312, 0.5
        %v5441 = vmul.f32 %v5313, 0.5
        %v5442 = vmul.f32 %v5314, 0.5
        %v5443 = vmul.f32 %v5315, 0.5
        %v5444 = vmul.f32 %v5316, 0.5
        %v5445 = vmul.f32 %v5317, 0.5
        %v5446 = vmul.f32 %v5318, 0.5
        %v5447 = vmul.f32 %v5319, 0.5
        %v5448 = vmul.f32 %v5320, 0.5
        %v5449 = vmul.f32 %v5321, 0.5
        %v5450 = vmul.f32 %v5322, 0.5
        %v5451 = vmul.f32 %v5323, 0.5
        %v5452 = vmul.f32 %v5324, 0.5
        %v5453 = vmul.f32 %v5325, 0.5
        %v5454 = vmul.f32 %v5326, 0.5
        %v5455 = vmul.f32 %v5327, 0.5
        %v5456 = vmul.f32 %v5328, 0.5
        %v5457 = vmul.f32 %v5329, 0.5
        %v5458 = vmul.f32 %v5330, 0.5
        %v5459 = vmul.f32 %v5331, 0.5
        %v5460 = vmul.f32 %v5332, 0.5
        %v5461 = vmul.f32 %v5333, 0.5
        %v5462 = vmul.f32 %v5334, 0.5
        %v5463 = vmul.f32 %v5335, 0.5
        %v5464 = vmul.f32 %v5336, 0.5
        %v5465 = vmul.f32 %v5337, 0.5
        %v5466 = vmul.f32 %v5338, 0.5
        %v5467 = vmul.f32 %v5339, 0.5
        %v5468 = vmul.f32 %v5340, 0.5
        %v5469 = vmul.f32 %v5341, 0.5
        %v5470 = vmul.f32 %v5342, 0.5
        %v5471 = vmul.f32 %v5343, 0.5
        %v5472 = vmul.f32 %v5344, 0.5
        %v5473 = vmul.f32 %v5345, 0.5
        %v5474 = vmul.f32 %v5346, 0.5
        %v5475 = vmul.f32 %v5347, 0.5
        %v5476 = vmul.f32 %v5348, 0.5
        %v5477 = vmul.f32 %v5349, 0.5
        %v5478 = vmul.f32 %v5350, 0.5
        %v5479 = vmul.f32 %v5351, 0.5
        %v5480 = vmul.f32 %v5352, 0.5
        %v5481 = vmul.f32 %v5353, 0.5
        %v5482 = vmul.f32 %v5354, 0.5
        %v5483 = vmul.f32 %v5355, 0.5
        %v5484 = vmul.f32 %v5356, 0.5
        %v5485 = vmul.f32 %v5357, 0.5
        %v5486 = vmul.f32 %v5358, 0.5
        %v5487 = vmul.f32 %v5359, 0.5
        %v5488 = vmul.f32 %v5360, 0.5
        %v5489 = vmul.f32 %v5361, 0.5
        %v5490 = vmul.f32 %v5362, 0.5
        %v5491 = vmul.f32 %v5363, 0.5
        %v5492 = vmul.f32 %v5364, 0.5
        %v5493 = vmul.f32 %v5365, 0.5
        %v5494 = vmul.f32 %v5366, 0.5
        %v5495 = vmul.f32 %v5367, 0.5
        %v5496 = vmul.f32 %v5368, 0.5
        %v5497 = vmul.f32 %v5369, 0.5
        %v5498 = vmul.f32 %v5370, 0.5
        %v5499 = vmul.f32 %v5371, 0.5
        %v5500 = vmul.f32 %v5372, 0.5
        %v5501 = vmul.f32 %v5373, 0.5
        %v5502 = vmul.f32 %v4160, %v5374
        %v5503 = vmul.f32 %v4162, %v5375
        %v5504 = vmul.f32 %v4164, %v5376
        %v5505 = vmul.f32 %v4166, %v5377
        %v5506 = vmul.f32 %v4170, %v5378
        %v5507 = vmul.f32 %v4172, %v5379
        %v5508 = vmul.f32 %v4174, %v5380
        %v5509 = vmul.f32 %v4176, %v5381
        %v5510 = vmul.f32 %v4180, %v5382
        %v5511 = vmul.f32 %v4182, %v5383
        %v5512 = vmul.f32 %v4184, %v5384
        %v5513 = vmul.f32 %v4186, %v5385
        %v5514 = vmul.f32 %v4190, %v5386
        %v5515 = vmul.f32 %v4192, %v5387
        %v5516 = vmul.f32 %v4194, %v5388
        %v5517 = vmul.f32 %v4196, %v5389
        %v5518 = vmul.f32 %v4200, %v5390
        %v5519 = vmul.f32 %v4202, %v5391
        %v5520 = vmul.f32 %v4204, %v5392
        %v5521 = vmul.f32 %v4206, %v5393
        %v5522 = vmul.f32 %v4210, %v5394
        %v5523 = vmul.f32 %v4212, %v5395
        %v5524 = vmul.f32 %v4214, %v5396
        %v5525 = vmul.f32 %v4216, %v5397
        %v5526 = vmul.f32 %v4220, %v5398
        %v5527 = vmul.f32 %v4222, %v5399
        %v5528 = vmul.f32 %v4224, %v5400
        %v5529 = vmul.f32 %v4226, %v5401
        %v5530 = vmul.f32 %v4230, %v5402
        %v5531 = vmul.f32 %v4232, %v5403
        %v5532 = vmul.f32 %v4234, %v5404
        %v5533 = vmul.f32 %v4236, %v5405
        %v5534 = vmul.f32 %v4240, %v5406
        %v5535 = vmul.f32 %v4242, %v5407
        %v5536 = vmul.f32 %v4244, %v5408
        %v5537 = vmul.f32 %v4246, %v5409
        %v5538 = vmul.f32 %v4250, %v5410
        %v5539 = vmul.f32 %v4252, %v5411
        %v5540 = vmul.f32 %v4254, %v5412
        %v5541 = vmul.f32 %v4256, %v5413
        %v5542 = vmul.f32 %v4260, %v5414
        %v5543 = vmul.f32 %v4262, %v5415
        %v5544 = vmul.f32 %v4264, %v5416
        %v5545 = vmul.f32 %v4266, %v5417
        %v5546 = vmul.f32 %v4270, %v5418
        %v5547 = vmul.f32 %v4272, %v5419
        %v5548 = vmul.f32 %v4274, %v5420
        %v5549 = vmul.f32 %v4276, %v5421
        %v5550 = vmul.f32 %v4280, %v5422
        %v5551 = vmul.f32 %v4282, %v5423
        %v5552 = vmul.f32 %v4284, %v5424
        %v5553 = vmul.f32 %v4286, %v5425
        %v5554 = vmul.f32 %v4290, %v5426
        %v5555 = vmul.f32 %v4292, %v5427
        %v5556 = vmul.f32 %v4294, %v5428
        %v5557 = vmul.f32 %v4296, %v5429
        %v5558 = vmul.f32 %v4300, %v5430
        %v5559 = vmul.f32 %v4302, %v5431
        %v5560 = vmul.f32 %v4304, %v5432
        %v5561 = vmul.f32 %v4306, %v5433
        %v5562 = vmul.f32 %v4310, %v5434
        %v5563 = vmul.f32 %v4312, %v5435
        %v5564 = vmul.f32 %v4314, %v5436
        %v5565 = vmul.f32 %v4316, %v5437
        %v5566 = vmul.f32 %v4320, %v5438
        %v5567 = vmul.f32 %v4322, %v5439
        %v5568 = vmul.f32 %v4324, %v5440
        %v5569 = vmul.f32 %v4326, %v5441
        %v5570 = vmul.f32 %v4330, %v5442
        %v5571 = vmul.f32 %v4332, %v5443
        %v5572 = vmul.f32 %v4334, %v5444
        %v5573 = vmul.f32 %v4336, %v5445
        %v5574 = vmul.f32 %v4340, %v5446
        %v5575 = vmul.f32 %v4342, %v5447
        %v5576 = vmul.f32 %v4344, %v5448
        %v5577 = vmul.f32 %v4346, %v5449
        %v5578 = vmul.f32 %v4350, %v5450
        %v5579 = vmul.f32 %v4352, %v5451
        %v5580 = vmul.f32 %v4354, %v5452
        %v5581 = vmul.f32 %v4356, %v5453
        %v5582 = vmul.f32 %v4360, %v5454
        %v5583 = vmul.f32 %v4362, %v5455
        %v5584 = vmul.f32 %v4364, %v5456
        %v5585 = vmul.f32 %v4366, %v5457
        %v5586 = vmul.f32 %v4370, %v5458
        %v5587 = vmul.f32 %v4372, %v5459
        %v5588 = vmul.f32 %v4374, %v5460
        %v5589 = vmul.f32 %v4376, %v5461
        %v5590 = vmul.f32 %v4380, %v5462
        %v5591 = vmul.f32 %v4382, %v5463
        %v5592 = vmul.f32 %v4384, %v5464
        %v5593 = vmul.f32 %v4386, %v5465
        %v5594 = vmul.f32 %v4390, %v5466
        %v5595 = vmul.f32 %v4392, %v5467
        %v5596 = vmul.f32 %v4394, %v5468
        %v5597 = vmul.f32 %v4396, %v5469
        %v5598 = vmul.f32 %v4400, %v5470
        %v5599 = vmul.f32 %v4402, %v5471
        %v5600 = vmul.f32 %v4404, %v5472
        %v5601 = vmul.f32 %v4406, %v5473
        %v5602 = vmul.f32 %v4410, %v5474
        %v5603 = vmul.f32 %v4412, %v5475
        %v5604 = vmul.f32 %v4414, %v5476
        %v5605 = vmul.f32 %v4416, %v5477
        %v5606 = vmul.f32 %v4420, %v5478
        %v5607 = vmul.f32 %v4422, %v5479
        %v5608 = vmul.f32 %v4424, %v5480
        %v5609 = vmul.f32 %v4426, %v5481
        %v5610 = vmul.f32 %v4430, %v5482
        %v5611 = vmul.f32 %v4432, %v5483
        %v5612 = vmul.f32 %v4434, %v5484
        %v5613 = vmul.f32 %v4436, %v5485
        %v5614 = vmul.f32 %v4440, %v5486
        %v5615 = vmul.f32 %v4442, %v5487
        %v5616 = vmul.f32 %v4444, %v5488
        %v5617 = vmul.f32 %v4446, %v5489
        %v5618 = vmul.f32 %v4450, %v5490
        %v5619 = vmul.f32 %v4452, %v5491
        %v5620 = vmul.f32 %v4454, %v5492
        %v5621 = vmul.f32 %v4456, %v5493
        %v5622 = vmul.f32 %v4460, %v5494
        %v5623 = vmul.f32 %v4462, %v5495
        %v5624 = vmul.f32 %v4464, %v5496
        %v5625 = vmul.f32 %v4466, %v5497
        %v5626 = vmul.f32 %v4470, %v5498
        %v5627 = vmul.f32 %v4472, %v5499
        %v5628 = vmul.f32 %v4474, %v5500
        %v5629 = vmul.f32 %v4476, %v5501
        %v5630 = vpack.c.bf16 %v5504, %v5502
        %v5631 = vpack.c.bf16 %v5505, %v5503
        %v5632 = vpack.c.bf16 %v5508, %v5506
        %v5633 = vpack.c.bf16 %v5509, %v5507
        %v5634 = vpack.c.bf16 %v5512, %v5510
        %v5635 = vpack.c.bf16 %v5513, %v5511
        %v5636 = vpack.c.bf16 %v5516, %v5514
        %v5637 = vpack.c.bf16 %v5517, %v5515
        %v5638 = vpack.c.bf16 %v5520, %v5518
        %v5639 = vpack.c.bf16 %v5521, %v5519
        %v5640 = vpack.c.bf16 %v5524, %v5522
        %v5641 = vpack.c.bf16 %v5525, %v5523
        %v5642 = vpack.c.bf16 %v5528, %v5526
        %v5643 = vpack.c.bf16 %v5529, %v5527
        %v5644 = vpack.c.bf16 %v5532, %v5530
        %v5645 = vpack.c.bf16 %v5533, %v5531
        %v5646 = vpack.c.bf16 %v5536, %v5534
        %v5647 = vpack.c.bf16 %v5537, %v5535
        %v5648 = vpack.c.bf16 %v5540, %v5538
        %v5649 = vpack.c.bf16 %v5541, %v5539
        %v5650 = vpack.c.bf16 %v5544, %v5542
        %v5651 = vpack.c.bf16 %v5545, %v5543
        %v5652 = vpack.c.bf16 %v5548, %v5546
        %v5653 = vpack.c.bf16 %v5549, %v5547
        %v5654 = vpack.c.bf16 %v5552, %v5550
        %v5655 = vpack.c.bf16 %v5553, %v5551
        %v5656 = vpack.c.bf16 %v5556, %v5554
        %v5657 = vpack.c.bf16 %v5557, %v5555
        %v5658 = vpack.c.bf16 %v5560, %v5558
        %v5659 = vpack.c.bf16 %v5561, %v5559
        %v5660 = vpack.c.bf16 %v5564, %v5562
        %v5661 = vpack.c.bf16 %v5565, %v5563
        %v5662 = vpack.c.bf16 %v5568, %v5566
        %v5663 = vpack.c.bf16 %v5569, %v5567
        %v5664 = vpack.c.bf16 %v5572, %v5570
        %v5665 = vpack.c.bf16 %v5573, %v5571
        %v5666 = vpack.c.bf16 %v5576, %v5574
        %v5667 = vpack.c.bf16 %v5577, %v5575
        %v5668 = vpack.c.bf16 %v5580, %v5578
        %v5669 = vpack.c.bf16 %v5581, %v5579
        %v5670 = vpack.c.bf16 %v5584, %v5582
        %v5671 = vpack.c.bf16 %v5585, %v5583
        %v5672 = vpack.c.bf16 %v5588, %v5586
        %v5673 = vpack.c.bf16 %v5589, %v5587
        %v5674 = vpack.c.bf16 %v5592, %v5590
        %v5675 = vpack.c.bf16 %v5593, %v5591
        %v5676 = vpack.c.bf16 %v5596, %v5594
        %v5677 = vpack.c.bf16 %v5597, %v5595
        %v5678 = vpack.c.bf16 %v5600, %v5598
        %v5679 = vpack.c.bf16 %v5601, %v5599
        %v5680 = vpack.c.bf16 %v5604, %v5602
        %v5681 = vpack.c.bf16 %v5605, %v5603
        %v5682 = vpack.c.bf16 %v5608, %v5606
        %v5683 = vpack.c.bf16 %v5609, %v5607
        %v5684 = vpack.c.bf16 %v5612, %v5610
        %v5685 = vpack.c.bf16 %v5613, %v5611
        %v5686 = vpack.c.bf16 %v5616, %v5614
        %v5687 = vpack.c.bf16 %v5617, %v5615
        %v5688 = vpack.c.bf16 %v5620, %v5618
        %v5689 = vpack.c.bf16 %v5621, %v5619
        %v5690 = vpack.c.bf16 %v5624, %v5622
        %v5691 = vpack.c.bf16 %v5625, %v5623
        %v5692 = vpack.c.bf16 %v5628, %v5626
        %v5693 = vpack.c.bf16 %v5629, %v5627
        %v5694 = vld [vmem:[%s8] sm:$0xf]
        %v5695 = vld [vmem:[%s8 + $0x4] sm:$0xf]
        %v5696 = vld [vmem:[%s8 + $0x8] sm:$0xf]
        %v5697 = vld [vmem:[%s8 + $0xc] sm:$0xf]
        %v5698 = vld [vmem:[%s8 + $0x10] sm:$0xf]
        %v5699 = vld [vmem:[%s8 + $0x14] sm:$0xf]
        %v5700 = vld [vmem:[%s8 + $0x18] sm:$0xf]
        %v5701 = vld [vmem:[%s8 + $0x1c] sm:$0xf]
        %v5702 = vld [vmem:[%s8 + $0x20] sm:$0xf]
        %v5703 = vld [vmem:[%s8 + $0x24] sm:$0xf]
        %v5704 = vld [vmem:[%s8 + $0x28] sm:$0xf]
        %v5705 = vld [vmem:[%s8 + $0x2c] sm:$0xf]
        %v5706 = vld [vmem:[%s8 + $0x30] sm:$0xf]
        %v5707 = vld [vmem:[%s8 + $0x34] sm:$0xf]
        %v5708 = vld [vmem:[%s8 + $0x38] sm:$0xf]
        %v5709 = vld [vmem:[%s8 + $0x3c] sm:$0xf]
        %v5710 = vld [vmem:[%s8 + $0x40] sm:$0xf]
        %v5711 = vld [vmem:[%s8 + $0x44] sm:$0xf]
        %v5712 = vld [vmem:[%s8 + $0x48] sm:$0xf]
        %v5713 = vld [vmem:[%s8 + $0x4c] sm:$0xf]
        %v5714 = vld [vmem:[%s8 + $0x50] sm:$0xf]
        %v5715 = vld [vmem:[%s8 + $0x54] sm:$0xf]
        %v5716 = vld [vmem:[%s8 + $0x58] sm:$0xf]
        %v5717 = vld [vmem:[%s8 + $0x5c] sm:$0xf]
        %v5718 = vld [vmem:[%s8 + $0x60] sm:$0xf]
        %v5719 = vld [vmem:[%s8 + $0x64] sm:$0xf]
        %v5720 = vld [vmem:[%s8 + $0x68] sm:$0xf]
        %v5721 = vld [vmem:[%s8 + $0x6c] sm:$0xf]
        %v5722 = vld [vmem:[%s8 + $0x70] sm:$0xf]
        %v5723 = vld [vmem:[%s8 + $0x74] sm:$0xf]
        %v5724 = vld [vmem:[%s8 + $0x78] sm:$0xf]
        %v5725 = vld [vmem:[%s8 + $0x7c] sm:$0xf]
        %v5726 = vld [vmem:[%s9] sm:$0x1]
        %v5728 = vlaneseq
        %v5729 = vshrl.u32 %v5728, 7
        %v5730 = vsub.s32 0, %v5729
        %v5731 = vrot.slane %v5726, %v5730
        %v5765 = vunpack.c.l.b16 %v5694
        %v5766 = vunpack.c.l.b16 %v5695
        %v5767 = vunpack.c.l.b16 %v5696
        %v5768 = vunpack.c.l.b16 %v5697
        %v5769 = vunpack.c.l.b16 %v5698
        %v5770 = vunpack.c.l.b16 %v5699
        %v5771 = vunpack.c.l.b16 %v5700
        %v5772 = vunpack.c.l.b16 %v5701
        %v5773 = vunpack.c.l.b16 %v5702
        %v5774 = vunpack.c.l.b16 %v5703
        %v5775 = vunpack.c.l.b16 %v5704
        %v5776 = vunpack.c.l.b16 %v5705
        %v5777 = vunpack.c.l.b16 %v5706
        %v5778 = vunpack.c.l.b16 %v5707
        %v5779 = vunpack.c.l.b16 %v5708
        %v5780 = vunpack.c.l.b16 %v5709
        %v5781 = vunpack.c.l.b16 %v5710
        %v5782 = vunpack.c.l.b16 %v5711
        %v5783 = vunpack.c.l.b16 %v5712
        %v5784 = vunpack.c.l.b16 %v5713
        %v5785 = vunpack.c.l.b16 %v5714
        %v5786 = vunpack.c.l.b16 %v5715
        %v5787 = vunpack.c.l.b16 %v5716
        %v5788 = vunpack.c.l.b16 %v5717
        %v5789 = vunpack.c.l.b16 %v5718
        %v5790 = vunpack.c.l.b16 %v5719
        %v5791 = vunpack.c.l.b16 %v5720
        %v5792 = vunpack.c.l.b16 %v5721
        %v5793 = vunpack.c.l.b16 %v5722
        %v5794 = vunpack.c.l.b16 %v5723
        %v5795 = vunpack.c.l.b16 %v5724
        %v5796 = vunpack.c.l.b16 %v5725
        %v5797 = vpack.c.b16 %v5766, %v5765
        %v5798 = vpack.c.b16 %v5768, %v5767
        %v5799 = vpack.c.b16 %v5770, %v5769
        %v5800 = vpack.c.b16 %v5772, %v5771
        %v5801 = vpack.c.b16 %v5774, %v5773
        %v5802 = vpack.c.b16 %v5776, %v5775
        %v5803 = vpack.c.b16 %v5778, %v5777
        %v5804 = vpack.c.b16 %v5780, %v5779
        %v5805 = vpack.c.b16 %v5782, %v5781
        %v5806 = vpack.c.b16 %v5784, %v5783
        %v5807 = vpack.c.b16 %v5786, %v5785
        %v5808 = vpack.c.b16 %v5788, %v5787
        %v5809 = vpack.c.b16 %v5790, %v5789
        %v5810 = vpack.c.b16 %v5792, %v5791
        %v5811 = vpack.c.b16 %v5794, %v5793
        %v5812 = vpack.c.b16 %v5796, %v5795
        %5829 = vmatprep.subr.bf16.mxu0 0
        %5830 = vmatpush1.bf16.msra.mxu0 %v5797
        %5831 = vmatprep.subr.bf16.mxu0 0
        %5832 = vmatpush1.bf16.msra.mxu0 %v5798
        %5833 = vmatprep.subr.bf16.mxu0 0
        %5834 = vmatpush1.bf16.msra.mxu0 %v5799
        %5835 = vmatprep.subr.bf16.mxu0 0
        %5836 = vmatpush1.bf16.msra.mxu0 %v5800
        %5837 = vmatprep.subr.bf16.mxu0 0
        %5838 = vmatpush1.bf16.msra.mxu0 %v5801
        %5839 = vmatprep.subr.bf16.mxu0 0
        %5840 = vmatpush1.bf16.msra.mxu0 %v5802
        %5841 = vmatprep.subr.bf16.mxu0 0
        %5842 = vmatpush1.bf16.msra.mxu0 %v5803
        %5843 = vmatprep.subr.bf16.mxu0 0
        %5844 = vmatpush1.bf16.msra.mxu0 %v5804
        %5845 = vmatprep.subr.bf16.mxu0 0
        %5846 = vmatpush1.bf16.msra.mxu0 %v5805
        %5847 = vmatprep.subr.bf16.mxu0 0
        %5848 = vmatpush1.bf16.msra.mxu0 %v5806
        %5849 = vmatprep.subr.bf16.mxu0 0
        %5850 = vmatpush1.bf16.msra.mxu0 %v5807
        %5851 = vmatprep.subr.bf16.mxu0 0
        %5852 = vmatpush1.bf16.msra.mxu0 %v5808
        %5853 = vmatprep.subr.bf16.mxu0 0
        %5854 = vmatpush1.bf16.msra.mxu0 %v5809
        %5855 = vmatprep.subr.bf16.mxu0 0
        %5856 = vmatpush1.bf16.msra.mxu0 %v5810
        %5857 = vmatprep.subr.bf16.mxu0 0
        %5858 = vmatpush1.bf16.msra.mxu0 %v5811
        %5859 = vmatprep.subr.bf16.mxu0 0
        %5860 = vmatpush1.bf16.msra.mxu0 %v5812
        %5861 = vmatprep.mubr.bf16.mxu0 %v5631
        %5862 = vmatmul.mubr.bf16.gmra.mrb[0].mxu0 %v5630
        %v5863 = vpop.f32.mrb[0].mxu0
        %v5864 = vadd.f32 %v5731, %v5863
        %v5865 = vpop.f32.mrb[0].mxu0
        %v5866 = vpop.f32.mrb[0].mxu0
        %v5867 = vadd.f32 %v5731, %v5866
        %v5868 = vpop.f32.mrb[0].mxu0
        %5869 = vmatprep.mubr.bf16.mxu0 %v5633
        %5870 = vmatmul.mubr.bf16.gmra.mrb[0].mxu0 %v5632
        %v5871 = vpop.f32.mrb[0].mxu0
        %v5872 = vadd.f32 %v5731, %v5871
        %v5873 = vpop.f32.mrb[0].mxu0
        %v5874 = vpop.f32.mrb[0].mxu0
        %v5875 = vadd.f32 %v5731, %v5874
        %v5876 = vpop.f32.mrb[0].mxu0
        %5877 = vmatprep.mubr.bf16.mxu0 %v5635
        %5878 = vmatmul.mubr.bf16.gmra.mrb[0].mxu0 %v5634
        %v5879 = vpop.f32.mrb[0].mxu0
        %v5880 = vadd.f32 %v5731, %v5879
        %v5881 = vpop.f32.mrb[0].mxu0
        %v5882 = vpop.f32.mrb[0].mxu0
        %v5883 = vadd.f32 %v5731, %v5882
        %v5884 = vpop.f32.mrb[0].mxu0
        %5885 = vmatprep.mubr.bf16.mxu0 %v5637
        %5886 = vmatmul.mubr.bf16.gmra.mrb[0].mxu0 %v5636
        %v5887 = vpop.f32.mrb[0].mxu0
        %v5888 = vadd.f32 %v5731, %v5887
        %v5889 = vpop.f32.mrb[0].mxu0
        %v5890 = vpop.f32.mrb[0].mxu0
        %v5891 = vadd.f32 %v5731, %v5890
        %v5892 = vpop.f32.mrb[0].mxu0
        %5893 = vmatprep.mubr.bf16.mxu0 %v5639
        %5894 = vmatmul.mubr.bf16.gmra.mrb[0].mxu0 %v5638
        %v5895 = vpop.f32.mrb[0].mxu0
        %v5896 = vadd.f32 %v5731, %v5895
        %v5897 = vpop.f32.mrb[0].mxu0
        %v5898 = vpop.f32.mrb[0].mxu0
        %v5899 = vadd.f32 %v5731, %v5898
        %v5900 = vpop.f32.mrb[0].mxu0
        %5901 = vmatprep.mubr.bf16.mxu0 %v5641
        %5902 = vmatmul.mubr.bf16.gmra.mrb[0].mxu0 %v5640
        %v5903 = vpop.f32.mrb[0].mxu0
        %v5904 = vadd.f32 %v5731, %v5903
        %v5905 = vpop.f32.mrb[0].mxu0
        %v5906 = vpop.f32.mrb[0].mxu0
        %v5907 = vadd.f32 %v5731, %v5906
        %v5908 = vpop.f32.mrb[0].mxu0
        %5909 = vmatprep.mubr.bf16.mxu0 %v5643
        %5910 = vmatmul.mubr.bf16.gmra.mrb[0].mxu0 %v5642
        %v5911 = vpop.f32.mrb[0].mxu0
        %v5912 = vadd.f32 %v5731, %v5911
        %v5913 = vpop.f32.mrb[0].mxu0
        %v5914 = vpop.f32.mrb[0].mxu0
        %v5915 = vadd.f32 %v5731, %v5914
        %v5916 = vpop.f32.mrb[0].mxu0
        %5917 = vmatprep.mubr.bf16.mxu0 %v5645
        %5918 = vmatmul.mubr.bf16.gmra.mrb[0].mxu0 %v5644
        %v5919 = vpop.f32.mrb[0].mxu0
        %v5920 = vadd.f32 %v5731, %v5919
        %v5921 = vpop.f32.mrb[0].mxu0
        %v5922 = vpop.f32.mrb[0].mxu0
        %v5923 = vadd.f32 %v5731, %v5922
        %v5924 = vpop.f32.mrb[0].mxu0
        %5925 = vmatprep.mubr.bf16.mxu0 %v5647
        %5926 = vmatmul.mubr.bf16.gmra.mrb[0].mxu0 %v5646
        %v5927 = vpop.f32.mrb[0].mxu0
        %v5928 = vadd.f32 %v5731, %v5927
        %v5929 = vpop.f32.mrb[0].mxu0
        %v5930 = vpop.f32.mrb[0].mxu0
        %v5931 = vadd.f32 %v5731, %v5930
        %v5932 = vpop.f32.mrb[0].mxu0
        %5933 = vmatprep.mubr.bf16.mxu0 %v5649
        %5934 = vmatmul.mubr.bf16.gmra.mrb[0].mxu0 %v5648
        %v5935 = vpop.f32.mrb[0].mxu0
        %v5936 = vadd.f32 %v5731, %v5935
        %v5937 = vpop.f32.mrb[0].mxu0
        %v5938 = vpop.f32.mrb[0].mxu0
        %v5939 = vadd.f32 %v5731, %v5938
        %v5940 = vpop.f32.mrb[0].mxu0
        %5941 = vmatprep.mubr.bf16.mxu0 %v5651
        %5942 = vmatmul.mubr.bf16.gmra.mrb[0].mxu0 %v5650
        %v5943 = vpop.f32.mrb[0].mxu0
        %v5944 = vadd.f32 %v5731, %v5943
        %v5945 = vpop.f32.mrb[0].mxu0
        %v5946 = vpop.f32.mrb[0].mxu0
        %v5947 = vadd.f32 %v5731, %v5946
        %v5948 = vpop.f32.mrb[0].mxu0
        %5949 = vmatprep.mubr.bf16.mxu0 %v5653
        %5950 = vmatmul.mubr.bf16.gmra.mrb[0].mxu0 %v5652
        %v5951 = vpop.f32.mrb[0].mxu0
        %v5952 = vadd.f32 %v5731, %v5951
        %v5953 = vpop.f32.mrb[0].mxu0
        %v5954 = vpop.f32.mrb[0].mxu0
        %v5955 = vadd.f32 %v5731, %v5954
        %v5956 = vpop.f32.mrb[0].mxu0
        %5957 = vmatprep.mubr.bf16.mxu0 %v5655
        %5958 = vmatmul.mubr.bf16.gmra.mrb[0].mxu0 %v5654
        %v5959 = vpop.f32.mrb[0].mxu0
        %v5960 = vadd.f32 %v5731, %v5959
        %v5961 = vpop.f32.mrb[0].mxu0
        %v5962 = vpop.f32.mrb[0].mxu0
        %v5963 = vadd.f32 %v5731, %v5962
        %v5964 = vpop.f32.mrb[0].mxu0
        %5965 = vmatprep.mubr.bf16.mxu0 %v5657
        %5966 = vmatmul.mubr.bf16.gmra.mrb[0].mxu0 %v5656
        %v5967 = vpop.f32.mrb[0].mxu0
        %v5968 = vadd.f32 %v5731, %v5967
        %v5969 = vpop.f32.mrb[0].mxu0
        %v5970 = vpop.f32.mrb[0].mxu0
        %v5971 = vadd.f32 %v5731, %v5970
        %v5972 = vpop.f32.mrb[0].mxu0
        %5973 = vmatprep.mubr.bf16.mxu0 %v5659
        %5974 = vmatmul.mubr.bf16.gmra.mrb[0].mxu0 %v5658
        %v5975 = vpop.f32.mrb[0].mxu0
        %v5976 = vadd.f32 %v5731, %v5975
        %v5977 = vpop.f32.mrb[0].mxu0
        %v5978 = vpop.f32.mrb[0].mxu0
        %v5979 = vadd.f32 %v5731, %v5978
        %v5980 = vpop.f32.mrb[0].mxu0
        %5981 = vmatprep.mubr.bf16.mxu0 %v5661
        %5982 = vmatmul.mubr.bf16.gmra.mrb[0].mxu0 %v5660
        %v5983 = vpop.f32.mrb[0].mxu0
        %v5984 = vadd.f32 %v5731, %v5983
        %v5985 = vpop.f32.mrb[0].mxu0
        %v5986 = vpop.f32.mrb[0].mxu0
        %v5987 = vadd.f32 %v5731, %v5986
        %v5988 = vpop.f32.mrb[0].mxu0
        %5989 = vmatprep.mubr.bf16.mxu0 %v5663
        %5990 = vmatmul.mubr.bf16.gmra.mrb[0].mxu0 %v5662
        %v5991 = vpop.f32.mrb[0].mxu0
        %v5992 = vadd.f32 %v5731, %v5991
        %v5993 = vpop.f32.mrb[0].mxu0
        %v5994 = vpop.f32.mrb[0].mxu0
        %v5995 = vadd.f32 %v5731, %v5994
        %v5996 = vpop.f32.mrb[0].mxu0
        %5997 = vmatprep.mubr.bf16.mxu0 %v5665
        %5998 = vmatmul.mubr.bf16.gmra.mrb[0].mxu0 %v5664
        %v5999 = vpop.f32.mrb[0].mxu0
        %v6000 = vadd.f32 %v5731, %v5999
        %v6001 = vpop.f32.mrb[0].mxu0
        %v6002 = vpop.f32.mrb[0].mxu0
        %v6003 = vadd.f32 %v5731, %v6002
        %v6004 = vpop.f32.mrb[0].mxu0
        %6005 = vmatprep.mubr.bf16.mxu0 %v5667
        %6006 = vmatmul.mubr.bf16.gmra.mrb[0].mxu0 %v5666
        %v6007 = vpop.f32.mrb[0].mxu0
        %v6008 = vadd.f32 %v5731, %v6007
        %v6009 = vpop.f32.mrb[0].mxu0
        %v6010 = vpop.f32.mrb[0].mxu0
        %v6011 = vadd.f32 %v5731, %v6010
        %v6012 = vpop.f32.mrb[0].mxu0
        %6013 = vmatprep.mubr.bf16.mxu0 %v5669
        %6014 = vmatmul.mubr.bf16.gmra.mrb[0].mxu0 %v5668
        %v6015 = vpop.f32.mrb[0].mxu0
        %v6016 = vadd.f32 %v5731, %v6015
        %v6017 = vpop.f32.mrb[0].mxu0
        %v6018 = vpop.f32.mrb[0].mxu0
        %v6019 = vadd.f32 %v5731, %v6018
        %v6020 = vpop.f32.mrb[0].mxu0
        %6021 = vmatprep.mubr.bf16.mxu0 %v5671
        %6022 = vmatmul.mubr.bf16.gmra.mrb[0].mxu0 %v5670
        %v6023 = vpop.f32.mrb[0].mxu0
        %v6024 = vadd.f32 %v5731, %v6023
        %v6025 = vpop.f32.mrb[0].mxu0
        %v6026 = vpop.f32.mrb[0].mxu0
        %v6027 = vadd.f32 %v5731, %v6026
        %v6028 = vpop.f32.mrb[0].mxu0
        %6029 = vmatprep.mubr.bf16.mxu0 %v5673
        %6030 = vmatmul.mubr.bf16.gmra.mrb[0].mxu0 %v5672
        %v6031 = vpop.f32.mrb[0].mxu0
        %v6032 = vadd.f32 %v5731, %v6031
        %v6033 = vpop.f32.mrb[0].mxu0
        %v6034 = vpop.f32.mrb[0].mxu0
        %v6035 = vadd.f32 %v5731, %v6034
        %v6036 = vpop.f32.mrb[0].mxu0
        %6037 = vmatprep.mubr.bf16.mxu0 %v5675
        %6038 = vmatmul.mubr.bf16.gmra.mrb[0].mxu0 %v5674
        %v6039 = vpop.f32.mrb[0].mxu0
        %v6040 = vadd.f32 %v5731, %v6039
        %v6041 = vpop.f32.mrb[0].mxu0
        %v6042 = vpop.f32.mrb[0].mxu0
        %v6043 = vadd.f32 %v5731, %v6042
        %v6044 = vpop.f32.mrb[0].mxu0
        %6045 = vmatprep.mubr.bf16.mxu0 %v5677
        %6046 = vmatmul.mubr.bf16.gmra.mrb[0].mxu0 %v5676
        %v6047 = vpop.f32.mrb[0].mxu0
        %v6048 = vadd.f32 %v5731, %v6047
        %v6049 = vpop.f32.mrb[0].mxu0
        %v6050 = vpop.f32.mrb[0].mxu0
        %v6051 = vadd.f32 %v5731, %v6050
        %v6052 = vpop.f32.mrb[0].mxu0
        %6053 = vmatprep.mubr.bf16.mxu0 %v5679
        %6054 = vmatmul.mubr.bf16.gmra.mrb[0].mxu0 %v5678
        %v6055 = vpop.f32.mrb[0].mxu0
        %v6056 = vadd.f32 %v5731, %v6055
        %v6057 = vpop.f32.mrb[0].mxu0
        %v6058 = vpop.f32.mrb[0].mxu0
        %v6059 = vadd.f32 %v5731, %v6058
        %v6060 = vpop.f32.mrb[0].mxu0
        %6061 = vmatprep.mubr.bf16.mxu0 %v5681
        %6062 = vmatmul.mubr.bf16.gmra.mrb[0].mxu0 %v5680
        %v6063 = vpop.f32.mrb[0].mxu0
        %v6064 = vadd.f32 %v5731, %v6063
        %v6065 = vpop.f32.mrb[0].mxu0
        %v6066 = vpop.f32.mrb[0].mxu0
        %v6067 = vadd.f32 %v5731, %v6066
        %v6068 = vpop.f32.mrb[0].mxu0
        %6069 = vmatprep.mubr.bf16.mxu0 %v5683
        %6070 = vmatmul.mubr.bf16.gmra.mrb[0].mxu0 %v5682
        %v6071 = vpop.f32.mrb[0].mxu0
        %v6072 = vadd.f32 %v5731, %v6071
        %v6073 = vpop.f32.mrb[0].mxu0
        %v6074 = vpop.f32.mrb[0].mxu0
        %v6075 = vadd.f32 %v5731, %v6074
        %v6076 = vpop.f32.mrb[0].mxu0
        %6077 = vmatprep.mubr.bf16.mxu0 %v5685
        %6078 = vmatmul.mubr.bf16.gmra.mrb[0].mxu0 %v5684
        %v6079 = vpop.f32.mrb[0].mxu0
        %v6080 = vadd.f32 %v5731, %v6079
        %v6081 = vpop.f32.mrb[0].mxu0
        %v6082 = vpop.f32.mrb[0].mxu0
        %v6083 = vadd.f32 %v5731, %v6082
        %v6084 = vpop.f32.mrb[0].mxu0
        %6085 = vmatprep.mubr.bf16.mxu0 %v5687
        %6086 = vmatmul.mubr.bf16.gmra.mrb[0].mxu0 %v5686
        %v6087 = vpop.f32.mrb[0].mxu0
        %v6088 = vadd.f32 %v5731, %v6087
        %v6089 = vpop.f32.mrb[0].mxu0
        %v6090 = vpop.f32.mrb[0].mxu0
        %v6091 = vadd.f32 %v5731, %v6090
        %v6092 = vpop.f32.mrb[0].mxu0
        %6093 = vmatprep.mubr.bf16.mxu0 %v5689
        %6094 = vmatmul.mubr.bf16.gmra.mrb[0].mxu0 %v5688
        %v6095 = vpop.f32.mrb[0].mxu0
        %v6096 = vadd.f32 %v5731, %v6095
        %v6097 = vpop.f32.mrb[0].mxu0
        %v6098 = vpop.f32.mrb[0].mxu0
        %v6099 = vadd.f32 %v5731, %v6098
        %v6100 = vpop.f32.mrb[0].mxu0
        %6101 = vmatprep.mubr.bf16.mxu0 %v5691
        %6102 = vmatmul.mubr.bf16.gmra.mrb[0].mxu0 %v5690
        %v6103 = vpop.f32.mrb[0].mxu0
        %v6104 = vadd.f32 %v5731, %v6103
        %v6105 = vpop.f32.mrb[0].mxu0
        %v6106 = vpop.f32.mrb[0].mxu0
        %v6107 = vadd.f32 %v5731, %v6106
        %v6108 = vpop.f32.mrb[0].mxu0
        %6109 = vmatprep.mubr.bf16.mxu0 %v5693
        %6110 = vmatmul.mubr.bf16.gmra.mrb[0].mxu0 %v5692
        %v6111 = vpop.f32.mrb[0].mxu0
        %v6112 = vadd.f32 %v5731, %v6111
        %v6113 = vpop.f32.mrb[0].mxu0
        %v6114 = vpop.f32.mrb[0].mxu0
        %v6115 = vadd.f32 %v5731, %v6114
        %v6116 = vpop.f32.mrb[0].mxu0
        %6117 = vdwg.mxu0
        %v6118 = vmul.f32 %v5864, %v5864
        %v6119 = vmul.f32 %v5867, %v5867
        %v6120 = vmul.f32 %v5872, %v5872
        %v6121 = vmul.f32 %v5875, %v5875
        %v6122 = vmul.f32 %v5880, %v5880
        %v6123 = vmul.f32 %v5883, %v5883
        %v6124 = vmul.f32 %v5888, %v5888
        %v6125 = vmul.f32 %v5891, %v5891
        %v6126 = vmul.f32 %v5896, %v5896
        %v6127 = vmul.f32 %v5899, %v5899
        %v6128 = vmul.f32 %v5904, %v5904
        %v6129 = vmul.f32 %v5907, %v5907
        %v6130 = vmul.f32 %v5912, %v5912
        %v6131 = vmul.f32 %v5915, %v5915
        %v6132 = vmul.f32 %v5920, %v5920
        %v6133 = vmul.f32 %v5923, %v5923
        %v6134 = vmul.f32 %v5928, %v5928
        %v6135 = vmul.f32 %v5931, %v5931
        %v6136 = vmul.f32 %v5936, %v5936
        %v6137 = vmul.f32 %v5939, %v5939
        %v6138 = vmul.f32 %v5944, %v5944
        %v6139 = vmul.f32 %v5947, %v5947
        %v6140 = vmul.f32 %v5952, %v5952
        %v6141 = vmul.f32 %v5955, %v5955
        %v6142 = vmul.f32 %v5960, %v5960
        %v6143 = vmul.f32 %v5963, %v5963
        %v6144 = vmul.f32 %v5968, %v5968
        %v6145 = vmul.f32 %v5971, %v5971
        %v6146 = vmul.f32 %v5976, %v5976
        %v6147 = vmul.f32 %v5979, %v5979
        %v6148 = vmul.f32 %v5984, %v5984
        %v6149 = vmul.f32 %v5987, %v5987
        %v6150 = vmul.f32 %v5992, %v5992
        %v6151 = vmul.f32 %v5995, %v5995
        %v6152 = vmul.f32 %v6000, %v6000
        %v6153 = vmul.f32 %v6003, %v6003
        %v6154 = vmul.f32 %v6008, %v6008
        %v6155 = vmul.f32 %v6011, %v6011
        %v6156 = vmul.f32 %v6016, %v6016
        %v6157 = vmul.f32 %v6019, %v6019
        %v6158 = vmul.f32 %v6024, %v6024
        %v6159 = vmul.f32 %v6027, %v6027
        %v6160 = vmul.f32 %v6032, %v6032
        %v6161 = vmul.f32 %v6035, %v6035
        %v6162 = vmul.f32 %v6040, %v6040
        %v6163 = vmul.f32 %v6043, %v6043
        %v6164 = vmul.f32 %v6048, %v6048
        %v6165 = vmul.f32 %v6051, %v6051
        %v6166 = vmul.f32 %v6056, %v6056
        %v6167 = vmul.f32 %v6059, %v6059
        %v6168 = vmul.f32 %v6064, %v6064
        %v6169 = vmul.f32 %v6067, %v6067
        %v6170 = vmul.f32 %v6072, %v6072
        %v6171 = vmul.f32 %v6075, %v6075
        %v6172 = vmul.f32 %v6080, %v6080
        %v6173 = vmul.f32 %v6083, %v6083
        %v6174 = vmul.f32 %v6088, %v6088
        %v6175 = vmul.f32 %v6091, %v6091
        %v6176 = vmul.f32 %v6096, %v6096
        %v6177 = vmul.f32 %v6099, %v6099
        %v6178 = vmul.f32 %v6104, %v6104
        %v6179 = vmul.f32 %v6107, %v6107
        %v6180 = vmul.f32 %v6112, %v6112
        %v6181 = vmul.f32 %v6115, %v6115
        %v6182 = vmul.f32 %v5864, %v6118
        %v6183 = vmul.f32 %v5867, %v6119
        %v6184 = vmul.f32 %v5872, %v6120
        %v6185 = vmul.f32 %v5875, %v6121
        %v6186 = vmul.f32 %v5880, %v6122
        %v6187 = vmul.f32 %v5883, %v6123
        %v6188 = vmul.f32 %v5888, %v6124
        %v6189 = vmul.f32 %v5891, %v6125
        %v6190 = vmul.f32 %v5896, %v6126
        %v6191 = vmul.f32 %v5899, %v6127
        %v6192 = vmul.f32 %v5904, %v6128
        %v6193 = vmul.f32 %v5907, %v6129
        %v6194 = vmul.f32 %v5912, %v6130
        %v6195 = vmul.f32 %v5915, %v6131
        %v6196 = vmul.f32 %v5920, %v6132
        %v6197 = vmul.f32 %v5923, %v6133
        %v6198 = vmul.f32 %v5928, %v6134
        %v6199 = vmul.f32 %v5931, %v6135
        %v6200 = vmul.f32 %v5936, %v6136
        %v6201 = vmul.f32 %v5939, %v6137
        %v6202 = vmul.f32 %v5944, %v6138
        %v6203 = vmul.f32 %v5947, %v6139
        %v6204 = vmul.f32 %v5952, %v6140
        %v6205 = vmul.f32 %v5955, %v6141
        %v6206 = vmul.f32 %v5960, %v6142
        %v6207 = vmul.f32 %v5963, %v6143
        %v6208 = vmul.f32 %v5968, %v6144
        %v6209 = vmul.f32 %v5971, %v6145
        %v6210 = vmul.f32 %v5976, %v6146
        %v6211 = vmul.f32 %v5979, %v6147
        %v6212 = vmul.f32 %v5984, %v6148
        %v6213 = vmul.f32 %v5987, %v6149
        %v6214 = vmul.f32 %v5992, %v6150
        %v6215 = vmul.f32 %v5995, %v6151
        %v6216 = vmul.f32 %v6000, %v6152
        %v6217 = vmul.f32 %v6003, %v6153
        %v6218 = vmul.f32 %v6008, %v6154
        %v6219 = vmul.f32 %v6011, %v6155
        %v6220 = vmul.f32 %v6016, %v6156
        %v6221 = vmul.f32 %v6019, %v6157
        %v6222 = vmul.f32 %v6024, %v6158
        %v6223 = vmul.f32 %v6027, %v6159
        %v6224 = vmul.f32 %v6032, %v6160
        %v6225 = vmul.f32 %v6035, %v6161
        %v6226 = vmul.f32 %v6040, %v6162
        %v6227 = vmul.f32 %v6043, %v6163
        %v6228 = vmul.f32 %v6048, %v6164
        %v6229 = vmul.f32 %v6051, %v6165
        %v6230 = vmul.f32 %v6056, %v6166
        %v6231 = vmul.f32 %v6059, %v6167
        %v6232 = vmul.f32 %v6064, %v6168
        %v6233 = vmul.f32 %v6067, %v6169
        %v6234 = vmul.f32 %v6072, %v6170
        %v6235 = vmul.f32 %v6075, %v6171
        %v6236 = vmul.f32 %v6080, %v6172
        %v6237 = vmul.f32 %v6083, %v6173
        %v6238 = vmul.f32 %v6088, %v6174
        %v6239 = vmul.f32 %v6091, %v6175
        %v6240 = vmul.f32 %v6096, %v6176
        %v6241 = vmul.f32 %v6099, %v6177
        %v6242 = vmul.f32 %v6104, %v6178
        %v6243 = vmul.f32 %v6107, %v6179
        %v6244 = vmul.f32 %v6112, %v6180
        %v6245 = vmul.f32 %v6115, %v6181
        %v6246 = vmul.f32 %v6182, 0.044715
        %v6247 = vmul.f32 %v6183, 0.044715
        %v6248 = vmul.f32 %v6184, 0.044715
        %v6249 = vmul.f32 %v6185, 0.044715
        %v6250 = vmul.f32 %v6186, 0.044715
        %v6251 = vmul.f32 %v6187, 0.044715
        %v6252 = vmul.f32 %v6188, 0.044715
        %v6253 = vmul.f32 %v6189, 0.044715
        %v6254 = vmul.f32 %v6190, 0.044715
        %v6255 = vmul.f32 %v6191, 0.044715
        %v6256 = vmul.f32 %v6192, 0.044715
        %v6257 = vmul.f32 %v6193, 0.044715
        %v6258 = vmul.f32 %v6194, 0.044715
        %v6259 = vmul.f32 %v6195, 0.044715
        %v6260 = vmul.f32 %v6196, 0.044715
        %v6261 = vmul.f32 %v6197, 0.044715
        %v6262 = vmul.f32 %v6198, 0.044715
        %v6263 = vmul.f32 %v6199, 0.044715
        %v6264 = vmul.f32 %v6200, 0.044715
        %v6265 = vmul.f32 %v6201, 0.044715
        %v6266 = vmul.f32 %v6202, 0.044715
        %v6267 = vmul.f32 %v6203, 0.044715
        %v6268 = vmul.f32 %v6204, 0.044715
        %v6269 = vmul.f32 %v6205, 0.044715
        %v6270 = vmul.f32 %v6206, 0.044715
        %v6271 = vmul.f32 %v6207, 0.044715
        %v6272 = vmul.f32 %v6208, 0.044715
        %v6273 = vmul.f32 %v6209, 0.044715
        %v6274 = vmul.f32 %v6210, 0.044715
        %v6275 = vmul.f32 %v6211, 0.044715
        %v6276 = vmul.f32 %v6212, 0.044715
        %v6277 = vmul.f32 %v6213, 0.044715
        %v6278 = vmul.f32 %v6214, 0.044715
        %v6279 = vmul.f32 %v6215, 0.044715
        %v6280 = vmul.f32 %v6216, 0.044715
        %v6281 = vmul.f32 %v6217, 0.044715
        %v6282 = vmul.f32 %v6218, 0.044715
        %v6283 = vmul.f32 %v6219, 0.044715
        %v6284 = vmul.f32 %v6220, 0.044715
        %v6285 = vmul.f32 %v6221, 0.044715
        %v6286 = vmul.f32 %v6222, 0.044715
        %v6287 = vmul.f32 %v6223, 0.044715
        %v6288 = vmul.f32 %v6224, 0.044715
        %v6289 = vmul.f32 %v6225, 0.044715
        %v6290 = vmul.f32 %v6226, 0.044715
        %v6291 = vmul.f32 %v6227, 0.044715
        %v6292 = vmul.f32 %v6228, 0.044715
        %v6293 = vmul.f32 %v6229, 0.044715
        %v6294 = vmul.f32 %v6230, 0.044715
        %v6295 = vmul.f32 %v6231, 0.044715
        %v6296 = vmul.f32 %v6232, 0.044715
        %v6297 = vmul.f32 %v6233, 0.044715
        %v6298 = vmul.f32 %v6234, 0.044715
        %v6299 = vmul.f32 %v6235, 0.044715
        %v6300 = vmul.f32 %v6236, 0.044715
        %v6301 = vmul.f32 %v6237, 0.044715
        %v6302 = vmul.f32 %v6238, 0.044715
        %v6303 = vmul.f32 %v6239, 0.044715
        %v6304 = vmul.f32 %v6240, 0.044715
        %v6305 = vmul.f32 %v6241, 0.044715
        %v6306 = vmul.f32 %v6242, 0.044715
        %v6307 = vmul.f32 %v6243, 0.044715
        %v6308 = vmul.f32 %v6244, 0.044715
        %v6309 = vmul.f32 %v6245, 0.044715
        %v6310 = vadd.f32 %v5864, %v6246
        %v6311 = vadd.f32 %v5867, %v6247
        %v6312 = vadd.f32 %v5872, %v6248
        %v6313 = vadd.f32 %v5875, %v6249
        %v6314 = vadd.f32 %v5880, %v6250
        %v6315 = vadd.f32 %v5883, %v6251
        %v6316 = vadd.f32 %v5888, %v6252
        %v6317 = vadd.f32 %v5891, %v6253
        %v6318 = vadd.f32 %v5896, %v6254
        %v6319 = vadd.f32 %v5899, %v6255
        %v6320 = vadd.f32 %v5904, %v6256
        %v6321 = vadd.f32 %v5907, %v6257
        %v6322 = vadd.f32 %v5912, %v6258
        %v6323 = vadd.f32 %v5915, %v6259
        %v6324 = vadd.f32 %v5920, %v6260
        %v6325 = vadd.f32 %v5923, %v6261
        %v6326 = vadd.f32 %v5928, %v6262
        %v6327 = vadd.f32 %v5931, %v6263
        %v6328 = vadd.f32 %v5936, %v6264
        %v6329 = vadd.f32 %v5939, %v6265
        %v6330 = vadd.f32 %v5944, %v6266
        %v6331 = vadd.f32 %v5947, %v6267
        %v6332 = vadd.f32 %v5952, %v6268
        %v6333 = vadd.f32 %v5955, %v6269
        %v6334 = vadd.f32 %v5960, %v6270
        %v6335 = vadd.f32 %v5963, %v6271
        %v6336 = vadd.f32 %v5968, %v6272
        %v6337 = vadd.f32 %v5971, %v6273
        %v6338 = vadd.f32 %v5976, %v6274
        %v6339 = vadd.f32 %v5979, %v6275
        %v6340 = vadd.f32 %v5984, %v6276
        %v6341 = vadd.f32 %v5987, %v6277
        %v6342 = vadd.f32 %v5992, %v6278
        %v6343 = vadd.f32 %v5995, %v6279
        %v6344 = vadd.f32 %v6000, %v6280
        %v6345 = vadd.f32 %v6003, %v6281
        %v6346 = vadd.f32 %v6008, %v6282
        %v6347 = vadd.f32 %v6011, %v6283
        %v6348 = vadd.f32 %v6016, %v6284
        %v6349 = vadd.f32 %v6019, %v6285
        %v6350 = vadd.f32 %v6024, %v6286
        %v6351 = vadd.f32 %v6027, %v6287
        %v6352 = vadd.f32 %v6032, %v6288
        %v6353 = vadd.f32 %v6035, %v6289
        %v6354 = vadd.f32 %v6040, %v6290
        %v6355 = vadd.f32 %v6043, %v6291
        %v6356 = vadd.f32 %v6048, %v6292
        %v6357 = vadd.f32 %v6051, %v6293
        %v6358 = vadd.f32 %v6056, %v6294
        %v6359 = vadd.f32 %v6059, %v6295
        %v6360 = vadd.f32 %v6064, %v6296
        %v6361 = vadd.f32 %v6067, %v6297
        %v6362 = vadd.f32 %v6072, %v6298
        %v6363 = vadd.f32 %v6075, %v6299
        %v6364 = vadd.f32 %v6080, %v6300
        %v6365 = vadd.f32 %v6083, %v6301
        %v6366 = vadd.f32 %v6088, %v6302
        %v6367 = vadd.f32 %v6091, %v6303
        %v6368 = vadd.f32 %v6096, %v6304
        %v6369 = vadd.f32 %v6099, %v6305
        %v6370 = vadd.f32 %v6104, %v6306
        %v6371 = vadd.f32 %v6107, %v6307
        %v6372 = vadd.f32 %v6112, %v6308
        %v6373 = vadd.f32 %v6115, %v6309
        %v6374 = vmul.f32 %v6310, 0.7978846
        %v6375 = vmul.f32 %v6311, 0.7978846
        %v6376 = vmul.f32 %v6312, 0.7978846
        %v6377 = vmul.f32 %v6313, 0.7978846
        %v6378 = vmul.f32 %v6314, 0.7978846
        %v6379 = vmul.f32 %v6315, 0.7978846
        %v6380 = vmul.f32 %v6316, 0.7978846
        %v6381 = vmul.f32 %v6317, 0.7978846
        %v6382 = vmul.f32 %v6318, 0.7978846
        %v6383 = vmul.f32 %v6319, 0.7978846
        %v6384 = vmul.f32 %v6320, 0.7978846
        %v6385 = vmul.f32 %v6321, 0.7978846
        %v6386 = vmul.f32 %v6322, 0.7978846
        %v6387 = vmul.f32 %v6323, 0.7978846
        %v6388 = vmul.f32 %v6324, 0.7978846
        %v6389 = vmul.f32 %v6325, 0.7978846
        %v6390 = vmul.f32 %v6326, 0.7978846
        %v6391 = vmul.f32 %v6327, 0.7978846
        %v6392 = vmul.f32 %v6328, 0.7978846
        %v6393 = vmul.f32 %v6329, 0.7978846
        %v6394 = vmul.f32 %v6330, 0.7978846
        %v6395 = vmul.f32 %v6331, 0.7978846
        %v6396 = vmul.f32 %v6332, 0.7978846
        %v6397 = vmul.f32 %v6333, 0.7978846
        %v6398 = vmul.f32 %v6334, 0.7978846
        %v6399 = vmul.f32 %v6335, 0.7978846
        %v6400 = vmul.f32 %v6336, 0.7978846
        %v6401 = vmul.f32 %v6337, 0.7978846
        %v6402 = vmul.f32 %v6338, 0.7978846
        %v6403 = vmul.f32 %v6339, 0.7978846
        %v6404 = vmul.f32 %v6340, 0.7978846
        %v6405 = vmul.f32 %v6341, 0.7978846
        %v6406 = vmul.f32 %v6342, 0.7978846
        %v6407 = vmul.f32 %v6343, 0.7978846
        %v6408 = vmul.f32 %v6344, 0.7978846
        %v6409 = vmul.f32 %v6345, 0.7978846
        %v6410 = vmul.f32 %v6346, 0.7978846
        %v6411 = vmul.f32 %v6347, 0.7978846
        %v6412 = vmul.f32 %v6348, 0.7978846
        %v6413 = vmul.f32 %v6349, 0.7978846
        %v6414 = vmul.f32 %v6350, 0.7978846
        %v6415 = vmul.f32 %v6351, 0.7978846
        %v6416 = vmul.f32 %v6352, 0.7978846
        %v6417 = vmul.f32 %v6353, 0.7978846
        %v6418 = vmul.f32 %v6354, 0.7978846
        %v6419 = vmul.f32 %v6355, 0.7978846
        %v6420 = vmul.f32 %v6356, 0.7978846
        %v6421 = vmul.f32 %v6357, 0.7978846
        %v6422 = vmul.f32 %v6358, 0.7978846
        %v6423 = vmul.f32 %v6359, 0.7978846
        %v6424 = vmul.f32 %v6360, 0.7978846
        %v6425 = vmul.f32 %v6361, 0.7978846
        %v6426 = vmul.f32 %v6362, 0.7978846
        %v6427 = vmul.f32 %v6363, 0.7978846
        %v6428 = vmul.f32 %v6364, 0.7978846
        %v6429 = vmul.f32 %v6365, 0.7978846
        %v6430 = vmul.f32 %v6366, 0.7978846
        %v6431 = vmul.f32 %v6367, 0.7978846
        %v6432 = vmul.f32 %v6368, 0.7978846
        %v6433 = vmul.f32 %v6369, 0.7978846
        %v6434 = vmul.f32 %v6370, 0.7978846
        %v6435 = vmul.f32 %v6371, 0.7978846
        %v6436 = vmul.f32 %v6372, 0.7978846
        %v6437 = vmul.f32 %v6373, 0.7978846
        %v6438 = vtanh.pop %v6374
        %v6439 = vtanh.pop %v6375
        %v6440 = vtanh.pop %v6376
        %v6441 = vtanh.pop %v6377
        %v6442 = vtanh.pop %v6378
        %v6443 = vtanh.pop %v6379
        %v6444 = vtanh.pop %v6380
        %v6445 = vtanh.pop %v6381
        %v6446 = vtanh.pop %v6382
        %v6447 = vtanh.pop %v6383
        %v6448 = vtanh.pop %v6384
        %v6449 = vtanh.pop %v6385
        %v6450 = vtanh.pop %v6386
        %v6451 = vtanh.pop %v6387
        %v6452 = vtanh.pop %v6388
        %v6453 = vtanh.pop %v6389
        %v6454 = vtanh.pop %v6390
        %v6455 = vtanh.pop %v6391
        %v6456 = vtanh.pop %v6392
        %v6457 = vtanh.pop %v6393
        %v6458 = vtanh.pop %v6394
        %v6459 = vtanh.pop %v6395
        %v6460 = vtanh.pop %v6396
        %v6461 = vtanh.pop %v6397
        %v6462 = vtanh.pop %v6398
        %v6463 = vtanh.pop %v6399
        %v6464 = vtanh.pop %v6400
        %v6465 = vtanh.pop %v6401
        %v6466 = vtanh.pop %v6402
        %v6467 = vtanh.pop %v6403
        %v6468 = vtanh.pop %v6404
        %v6469 = vtanh.pop %v6405
        %v6470 = vtanh.pop %v6406
        %v6471 = vtanh.pop %v6407
        %v6472 = vtanh.pop %v6408
        %v6473 = vtanh.pop %v6409
        %v6474 = vtanh.pop %v6410
        %v6475 = vtanh.pop %v6411
        %v6476 = vtanh.pop %v6412
        %v6477 = vtanh.pop %v6413
        %v6478 = vtanh.pop %v6414
        %v6479 = vtanh.pop %v6415
        %v6480 = vtanh.pop %v6416
        %v6481 = vtanh.pop %v6417
        %v6482 = vtanh.pop %v6418
        %v6483 = vtanh.pop %v6419
        %v6484 = vtanh.pop %v6420
        %v6485 = vtanh.pop %v6421
        %v6486 = vtanh.pop %v6422
        %v6487 = vtanh.pop %v6423
        %v6488 = vtanh.pop %v6424
        %v6489 = vtanh.pop %v6425
        %v6490 = vtanh.pop %v6426
        %v6491 = vtanh.pop %v6427
        %v6492 = vtanh.pop %v6428
        %v6493 = vtanh.pop %v6429
        %v6494 = vtanh.pop %v6430
        %v6495 = vtanh.pop %v6431
        %v6496 = vtanh.pop %v6432
        %v6497 = vtanh.pop %v6433
        %v6498 = vtanh.pop %v6434
        %v6499 = vtanh.pop %v6435
        %v6500 = vtanh.pop %v6436
        %v6501 = vtanh.pop %v6437
        %v6502 = vadd.f32 %v6438, 1.0
        %v6503 = vadd.f32 %v6439, 1.0
        %v6504 = vadd.f32 %v6440, 1.0
        %v6505 = vadd.f32 %v6441, 1.0
        %v6506 = vadd.f32 %v6442, 1.0
        %v6507 = vadd.f32 %v6443, 1.0
        %v6508 = vadd.f32 %v6444, 1.0
        %v6509 = vadd.f32 %v6445, 1.0
        %v6510 = vadd.f32 %v6446, 1.0
        %v6511 = vadd.f32 %v6447, 1.0
        %v6512 = vadd.f32 %v6448, 1.0
        %v6513 = vadd.f32 %v6449, 1.0
        %v6514 = vadd.f32 %v6450, 1.0
        %v6515 = vadd.f32 %v6451, 1.0
        %v6516 = vadd.f32 %v6452, 1.0
        %v6517 = vadd.f32 %v6453, 1.0
        %v6518 = vadd.f32 %v6454, 1.0
        %v6519 = vadd.f32 %v6455, 1.0
        %v6520 = vadd.f32 %v6456, 1.0
        %v6521 = vadd.f32 %v6457, 1.0
        %v6522 = vadd.f32 %v6458, 1.0
        %v6523 = vadd.f32 %v6459, 1.0
        %v6524 = vadd.f32 %v6460, 1.0
        %v6525 = vadd.f32 %v6461, 1.0
        %v6526 = vadd.f32 %v6462, 1.0
        %v6527 = vadd.f32 %v6463, 1.0
        %v6528 = vadd.f32 %v6464, 1.0
        %v6529 = vadd.f32 %v6465, 1.0
        %v6530 = vadd.f32 %v6466, 1.0
        %v6531 = vadd.f32 %v6467, 1.0
        %v6532 = vadd.f32 %v6468, 1.0
        %v6533 = vadd.f32 %v6469, 1.0
        %v6534 = vadd.f32 %v6470, 1.0
        %v6535 = vadd.f32 %v6471, 1.0
        %v6536 = vadd.f32 %v6472, 1.0
        %v6537 = vadd.f32 %v6473, 1.0
        %v6538 = vadd.f32 %v6474, 1.0
        %v6539 = vadd.f32 %v6475, 1.0
        %v6540 = vadd.f32 %v6476, 1.0
        %v6541 = vadd.f32 %v6477, 1.0
        %v6542 = vadd.f32 %v6478, 1.0
        %v6543 = vadd.f32 %v6479, 1.0
        %v6544 = vadd.f32 %v6480, 1.0
        %v6545 = vadd.f32 %v6481, 1.0
        %v6546 = vadd.f32 %v6482, 1.0
        %v6547 = vadd.f32 %v6483, 1.0
        %v6548 = vadd.f32 %v6484, 1.0
        %v6549 = vadd.f32 %v6485, 1.0
        %v6550 = vadd.f32 %v6486, 1.0
        %v6551 = vadd.f32 %v6487, 1.0
        %v6552 = vadd.f32 %v6488, 1.0
        %v6553 = vadd.f32 %v6489, 1.0
        %v6554 = vadd.f32 %v6490, 1.0
        %v6555 = vadd.f32 %v6491, 1.0
        %v6556 = vadd.f32 %v6492, 1.0
        %v6557 = vadd.f32 %v6493, 1.0
        %v6558 = vadd.f32 %v6494, 1.0
        %v6559 = vadd.f32 %v6495, 1.0
        %v6560 = vadd.f32 %v6496, 1.0
        %v6561 = vadd.f32 %v6497, 1.0
        %v6562 = vadd.f32 %v6498, 1.0
        %v6563 = vadd.f32 %v6499, 1.0
        %v6564 = vadd.f32 %v6500, 1.0
        %v6565 = vadd.f32 %v6501, 1.0
        %v6566 = vmul.f32 %v6502, 0.5
        %v6567 = vmul.f32 %v6503, 0.5
        %v6568 = vmul.f32 %v6504, 0.5
        %v6569 = vmul.f32 %v6505, 0.5
        %v6570 = vmul.f32 %v6506, 0.5
        %v6571 = vmul.f32 %v6507, 0.5
        %v6572 = vmul.f32 %v6508, 0.5
        %v6573 = vmul.f32 %v6509, 0.5
        %v6574 = vmul.f32 %v6510, 0.5
        %v6575 = vmul.f32 %v6511, 0.5
        %v6576 = vmul.f32 %v6512, 0.5
        %v6577 = vmul.f32 %v6513, 0.5
        %v6578 = vmul.f32 %v6514, 0.5
        %v6579 = vmul.f32 %v6515, 0.5
        %v6580 = vmul.f32 %v6516, 0.5
        %v6581 = vmul.f32 %v6517, 0.5
        %v6582 = vmul.f32 %v6518, 0.5
        %v6583 = vmul.f32 %v6519, 0.5
        %v6584 = vmul.f32 %v6520, 0.5
        %v6585 = vmul.f32 %v6521, 0.5
        %v6586 = vmul.f32 %v6522, 0.5
        %v6587 = vmul.f32 %v6523, 0.5
        %v6588 = vmul.f32 %v6524, 0.5
        %v6589 = vmul.f32 %v6525, 0.5
        %v6590 = vmul.f32 %v6526, 0.5
        %v6591 = vmul.f32 %v6527, 0.5
        %v6592 = vmul.f32 %v6528, 0.5
        %v6593 = vmul.f32 %v6529, 0.5
        %v6594 = vmul.f32 %v6530, 0.5
        %v6595 = vmul.f32 %v6531, 0.5
        %v6596 = vmul.f32 %v6532, 0.5
        %v6597 = vmul.f32 %v6533, 0.5
        %v6598 = vmul.f32 %v6534, 0.5
        %v6599 = vmul.f32 %v6535, 0.5
        %v6600 = vmul.f32 %v6536, 0.5
        %v6601 = vmul.f32 %v6537, 0.5
        %v6602 = vmul.f32 %v6538, 0.5
        %v6603 = vmul.f32 %v6539, 0.5
        %v6604 = vmul.f32 %v6540, 0.5
        %v6605 = vmul.f32 %v6541, 0.5
        %v6606 = vmul.f32 %v6542, 0.5
        %v6607 = vmul.f32 %v6543, 0.5
        %v6608 = vmul.f32 %v6544, 0.5
        %v6609 = vmul.f32 %v6545, 0.5
        %v6610 = vmul.f32 %v6546, 0.5
        %v6611 = vmul.f32 %v6547, 0.5
        %v6612 = vmul.f32 %v6548, 0.5
        %v6613 = vmul.f32 %v6549, 0.5
        %v6614 = vmul.f32 %v6550, 0.5
        %v6615 = vmul.f32 %v6551, 0.5
        %v6616 = vmul.f32 %v6552, 0.5
        %v6617 = vmul.f32 %v6553, 0.5
        %v6618 = vmul.f32 %v6554, 0.5
        %v6619 = vmul.f32 %v6555, 0.5
        %v6620 = vmul.f32 %v6556, 0.5
        %v6621 = vmul.f32 %v6557, 0.5
        %v6622 = vmul.f32 %v6558, 0.5
        %v6623 = vmul.f32 %v6559, 0.5
        %v6624 = vmul.f32 %v6560, 0.5
        %v6625 = vmul.f32 %v6561, 0.5
        %v6626 = vmul.f32 %v6562, 0.5
        %v6627 = vmul.f32 %v6563, 0.5
        %v6628 = vmul.f32 %v6564, 0.5
        %v6629 = vmul.f32 %v6565, 0.5
        %v6630 = vmul.f32 %v5864, %v6566
        %v6631 = vmul.f32 %v5867, %v6567
        %v6632 = vmul.f32 %v5872, %v6568
        %v6633 = vmul.f32 %v5875, %v6569
        %v6634 = vmul.f32 %v5880, %v6570
        %v6635 = vmul.f32 %v5883, %v6571
        %v6636 = vmul.f32 %v5888, %v6572
        %v6637 = vmul.f32 %v5891, %v6573
        %v6638 = vmul.f32 %v5896, %v6574
        %v6639 = vmul.f32 %v5899, %v6575
        %v6640 = vmul.f32 %v5904, %v6576
        %v6641 = vmul.f32 %v5907, %v6577
        %v6642 = vmul.f32 %v5912, %v6578
        %v6643 = vmul.f32 %v5915, %v6579
        %v6644 = vmul.f32 %v5920, %v6580
        %v6645 = vmul.f32 %v5923, %v6581
        %v6646 = vmul.f32 %v5928, %v6582
        %v6647 = vmul.f32 %v5931, %v6583
        %v6648 = vmul.f32 %v5936, %v6584
        %v6649 = vmul.f32 %v5939, %v6585
        %v6650 = vmul.f32 %v5944, %v6586
        %v6651 = vmul.f32 %v5947, %v6587
        %v6652 = vmul.f32 %v5952, %v6588
        %v6653 = vmul.f32 %v5955, %v6589
        %v6654 = vmul.f32 %v5960, %v6590
        %v6655 = vmul.f32 %v5963, %v6591
        %v6656 = vmul.f32 %v5968, %v6592
        %v6657 = vmul.f32 %v5971, %v6593
        %v6658 = vmul.f32 %v5976, %v6594
        %v6659 = vmul.f32 %v5979, %v6595
        %v6660 = vmul.f32 %v5984, %v6596
        %v6661 = vmul.f32 %v5987, %v6597
        %v6662 = vmul.f32 %v5992, %v6598
        %v6663 = vmul.f32 %v5995, %v6599
        %v6664 = vmul.f32 %v6000, %v6600
        %v6665 = vmul.f32 %v6003, %v6601
        %v6666 = vmul.f32 %v6008, %v6602
        %v6667 = vmul.f32 %v6011, %v6603
        %v6668 = vmul.f32 %v6016, %v6604
        %v6669 = vmul.f32 %v6019, %v6605
        %v6670 = vmul.f32 %v6024, %v6606
        %v6671 = vmul.f32 %v6027, %v6607
        %v6672 = vmul.f32 %v6032, %v6608
        %v6673 = vmul.f32 %v6035, %v6609
        %v6674 = vmul.f32 %v6040, %v6610
        %v6675 = vmul.f32 %v6043, %v6611
        %v6676 = vmul.f32 %v6048, %v6612
        %v6677 = vmul.f32 %v6051, %v6613
        %v6678 = vmul.f32 %v6056, %v6614
        %v6679 = vmul.f32 %v6059, %v6615
        %v6680 = vmul.f32 %v6064, %v6616
        %v6681 = vmul.f32 %v6067, %v6617
        %v6682 = vmul.f32 %v6072, %v6618
        %v6683 = vmul.f32 %v6075, %v6619
        %v6684 = vmul.f32 %v6080, %v6620
        %v6685 = vmul.f32 %v6083, %v6621
        %v6686 = vmul.f32 %v6088, %v6622
        %v6687 = vmul.f32 %v6091, %v6623
        %v6688 = vmul.f32 %v6096, %v6624
        %v6689 = vmul.f32 %v6099, %v6625
        %v6690 = vmul.f32 %v6104, %v6626
        %v6691 = vmul.f32 %v6107, %v6627
        %v6692 = vmul.f32 %v6112, %v6628
        %v6693 = vmul.f32 %v6115, %v6629
        %v6694 = vpack.c.bf16 %v6631, %v6630
        %v6695 = vpack.c.bf16 %v6633, %v6632
        %v6696 = vpack.c.bf16 %v6635, %v6634
        %v6697 = vpack.c.bf16 %v6637, %v6636
        %v6698 = vpack.c.bf16 %v6639, %v6638
        %v6699 = vpack.c.bf16 %v6641, %v6640
        %v6700 = vpack.c.bf16 %v6643, %v6642
        %v6701 = vpack.c.bf16 %v6645, %v6644
        %v6702 = vpack.c.bf16 %v6647, %v6646
        %v6703 = vpack.c.bf16 %v6649, %v6648
        %v6704 = vpack.c.bf16 %v6651, %v6650
        %v6705 = vpack.c.bf16 %v6653, %v6652
        %v6706 = vpack.c.bf16 %v6655, %v6654
        %v6707 = vpack.c.bf16 %v6657, %v6656
        %v6708 = vpack.c.bf16 %v6659, %v6658
        %v6709 = vpack.c.bf16 %v6661, %v6660
        %v6710 = vpack.c.bf16 %v6663, %v6662
        %v6711 = vpack.c.bf16 %v6665, %v6664
        %v6712 = vpack.c.bf16 %v6667, %v6666
        %v6713 = vpack.c.bf16 %v6669, %v6668
        %v6714 = vpack.c.bf16 %v6671, %v6670
        %v6715 = vpack.c.bf16 %v6673, %v6672
        %v6716 = vpack.c.bf16 %v6675, %v6674
        %v6717 = vpack.c.bf16 %v6677, %v6676
        %v6718 = vpack.c.bf16 %v6679, %v6678
        %v6719 = vpack.c.bf16 %v6681, %v6680
        %v6720 = vpack.c.bf16 %v6683, %v6682
        %v6721 = vpack.c.bf16 %v6685, %v6684
        %v6722 = vpack.c.bf16 %v6687, %v6686
        %v6723 = vpack.c.bf16 %v6689, %v6688
        %v6724 = vpack.c.bf16 %v6691, %v6690
        %v6725 = vpack.c.bf16 %v6693, %v6692
        %v6726 = vld [vmem:[%s10] sm:$0xf]
        %v6727 = vld [vmem:[%s10 + $0x4] sm:$0xf]
        %v6728 = vld [vmem:[%s10 + $0x8] sm:$0xf]
        %v6729 = vld [vmem:[%s10 + $0xc] sm:$0xf]
        %v6730 = vld [vmem:[%s10 + $0x10] sm:$0xf]
        %v6731 = vld [vmem:[%s10 + $0x14] sm:$0xf]
        %v6732 = vld [vmem:[%s10 + $0x18] sm:$0xf]
        %v6733 = vld [vmem:[%s10 + $0x1c] sm:$0xf]
        %v6734 = vld [vmem:[%s10 + $0x20] sm:$0xf]
        %v6735 = vld [vmem:[%s10 + $0x24] sm:$0xf]
        %v6736 = vld [vmem:[%s10 + $0x28] sm:$0xf]
        %v6737 = vld [vmem:[%s10 + $0x2c] sm:$0xf]
        %v6738 = vld [vmem:[%s10 + $0x30] sm:$0xf]
        %v6739 = vld [vmem:[%s10 + $0x34] sm:$0xf]
        %v6740 = vld [vmem:[%s10 + $0x38] sm:$0xf]
        %v6741 = vld [vmem:[%s10 + $0x3c] sm:$0xf]
        %v6742 = vld [vmem:[%s11] sm:$0x1]
        %v6744 = vlaneseq
        %v6745 = vshrl.u32 %v6744, 7
        %v6746 = vsub.s32 0, %v6745
        %v6747 = vrot.slane %v6742, %v6746
        %v6765 = vunpack.c.l.b16 %v6726
        %v6766 = vunpack.c.l.b16 %v6727
        %v6767 = vunpack.c.l.b16 %v6728
        %v6768 = vunpack.c.l.b16 %v6729
        %v6769 = vunpack.c.l.b16 %v6730
        %v6770 = vunpack.c.l.b16 %v6731
        %v6771 = vunpack.c.l.b16 %v6732
        %v6772 = vunpack.c.l.b16 %v6733
        %v6773 = vunpack.c.l.b16 %v6734
        %v6774 = vunpack.c.l.b16 %v6735
        %v6775 = vunpack.c.l.b16 %v6736
        %v6776 = vunpack.c.l.b16 %v6737
        %v6777 = vunpack.c.l.b16 %v6738
        %v6778 = vunpack.c.l.b16 %v6739
        %v6779 = vunpack.c.l.b16 %v6740
        %v6780 = vunpack.c.l.b16 %v6741
        %v6781 = vpack.c.b16 %v6766, %v6765
        %v6782 = vpack.c.b16 %v6768, %v6767
        %v6783 = vpack.c.b16 %v6770, %v6769
        %v6784 = vpack.c.b16 %v6772, %v6771
        %v6785 = vpack.c.b16 %v6774, %v6773
        %v6786 = vpack.c.b16 %v6776, %v6775
        %v6787 = vpack.c.b16 %v6778, %v6777
        %v6788 = vpack.c.b16 %v6780, %v6779
        %6797 = vmatprep.subr.bf16.mxu0 0
        %6798 = vmatpush1.bf16.msra.mxu0 %v6781
        %6799 = vmatprep.subr.bf16.mxu0 0
        %6800 = vmatpush1.bf16.msra.mxu0 %v6782
        %6801 = vmatprep.subr.bf16.mxu0 0
        %6802 = vmatpush1.bf16.msra.mxu0 %v6783
        %6803 = vmatprep.subr.bf16.mxu0 0
        %6804 = vmatpush1.bf16.msra.mxu0 %v6784
        %6805 = vmatprep.subr.bf16.mxu0 0
        %6806 = vmatpush1.bf16.msra.mxu0 %v6785
        %6807 = vmatprep.subr.bf16.mxu0 0
        %6808 = vmatpush1.bf16.msra.mxu0 %v6786
        %6809 = vmatprep.subr.bf16.mxu0 0
        %6810 = vmatpush1.bf16.msra.mxu0 %v6787
        %6811 = vmatprep.subr.bf16.mxu0 0
        %6812 = vmatpush1.bf16.msra.mxu0 %v6788
        %6813 = vmatprep.subr.bf16.mxu0 0
        %6814 = vmatpush1.bf16.msra.mxu0 0
        %6815 = vmatprep.subr.bf16.mxu0 0
        %6816 = vmatpush1.bf16.msra.mxu0 0
        %6817 = vmatprep.subr.bf16.mxu0 0
        %6818 = vmatpush1.bf16.msra.mxu0 0
        %6819 = vmatprep.subr.bf16.mxu0 0
        %6820 = vmatpush1.bf16.msra.mxu0 0
        %6821 = vmatprep.subr.bf16.mxu0 0
        %6822 = vmatpush1.bf16.msra.mxu0 0
        %6823 = vmatprep.subr.bf16.mxu0 0
        %6824 = vmatpush1.bf16.msra.mxu0 0
        %6825 = vmatprep.subr.bf16.mxu0 0
        %6826 = vmatpush1.bf16.msra.mxu0 0
        %6827 = vmatprep.subr.bf16.mxu0 0
        %6828 = vmatpush1.bf16.msra.mxu0 0
        %6829 = vmatprep.mubr.bf16.mxu0 0
        %6830 = vmatmul.mubr.bf16.gmra.mrb[0].mxu0 %v6694
        %v6831 = vpop.f32.mrb[0].mxu0
        %v6832 = vadd.f32 %v6747, %v6831
        %v6833 = vpop.f32.mrb[0].mxu0
        %v6834 = vpop.f32.mrb[0].mxu0
        %v6835 = vadd.f32 %v6747, %v6834
        %v6836 = vpop.f32.mrb[0].mxu0
        %6837 = vmatprep.mubr.bf16.mxu0 0
        %6838 = vmatmul.mubr.bf16.gmra.mrb[0].mxu0 %v6695
        %v6839 = vpop.f32.mrb[0].mxu0
        %v6840 = vadd.f32 %v6747, %v6839
        %v6841 = vpop.f32.mrb[0].mxu0
        %v6842 = vpop.f32.mrb[0].mxu0
        %v6843 = vadd.f32 %v6747, %v6842
        %v6844 = vpop.f32.mrb[0].mxu0
        %6845 = vmatprep.mubr.bf16.mxu0 0
        %6846 = vmatmul.mubr.bf16.gmra.mrb[0].mxu0 %v6696
        %v6847 = vpop.f32.mrb[0].mxu0
        %v6848 = vadd.f32 %v6747, %v6847
        %v6849 = vpop.f32.mrb[0].mxu0
        %v6850 = vpop.f32.mrb[0].mxu0
        %v6851 = vadd.f32 %v6747, %v6850
        %v6852 = vpop.f32.mrb[0].mxu0
        %6853 = vmatprep.mubr.bf16.mxu0 0
        %6854 = vmatmul.mubr.bf16.gmra.mrb[0].mxu0 %v6697
        %v6855 = vpop.f32.mrb[0].mxu0
        %v6856 = vadd.f32 %v6747, %v6855
        %v6857 = vpop.f32.mrb[0].mxu0
        %v6858 = vpop.f32.mrb[0].mxu0
        %v6859 = vadd.f32 %v6747, %v6858
        %v6860 = vpop.f32.mrb[0].mxu0
        %6861 = vmatprep.mubr.bf16.mxu0 0
        %6862 = vmatmul.mubr.bf16.gmra.mrb[0].mxu0 %v6698
        %v6863 = vpop.f32.mrb[0].mxu0
        %v6864 = vadd.f32 %v6747, %v6863
        %v6865 = vpop.f32.mrb[0].mxu0
        %v6866 = vpop.f32.mrb[0].mxu0
        %v6867 = vadd.f32 %v6747, %v6866
        %v6868 = vpop.f32.mrb[0].mxu0
        %6869 = vmatprep.mubr.bf16.mxu0 0
        %6870 = vmatmul.mubr.bf16.gmra.mrb[0].mxu0 %v6699
        %v6871 = vpop.f32.mrb[0].mxu0
        %v6872 = vadd.f32 %v6747, %v6871
        %v6873 = vpop.f32.mrb[0].mxu0
        %v6874 = vpop.f32.mrb[0].mxu0
        %v6875 = vadd.f32 %v6747, %v6874
        %v6876 = vpop.f32.mrb[0].mxu0
        %6877 = vmatprep.mubr.bf16.mxu0 0
        %6878 = vmatmul.mubr.bf16.gmra.mrb[0].mxu0 %v6700
        %v6879 = vpop.f32.mrb[0].mxu0
        %v6880 = vadd.f32 %v6747, %v6879
        %v6881 = vpop.f32.mrb[0].mxu0
        %v6882 = vpop.f32.mrb[0].mxu0
        %v6883 = vadd.f32 %v6747, %v6882
        %v6884 = vpop.f32.mrb[0].mxu0
        %6885 = vmatprep.mubr.bf16.mxu0 0
        %6886 = vmatmul.mubr.bf16.gmra.mrb[0].mxu0 %v6701
        %v6887 = vpop.f32.mrb[0].mxu0
        %v6888 = vadd.f32 %v6747, %v6887
        %v6889 = vpop.f32.mrb[0].mxu0
        %v6890 = vpop.f32.mrb[0].mxu0
        %v6891 = vadd.f32 %v6747, %v6890
        %v6892 = vpop.f32.mrb[0].mxu0
        %6893 = vmatprep.mubr.bf16.mxu0 0
        %6894 = vmatmul.mubr.bf16.gmra.mrb[0].mxu0 %v6702
        %v6895 = vpop.f32.mrb[0].mxu0
        %v6896 = vadd.f32 %v6747, %v6895
        %v6897 = vpop.f32.mrb[0].mxu0
        %v6898 = vpop.f32.mrb[0].mxu0
        %v6899 = vadd.f32 %v6747, %v6898
        %v6900 = vpop.f32.mrb[0].mxu0
        %6901 = vmatprep.mubr.bf16.mxu0 0
        %6902 = vmatmul.mubr.bf16.gmra.mrb[0].mxu0 %v6703
        %v6903 = vpop.f32.mrb[0].mxu0
        %v6904 = vadd.f32 %v6747, %v6903
        %v6905 = vpop.f32.mrb[0].mxu0
        %v6906 = vpop.f32.mrb[0].mxu0
        %v6907 = vadd.f32 %v6747, %v6906
        %v6908 = vpop.f32.mrb[0].mxu0
        %6909 = vmatprep.mubr.bf16.mxu0 0
        %6910 = vmatmul.mubr.bf16.gmra.mrb[0].mxu0 %v6704
        %v6911 = vpop.f32.mrb[0].mxu0
        %v6912 = vadd.f32 %v6747, %v6911
        %v6913 = vpop.f32.mrb[0].mxu0
        %v6914 = vpop.f32.mrb[0].mxu0
        %v6915 = vadd.f32 %v6747, %v6914
        %v6916 = vpop.f32.mrb[0].mxu0
        %6917 = vmatprep.mubr.bf16.mxu0 0
        %6918 = vmatmul.mubr.bf16.gmra.mrb[0].mxu0 %v6705
        %v6919 = vpop.f32.mrb[0].mxu0
        %v6920 = vadd.f32 %v6747, %v6919
        %v6921 = vpop.f32.mrb[0].mxu0
        %v6922 = vpop.f32.mrb[0].mxu0
        %v6923 = vadd.f32 %v6747, %v6922
        %v6924 = vpop.f32.mrb[0].mxu0
        %6925 = vmatprep.mubr.bf16.mxu0 0
        %6926 = vmatmul.mubr.bf16.gmra.mrb[0].mxu0 %v6706
        %v6927 = vpop.f32.mrb[0].mxu0
        %v6928 = vadd.f32 %v6747, %v6927
        %v6929 = vpop.f32.mrb[0].mxu0
        %v6930 = vpop.f32.mrb[0].mxu0
        %v6931 = vadd.f32 %v6747, %v6930
        %v6932 = vpop.f32.mrb[0].mxu0
        %6933 = vmatprep.mubr.bf16.mxu0 0
        %6934 = vmatmul.mubr.bf16.gmra.mrb[0].mxu0 %v6707
        %v6935 = vpop.f32.mrb[0].mxu0
        %v6936 = vadd.f32 %v6747, %v6935
        %v6937 = vpop.f32.mrb[0].mxu0
        %v6938 = vpop.f32.mrb[0].mxu0
        %v6939 = vadd.f32 %v6747, %v6938
        %v6940 = vpop.f32.mrb[0].mxu0
        %6941 = vmatprep.mubr.bf16.mxu0 0
        %6942 = vmatmul.mubr.bf16.gmra.mrb[0].mxu0 %v6708
        %v6943 = vpop.f32.mrb[0].mxu0
        %v6944 = vadd.f32 %v6747, %v6943
        %v6945 = vpop.f32.mrb[0].mxu0
        %v6946 = vpop.f32.mrb[0].mxu0
        %v6947 = vadd.f32 %v6747, %v6946
        %v6948 = vpop.f32.mrb[0].mxu0
        %6949 = vmatprep.mubr.bf16.mxu0 0
        %6950 = vmatmul.mubr.bf16.gmra.mrb[0].mxu0 %v6709
        %v6951 = vpop.f32.mrb[0].mxu0
        %v6952 = vadd.f32 %v6747, %v6951
        %v6953 = vpop.f32.mrb[0].mxu0
        %v6954 = vpop.f32.mrb[0].mxu0
        %v6955 = vadd.f32 %v6747, %v6954
        %v6956 = vpop.f32.mrb[0].mxu0
        %6957 = vmatprep.mubr.bf16.mxu0 0
        %6958 = vmatmul.mubr.bf16.gmra.mrb[0].mxu0 %v6710
        %v6959 = vpop.f32.mrb[0].mxu0
        %v6960 = vadd.f32 %v6747, %v6959
        %v6961 = vpop.f32.mrb[0].mxu0
        %v6962 = vpop.f32.mrb[0].mxu0
        %v6963 = vadd.f32 %v6747, %v6962
        %v6964 = vpop.f32.mrb[0].mxu0
        %6965 = vmatprep.mubr.bf16.mxu0 0
        %6966 = vmatmul.mubr.bf16.gmra.mrb[0].mxu0 %v6711
        %v6967 = vpop.f32.mrb[0].mxu0
        %v6968 = vadd.f32 %v6747, %v6967
        %v6969 = vpop.f32.mrb[0].mxu0
        %v6970 = vpop.f32.mrb[0].mxu0
        %v6971 = vadd.f32 %v6747, %v6970
        %v6972 = vpop.f32.mrb[0].mxu0
        %6973 = vmatprep.mubr.bf16.mxu0 0
        %6974 = vmatmul.mubr.bf16.gmra.mrb[0].mxu0 %v6712
        %v6975 = vpop.f32.mrb[0].mxu0
        %v6976 = vadd.f32 %v6747, %v6975
        %v6977 = vpop.f32.mrb[0].mxu0
        %v6978 = vpop.f32.mrb[0].mxu0
        %v6979 = vadd.f32 %v6747, %v6978
        %v6980 = vpop.f32.mrb[0].mxu0
        %6981 = vmatprep.mubr.bf16.mxu0 0
        %6982 = vmatmul.mubr.bf16.gmra.mrb[0].mxu0 %v6713
        %v6983 = vpop.f32.mrb[0].mxu0
        %v6984 = vadd.f32 %v6747, %v6983
        %v6985 = vpop.f32.mrb[0].mxu0
        %v6986 = vpop.f32.mrb[0].mxu0
        %v6987 = vadd.f32 %v6747, %v6986
        %v6988 = vpop.f32.mrb[0].mxu0
        %6989 = vmatprep.mubr.bf16.mxu0 0
        %6990 = vmatmul.mubr.bf16.gmra.mrb[0].mxu0 %v6714
        %v6991 = vpop.f32.mrb[0].mxu0
        %v6992 = vadd.f32 %v6747, %v6991
        %v6993 = vpop.f32.mrb[0].mxu0
        %v6994 = vpop.f32.mrb[0].mxu0
        %v6995 = vadd.f32 %v6747, %v6994
        %v6996 = vpop.f32.mrb[0].mxu0
        %6997 = vmatprep.mubr.bf16.mxu0 0
        %6998 = vmatmul.mubr.bf16.gmra.mrb[0].mxu0 %v6715
        %v6999 = vpop.f32.mrb[0].mxu0
        %v7000 = vadd.f32 %v6747, %v6999
        %v7001 = vpop.f32.mrb[0].mxu0
        %v7002 = vpop.f32.mrb[0].mxu0
        %v7003 = vadd.f32 %v6747, %v7002
        %v7004 = vpop.f32.mrb[0].mxu0
        %7005 = vmatprep.mubr.bf16.mxu0 0
        %7006 = vmatmul.mubr.bf16.gmra.mrb[0].mxu0 %v6716
        %v7007 = vpop.f32.mrb[0].mxu0
        %v7008 = vadd.f32 %v6747, %v7007
        %v7009 = vpop.f32.mrb[0].mxu0
        %v7010 = vpop.f32.mrb[0].mxu0
        %v7011 = vadd.f32 %v6747, %v7010
        %v7012 = vpop.f32.mrb[0].mxu0
        %7013 = vmatprep.mubr.bf16.mxu0 0
        %7014 = vmatmul.mubr.bf16.gmra.mrb[0].mxu0 %v6717
        %v7015 = vpop.f32.mrb[0].mxu0
        %v7016 = vadd.f32 %v6747, %v7015
        %v7017 = vpop.f32.mrb[0].mxu0
        %v7018 = vpop.f32.mrb[0].mxu0
        %v7019 = vadd.f32 %v6747, %v7018
        %v7020 = vpop.f32.mrb[0].mxu0
        %7021 = vmatprep.mubr.bf16.mxu0 0
        %7022 = vmatmul.mubr.bf16.gmra.mrb[0].mxu0 %v6718
        %v7023 = vpop.f32.mrb[0].mxu0
        %v7024 = vadd.f32 %v6747, %v7023
        %v7025 = vpop.f32.mrb[0].mxu0
        %v7026 = vpop.f32.mrb[0].mxu0
        %v7027 = vadd.f32 %v6747, %v7026
        %v7028 = vpop.f32.mrb[0].mxu0
        %7029 = vmatprep.mubr.bf16.mxu0 0
        %7030 = vmatmul.mubr.bf16.gmra.mrb[0].mxu0 %v6719
        %v7031 = vpop.f32.mrb[0].mxu0
        %v7032 = vadd.f32 %v6747, %v7031
        %v7033 = vpop.f32.mrb[0].mxu0
        %v7034 = vpop.f32.mrb[0].mxu0
        %v7035 = vadd.f32 %v6747, %v7034
        %v7036 = vpop.f32.mrb[0].mxu0
        %7037 = vmatprep.mubr.bf16.mxu0 0
        %7038 = vmatmul.mubr.bf16.gmra.mrb[0].mxu0 %v6720
        %v7039 = vpop.f32.mrb[0].mxu0
        %v7040 = vadd.f32 %v6747, %v7039
        %v7041 = vpop.f32.mrb[0].mxu0
        %v7042 = vpop.f32.mrb[0].mxu0
        %v7043 = vadd.f32 %v6747, %v7042
        %v7044 = vpop.f32.mrb[0].mxu0
        %7045 = vmatprep.mubr.bf16.mxu0 0
        %7046 = vmatmul.mubr.bf16.gmra.mrb[0].mxu0 %v6721
        %v7047 = vpop.f32.mrb[0].mxu0
        %v7048 = vadd.f32 %v6747, %v7047
        %v7049 = vpop.f32.mrb[0].mxu0
        %v7050 = vpop.f32.mrb[0].mxu0
        %v7051 = vadd.f32 %v6747, %v7050
        %v7052 = vpop.f32.mrb[0].mxu0
        %7053 = vmatprep.mubr.bf16.mxu0 0
        %7054 = vmatmul.mubr.bf16.gmra.mrb[0].mxu0 %v6722
        %v7055 = vpop.f32.mrb[0].mxu0
        %v7056 = vadd.f32 %v6747, %v7055
        %v7057 = vpop.f32.mrb[0].mxu0
        %v7058 = vpop.f32.mrb[0].mxu0
        %v7059 = vadd.f32 %v6747, %v7058
        %v7060 = vpop.f32.mrb[0].mxu0
        %7061 = vmatprep.mubr.bf16.mxu0 0
        %7062 = vmatmul.mubr.bf16.gmra.mrb[0].mxu0 %v6723
        %v7063 = vpop.f32.mrb[0].mxu0
        %v7064 = vadd.f32 %v6747, %v7063
        %v7065 = vpop.f32.mrb[0].mxu0
        %v7066 = vpop.f32.mrb[0].mxu0
        %v7067 = vadd.f32 %v6747, %v7066
        %v7068 = vpop.f32.mrb[0].mxu0
        %7069 = vmatprep.mubr.bf16.mxu0 0
        %7070 = vmatmul.mubr.bf16.gmra.mrb[0].mxu0 %v6724
        %v7071 = vpop.f32.mrb[0].mxu0
        %v7072 = vadd.f32 %v6747, %v7071
        %v7073 = vpop.f32.mrb[0].mxu0
        %v7074 = vpop.f32.mrb[0].mxu0
        %v7075 = vadd.f32 %v6747, %v7074
        %v7076 = vpop.f32.mrb[0].mxu0
        %7077 = vmatprep.mubr.bf16.mxu0 0
        %7078 = vmatmul.mubr.bf16.gmra.mrb[0].mxu0 %v6725
        %v7079 = vpop.f32.mrb[0].mxu0
        %v7080 = vadd.f32 %v6747, %v7079
        %v7081 = vpop.f32.mrb[0].mxu0
        %v7082 = vpop.f32.mrb[0].mxu0
        %v7083 = vadd.f32 %v6747, %v7082
        %v7084 = vpop.f32.mrb[0].mxu0
        %7085 = vdwg.mxu0
        %v7086 = vmul.f32 %v6832, %v6832
        %v7087 = vmul.f32 %v6835, %v6835
        %v7088 = vmul.f32 %v6840, %v6840
        %v7089 = vmul.f32 %v6843, %v6843
        %v7090 = vmul.f32 %v6848, %v6848
        %v7091 = vmul.f32 %v6851, %v6851
        %v7092 = vmul.f32 %v6856, %v6856
        %v7093 = vmul.f32 %v6859, %v6859
        %v7094 = vmul.f32 %v6864, %v6864
        %v7095 = vmul.f32 %v6867, %v6867
        %v7096 = vmul.f32 %v6872, %v6872
        %v7097 = vmul.f32 %v6875, %v6875
        %v7098 = vmul.f32 %v6880, %v6880
        %v7099 = vmul.f32 %v6883, %v6883
        %v7100 = vmul.f32 %v6888, %v6888
        %v7101 = vmul.f32 %v6891, %v6891
        %v7102 = vmul.f32 %v6896, %v6896
        %v7103 = vmul.f32 %v6899, %v6899
        %v7104 = vmul.f32 %v6904, %v6904
        %v7105 = vmul.f32 %v6907, %v6907
        %v7106 = vmul.f32 %v6912, %v6912
        %v7107 = vmul.f32 %v6915, %v6915
        %v7108 = vmul.f32 %v6920, %v6920
        %v7109 = vmul.f32 %v6923, %v6923
        %v7110 = vmul.f32 %v6928, %v6928
        %v7111 = vmul.f32 %v6931, %v6931
        %v7112 = vmul.f32 %v6936, %v6936
        %v7113 = vmul.f32 %v6939, %v6939
        %v7114 = vmul.f32 %v6944, %v6944
        %v7115 = vmul.f32 %v6947, %v6947
        %v7116 = vmul.f32 %v6952, %v6952
        %v7117 = vmul.f32 %v6955, %v6955
        %v7118 = vmul.f32 %v6960, %v6960
        %v7119 = vmul.f32 %v6963, %v6963
        %v7120 = vmul.f32 %v6968, %v6968
        %v7121 = vmul.f32 %v6971, %v6971
        %v7122 = vmul.f32 %v6976, %v6976
        %v7123 = vmul.f32 %v6979, %v6979
        %v7124 = vmul.f32 %v6984, %v6984
        %v7125 = vmul.f32 %v6987, %v6987
        %v7126 = vmul.f32 %v6992, %v6992
        %v7127 = vmul.f32 %v6995, %v6995
        %v7128 = vmul.f32 %v7000, %v7000
        %v7129 = vmul.f32 %v7003, %v7003
        %v7130 = vmul.f32 %v7008, %v7008
        %v7131 = vmul.f32 %v7011, %v7011
        %v7132 = vmul.f32 %v7016, %v7016
        %v7133 = vmul.f32 %v7019, %v7019
        %v7134 = vmul.f32 %v7024, %v7024
        %v7135 = vmul.f32 %v7027, %v7027
        %v7136 = vmul.f32 %v7032, %v7032
        %v7137 = vmul.f32 %v7035, %v7035
        %v7138 = vmul.f32 %v7040, %v7040
        %v7139 = vmul.f32 %v7043, %v7043
        %v7140 = vmul.f32 %v7048, %v7048
        %v7141 = vmul.f32 %v7051, %v7051
        %v7142 = vmul.f32 %v7056, %v7056
        %v7143 = vmul.f32 %v7059, %v7059
        %v7144 = vmul.f32 %v7064, %v7064
        %v7145 = vmul.f32 %v7067, %v7067
        %v7146 = vmul.f32 %v7072, %v7072
        %v7147 = vmul.f32 %v7075, %v7075
        %v7148 = vmul.f32 %v7080, %v7080
        %v7149 = vmul.f32 %v7083, %v7083
        %v7150 = vmul.f32 %v6832, %v7086
        %v7151 = vmul.f32 %v6835, %v7087
        %v7152 = vmul.f32 %v6840, %v7088
        %v7153 = vmul.f32 %v6843, %v7089
        %v7154 = vmul.f32 %v6848, %v7090
        %v7155 = vmul.f32 %v6851, %v7091
        %v7156 = vmul.f32 %v6856, %v7092
        %v7157 = vmul.f32 %v6859, %v7093
        %v7158 = vmul.f32 %v6864, %v7094
        %v7159 = vmul.f32 %v6867, %v7095
        %v7160 = vmul.f32 %v6872, %v7096
        %v7161 = vmul.f32 %v6875, %v7097
        %v7162 = vmul.f32 %v6880, %v7098
        %v7163 = vmul.f32 %v6883, %v7099
        %v7164 = vmul.f32 %v6888, %v7100
        %v7165 = vmul.f32 %v6891, %v7101
        %v7166 = vmul.f32 %v6896, %v7102
        %v7167 = vmul.f32 %v6899, %v7103
        %v7168 = vmul.f32 %v6904, %v7104
        %v7169 = vmul.f32 %v6907, %v7105
        %v7170 = vmul.f32 %v6912, %v7106
        %v7171 = vmul.f32 %v6915, %v7107
        %v7172 = vmul.f32 %v6920, %v7108
        %v7173 = vmul.f32 %v6923, %v7109
        %v7174 = vmul.f32 %v6928, %v7110
        %v7175 = vmul.f32 %v6931, %v7111
        %v7176 = vmul.f32 %v6936, %v7112
        %v7177 = vmul.f32 %v6939, %v7113
        %v7178 = vmul.f32 %v6944, %v7114
        %v7179 = vmul.f32 %v6947, %v7115
        %v7180 = vmul.f32 %v6952, %v7116
        %v7181 = vmul.f32 %v6955, %v7117
        %v7182 = vmul.f32 %v6960, %v7118
        %v7183 = vmul.f32 %v6963, %v7119
        %v7184 = vmul.f32 %v6968, %v7120
        %v7185 = vmul.f32 %v6971, %v7121
        %v7186 = vmul.f32 %v6976, %v7122
        %v7187 = vmul.f32 %v6979, %v7123
        %v7188 = vmul.f32 %v6984, %v7124
        %v7189 = vmul.f32 %v6987, %v7125
        %v7190 = vmul.f32 %v6992, %v7126
        %v7191 = vmul.f32 %v6995, %v7127
        %v7192 = vmul.f32 %v7000, %v7128
        %v7193 = vmul.f32 %v7003, %v7129
        %v7194 = vmul.f32 %v7008, %v7130
        %v7195 = vmul.f32 %v7011, %v7131
        %v7196 = vmul.f32 %v7016, %v7132
        %v7197 = vmul.f32 %v7019, %v7133
        %v7198 = vmul.f32 %v7024, %v7134
        %v7199 = vmul.f32 %v7027, %v7135
        %v7200 = vmul.f32 %v7032, %v7136
        %v7201 = vmul.f32 %v7035, %v7137
        %v7202 = vmul.f32 %v7040, %v7138
        %v7203 = vmul.f32 %v7043, %v7139
        %v7204 = vmul.f32 %v7048, %v7140
        %v7205 = vmul.f32 %v7051, %v7141
        %v7206 = vmul.f32 %v7056, %v7142
        %v7207 = vmul.f32 %v7059, %v7143
        %v7208 = vmul.f32 %v7064, %v7144
        %v7209 = vmul.f32 %v7067, %v7145
        %v7210 = vmul.f32 %v7072, %v7146
        %v7211 = vmul.f32 %v7075, %v7147
        %v7212 = vmul.f32 %v7080, %v7148
        %v7213 = vmul.f32 %v7083, %v7149
        %v7214 = vmul.f32 %v7150, 0.044715
        %v7215 = vmul.f32 %v7151, 0.044715
        %v7216 = vmul.f32 %v7152, 0.044715
        %v7217 = vmul.f32 %v7153, 0.044715
        %v7218 = vmul.f32 %v7154, 0.044715
        %v7219 = vmul.f32 %v7155, 0.044715
        %v7220 = vmul.f32 %v7156, 0.044715
        %v7221 = vmul.f32 %v7157, 0.044715
        %v7222 = vmul.f32 %v7158, 0.044715
        %v7223 = vmul.f32 %v7159, 0.044715
        %v7224 = vmul.f32 %v7160, 0.044715
        %v7225 = vmul.f32 %v7161, 0.044715
        %v7226 = vmul.f32 %v7162, 0.044715
        %v7227 = vmul.f32 %v7163, 0.044715
        %v7228 = vmul.f32 %v7164, 0.044715
        %v7229 = vmul.f32 %v7165, 0.044715
        %v7230 = vmul.f32 %v7166, 0.044715
        %v7231 = vmul.f32 %v7167, 0.044715
        %v7232 = vmul.f32 %v7168, 0.044715
        %v7233 = vmul.f32 %v7169, 0.044715
        %v7234 = vmul.f32 %v7170, 0.044715
        %v7235 = vmul.f32 %v7171, 0.044715
        %v7236 = vmul.f32 %v7172, 0.044715
        %v7237 = vmul.f32 %v7173, 0.044715
        %v7238 = vmul.f32 %v7174, 0.044715
        %v7239 = vmul.f32 %v7175, 0.044715
        %v7240 = vmul.f32 %v7176, 0.044715
        %v7241 = vmul.f32 %v7177, 0.044715
        %v7242 = vmul.f32 %v7178, 0.044715
        %v7243 = vmul.f32 %v7179, 0.044715
        %v7244 = vmul.f32 %v7180, 0.044715
        %v7245 = vmul.f32 %v7181, 0.044715
        %v7246 = vmul.f32 %v7182, 0.044715
        %v7247 = vmul.f32 %v7183, 0.044715
        %v7248 = vmul.f32 %v7184, 0.044715
        %v7249 = vmul.f32 %v7185, 0.044715
        %v7250 = vmul.f32 %v7186, 0.044715
        %v7251 = vmul.f32 %v7187, 0.044715
        %v7252 = vmul.f32 %v7188, 0.044715
        %v7253 = vmul.f32 %v7189, 0.044715
        %v7254 = vmul.f32 %v7190, 0.044715
        %v7255 = vmul.f32 %v7191, 0.044715
        %v7256 = vmul.f32 %v7192, 0.044715
        %v7257 = vmul.f32 %v7193, 0.044715
        %v7258 = vmul.f32 %v7194, 0.044715
        %v7259 = vmul.f32 %v7195, 0.044715
        %v7260 = vmul.f32 %v7196, 0.044715
        %v7261 = vmul.f32 %v7197, 0.044715
        %v7262 = vmul.f32 %v7198, 0.044715
        %v7263 = vmul.f32 %v7199, 0.044715
        %v7264 = vmul.f32 %v7200, 0.044715
        %v7265 = vmul.f32 %v7201, 0.044715
        %v7266 = vmul.f32 %v7202, 0.044715
        %v7267 = vmul.f32 %v7203, 0.044715
        %v7268 = vmul.f32 %v7204, 0.044715
        %v7269 = vmul.f32 %v7205, 0.044715
        %v7270 = vmul.f32 %v7206, 0.044715
        %v7271 = vmul.f32 %v7207, 0.044715
        %v7272 = vmul.f32 %v7208, 0.044715
        %v7273 = vmul.f32 %v7209, 0.044715
        %v7274 = vmul.f32 %v7210, 0.044715
        %v7275 = vmul.f32 %v7211, 0.044715
        %v7276 = vmul.f32 %v7212, 0.044715
        %v7277 = vmul.f32 %v7213, 0.044715
        %v7278 = vadd.f32 %v6832, %v7214
        %v7279 = vadd.f32 %v6835, %v7215
        %v7280 = vadd.f32 %v6840, %v7216
        %v7281 = vadd.f32 %v6843, %v7217
        %v7282 = vadd.f32 %v6848, %v7218
        %v7283 = vadd.f32 %v6851, %v7219
        %v7284 = vadd.f32 %v6856, %v7220
        %v7285 = vadd.f32 %v6859, %v7221
        %v7286 = vadd.f32 %v6864, %v7222
        %v7287 = vadd.f32 %v6867, %v7223
        %v7288 = vadd.f32 %v6872, %v7224
        %v7289 = vadd.f32 %v6875, %v7225
        %v7290 = vadd.f32 %v6880, %v7226
        %v7291 = vadd.f32 %v6883, %v7227
        %v7292 = vadd.f32 %v6888, %v7228
        %v7293 = vadd.f32 %v6891, %v7229
        %v7294 = vadd.f32 %v6896, %v7230
        %v7295 = vadd.f32 %v6899, %v7231
        %v7296 = vadd.f32 %v6904, %v7232
        %v7297 = vadd.f32 %v6907, %v7233
        %v7298 = vadd.f32 %v6912, %v7234
        %v7299 = vadd.f32 %v6915, %v7235
        %v7300 = vadd.f32 %v6920, %v7236
        %v7301 = vadd.f32 %v6923, %v7237
        %v7302 = vadd.f32 %v6928, %v7238
        %v7303 = vadd.f32 %v6931, %v7239
        %v7304 = vadd.f32 %v6936, %v7240
        %v7305 = vadd.f32 %v6939, %v7241
        %v7306 = vadd.f32 %v6944, %v7242
        %v7307 = vadd.f32 %v6947, %v7243
        %v7308 = vadd.f32 %v6952, %v7244
        %v7309 = vadd.f32 %v6955, %v7245
        %v7310 = vadd.f32 %v6960, %v7246
        %v7311 = vadd.f32 %v6963, %v7247
        %v7312 = vadd.f32 %v6968, %v7248
        %v7313 = vadd.f32 %v6971, %v7249
        %v7314 = vadd.f32 %v6976, %v7250
        %v7315 = vadd.f32 %v6979, %v7251
        %v7316 = vadd.f32 %v6984, %v7252
        %v7317 = vadd.f32 %v6987, %v7253
        %v7318 = vadd.f32 %v6992, %v7254
        %v7319 = vadd.f32 %v6995, %v7255
        %v7320 = vadd.f32 %v7000, %v7256
        %v7321 = vadd.f32 %v7003, %v7257
        %v7322 = vadd.f32 %v7008, %v7258
        %v7323 = vadd.f32 %v7011, %v7259
        %v7324 = vadd.f32 %v7016, %v7260
        %v7325 = vadd.f32 %v7019, %v7261
        %v7326 = vadd.f32 %v7024, %v7262
        %v7327 = vadd.f32 %v7027, %v7263
        %v7328 = vadd.f32 %v7032, %v7264
        %v7329 = vadd.f32 %v7035, %v7265
        %v7330 = vadd.f32 %v7040, %v7266
        %v7331 = vadd.f32 %v7043, %v7267
        %v7332 = vadd.f32 %v7048, %v7268
        %v7333 = vadd.f32 %v7051, %v7269
        %v7334 = vadd.f32 %v7056, %v7270
        %v7335 = vadd.f32 %v7059, %v7271
        %v7336 = vadd.f32 %v7064, %v7272
        %v7337 = vadd.f32 %v7067, %v7273
        %v7338 = vadd.f32 %v7072, %v7274
        %v7339 = vadd.f32 %v7075, %v7275
        %v7340 = vadd.f32 %v7080, %v7276
        %v7341 = vadd.f32 %v7083, %v7277
        %v7342 = vmul.f32 %v7278, 0.7978846
        %v7343 = vmul.f32 %v7279, 0.7978846
        %v7344 = vmul.f32 %v7280, 0.7978846
        %v7345 = vmul.f32 %v7281, 0.7978846
        %v7346 = vmul.f32 %v7282, 0.7978846
        %v7347 = vmul.f32 %v7283, 0.7978846
        %v7348 = vmul.f32 %v7284, 0.7978846
        %v7349 = vmul.f32 %v7285, 0.7978846
        %v7350 = vmul.f32 %v7286, 0.7978846
        %v7351 = vmul.f32 %v7287, 0.7978846
        %v7352 = vmul.f32 %v7288, 0.7978846
        %v7353 = vmul.f32 %v7289, 0.7978846
        %v7354 = vmul.f32 %v7290, 0.7978846
        %v7355 = vmul.f32 %v7291, 0.7978846
        %v7356 = vmul.f32 %v7292, 0.7978846
        %v7357 = vmul.f32 %v7293, 0.7978846
        %v7358 = vmul.f32 %v7294, 0.7978846
        %v7359 = vmul.f32 %v7295, 0.7978846
        %v7360 = vmul.f32 %v7296, 0.7978846
        %v7361 = vmul.f32 %v7297, 0.7978846
        %v7362 = vmul.f32 %v7298, 0.7978846
        %v7363 = vmul.f32 %v7299, 0.7978846
        %v7364 = vmul.f32 %v7300, 0.7978846
        %v7365 = vmul.f32 %v7301, 0.7978846
        %v7366 = vmul.f32 %v7302, 0.7978846
        %v7367 = vmul.f32 %v7303, 0.7978846
        %v7368 = vmul.f32 %v7304, 0.7978846
        %v7369 = vmul.f32 %v7305, 0.7978846
        %v7370 = vmul.f32 %v7306, 0.7978846
        %v7371 = vmul.f32 %v7307, 0.7978846
        %v7372 = vmul.f32 %v7308, 0.7978846
        %v7373 = vmul.f32 %v7309, 0.7978846
        %v7374 = vmul.f32 %v7310, 0.7978846
        %v7375 = vmul.f32 %v7311, 0.7978846
        %v7376 = vmul.f32 %v7312, 0.7978846
        %v7377 = vmul.f32 %v7313, 0.7978846
        %v7378 = vmul.f32 %v7314, 0.7978846
        %v7379 = vmul.f32 %v7315, 0.7978846
        %v7380 = vmul.f32 %v7316, 0.7978846
        %v7381 = vmul.f32 %v7317, 0.7978846
        %v7382 = vmul.f32 %v7318, 0.7978846
        %v7383 = vmul.f32 %v7319, 0.7978846
        %v7384 = vmul.f32 %v7320, 0.7978846
        %v7385 = vmul.f32 %v7321, 0.7978846
        %v7386 = vmul.f32 %v7322, 0.7978846
        %v7387 = vmul.f32 %v7323, 0.7978846
        %v7388 = vmul.f32 %v7324, 0.7978846
        %v7389 = vmul.f32 %v7325, 0.7978846
        %v7390 = vmul.f32 %v7326, 0.7978846
        %v7391 = vmul.f32 %v7327, 0.7978846
        %v7392 = vmul.f32 %v7328, 0.7978846
        %v7393 = vmul.f32 %v7329, 0.7978846
        %v7394 = vmul.f32 %v7330, 0.7978846
        %v7395 = vmul.f32 %v7331, 0.7978846
        %v7396 = vmul.f32 %v7332, 0.7978846
        %v7397 = vmul.f32 %v7333, 0.7978846
        %v7398 = vmul.f32 %v7334, 0.7978846
        %v7399 = vmul.f32 %v7335, 0.7978846
        %v7400 = vmul.f32 %v7336, 0.7978846
        %v7401 = vmul.f32 %v7337, 0.7978846
        %v7402 = vmul.f32 %v7338, 0.7978846
        %v7403 = vmul.f32 %v7339, 0.7978846
        %v7404 = vmul.f32 %v7340, 0.7978846
        %v7405 = vmul.f32 %v7341, 0.7978846
        %v7406 = vtanh.pop %v7342
        %v7407 = vtanh.pop %v7343
        %v7408 = vtanh.pop %v7344
        %v7409 = vtanh.pop %v7345
        %v7410 = vtanh.pop %v7346
        %v7411 = vtanh.pop %v7347
        %v7412 = vtanh.pop %v7348
        %v7413 = vtanh.pop %v7349
        %v7414 = vtanh.pop %v7350
        %v7415 = vtanh.pop %v7351
        %v7416 = vtanh.pop %v7352
        %v7417 = vtanh.pop %v7353
        %v7418 = vtanh.pop %v7354
        %v7419 = vtanh.pop %v7355
        %v7420 = vtanh.pop %v7356
        %v7421 = vtanh.pop %v7357
        %v7422 = vtanh.pop %v7358
        %v7423 = vtanh.pop %v7359
        %v7424 = vtanh.pop %v7360
        %v7425 = vtanh.pop %v7361
        %v7426 = vtanh.pop %v7362
        %v7427 = vtanh.pop %v7363
        %v7428 = vtanh.pop %v7364
        %v7429 = vtanh.pop %v7365
        %v7430 = vtanh.pop %v7366
        %v7431 = vtanh.pop %v7367
        %v7432 = vtanh.pop %v7368
        %v7433 = vtanh.pop %v7369
        %v7434 = vtanh.pop %v7370
        %v7435 = vtanh.pop %v7371
        %v7436 = vtanh.pop %v7372
        %v7437 = vtanh.pop %v7373
        %v7438 = vtanh.pop %v7374
        %v7439 = vtanh.pop %v7375
        %v7440 = vtanh.pop %v7376
        %v7441 = vtanh.pop %v7377
        %v7442 = vtanh.pop %v7378
        %v7443 = vtanh.pop %v7379
        %v7444 = vtanh.pop %v7380
        %v7445 = vtanh.pop %v7381
        %v7446 = vtanh.pop %v7382
        %v7447 = vtanh.pop %v7383
        %v7448 = vtanh.pop %v7384
        %v7449 = vtanh.pop %v7385
        %v7450 = vtanh.pop %v7386
        %v7451 = vtanh.pop %v7387
        %v7452 = vtanh.pop %v7388
        %v7453 = vtanh.pop %v7389
        %v7454 = vtanh.pop %v7390
        %v7455 = vtanh.pop %v7391
        %v7456 = vtanh.pop %v7392
        %v7457 = vtanh.pop %v7393
        %v7458 = vtanh.pop %v7394
        %v7459 = vtanh.pop %v7395
        %v7460 = vtanh.pop %v7396
        %v7461 = vtanh.pop %v7397
        %v7462 = vtanh.pop %v7398
        %v7463 = vtanh.pop %v7399
        %v7464 = vtanh.pop %v7400
        %v7465 = vtanh.pop %v7401
        %v7466 = vtanh.pop %v7402
        %v7467 = vtanh.pop %v7403
        %v7468 = vtanh.pop %v7404
        %v7469 = vtanh.pop %v7405
        %v7470 = vadd.f32 %v7406, 1.0
        %v7471 = vadd.f32 %v7407, 1.0
        %v7472 = vadd.f32 %v7408, 1.0
        %v7473 = vadd.f32 %v7409, 1.0
        %v7474 = vadd.f32 %v7410, 1.0
        %v7475 = vadd.f32 %v7411, 1.0
        %v7476 = vadd.f32 %v7412, 1.0
        %v7477 = vadd.f32 %v7413, 1.0
        %v7478 = vadd.f32 %v7414, 1.0
        %v7479 = vadd.f32 %v7415, 1.0
        %v7480 = vadd.f32 %v7416, 1.0
        %v7481 = vadd.f32 %v7417, 1.0
        %v7482 = vadd.f32 %v7418, 1.0
        %v7483 = vadd.f32 %v7419, 1.0
        %v7484 = vadd.f32 %v7420, 1.0
        %v7485 = vadd.f32 %v7421, 1.0
        %v7486 = vadd.f32 %v7422, 1.0
        %v7487 = vadd.f32 %v7423, 1.0
        %v7488 = vadd.f32 %v7424, 1.0
        %v7489 = vadd.f32 %v7425, 1.0
        %v7490 = vadd.f32 %v7426, 1.0
        %v7491 = vadd.f32 %v7427, 1.0
        %v7492 = vadd.f32 %v7428, 1.0
        %v7493 = vadd.f32 %v7429, 1.0
        %v7494 = vadd.f32 %v7430, 1.0
        %v7495 = vadd.f32 %v7431, 1.0
        %v7496 = vadd.f32 %v7432, 1.0
        %v7497 = vadd.f32 %v7433, 1.0
        %v7498 = vadd.f32 %v7434, 1.0
        %v7499 = vadd.f32 %v7435, 1.0
        %v7500 = vadd.f32 %v7436, 1.0
        %v7501 = vadd.f32 %v7437, 1.0
        %v7502 = vadd.f32 %v7438, 1.0
        %v7503 = vadd.f32 %v7439, 1.0
        %v7504 = vadd.f32 %v7440, 1.0
        %v7505 = vadd.f32 %v7441, 1.0
        %v7506 = vadd.f32 %v7442, 1.0
        %v7507 = vadd.f32 %v7443, 1.0
        %v7508 = vadd.f32 %v7444, 1.0
        %v7509 = vadd.f32 %v7445, 1.0
        %v7510 = vadd.f32 %v7446, 1.0
        %v7511 = vadd.f32 %v7447, 1.0
        %v7512 = vadd.f32 %v7448, 1.0
        %v7513 = vadd.f32 %v7449, 1.0
        %v7514 = vadd.f32 %v7450, 1.0
        %v7515 = vadd.f32 %v7451, 1.0
        %v7516 = vadd.f32 %v7452, 1.0
        %v7517 = vadd.f32 %v7453, 1.0
        %v7518 = vadd.f32 %v7454, 1.0
        %v7519 = vadd.f32 %v7455, 1.0
        %v7520 = vadd.f32 %v7456, 1.0
        %v7521 = vadd.f32 %v7457, 1.0
        %v7522 = vadd.f32 %v7458, 1.0
        %v7523 = vadd.f32 %v7459, 1.0
        %v7524 = vadd.f32 %v7460, 1.0
        %v7525 = vadd.f32 %v7461, 1.0
        %v7526 = vadd.f32 %v7462, 1.0
        %v7527 = vadd.f32 %v7463, 1.0
        %v7528 = vadd.f32 %v7464, 1.0
        %v7529 = vadd.f32 %v7465, 1.0
        %v7530 = vadd.f32 %v7466, 1.0
        %v7531 = vadd.f32 %v7467, 1.0
        %v7532 = vadd.f32 %v7468, 1.0
        %v7533 = vadd.f32 %v7469, 1.0
        %v7534 = vmul.f32 %v7470, 0.5
        %v7535 = vmul.f32 %v7471, 0.5
        %v7536 = vmul.f32 %v7472, 0.5
        %v7537 = vmul.f32 %v7473, 0.5
        %v7538 = vmul.f32 %v7474, 0.5
        %v7539 = vmul.f32 %v7475, 0.5
        %v7540 = vmul.f32 %v7476, 0.5
        %v7541 = vmul.f32 %v7477, 0.5
        %v7542 = vmul.f32 %v7478, 0.5
        %v7543 = vmul.f32 %v7479, 0.5
        %v7544 = vmul.f32 %v7480, 0.5
        %v7545 = vmul.f32 %v7481, 0.5
        %v7546 = vmul.f32 %v7482, 0.5
        %v7547 = vmul.f32 %v7483, 0.5
        %v7548 = vmul.f32 %v7484, 0.5
        %v7549 = vmul.f32 %v7485, 0.5
        %v7550 = vmul.f32 %v7486, 0.5
        %v7551 = vmul.f32 %v7487, 0.5
        %v7552 = vmul.f32 %v7488, 0.5
        %v7553 = vmul.f32 %v7489, 0.5
        %v7554 = vmul.f32 %v7490, 0.5
        %v7555 = vmul.f32 %v7491, 0.5
        %v7556 = vmul.f32 %v7492, 0.5
        %v7557 = vmul.f32 %v7493, 0.5
        %v7558 = vmul.f32 %v7494, 0.5
        %v7559 = vmul.f32 %v7495, 0.5
        %v7560 = vmul.f32 %v7496, 0.5
        %v7561 = vmul.f32 %v7497, 0.5
        %v7562 = vmul.f32 %v7498, 0.5
        %v7563 = vmul.f32 %v7499, 0.5
        %v7564 = vmul.f32 %v7500, 0.5
        %v7565 = vmul.f32 %v7501, 0.5
        %v7566 = vmul.f32 %v7502, 0.5
        %v7567 = vmul.f32 %v7503, 0.5
        %v7568 = vmul.f32 %v7504, 0.5
        %v7569 = vmul.f32 %v7505, 0.5
        %v7570 = vmul.f32 %v7506, 0.5
        %v7571 = vmul.f32 %v7507, 0.5
        %v7572 = vmul.f32 %v7508, 0.5
        %v7573 = vmul.f32 %v7509, 0.5
        %v7574 = vmul.f32 %v7510, 0.5
        %v7575 = vmul.f32 %v7511, 0.5
        %v7576 = vmul.f32 %v7512, 0.5
        %v7577 = vmul.f32 %v7513, 0.5
        %v7578 = vmul.f32 %v7514, 0.5
        %v7579 = vmul.f32 %v7515, 0.5
        %v7580 = vmul.f32 %v7516, 0.5
        %v7581 = vmul.f32 %v7517, 0.5
        %v7582 = vmul.f32 %v7518, 0.5
        %v7583 = vmul.f32 %v7519, 0.5
        %v7584 = vmul.f32 %v7520, 0.5
        %v7585 = vmul.f32 %v7521, 0.5
        %v7586 = vmul.f32 %v7522, 0.5
        %v7587 = vmul.f32 %v7523, 0.5
        %v7588 = vmul.f32 %v7524, 0.5
        %v7589 = vmul.f32 %v7525, 0.5
        %v7590 = vmul.f32 %v7526, 0.5
        %v7591 = vmul.f32 %v7527, 0.5
        %v7592 = vmul.f32 %v7528, 0.5
        %v7593 = vmul.f32 %v7529, 0.5
        %v7594 = vmul.f32 %v7530, 0.5
        %v7595 = vmul.f32 %v7531, 0.5
        %v7596 = vmul.f32 %v7532, 0.5
        %v7597 = vmul.f32 %v7533, 0.5
        %v7598 = vmul.f32 %v6832, %v7534
        %v7599 = vmul.f32 %v6835, %v7535
        %v7600 = vmul.f32 %v6840, %v7536
        %v7601 = vmul.f32 %v6843, %v7537
        %v7602 = vmul.f32 %v6848, %v7538
        %v7603 = vmul.f32 %v6851, %v7539
        %v7604 = vmul.f32 %v6856, %v7540
        %v7605 = vmul.f32 %v6859, %v7541
        %v7606 = vmul.f32 %v6864, %v7542
        %v7607 = vmul.f32 %v6867, %v7543
        %v7608 = vmul.f32 %v6872, %v7544
        %v7609 = vmul.f32 %v6875, %v7545
        %v7610 = vmul.f32 %v6880, %v7546
        %v7611 = vmul.f32 %v6883, %v7547
        %v7612 = vmul.f32 %v6888, %v7548
        %v7613 = vmul.f32 %v6891, %v7549
        %v7614 = vmul.f32 %v6896, %v7550
        %v7615 = vmul.f32 %v6899, %v7551
        %v7616 = vmul.f32 %v6904, %v7552
        %v7617 = vmul.f32 %v6907, %v7553
        %v7618 = vmul.f32 %v6912, %v7554
        %v7619 = vmul.f32 %v6915, %v7555
        %v7620 = vmul.f32 %v6920, %v7556
        %v7621 = vmul.f32 %v6923, %v7557
        %v7622 = vmul.f32 %v6928, %v7558
        %v7623 = vmul.f32 %v6931, %v7559
        %v7624 = vmul.f32 %v6936, %v7560
        %v7625 = vmul.f32 %v6939, %v7561
        %v7626 = vmul.f32 %v6944, %v7562
        %v7627 = vmul.f32 %v6947, %v7563
        %v7628 = vmul.f32 %v6952, %v7564
        %v7629 = vmul.f32 %v6955, %v7565
        %v7630 = vmul.f32 %v6960, %v7566
        %v7631 = vmul.f32 %v6963, %v7567
        %v7632 = vmul.f32 %v6968, %v7568
        %v7633 = vmul.f32 %v6971, %v7569
        %v7634 = vmul.f32 %v6976, %v7570
        %v7635 = vmul.f32 %v6979, %v7571
        %v7636 = vmul.f32 %v6984, %v7572
        %v7637 = vmul.f32 %v6987, %v7573
        %v7638 = vmul.f32 %v6992, %v7574
        %v7639 = vmul.f32 %v6995, %v7575
        %v7640 = vmul.f32 %v7000, %v7576
        %v7641 = vmul.f32 %v7003, %v7577
        %v7642 = vmul.f32 %v7008, %v7578
        %v7643 = vmul.f32 %v7011, %v7579
        %v7644 = vmul.f32 %v7016, %v7580
        %v7645 = vmul.f32 %v7019, %v7581
        %v7646 = vmul.f32 %v7024, %v7582
        %v7647 = vmul.f32 %v7027, %v7583
        %v7648 = vmul.f32 %v7032, %v7584
        %v7649 = vmul.f32 %v7035, %v7585
        %v7650 = vmul.f32 %v7040, %v7586
        %v7651 = vmul.f32 %v7043, %v7587
        %v7652 = vmul.f32 %v7048, %v7588
        %v7653 = vmul.f32 %v7051, %v7589
        %v7654 = vmul.f32 %v7056, %v7590
        %v7655 = vmul.f32 %v7059, %v7591
        %v7656 = vmul.f32 %v7064, %v7592
        %v7657 = vmul.f32 %v7067, %v7593
        %v7658 = vmul.f32 %v7072, %v7594
        %v7659 = vmul.f32 %v7075, %v7595
        %v7660 = vmul.f32 %v7080, %v7596
        %v7661 = vmul.f32 %v7083, %v7597
        %v7662 = vld [vmem:[%s12] sm:$0x1]
        %v7663 = vpack.c.bf16 %v7599, %v7598
        %v7664 = vpack.c.bf16 %v7601, %v7600
        %v7665 = vpack.c.bf16 %v7603, %v7602
        %v7666 = vpack.c.bf16 %v7605, %v7604
        %v7667 = vpack.c.bf16 %v7607, %v7606
        %v7668 = vpack.c.bf16 %v7609, %v7608
        %v7669 = vpack.c.bf16 %v7611, %v7610
        %v7670 = vpack.c.bf16 %v7613, %v7612
        %v7671 = vpack.c.bf16 %v7615, %v7614
        %v7672 = vpack.c.bf16 %v7617, %v7616
        %v7673 = vpack.c.bf16 %v7619, %v7618
        %v7674 = vpack.c.bf16 %v7621, %v7620
        %v7675 = vpack.c.bf16 %v7623, %v7622
        %v7676 = vpack.c.bf16 %v7625, %v7624
        %v7677 = vpack.c.bf16 %v7627, %v7626
        %v7678 = vpack.c.bf16 %v7629, %v7628
        %v7679 = vpack.c.bf16 %v7631, %v7630
        %v7680 = vpack.c.bf16 %v7633, %v7632
        %v7681 = vpack.c.bf16 %v7635, %v7634
        %v7682 = vpack.c.bf16 %v7637, %v7636
        %v7683 = vpack.c.bf16 %v7639, %v7638
        %v7684 = vpack.c.bf16 %v7641, %v7640
        %v7685 = vpack.c.bf16 %v7643, %v7642
        %v7686 = vpack.c.bf16 %v7645, %v7644
        %v7687 = vpack.c.bf16 %v7647, %v7646
        %v7688 = vpack.c.bf16 %v7649, %v7648
        %v7689 = vpack.c.bf16 %v7651, %v7650
        %v7690 = vpack.c.bf16 %v7653, %v7652
        %v7691 = vpack.c.bf16 %v7655, %v7654
        %v7692 = vpack.c.bf16 %v7657, %v7656
        %v7693 = vpack.c.bf16 %v7659, %v7658
        %v7694 = vpack.c.bf16 %v7661, %v7660
        %v7695 = vld [vmem:[#allocation2] sm:$0x1]
        %7697 = vset.pattern.permute.xlu0 0
        %7698 = vperm.xlu0 %7697, %v7695
        %v7699 = vpop.permute.xlu0 %7698
        %v7701 = vlaneseq
        %v7702 = vshrl.u32 %v7701, 7
        %v7703 = vsub.s32 0, %v7702
        %v7704 = vrot.slane %v7699, %v7703
        %vm7705 = vcmask 523264
        %v7707 = vsel %vm7705, %v7662, 0
        %v7710 = vsel %vm7705, %v7663, 0
        %v7713 = vsel %vm7705, %v7664, 0
        %v7716 = vsel %vm7705, %v7665, 0
        %v7719 = vsel %vm7705, %v7666, 0
        %v7722 = vsel %vm7705, %v7667, 0
        %v7725 = vsel %vm7705, %v7668, 0
        %v7728 = vsel %vm7705, %v7669, 0
        %v7731 = vsel %vm7705, %v7670, 0
        %v7734 = vsel %vm7705, %v7671, 0
        %v7737 = vsel %vm7705, %v7672, 0
        %v7740 = vsel %vm7705, %v7673, 0
        %v7743 = vsel %vm7705, %v7674, 0
        %v7746 = vsel %vm7705, %v7675, 0
        %v7749 = vsel %vm7705, %v7676, 0
        %v7752 = vsel %vm7705, %v7677, 0
        %v7755 = vsel %vm7705, %v7678, 0
        %v7758 = vsel %vm7705, %v7679, 0
        %v7761 = vsel %vm7705, %v7680, 0
        %v7764 = vsel %vm7705, %v7681, 0
        %v7767 = vsel %vm7705, %v7682, 0
        %v7770 = vsel %vm7705, %v7683, 0
        %v7773 = vsel %vm7705, %v7684, 0
        %v7776 = vsel %vm7705, %v7685, 0
        %v7779 = vsel %vm7705, %v7686, 0
        %v7782 = vsel %vm7705, %v7687, 0
        %v7785 = vsel %vm7705, %v7688, 0
        %v7788 = vsel %vm7705, %v7689, 0
        %v7791 = vsel %vm7705, %v7690, 0
        %v7794 = vsel %vm7705, %v7691, 0
        %v7797 = vsel %vm7705, %v7692, 0
        %v7800 = vsel %vm7705, %v7693, 0
        %v7803 = vsel %vm7705, %v7694, 0
        %7805 = vmatprep.subr.bf16.mxu0 0
        %7806 = vmatpush1.bf16.xpose.msra.mxu0 %v7710
        %7807 = vmatprep.subr.bf16.mxu0 0
        %7808 = vmatpush1.bf16.xpose.msra.mxu0 %v7713
        %7809 = vmatprep.subr.bf16.mxu0 0
        %7810 = vmatpush1.bf16.xpose.msra.mxu0 %v7716
        %7811 = vmatprep.subr.bf16.mxu0 0
        %7812 = vmatpush1.bf16.xpose.msra.mxu0 %v7719
        %7813 = vmatprep.subr.bf16.mxu0 0
        %7814 = vmatpush1.bf16.xpose.msra.mxu0 %v7722
        %7815 = vmatprep.subr.bf16.mxu0 0
        %7816 = vmatpush1.bf16.xpose.msra.mxu0 %v7725
        %7817 = vmatprep.subr.bf16.mxu0 0
        %7818 = vmatpush1.bf16.xpose.msra.mxu0 %v7728
        %7819 = vmatprep.subr.bf16.mxu0 0
        %7820 = vmatpush1.bf16.xpose.msra.mxu0 %v7731
        %7821 = vmatprep.subr.bf16.mxu0 0
        %7822 = vmatpush1.bf16.xpose.msra.mxu0 %v7734
        %7823 = vmatprep.subr.bf16.mxu0 0
        %7824 = vmatpush1.bf16.xpose.msra.mxu0 %v7737
        %7825 = vmatprep.subr.bf16.mxu0 0
        %7826 = vmatpush1.bf16.xpose.msra.mxu0 %v7740
        %7827 = vmatprep.subr.bf16.mxu0 0
        %7828 = vmatpush1.bf16.xpose.msra.mxu0 %v7743
        %7829 = vmatprep.subr.bf16.mxu0 0
        %7830 = vmatpush1.bf16.xpose.msra.mxu0 %v7746
        %7831 = vmatprep.subr.bf16.mxu0 0
        %7832 = vmatpush1.bf16.xpose.msra.mxu0 %v7749
        %7833 = vmatprep.subr.bf16.mxu0 0
        %7834 = vmatpush1.bf16.xpose.msra.mxu0 %v7752
        %7835 = vmatprep.subr.bf16.mxu0 0
        %7836 = vmatpush1.bf16.xpose.msra.mxu0 %v7755
        %7837 = vmatprep.mubr.bf16.mxu0 0
        %7838 = vmatmul.mubr.bf16.gmra.mrb[0].mxu0 %v7707
        %v7839 = vpop.f32.mrb[0].mxu0
        %v7840 = vadd.f32 %v7704, %v7839
        %v7841 = vpop.f32.mrb[0].mxu0
        %v7842 = vadd.f32 %v7704, %v7841
        %v7843 = vpop.f32.mrb[0].mxu0
        %v7844 = vpop.f32.mrb[0].mxu0
        %7845 = vdwg.mxu0
        %7846 = vmatprep.subr.bf16.mxu0 0
        %7847 = vmatpush1.bf16.xpose.msra.mxu0 %v7758
        %7848 = vmatprep.subr.bf16.mxu0 0
        %7849 = vmatpush1.bf16.xpose.msra.mxu0 %v7761
        %7850 = vmatprep.subr.bf16.mxu0 0
        %7851 = vmatpush1.bf16.xpose.msra.mxu0 %v7764
        %7852 = vmatprep.subr.bf16.mxu0 0
        %7853 = vmatpush1.bf16.xpose.msra.mxu0 %v7767
        %7854 = vmatprep.subr.bf16.mxu0 0
        %7855 = vmatpush1.bf16.xpose.msra.mxu0 %v7770
        %7856 = vmatprep.subr.bf16.mxu0 0
        %7857 = vmatpush1.bf16.xpose.msra.mxu0 %v7773
        %7858 = vmatprep.subr.bf16.mxu0 0
        %7859 = vmatpush1.bf16.xpose.msra.mxu0 %v7776
        %7860 = vmatprep.subr.bf16.mxu0 0
        %7861 = vmatpush1.bf16.xpose.msra.mxu0 %v7779
        %7862 = vmatprep.subr.bf16.mxu0 0
        %7863 = vmatpush1.bf16.xpose.msra.mxu0 %v7782
        %7864 = vmatprep.subr.bf16.mxu0 0
        %7865 = vmatpush1.bf16.xpose.msra.mxu0 %v7785
        %7866 = vmatprep.subr.bf16.mxu0 0
        %7867 = vmatpush1.bf16.xpose.msra.mxu0 %v7788
        %7868 = vmatprep.subr.bf16.mxu0 0
        %7869 = vmatpush1.bf16.xpose.msra.mxu0 %v7791
        %7870 = vmatprep.subr.bf16.mxu0 0
        %7871 = vmatpush1.bf16.xpose.msra.mxu0 %v7794
        %7872 = vmatprep.subr.bf16.mxu0 0
        %7873 = vmatpush1.bf16.xpose.msra.mxu0 %v7797
        %7874 = vmatprep.subr.bf16.mxu0 0
        %7875 = vmatpush1.bf16.xpose.msra.mxu0 %v7800
        %7876 = vmatprep.subr.bf16.mxu0 0
        %7877 = vmatpush1.bf16.xpose.msra.mxu0 %v7803
        %7878 = vmatprep.mubr.bf16.mxu0 0
        %7879 = vmatmul.mubr.bf16.gmra.mrb[0].mxu0 %v7707
        %v7880 = vpop.f32.mrb[0].mxu0
        %v7881 = vadd.f32 %v7704, %v7880
        %v7882 = vpop.f32.mrb[0].mxu0
        %v7883 = vadd.f32 %v7704, %v7882
        %v7884 = vpop.f32.mrb[0].mxu0
        %v7885 = vpop.f32.mrb[0].mxu0
        %7886 = vdwg.mxu0
        %v7887 = vxor.u32 %v7840, 2147483648
        %v7888 = vxor.u32 %v7842, 2147483648
        %v7889 = vxor.u32 %v7881, 2147483648
        %v7890 = vxor.u32 %v7883, 2147483648
        %v7891 = vmul.f32 %v7887, 1.442695
        %v7892 = vpow.pop %v7891
        %v7893 = vmul.f32 %v7888, 1.442695
        %v7894 = vpow.pop %v7893
        %v7895 = vmul.f32 %v7889, 1.442695
        %v7896 = vpow.pop %v7895
        %v7897 = vmul.f32 %v7890, 1.442695
        %v7898 = vpow.pop %v7897
        %v7899 = vadd.f32 %v7892, 1.0
        %v7900 = vadd.f32 %v7894, 1.0
        %v7901 = vadd.f32 %v7896, 1.0
        %v7902 = vadd.f32 %v7898, 1.0
        %v7903 = vrcp.pop %v7899
        %v7904 = vmul.f32 1.0, %v7903
        %v7905 = vrcp.pop %v7900
        %v7906 = vmul.f32 1.0, %v7905
        %v7907 = vrcp.pop %v7901
        %v7908 = vmul.f32 1.0, %v7907
        %v7909 = vrcp.pop %v7902
        %v7910 = vmul.f32 1.0, %v7909
        %v7915 = vcombine.low %v7904, %v7906
        %v7916 = vcombine.low %v7908, %v7910
        %v7918 = vunpack.c.l.s4 1966171168
        %v7919 = vunpack.c.0.s8 %v7918
        %v7920 = vlaneseq
        %v7921 = vshrl.u32 %v7920, 7
        %v7922 = vsub.s32 %v7919, %v7921
        %v7923 = vrot.slane %v7915, %v7922
        %v7925 = vunpack.c.l.s4 1966171168
        %v7926 = vunpack.c.0.s8 %v7925
        %v7927 = vlaneseq
        %v7928 = vshrl.u32 %v7927, 7
        %v7929 = vsub.s32 %v7926, %v7928
        %v7930 = vrot.slane %v7916, %v7929
        %v7931 = vcombine.low %v7923, %v7930
        %v7933 = vunpack.c.l.s4 1966171168
        %v7934 = vunpack.c.0.s8 %v7933
        %v7935 = vlaneseq
        %v7936 = vshrl.u32 %v7935, 7
        %v7937 = vsub.s32 %v7934, %v7936
        %v7938 = vrot.slane %v7931, %v7937
        %v7940 = vlaneseq
        %vm7941 = vcmp.ge.s32.totalorder %v7940, 0
        %vm7942 = vcmp.lt.s32.totalorder %v7940, 512
        %vm7943 = vmand %vm7941, %vm7942
        %7944 = vst.msk [vmem:[%s479] sm:$0xf] %vm7943, %v7938
        %s7945 = sand.u32 %s342, 1
        %s7946 = scalar_lea.sflag [#allocation4], %s7945
        %s7947 = sand.u32 %s342, 1
        %s7948 = smul.addr %s7947, 4
        %s7949 = scalar_lea.vmem [#allocation3], %s7948
        // Predicated region
        $region77: #{tpu_custom_call.1} parent=75 // pred_check
          %p7950 = pneg %p352
        $region78: #{tpu_custom_call.1} parent=75 // pred_check_branch
          %7952 = sbr.rel (%p7950) target = $region80
        $region79: #{tpu_custom_call.1} parent=75 // pred_region
          %s7953 = smul.u32 4, %s30
          %s7955 = ssub.s32 64, 64
          %7956 = vsyncadd %s7946, %s7955
          %s7957 = smul.addr %s7953, 16
          %s7958 = scalar_lea.hbm %s14, %s7957
          %s7960 = sshll.u32 %s7949, 4
          %s7961 = int_to_ptr.vmem [resolvable:$true] %s7960
          %7963 = dma.vmem_to_hbm [thread:$0]  %s7961, 64, %s7958, %s7946
        $region80: #{tpu_custom_call.1} parent=75 // pred_fallthru
          _
      $region76: #{tpu_custom_call.1} parent=5 // pred_fallthru
        _
      %p7964 = scmp.le.s32.totalorder 2, %s25
      // Predicated region
      $region81: #{tpu_custom_call.1} parent=5 // pred_check
        %p7965 = pneg %p7964
      $region82: #{tpu_custom_call.1} parent=5 // pred_check_branch
        %7967 = sbr.rel (%p7965) target = $region84
      $region83: #{tpu_custom_call.1} parent=5 // pred_region
        %s7968 = ssub.s32 %s25, 2
        // Predicated region
        $region85: #{tpu_custom_call.1} parent=83 // pred_check
          %p7969 = pneg %p358
        $region86: #{tpu_custom_call.1} parent=83 // pred_check_branch
          %7971 = sbr.rel (%p7969) target = $region88
        $region87: #{tpu_custom_call.1} parent=83 // pred_region
          %s7972 = sand.u32 %s343, 1
          %s7973 = scalar_lea.sflag [#allocation4], %s7972
          %s7974 = sand.u32 %s343, 1
          %s7975 = smul.addr %s7974, 4
          %s7976 = scalar_lea.vmem [#allocation3], %s7975
          %7977 = dma.done %s7973, 64
        $region88: #{tpu_custom_call.1} parent=83 // pred_fallthru
          _
      $region84: #{tpu_custom_call.1} parent=5 // pred_fallthru
        _
    $region6: #{tpu_custom_call.1} parent=1 // loop_footer
      %s29 = sadd.s32 1, %s25
    $region7: #{tpu_custom_call.1} parent=1 // loop_footer_branch
      %24 = sbr.rel target = $region3
    $region8: #{tpu_custom_call.1} parent=1 // loop_exit
      _
    %7978 = vsyncpa [#allocation4], 1
    %s7979 = scalar_lea.sflag [#allocation4], 1
    %7980 = vsyncpa %s7979, 1

</llo_original>
